<compile_context>
chip_gen: v7x
topology: tpu7x:2x2x1
jax: 0.10.0
libtpu: 0.0.40
codegen_flags: <defaults>
</compile_context>

<pallas_src>
import functools
import math

import jax
import jax.numpy as jnp
from jax.experimental import pallas as pl
from jax.experimental.pallas import tpu as pltpu

HIDDEN = 256


# ----------------------------------------------------------------------------
# Generation-aware VMEM budget (v5e/v6e: 128 MiB physical, v7x: 64 MiB).
# ----------------------------------------------------------------------------
def _vmem_budget(request_bytes):
    cap = None
    try:
        cap = getattr(pltpu.get_tpu_info(), "vmem_capacity_bytes", None)
    except Exception:
        cap = None
    if not cap:
        cap = 64 * 1024 * 1024          # conservative (v7x-sized) fallback
    return int(min(request_bytes, cap - cap // 8))   # keep ~12.5% headroom


# ----------------------------------------------------------------------------
# Kernel 1: relation-weighted per-edge MLP, lane-dense (edges on lanes).
#   adj_ref : (R, bc) VMEM      w1t_ref : (HIDDEN, R) VMEM
#   b1_ref  : (HIDDEN, 1) VMEM  w2c_ref : (HIDDEN, 1) VMEM
#   b2_ref  : (1, 1) SMEM       o_ref   : (1, bc) VMEM
# ----------------------------------------------------------------------------
def _edge_mlp_kernel(adj_ref, w1t_ref, b1_ref, w2c_ref, b2_ref, o_ref, *,
                     relations, hidden, chunk):
    bc = o_ref.shape[1]
    # Hoist the R adjacency rows ((1, bc) lane-dense vectors) once per block.
    a_rows = [adj_ref[r:r + 1, :] for r in range(relations)]
    out = jnp.zeros((1, bc), jnp.float32)
    # HIDDEN processed in 8-row chunks: rank-R contraction as VPU FMAs (MXU
    # would be ~3% utilized on K=4), ReLU and the w2 reduction fused so the
    # (HIDDEN, bc) activation never round-trips through VMEM.
    for c in range(hidden // chunk):
        lo = c * chunk
        w1c = w1t_ref[lo:lo + chunk, :]            # (chunk, R)
        b1c = b1_ref[lo:lo + chunk, :]             # (chunk, 1)
        w2c = w2c_ref[lo:lo + chunk, :]            # (chunk, 1)
        h = w1c[:, 0:1] * a_rows[0]                # (chunk, bc)
        for r in range(1, relations):
            h = h + w1c[:, r:r + 1] * a_rows[r]    # VPU broadcast-FMA
        h = jnp.maximum(h + b1c, 0.0)              # bias + ReLU
        out = out + jnp.sum(w2c * h, axis=0, keepdims=True)
    o_ref[...] = out + b2_ref[0, 0]


def _pick_block_cols(m, max_bc):
    if m <= max_bc:
        return m
    bc = (max_bc // 128) * 128
    while bc >= 128:
        if m % bc == 0:
            return bc
        bc -= 128
    return m       # no aligned divisor: fall back to a single block


def edge_mlp(adj_flat, w1t, b1_col, w2_col, b2, *, max_block_cols=1024, chunk=8):
    hid, r = w1t.shape
    _, m = adj_flat.shape
    assert hid % chunk == 0
    bc = _pick_block_cols(m, max_block_cols)
    kern = functools.partial(_edge_mlp_kernel, relations=r, hidden=hid, chunk=chunk)
    return pl.pallas_call(
        kern,
        out_shape=jax.ShapeDtypeStruct((1, m), jnp.float32),
        grid_spec=pltpu.PrefetchScalarGridSpec(
            num_scalar_prefetch=0,
            grid=(m // bc,),
            in_specs=[
                pl.BlockSpec((r, bc), lambda i: (0, i)),
                pl.BlockSpec((hid, r), lambda i: (0, 0)),
                pl.BlockSpec((hid, 1), lambda i: (0, 0)),
                pl.BlockSpec((hid, 1), lambda i: (0, 0)),
                pl.BlockSpec(memory_space=pltpu.MemorySpace.SMEM),   # b2 scalar
            ],
            out_specs=pl.BlockSpec((1, bc), lambda i: (0, i)),
        ),
        compiler_params=pltpu.CompilerParams(
            dimension_semantics=("parallel",),
            vmem_limit_bytes=_vmem_budget(32 * 1024 * 1024),
        ),
    )(adj_flat, w1t, b1_col, w2_col, b2)


# ----------------------------------------------------------------------------
# Kernel 2 (fused, row-blocked): communicability series A + sum_{k=2..P} A^k/k!
# for the block's rows, masked-row gather (one-hot matmul) and soft-target
# cross-entropy partials.
#   mask_ref : (K, 1) int32   a_ref : (N, N)   y_ref : (K, N)
#   loss_ref : (1, 8, 128)    m_ref : (row_block, N)
# ----------------------------------------------------------------------------
def _comm_loss_kernel(mask_ref, a_ref, y_ref, loss_ref, m_ref, *,
                      power, n_mask, row_block, n_chains, series_bf16):
    i = pl.program_id(0)
    row0 = pl.multiple_of(i * row_block, 8)

    a = a_ref[...]                                         # (N, N), full
    a_dot = a.astype(jnp.bfloat16) if series_bf16 else a

    # n_chains independent sub-row chains -> overlapping MXU matmuls per step.
    sub = row_block // n_chains
    ps = [a_ref[pl.ds(pl.multiple_of(row0 + c * sub, 8), sub), :]
          for c in range(n_chains)]
    accs = list(ps)                                        # A^1 term per chain
    for k in range(2, power + 1):
        inv_k = 1.0 / k                                    # p carries 1/k!
        nxt = []
        for c in range(n_chains):
            lhs = ps[c].astype(jnp.bfloat16) if series_bf16 else ps[c]
            pk = jnp.dot(lhs, a_dot, preferred_element_type=jnp.float32) * inv_k
            accs[c] = accs[c] + pk
            nxt.append(pk)
        ps = nxt
    for c in range(n_chains):
        m_ref[c * sub:(c + 1) * sub, :] = accs[c]

    # Gather the mask rows owned by this block via a one-hot matmul.
    acc_blk = m_ref[...]                                   # (row_block, N)
    mask = mask_ref[...]                                   # (K, 1) int32
    owned = jnp.logical_and(mask >= row0, mask < row0 + row_block)
    local = mask - row0
    col_ids = jax.lax.broadcasted_iota(jnp.int32, (n_mask, row_block), 1)
    one_hot = jnp.logical_and(col_ids == local, owned).astype(jnp.float32)
    pred = jnp.dot(one_hot, acc_blk, preferred_element_type=jnp.float32)  # (K, N)

    # softmax(y, -1): exact divide on the label path (per correctness review).
    y = y_ref[...]
    y_m = jnp.max(y, axis=-1, keepdims=True)
    y_e = jnp.exp(y - y_m)
    y_soft = y_e / jnp.sum(y_e, axis=-1, keepdims=True)
    # log_softmax(pred, -1)
    p_m = jnp.max(pred, axis=-1, keepdims=True)
    p_sh = pred - p_m
    lse = jnp.log(jnp.sum(jnp.exp(p_sh), axis=-1, keepdims=True))
    logp = p_sh - lse
    per_row = -jnp.sum(y_soft * logp, axis=-1, keepdims=True)             # (K, 1)
    per_row = jnp.where(owned, per_row, 0.0)              # drop rows other block owns
    partial = jnp.sum(per_row) * (1.0 / n_mask)
    loss_ref[...] = jnp.zeros(loss_ref.shape, jnp.float32) + partial


def comm_gather_loss(mask2d, a, y_sel, *, power, row_blocks, n_chains, series_bf16):
    N = a.shape[0]
    K = mask2d.shape[0]
    row_block = N // row_blocks
    kern = functools.partial(_comm_loss_kernel, power=power, n_mask=K,
                             row_block=row_block, n_chains=n_chains,
                             series_bf16=series_bf16)
    return pl.pallas_call(
        kern,
        out_shape=(
            jax.ShapeDtypeStruct((row_blocks, 8, 128), jnp.float32),  # loss partials
            jax.ShapeDtypeStruct((N, N), jnp.float32),                # communicability
        ),
        grid_spec=pltpu.PrefetchScalarGridSpec(
            num_scalar_prefetch=0,
            grid=(row_blocks,),
            in_specs=[
                pl.BlockSpec((K, 1), lambda i: (0, 0)),
                pl.BlockSpec((N, N), lambda i: (0, 0)),
                pl.BlockSpec((K, N), lambda i: (0, 0)),
            ],
            out_specs=(
                pl.BlockSpec((1, 8, 128), lambda i: (i, 0, 0)),
                pl.BlockSpec((row_block, N), lambda i: (i, 0)),
            ),
        ),
        compiler_params=pltpu.CompilerParams(
            dimension_semantics=("parallel",),            # v7x: 2-TC row split
            vmem_limit_bytes=_vmem_budget(112 * 1024 * 1024),
        ),
    )(mask2d, a, y_sel)


# ----------------------------------------------------------------------------
# Full forward (wrapper glue: free reshapes, tiny weight folding, K-row gather)
# ----------------------------------------------------------------------------
def dnn_influence_forward(adj, target, mask_idx, params, c_degree=8, *,
                          row_blocks=2, n_chains=2, series_bf16=False):
    R, N, _ = adj.shape
    # relation_weight = emb(arange(R)); w = w + w.min(); folded into W1.
    w = params["rel_emb"].reshape(-1)
    w = w + jnp.min(w)
    w1t_eff = jnp.transpose(params["w1"] * w[:, None])    # (HIDDEN, R)
    b1_col = params["b1"].reshape(-1, 1)                  # (HIDDEN, 1)
    w2_col = params["w2"].reshape(-1, 1)                  # (HIDDEN, 1)
    b2 = params["b2"].reshape(1, 1)

    adj_flat = adj.reshape(R, N * N)                      # free reshape
    a_flat = edge_mlp(adj_flat, w1t_eff, b1_col, w2_col, b2)   # (1, N*N)
    a = a_flat.reshape(N, N)                              # free reshape

    if N % (row_blocks * 8) != 0:
        row_blocks = 1
    if (N // row_blocks) % (n_chains * 8) != 0:
        n_chains = 1

    mask2d = mask_idx.astype(jnp.int32).reshape(-1, 1)
    y_sel = target[mask_idx]                              # tiny (K, N) gather (XLA)
    loss_parts, m = comm_gather_loss(
        mask2d, a, y_sel, power=c_degree, row_blocks=row_blocks,
        n_chains=n_chains, series_bf16=series_bf16)
    loss = jnp.sum(loss_parts[:, 0, 0])
    return loss, m


# ----------------------------------------------------------------------------
# Pure-JAX reference for a sanity check
# ----------------------------------------------------------------------------
def reference_forward(adj, target, mask_idx, params, c_degree=8):
    R, N, _ = adj.shape
    w = params["rel_emb"].reshape(-1)
    w = w + jnp.min(w)
    wi = adj * w.reshape(-1, 1, 1)
    wi = jnp.transpose(wi, (1, 2, 0))                     # (N, N, R)
    h = jnp.maximum(wi @ params["w1"] + params["b1"][0], 0.0)
    a = (h @ params["w2"] + params["b2"][0])[..., 0]      # (N, N)
    acc, p = a, a
    for i in range(2, c_degree + 1):
        p = p @ a
        acc = acc + p / math.factorial(i)
    pred = acc[mask_idx]
    y = target[mask_idx]
    y_soft = jax.nn.softmax(y, axis=-1)
    logp = jax.nn.log_softmax(pred, axis=-1)
    loss = jnp.mean(-jnp.sum(y_soft * logp, axis=-1))
    return loss, acc


if __name__ == "__main__":
    R, N = 4, 64        # num_relations, nodes
    C_DEG = 8

    key = jax.random.PRNGKey(0)
    k1, k2, k3, k4, kadj, ktgt = jax.random.split(key, 6)

    # Parameters (deterministic synthetic init; embedding uses nn.init.constant_(1)).
    b1_bound = 1.0 / math.sqrt(R)
    b2_bound = 1.0 / math.sqrt(HIDDEN)
    params = {
        "rel_emb": jnp.ones((R, 1), jnp.float32),
        "w1": jax.random.uniform(k1, (R, HIDDEN), jnp.float32, -b1_bound, b1_bound),
        "b1": jax.random.uniform(k2, (1, HIDDEN), jnp.float32, -b1_bound, b1_bound),
        "w2": jax.random.uniform(k3, (HIDDEN, 1), jnp.float32, -b2_bound, b2_bound),
        "b2": jax.random.uniform(k4, (1, 1), jnp.float32, -b2_bound, b2_bound),
    }

    # Inputs: sparse-ish multi-relational adjacency, dense target scores.
    adj = (jax.random.uniform(kadj, (R, N, N)) < 0.1).astype(jnp.float32)
    target = jax.random.uniform(ktgt, (N, N), jnp.float32)
    mask_idx = jnp.array([0, 5, 9, 13, 21, 34, 47, 55], dtype=jnp.int32)

    loss, m = dnn_influence_forward(adj, target, mask_idx, params, c_degree=C_DEG)
    jax.block_until_ready((loss, m))

    loss_ref, m_ref = reference_forward(adj, target, mask_idx, params, c_degree=C_DEG)
    rel_err = jnp.linalg.norm(m - m_ref) / (jnp.linalg.norm(m_ref) + 1e-12)
    assert jnp.isfinite(loss), "loss is not finite"
    assert rel_err < 2e-2, f"communicability matrix mismatch: rel_err={rel_err}"
    assert abs(float(loss) - float(loss_ref)) < 2e-2 * (abs(float(loss_ref)) + 1.0), \
        f"loss mismatch: {loss} vs {loss_ref}"

    print("KERNEL_OK")
</pallas_src>

<mosaic_0001>
module attributes {stable_mosaic.version = 11 : i64} {
  func.func @_edge_mlp_kernel(%arg0: i32, %arg1: memref<4x1024xf32, #tpu.memory_space<vmem>>, %arg2: memref<256x4xf32, #tpu.memory_space<vmem>>, %arg3: memref<256x1xf32, #tpu.memory_space<vmem>>, %arg4: memref<256x1xf32, #tpu.memory_space<vmem>>, %arg5: memref<1x1xf32, #tpu.memory_space<smem>>, %arg6: memref<1x1024xf32, #tpu.memory_space<vmem>>) attributes {dimension_semantics = [#tpu.dimension_semantics<parallel>], iteration_bounds = array<i64: 4>, scalar_prefetch = 0 : i64, scratch_operands = 0 : i64, tpu.core_type = #tpu.core_type<tc>, window_params = [{transform_indices = @transform_0, window_bounds = array<i64: 4, 1024>}, {pipeline_mode = #tpu.pipeline_mode<synchronous>, transform_indices = @transform_1, window_bounds = array<i64: 256, 4>}, {pipeline_mode = #tpu.pipeline_mode<synchronous>, transform_indices = @transform_2, window_bounds = array<i64: 256, 1>}, {pipeline_mode = #tpu.pipeline_mode<synchronous>, transform_indices = @transform_3, window_bounds = array<i64: 256, 1>}, {transform_indices = @transform_4, window_bounds = array<i64: 1, 1>}, {transform_indices = @transform_5, window_bounds = array<i64: 1, 1024>}]} {
    %c0 = arith.constant 0 : index
    %c0_0 = arith.constant 0 : index
    %0 = vector.load %arg1[%c0, %c0_0] : memref<4x1024xf32, #tpu.memory_space<vmem>>, vector<1x1024xf32>
    %c1 = arith.constant 1 : index
    %c0_1 = arith.constant 0 : index
    %1 = vector.load %arg1[%c1, %c0_1] : memref<4x1024xf32, #tpu.memory_space<vmem>>, vector<1x1024xf32>
    %c2 = arith.constant 2 : index
    %c0_2 = arith.constant 0 : index
    %2 = vector.load %arg1[%c2, %c0_2] : memref<4x1024xf32, #tpu.memory_space<vmem>>, vector<1x1024xf32>
    %c3 = arith.constant 3 : index
    %c0_3 = arith.constant 0 : index
    %3 = vector.load %arg1[%c3, %c0_3] : memref<4x1024xf32, #tpu.memory_space<vmem>>, vector<1x1024xf32>
    %cst = arith.constant 0.000000e+00 : f32
    %4 = vector.broadcast %cst : f32 to vector<1x1024xf32>
    %c0_4 = arith.constant 0 : index
    %c0_5 = arith.constant 0 : index
    %5 = vector.load %arg2[%c0_4, %c0_5] : memref<256x4xf32, #tpu.memory_space<vmem>>, vector<8x4xf32>
    %c0_6 = arith.constant 0 : index
    %c0_7 = arith.constant 0 : index
    %6 = vector.load %arg3[%c0_6, %c0_7] : memref<256x1xf32, #tpu.memory_space<vmem>>, vector<8x1xf32>
    %c0_8 = arith.constant 0 : index
    %c0_9 = arith.constant 0 : index
    %7 = vector.load %arg4[%c0_8, %c0_9] : memref<256x1xf32, #tpu.memory_space<vmem>>, vector<8x1xf32>
    %8 = vector.extract_strided_slice %5 {offsets = [0, 0], sizes = [8, 1], strides = [1, 1]} : vector<8x4xf32> to vector<8x1xf32>
    %9 = vector.broadcast %8 : vector<8x1xf32> to vector<8x1024xf32>
    %10 = vector.broadcast %0 : vector<1x1024xf32> to vector<8x1024xf32>
    %11 = arith.mulf %9, %10 : vector<8x1024xf32>
    %12 = vector.extract_strided_slice %5 {offsets = [0, 1], sizes = [8, 1], strides = [1, 1]} : vector<8x4xf32> to vector<8x1xf32>
    %13 = vector.broadcast %12 : vector<8x1xf32> to vector<8x1024xf32>
    %14 = vector.broadcast %1 : vector<1x1024xf32> to vector<8x1024xf32>
    %15 = arith.mulf %13, %14 : vector<8x1024xf32>
    %16 = arith.addf %11, %15 : vector<8x1024xf32>
    %17 = vector.extract_strided_slice %5 {offsets = [0, 2], sizes = [8, 1], strides = [1, 1]} : vector<8x4xf32> to vector<8x1xf32>
    %18 = vector.broadcast %17 : vector<8x1xf32> to vector<8x1024xf32>
    %19 = vector.broadcast %2 : vector<1x1024xf32> to vector<8x1024xf32>
    %20 = arith.mulf %18, %19 : vector<8x1024xf32>
    %21 = arith.addf %16, %20 : vector<8x1024xf32>
    %22 = vector.extract_strided_slice %5 {offsets = [0, 3], sizes = [8, 1], strides = [1, 1]} : vector<8x4xf32> to vector<8x1xf32>
    %23 = vector.broadcast %22 : vector<8x1xf32> to vector<8x1024xf32>
    %24 = vector.broadcast %3 : vector<1x1024xf32> to vector<8x1024xf32>
    %25 = arith.mulf %23, %24 : vector<8x1024xf32>
    %26 = arith.addf %21, %25 : vector<8x1024xf32>
    %27 = vector.broadcast %6 : vector<8x1xf32> to vector<8x1024xf32>
    %28 = arith.addf %26, %27 : vector<8x1024xf32>
    %cst_10 = arith.constant 0.000000e+00 : f32
    %29 = vector.broadcast %cst_10 : f32 to vector<8x1024xf32>
    %30 = arith.maximumf %28, %29 : vector<8x1024xf32>
    %31 = vector.broadcast %7 : vector<8x1xf32> to vector<8x1024xf32>
    %32 = arith.mulf %31, %30 : vector<8x1024xf32>
    %cst_11 = arith.constant dense<0.000000e+00> : vector<1024xf32>
    %33 = vector.multi_reduction <add>, %32, %cst_11 [0] : vector<8x1024xf32> to vector<1024xf32>
    %34 = vector.shape_cast %33 : vector<1024xf32> to vector<1x1024xf32>
    %35 = arith.addf %4, %34 : vector<1x1024xf32>
    %c8 = arith.constant 8 : index
    %c0_12 = arith.constant 0 : index
    %36 = vector.load %arg2[%c8, %c0_12] : memref<256x4xf32, #tpu.memory_space<vmem>>, vector<8x4xf32>
    %c8_13 = arith.constant 8 : index
    %c0_14 = arith.constant 0 : index
    %37 = vector.load %arg3[%c8_13, %c0_14] : memref<256x1xf32, #tpu.memory_space<vmem>>, vector<8x1xf32>
    %c8_15 = arith.constant 8 : index
    %c0_16 = arith.constant 0 : index
    %38 = vector.load %arg4[%c8_15, %c0_16] : memref<256x1xf32, #tpu.memory_space<vmem>>, vector<8x1xf32>
    %39 = vector.extract_strided_slice %36 {offsets = [0, 0], sizes = [8, 1], strides = [1, 1]} : vector<8x4xf32> to vector<8x1xf32>
    %40 = vector.broadcast %39 : vector<8x1xf32> to vector<8x1024xf32>
    %41 = vector.broadcast %0 : vector<1x1024xf32> to vector<8x1024xf32>
    %42 = arith.mulf %40, %41 : vector<8x1024xf32>
    %43 = vector.extract_strided_slice %36 {offsets = [0, 1], sizes = [8, 1], strides = [1, 1]} : vector<8x4xf32> to vector<8x1xf32>
    %44 = vector.broadcast %43 : vector<8x1xf32> to vector<8x1024xf32>
    %45 = vector.broadcast %1 : vector<1x1024xf32> to vector<8x1024xf32>
    %46 = arith.mulf %44, %45 : vector<8x1024xf32>
    %47 = arith.addf %42, %46 : vector<8x1024xf32>
    %48 = vector.extract_strided_slice %36 {offsets = [0, 2], sizes = [8, 1], strides = [1, 1]} : vector<8x4xf32> to vector<8x1xf32>
    %49 = vector.broadcast %48 : vector<8x1xf32> to vector<8x1024xf32>
    %50 = vector.broadcast %2 : vector<1x1024xf32> to vector<8x1024xf32>
    %51 = arith.mulf %49, %50 : vector<8x1024xf32>
    %52 = arith.addf %47, %51 : vector<8x1024xf32>
    %53 = vector.extract_strided_slice %36 {offsets = [0, 3], sizes = [8, 1], strides = [1, 1]} : vector<8x4xf32> to vector<8x1xf32>
    %54 = vector.broadcast %53 : vector<8x1xf32> to vector<8x1024xf32>
    %55 = vector.broadcast %3 : vector<1x1024xf32> to vector<8x1024xf32>
    %56 = arith.mulf %54, %55 : vector<8x1024xf32>
    %57 = arith.addf %52, %56 : vector<8x1024xf32>
    %58 = vector.broadcast %37 : vector<8x1xf32> to vector<8x1024xf32>
    %59 = arith.addf %57, %58 : vector<8x1024xf32>
    %cst_17 = arith.constant 0.000000e+00 : f32
    %60 = vector.broadcast %cst_17 : f32 to vector<8x1024xf32>
    %61 = arith.maximumf %59, %60 : vector<8x1024xf32>
    %62 = vector.broadcast %38 : vector<8x1xf32> to vector<8x1024xf32>
    %63 = arith.mulf %62, %61 : vector<8x1024xf32>
    %cst_18 = arith.constant dense<0.000000e+00> : vector<1024xf32>
    %64 = vector.multi_reduction <add>, %63, %cst_18 [0] : vector<8x1024xf32> to vector<1024xf32>
    %65 = vector.shape_cast %64 : vector<1024xf32> to vector<1x1024xf32>
    %66 = arith.addf %35, %65 : vector<1x1024xf32>
    %c16 = arith.constant 16 : index
    %c0_19 = arith.constant 0 : index
    %67 = vector.load %arg2[%c16, %c0_19] : memref<256x4xf32, #tpu.memory_space<vmem>>, vector<8x4xf32>
    %c16_20 = arith.constant 16 : index
    %c0_21 = arith.constant 0 : index
    %68 = vector.load %arg3[%c16_20, %c0_21] : memref<256x1xf32, #tpu.memory_space<vmem>>, vector<8x1xf32>
    %c16_22 = arith.constant 16 : index
    %c0_23 = arith.constant 0 : index
    %69 = vector.load %arg4[%c16_22, %c0_23] : memref<256x1xf32, #tpu.memory_space<vmem>>, vector<8x1xf32>
    %70 = vector.extract_strided_slice %67 {offsets = [0, 0], sizes = [8, 1], strides = [1, 1]} : vector<8x4xf32> to vector<8x1xf32>
    %71 = vector.broadcast %70 : vector<8x1xf32> to vector<8x1024xf32>
    %72 = vector.broadcast %0 : vector<1x1024xf32> to vector<8x1024xf32>
    %73 = arith.mulf %71, %72 : vector<8x1024xf32>
    %74 = vector.extract_strided_slice %67 {offsets = [0, 1], sizes = [8, 1], strides = [1, 1]} : vector<8x4xf32> to vector<8x1xf32>
    %75 = vector.broadcast %74 : vector<8x1xf32> to vector<8x1024xf32>
    %76 = vector.broadcast %1 : vector<1x1024xf32> to vector<8x1024xf32>
    %77 = arith.mulf %75, %76 : vector<8x1024xf32>
    %78 = arith.addf %73, %77 : vector<8x1024xf32>
    %79 = vector.extract_strided_slice %67 {offsets = [0, 2], sizes = [8, 1], strides = [1, 1]} : vector<8x4xf32> to vector<8x1xf32>
    %80 = vector.broadcast %79 : vector<8x1xf32> to vector<8x1024xf32>
    %81 = vector.broadcast %2 : vector<1x1024xf32> to vector<8x1024xf32>
    %82 = arith.mulf %80, %81 : vector<8x1024xf32>
    %83 = arith.addf %78, %82 : vector<8x1024xf32>
    %84 = vector.extract_strided_slice %67 {offsets = [0, 3], sizes = [8, 1], strides = [1, 1]} : vector<8x4xf32> to vector<8x1xf32>
    %85 = vector.broadcast %84 : vector<8x1xf32> to vector<8x1024xf32>
    %86 = vector.broadcast %3 : vector<1x1024xf32> to vector<8x1024xf32>
    %87 = arith.mulf %85, %86 : vector<8x1024xf32>
    %88 = arith.addf %83, %87 : vector<8x1024xf32>
    %89 = vector.broadcast %68 : vector<8x1xf32> to vector<8x1024xf32>
    %90 = arith.addf %88, %89 : vector<8x1024xf32>
    %cst_24 = arith.constant 0.000000e+00 : f32
    %91 = vector.broadcast %cst_24 : f32 to vector<8x1024xf32>
    %92 = arith.maximumf %90, %91 : vector<8x1024xf32>
    %93 = vector.broadcast %69 : vector<8x1xf32> to vector<8x1024xf32>
    %94 = arith.mulf %93, %92 : vector<8x1024xf32>
    %cst_25 = arith.constant dense<0.000000e+00> : vector<1024xf32>
    %95 = vector.multi_reduction <add>, %94, %cst_25 [0] : vector<8x1024xf32> to vector<1024xf32>
    %96 = vector.shape_cast %95 : vector<1024xf32> to vector<1x1024xf32>
    %97 = arith.addf %66, %96 : vector<1x1024xf32>
    %c24 = arith.constant 24 : index
    %c0_26 = arith.constant 0 : index
    %98 = vector.load %arg2[%c24, %c0_26] : memref<256x4xf32, #tpu.memory_space<vmem>>, vector<8x4xf32>
    %c24_27 = arith.constant 24 : index
    %c0_28 = arith.constant 0 : index
    %99 = vector.load %arg3[%c24_27, %c0_28] : memref<256x1xf32, #tpu.memory_space<vmem>>, vector<8x1xf32>
    %c24_29 = arith.constant 24 : index
    %c0_30 = arith.constant 0 : index
    %100 = vector.load %arg4[%c24_29, %c0_30] : memref<256x1xf32, #tpu.memory_space<vmem>>, vector<8x1xf32>
    %101 = vector.extract_strided_slice %98 {offsets = [0, 0], sizes = [8, 1], strides = [1, 1]} : vector<8x4xf32> to vector<8x1xf32>
    %102 = vector.broadcast %101 : vector<8x1xf32> to vector<8x1024xf32>
    %103 = vector.broadcast %0 : vector<1x1024xf32> to vector<8x1024xf32>
    %104 = arith.mulf %102, %103 : vector<8x1024xf32>
    %105 = vector.extract_strided_slice %98 {offsets = [0, 1], sizes = [8, 1], strides = [1, 1]} : vector<8x4xf32> to vector<8x1xf32>
    %106 = vector.broadcast %105 : vector<8x1xf32> to vector<8x1024xf32>
    %107 = vector.broadcast %1 : vector<1x1024xf32> to vector<8x1024xf32>
    %108 = arith.mulf %106, %107 : vector<8x1024xf32>
    %109 = arith.addf %104, %108 : vector<8x1024xf32>
    %110 = vector.extract_strided_slice %98 {offsets = [0, 2], sizes = [8, 1], strides = [1, 1]} : vector<8x4xf32> to vector<8x1xf32>
    %111 = vector.broadcast %110 : vector<8x1xf32> to vector<8x1024xf32>
    %112 = vector.broadcast %2 : vector<1x1024xf32> to vector<8x1024xf32>
    %113 = arith.mulf %111, %112 : vector<8x1024xf32>
    %114 = arith.addf %109, %113 : vector<8x1024xf32>
    %115 = vector.extract_strided_slice %98 {offsets = [0, 3], sizes = [8, 1], strides = [1, 1]} : vector<8x4xf32> to vector<8x1xf32>
    %116 = vector.broadcast %115 : vector<8x1xf32> to vector<8x1024xf32>
    %117 = vector.broadcast %3 : vector<1x1024xf32> to vector<8x1024xf32>
    %118 = arith.mulf %116, %117 : vector<8x1024xf32>
    %119 = arith.addf %114, %118 : vector<8x1024xf32>
    %120 = vector.broadcast %99 : vector<8x1xf32> to vector<8x1024xf32>
    %121 = arith.addf %119, %120 : vector<8x1024xf32>
    %cst_31 = arith.constant 0.000000e+00 : f32
    %122 = vector.broadcast %cst_31 : f32 to vector<8x1024xf32>
    %123 = arith.maximumf %121, %122 : vector<8x1024xf32>
    %124 = vector.broadcast %100 : vector<8x1xf32> to vector<8x1024xf32>
    %125 = arith.mulf %124, %123 : vector<8x1024xf32>
    %cst_32 = arith.constant dense<0.000000e+00> : vector<1024xf32>
    %126 = vector.multi_reduction <add>, %125, %cst_32 [0] : vector<8x1024xf32> to vector<1024xf32>
    %127 = vector.shape_cast %126 : vector<1024xf32> to vector<1x1024xf32>
    %128 = arith.addf %97, %127 : vector<1x1024xf32>
    %c32 = arith.constant 32 : index
    %c0_33 = arith.constant 0 : index
    %129 = vector.load %arg2[%c32, %c0_33] : memref<256x4xf32, #tpu.memory_space<vmem>>, vector<8x4xf32>
    %c32_34 = arith.constant 32 : index
    %c0_35 = arith.constant 0 : index
    %130 = vector.load %arg3[%c32_34, %c0_35] : memref<256x1xf32, #tpu.memory_space<vmem>>, vector<8x1xf32>
    %c32_36 = arith.constant 32 : index
    %c0_37 = arith.constant 0 : index
    %131 = vector.load %arg4[%c32_36, %c0_37] : memref<256x1xf32, #tpu.memory_space<vmem>>, vector<8x1xf32>
    %132 = vector.extract_strided_slice %129 {offsets = [0, 0], sizes = [8, 1], strides = [1, 1]} : vector<8x4xf32> to vector<8x1xf32>
    %133 = vector.broadcast %132 : vector<8x1xf32> to vector<8x1024xf32>
    %134 = vector.broadcast %0 : vector<1x1024xf32> to vector<8x1024xf32>
    %135 = arith.mulf %133, %134 : vector<8x1024xf32>
    %136 = vector.extract_strided_slice %129 {offsets = [0, 1], sizes = [8, 1], strides = [1, 1]} : vector<8x4xf32> to vector<8x1xf32>
    %137 = vector.broadcast %136 : vector<8x1xf32> to vector<8x1024xf32>
    %138 = vector.broadcast %1 : vector<1x1024xf32> to vector<8x1024xf32>
    %139 = arith.mulf %137, %138 : vector<8x1024xf32>
    %140 = arith.addf %135, %139 : vector<8x1024xf32>
    %141 = vector.extract_strided_slice %129 {offsets = [0, 2], sizes = [8, 1], strides = [1, 1]} : vector<8x4xf32> to vector<8x1xf32>
    %142 = vector.broadcast %141 : vector<8x1xf32> to vector<8x1024xf32>
    %143 = vector.broadcast %2 : vector<1x1024xf32> to vector<8x1024xf32>
    %144 = arith.mulf %142, %143 : vector<8x1024xf32>
    %145 = arith.addf %140, %144 : vector<8x1024xf32>
    %146 = vector.extract_strided_slice %129 {offsets = [0, 3], sizes = [8, 1], strides = [1, 1]} : vector<8x4xf32> to vector<8x1xf32>
    %147 = vector.broadcast %146 : vector<8x1xf32> to vector<8x1024xf32>
    %148 = vector.broadcast %3 : vector<1x1024xf32> to vector<8x1024xf32>
    %149 = arith.mulf %147, %148 : vector<8x1024xf32>
    %150 = arith.addf %145, %149 : vector<8x1024xf32>
    %151 = vector.broadcast %130 : vector<8x1xf32> to vector<8x1024xf32>
    %152 = arith.addf %150, %151 : vector<8x1024xf32>
    %cst_38 = arith.constant 0.000000e+00 : f32
    %153 = vector.broadcast %cst_38 : f32 to vector<8x1024xf32>
    %154 = arith.maximumf %152, %153 : vector<8x1024xf32>
    %155 = vector.broadcast %131 : vector<8x1xf32> to vector<8x1024xf32>
    %156 = arith.mulf %155, %154 : vector<8x1024xf32>
    %cst_39 = arith.constant dense<0.000000e+00> : vector<1024xf32>
    %157 = vector.multi_reduction <add>, %156, %cst_39 [0] : vector<8x1024xf32> to vector<1024xf32>
    %158 = vector.shape_cast %157 : vector<1024xf32> to vector<1x1024xf32>
    %159 = arith.addf %128, %158 : vector<1x1024xf32>
    %c40 = arith.constant 40 : index
    %c0_40 = arith.constant 0 : index
    %160 = vector.load %arg2[%c40, %c0_40] : memref<256x4xf32, #tpu.memory_space<vmem>>, vector<8x4xf32>
    %c40_41 = arith.constant 40 : index
    %c0_42 = arith.constant 0 : index
    %161 = vector.load %arg3[%c40_41, %c0_42] : memref<256x1xf32, #tpu.memory_space<vmem>>, vector<8x1xf32>
    %c40_43 = arith.constant 40 : index
    %c0_44 = arith.constant 0 : index
    %162 = vector.load %arg4[%c40_43, %c0_44] : memref<256x1xf32, #tpu.memory_space<vmem>>, vector<8x1xf32>
    %163 = vector.extract_strided_slice %160 {offsets = [0, 0], sizes = [8, 1], strides = [1, 1]} : vector<8x4xf32> to vector<8x1xf32>
    %164 = vector.broadcast %163 : vector<8x1xf32> to vector<8x1024xf32>
    %165 = vector.broadcast %0 : vector<1x1024xf32> to vector<8x1024xf32>
    %166 = arith.mulf %164, %165 : vector<8x1024xf32>
    %167 = vector.extract_strided_slice %160 {offsets = [0, 1], sizes = [8, 1], strides = [1, 1]} : vector<8x4xf32> to vector<8x1xf32>
    %168 = vector.broadcast %167 : vector<8x1xf32> to vector<8x1024xf32>
    %169 = vector.broadcast %1 : vector<1x1024xf32> to vector<8x1024xf32>
    %170 = arith.mulf %168, %169 : vector<8x1024xf32>
    %171 = arith.addf %166, %170 : vector<8x1024xf32>
    %172 = vector.extract_strided_slice %160 {offsets = [0, 2], sizes = [8, 1], strides = [1, 1]} : vector<8x4xf32> to vector<8x1xf32>
    %173 = vector.broadcast %172 : vector<8x1xf32> to vector<8x1024xf32>
    %174 = vector.broadcast %2 : vector<1x1024xf32> to vector<8x1024xf32>
    %175 = arith.mulf %173, %174 : vector<8x1024xf32>
    %176 = arith.addf %171, %175 : vector<8x1024xf32>
    %177 = vector.extract_strided_slice %160 {offsets = [0, 3], sizes = [8, 1], strides = [1, 1]} : vector<8x4xf32> to vector<8x1xf32>
    %178 = vector.broadcast %177 : vector<8x1xf32> to vector<8x1024xf32>
    %179 = vector.broadcast %3 : vector<1x1024xf32> to vector<8x1024xf32>
    %180 = arith.mulf %178, %179 : vector<8x1024xf32>
    %181 = arith.addf %176, %180 : vector<8x1024xf32>
    %182 = vector.broadcast %161 : vector<8x1xf32> to vector<8x1024xf32>
    %183 = arith.addf %181, %182 : vector<8x1024xf32>
    %cst_45 = arith.constant 0.000000e+00 : f32
    %184 = vector.broadcast %cst_45 : f32 to vector<8x1024xf32>
    %185 = arith.maximumf %183, %184 : vector<8x1024xf32>
    %186 = vector.broadcast %162 : vector<8x1xf32> to vector<8x1024xf32>
    %187 = arith.mulf %186, %185 : vector<8x1024xf32>
    %cst_46 = arith.constant dense<0.000000e+00> : vector<1024xf32>
    %188 = vector.multi_reduction <add>, %187, %cst_46 [0] : vector<8x1024xf32> to vector<1024xf32>
    %189 = vector.shape_cast %188 : vector<1024xf32> to vector<1x1024xf32>
    %190 = arith.addf %159, %189 : vector<1x1024xf32>
    %c48 = arith.constant 48 : index
    %c0_47 = arith.constant 0 : index
    %191 = vector.load %arg2[%c48, %c0_47] : memref<256x4xf32, #tpu.memory_space<vmem>>, vector<8x4xf32>
    %c48_48 = arith.constant 48 : index
    %c0_49 = arith.constant 0 : index
    %192 = vector.load %arg3[%c48_48, %c0_49] : memref<256x1xf32, #tpu.memory_space<vmem>>, vector<8x1xf32>
    %c48_50 = arith.constant 48 : index
    %c0_51 = arith.constant 0 : index
    %193 = vector.load %arg4[%c48_50, %c0_51] : memref<256x1xf32, #tpu.memory_space<vmem>>, vector<8x1xf32>
    %194 = vector.extract_strided_slice %191 {offsets = [0, 0], sizes = [8, 1], strides = [1, 1]} : vector<8x4xf32> to vector<8x1xf32>
    %195 = vector.broadcast %194 : vector<8x1xf32> to vector<8x1024xf32>
    %196 = vector.broadcast %0 : vector<1x1024xf32> to vector<8x1024xf32>
    %197 = arith.mulf %195, %196 : vector<8x1024xf32>
    %198 = vector.extract_strided_slice %191 {offsets = [0, 1], sizes = [8, 1], strides = [1, 1]} : vector<8x4xf32> to vector<8x1xf32>
    %199 = vector.broadcast %198 : vector<8x1xf32> to vector<8x1024xf32>
    %200 = vector.broadcast %1 : vector<1x1024xf32> to vector<8x1024xf32>
    %201 = arith.mulf %199, %200 : vector<8x1024xf32>
    %202 = arith.addf %197, %201 : vector<8x1024xf32>
    %203 = vector.extract_strided_slice %191 {offsets = [0, 2], sizes = [8, 1], strides = [1, 1]} : vector<8x4xf32> to vector<8x1xf32>
    %204 = vector.broadcast %203 : vector<8x1xf32> to vector<8x1024xf32>
    %205 = vector.broadcast %2 : vector<1x1024xf32> to vector<8x1024xf32>
    %206 = arith.mulf %204, %205 : vector<8x1024xf32>
    %207 = arith.addf %202, %206 : vector<8x1024xf32>
    %208 = vector.extract_strided_slice %191 {offsets = [0, 3], sizes = [8, 1], strides = [1, 1]} : vector<8x4xf32> to vector<8x1xf32>
    %209 = vector.broadcast %208 : vector<8x1xf32> to vector<8x1024xf32>
    %210 = vector.broadcast %3 : vector<1x1024xf32> to vector<8x1024xf32>
    %211 = arith.mulf %209, %210 : vector<8x1024xf32>
    %212 = arith.addf %207, %211 : vector<8x1024xf32>
    %213 = vector.broadcast %192 : vector<8x1xf32> to vector<8x1024xf32>
    %214 = arith.addf %212, %213 : vector<8x1024xf32>
    %cst_52 = arith.constant 0.000000e+00 : f32
    %215 = vector.broadcast %cst_52 : f32 to vector<8x1024xf32>
    %216 = arith.maximumf %214, %215 : vector<8x1024xf32>
    %217 = vector.broadcast %193 : vector<8x1xf32> to vector<8x1024xf32>
    %218 = arith.mulf %217, %216 : vector<8x1024xf32>
    %cst_53 = arith.constant dense<0.000000e+00> : vector<1024xf32>
    %219 = vector.multi_reduction <add>, %218, %cst_53 [0] : vector<8x1024xf32> to vector<1024xf32>
    %220 = vector.shape_cast %219 : vector<1024xf32> to vector<1x1024xf32>
    %221 = arith.addf %190, %220 : vector<1x1024xf32>
    %c56 = arith.constant 56 : index
    %c0_54 = arith.constant 0 : index
    %222 = vector.load %arg2[%c56, %c0_54] : memref<256x4xf32, #tpu.memory_space<vmem>>, vector<8x4xf32>
    %c56_55 = arith.constant 56 : index
    %c0_56 = arith.constant 0 : index
    %223 = vector.load %arg3[%c56_55, %c0_56] : memref<256x1xf32, #tpu.memory_space<vmem>>, vector<8x1xf32>
    %c56_57 = arith.constant 56 : index
    %c0_58 = arith.constant 0 : index
    %224 = vector.load %arg4[%c56_57, %c0_58] : memref<256x1xf32, #tpu.memory_space<vmem>>, vector<8x1xf32>
    %225 = vector.extract_strided_slice %222 {offsets = [0, 0], sizes = [8, 1], strides = [1, 1]} : vector<8x4xf32> to vector<8x1xf32>
    %226 = vector.broadcast %225 : vector<8x1xf32> to vector<8x1024xf32>
    %227 = vector.broadcast %0 : vector<1x1024xf32> to vector<8x1024xf32>
    %228 = arith.mulf %226, %227 : vector<8x1024xf32>
    %229 = vector.extract_strided_slice %222 {offsets = [0, 1], sizes = [8, 1], strides = [1, 1]} : vector<8x4xf32> to vector<8x1xf32>
    %230 = vector.broadcast %229 : vector<8x1xf32> to vector<8x1024xf32>
    %231 = vector.broadcast %1 : vector<1x1024xf32> to vector<8x1024xf32>
    %232 = arith.mulf %230, %231 : vector<8x1024xf32>
    %233 = arith.addf %228, %232 : vector<8x1024xf32>
    %234 = vector.extract_strided_slice %222 {offsets = [0, 2], sizes = [8, 1], strides = [1, 1]} : vector<8x4xf32> to vector<8x1xf32>
    %235 = vector.broadcast %234 : vector<8x1xf32> to vector<8x1024xf32>
    %236 = vector.broadcast %2 : vector<1x1024xf32> to vector<8x1024xf32>
    %237 = arith.mulf %235, %236 : vector<8x1024xf32>
    %238 = arith.addf %233, %237 : vector<8x1024xf32>
    %239 = vector.extract_strided_slice %222 {offsets = [0, 3], sizes = [8, 1], strides = [1, 1]} : vector<8x4xf32> to vector<8x1xf32>
    %240 = vector.broadcast %239 : vector<8x1xf32> to vector<8x1024xf32>
    %241 = vector.broadcast %3 : vector<1x1024xf32> to vector<8x1024xf32>
    %242 = arith.mulf %240, %241 : vector<8x1024xf32>
    %243 = arith.addf %238, %242 : vector<8x1024xf32>
    %244 = vector.broadcast %223 : vector<8x1xf32> to vector<8x1024xf32>
    %245 = arith.addf %243, %244 : vector<8x1024xf32>
    %cst_59 = arith.constant 0.000000e+00 : f32
    %246 = vector.broadcast %cst_59 : f32 to vector<8x1024xf32>
    %247 = arith.maximumf %245, %246 : vector<8x1024xf32>
    %248 = vector.broadcast %224 : vector<8x1xf32> to vector<8x1024xf32>
    %249 = arith.mulf %248, %247 : vector<8x1024xf32>
    %cst_60 = arith.constant dense<0.000000e+00> : vector<1024xf32>
    %250 = vector.multi_reduction <add>, %249, %cst_60 [0] : vector<8x1024xf32> to vector<1024xf32>
    %251 = vector.shape_cast %250 : vector<1024xf32> to vector<1x1024xf32>
    %252 = arith.addf %221, %251 : vector<1x1024xf32>
    %c64 = arith.constant 64 : index
    %c0_61 = arith.constant 0 : index
    %253 = vector.load %arg2[%c64, %c0_61] : memref<256x4xf32, #tpu.memory_space<vmem>>, vector<8x4xf32>
    %c64_62 = arith.constant 64 : index
    %c0_63 = arith.constant 0 : index
    %254 = vector.load %arg3[%c64_62, %c0_63] : memref<256x1xf32, #tpu.memory_space<vmem>>, vector<8x1xf32>
    %c64_64 = arith.constant 64 : index
    %c0_65 = arith.constant 0 : index
    %255 = vector.load %arg4[%c64_64, %c0_65] : memref<256x1xf32, #tpu.memory_space<vmem>>, vector<8x1xf32>
    %256 = vector.extract_strided_slice %253 {offsets = [0, 0], sizes = [8, 1], strides = [1, 1]} : vector<8x4xf32> to vector<8x1xf32>
    %257 = vector.broadcast %256 : vector<8x1xf32> to vector<8x1024xf32>
    %258 = vector.broadcast %0 : vector<1x1024xf32> to vector<8x1024xf32>
    %259 = arith.mulf %257, %258 : vector<8x1024xf32>
    %260 = vector.extract_strided_slice %253 {offsets = [0, 1], sizes = [8, 1], strides = [1, 1]} : vector<8x4xf32> to vector<8x1xf32>
    %261 = vector.broadcast %260 : vector<8x1xf32> to vector<8x1024xf32>
    %262 = vector.broadcast %1 : vector<1x1024xf32> to vector<8x1024xf32>
    %263 = arith.mulf %261, %262 : vector<8x1024xf32>
    %264 = arith.addf %259, %263 : vector<8x1024xf32>
    %265 = vector.extract_strided_slice %253 {offsets = [0, 2], sizes = [8, 1], strides = [1, 1]} : vector<8x4xf32> to vector<8x1xf32>
    %266 = vector.broadcast %265 : vector<8x1xf32> to vector<8x1024xf32>
    %267 = vector.broadcast %2 : vector<1x1024xf32> to vector<8x1024xf32>
    %268 = arith.mulf %266, %267 : vector<8x1024xf32>
    %269 = arith.addf %264, %268 : vector<8x1024xf32>
    %270 = vector.extract_strided_slice %253 {offsets = [0, 3], sizes = [8, 1], strides = [1, 1]} : vector<8x4xf32> to vector<8x1xf32>
    %271 = vector.broadcast %270 : vector<8x1xf32> to vector<8x1024xf32>
    %272 = vector.broadcast %3 : vector<1x1024xf32> to vector<8x1024xf32>
    %273 = arith.mulf %271, %272 : vector<8x1024xf32>
    %274 = arith.addf %269, %273 : vector<8x1024xf32>
    %275 = vector.broadcast %254 : vector<8x1xf32> to vector<8x1024xf32>
    %276 = arith.addf %274, %275 : vector<8x1024xf32>
    %cst_66 = arith.constant 0.000000e+00 : f32
    %277 = vector.broadcast %cst_66 : f32 to vector<8x1024xf32>
    %278 = arith.maximumf %276, %277 : vector<8x1024xf32>
    %279 = vector.broadcast %255 : vector<8x1xf32> to vector<8x1024xf32>
    %280 = arith.mulf %279, %278 : vector<8x1024xf32>
    %cst_67 = arith.constant dense<0.000000e+00> : vector<1024xf32>
    %281 = vector.multi_reduction <add>, %280, %cst_67 [0] : vector<8x1024xf32> to vector<1024xf32>
    %282 = vector.shape_cast %281 : vector<1024xf32> to vector<1x1024xf32>
    %283 = arith.addf %252, %282 : vector<1x1024xf32>
    %c72 = arith.constant 72 : index
    %c0_68 = arith.constant 0 : index
    %284 = vector.load %arg2[%c72, %c0_68] : memref<256x4xf32, #tpu.memory_space<vmem>>, vector<8x4xf32>
    %c72_69 = arith.constant 72 : index
    %c0_70 = arith.constant 0 : index
    %285 = vector.load %arg3[%c72_69, %c0_70] : memref<256x1xf32, #tpu.memory_space<vmem>>, vector<8x1xf32>
    %c72_71 = arith.constant 72 : index
    %c0_72 = arith.constant 0 : index
    %286 = vector.load %arg4[%c72_71, %c0_72] : memref<256x1xf32, #tpu.memory_space<vmem>>, vector<8x1xf32>
    %287 = vector.extract_strided_slice %284 {offsets = [0, 0], sizes = [8, 1], strides = [1, 1]} : vector<8x4xf32> to vector<8x1xf32>
    %288 = vector.broadcast %287 : vector<8x1xf32> to vector<8x1024xf32>
    %289 = vector.broadcast %0 : vector<1x1024xf32> to vector<8x1024xf32>
    %290 = arith.mulf %288, %289 : vector<8x1024xf32>
    %291 = vector.extract_strided_slice %284 {offsets = [0, 1], sizes = [8, 1], strides = [1, 1]} : vector<8x4xf32> to vector<8x1xf32>
    %292 = vector.broadcast %291 : vector<8x1xf32> to vector<8x1024xf32>
    %293 = vector.broadcast %1 : vector<1x1024xf32> to vector<8x1024xf32>
    %294 = arith.mulf %292, %293 : vector<8x1024xf32>
    %295 = arith.addf %290, %294 : vector<8x1024xf32>
    %296 = vector.extract_strided_slice %284 {offsets = [0, 2], sizes = [8, 1], strides = [1, 1]} : vector<8x4xf32> to vector<8x1xf32>
    %297 = vector.broadcast %296 : vector<8x1xf32> to vector<8x1024xf32>
    %298 = vector.broadcast %2 : vector<1x1024xf32> to vector<8x1024xf32>
    %299 = arith.mulf %297, %298 : vector<8x1024xf32>
    %300 = arith.addf %295, %299 : vector<8x1024xf32>
    %301 = vector.extract_strided_slice %284 {offsets = [0, 3], sizes = [8, 1], strides = [1, 1]} : vector<8x4xf32> to vector<8x1xf32>
    %302 = vector.broadcast %301 : vector<8x1xf32> to vector<8x1024xf32>
    %303 = vector.broadcast %3 : vector<1x1024xf32> to vector<8x1024xf32>
    %304 = arith.mulf %302, %303 : vector<8x1024xf32>
    %305 = arith.addf %300, %304 : vector<8x1024xf32>
    %306 = vector.broadcast %285 : vector<8x1xf32> to vector<8x1024xf32>
    %307 = arith.addf %305, %306 : vector<8x1024xf32>
    %cst_73 = arith.constant 0.000000e+00 : f32
    %308 = vector.broadcast %cst_73 : f32 to vector<8x1024xf32>
    %309 = arith.maximumf %307, %308 : vector<8x1024xf32>
    %310 = vector.broadcast %286 : vector<8x1xf32> to vector<8x1024xf32>
    %311 = arith.mulf %310, %309 : vector<8x1024xf32>
    %cst_74 = arith.constant dense<0.000000e+00> : vector<1024xf32>
    %312 = vector.multi_reduction <add>, %311, %cst_74 [0] : vector<8x1024xf32> to vector<1024xf32>
    %313 = vector.shape_cast %312 : vector<1024xf32> to vector<1x1024xf32>
    %314 = arith.addf %283, %313 : vector<1x1024xf32>
    %c80 = arith.constant 80 : index
    %c0_75 = arith.constant 0 : index
    %315 = vector.load %arg2[%c80, %c0_75] : memref<256x4xf32, #tpu.memory_space<vmem>>, vector<8x4xf32>
    %c80_76 = arith.constant 80 : index
    %c0_77 = arith.constant 0 : index
    %316 = vector.load %arg3[%c80_76, %c0_77] : memref<256x1xf32, #tpu.memory_space<vmem>>, vector<8x1xf32>
    %c80_78 = arith.constant 80 : index
    %c0_79 = arith.constant 0 : index
    %317 = vector.load %arg4[%c80_78, %c0_79] : memref<256x1xf32, #tpu.memory_space<vmem>>, vector<8x1xf32>
    %318 = vector.extract_strided_slice %315 {offsets = [0, 0], sizes = [8, 1], strides = [1, 1]} : vector<8x4xf32> to vector<8x1xf32>
    %319 = vector.broadcast %318 : vector<8x1xf32> to vector<8x1024xf32>
    %320 = vector.broadcast %0 : vector<1x1024xf32> to vector<8x1024xf32>
    %321 = arith.mulf %319, %320 : vector<8x1024xf32>
    %322 = vector.extract_strided_slice %315 {offsets = [0, 1], sizes = [8, 1], strides = [1, 1]} : vector<8x4xf32> to vector<8x1xf32>
    %323 = vector.broadcast %322 : vector<8x1xf32> to vector<8x1024xf32>
    %324 = vector.broadcast %1 : vector<1x1024xf32> to vector<8x1024xf32>
    %325 = arith.mulf %323, %324 : vector<8x1024xf32>
    %326 = arith.addf %321, %325 : vector<8x1024xf32>
    %327 = vector.extract_strided_slice %315 {offsets = [0, 2], sizes = [8, 1], strides = [1, 1]} : vector<8x4xf32> to vector<8x1xf32>
    %328 = vector.broadcast %327 : vector<8x1xf32> to vector<8x1024xf32>
    %329 = vector.broadcast %2 : vector<1x1024xf32> to vector<8x1024xf32>
    %330 = arith.mulf %328, %329 : vector<8x1024xf32>
    %331 = arith.addf %326, %330 : vector<8x1024xf32>
    %332 = vector.extract_strided_slice %315 {offsets = [0, 3], sizes = [8, 1], strides = [1, 1]} : vector<8x4xf32> to vector<8x1xf32>
    %333 = vector.broadcast %332 : vector<8x1xf32> to vector<8x1024xf32>
    %334 = vector.broadcast %3 : vector<1x1024xf32> to vector<8x1024xf32>
    %335 = arith.mulf %333, %334 : vector<8x1024xf32>
    %336 = arith.addf %331, %335 : vector<8x1024xf32>
    %337 = vector.broadcast %316 : vector<8x1xf32> to vector<8x1024xf32>
    %338 = arith.addf %336, %337 : vector<8x1024xf32>
    %cst_80 = arith.constant 0.000000e+00 : f32
    %339 = vector.broadcast %cst_80 : f32 to vector<8x1024xf32>
    %340 = arith.maximumf %338, %339 : vector<8x1024xf32>
    %341 = vector.broadcast %317 : vector<8x1xf32> to vector<8x1024xf32>
    %342 = arith.mulf %341, %340 : vector<8x1024xf32>
    %cst_81 = arith.constant dense<0.000000e+00> : vector<1024xf32>
    %343 = vector.multi_reduction <add>, %342, %cst_81 [0] : vector<8x1024xf32> to vector<1024xf32>
    %344 = vector.shape_cast %343 : vector<1024xf32> to vector<1x1024xf32>
    %345 = arith.addf %314, %344 : vector<1x1024xf32>
    %c88 = arith.constant 88 : index
    %c0_82 = arith.constant 0 : index
    %346 = vector.load %arg2[%c88, %c0_82] : memref<256x4xf32, #tpu.memory_space<vmem>>, vector<8x4xf32>
    %c88_83 = arith.constant 88 : index
    %c0_84 = arith.constant 0 : index
    %347 = vector.load %arg3[%c88_83, %c0_84] : memref<256x1xf32, #tpu.memory_space<vmem>>, vector<8x1xf32>
    %c88_85 = arith.constant 88 : index
    %c0_86 = arith.constant 0 : index
    %348 = vector.load %arg4[%c88_85, %c0_86] : memref<256x1xf32, #tpu.memory_space<vmem>>, vector<8x1xf32>
    %349 = vector.extract_strided_slice %346 {offsets = [0, 0], sizes = [8, 1], strides = [1, 1]} : vector<8x4xf32> to vector<8x1xf32>
    %350 = vector.broadcast %349 : vector<8x1xf32> to vector<8x1024xf32>
    %351 = vector.broadcast %0 : vector<1x1024xf32> to vector<8x1024xf32>
    %352 = arith.mulf %350, %351 : vector<8x1024xf32>
    %353 = vector.extract_strided_slice %346 {offsets = [0, 1], sizes = [8, 1], strides = [1, 1]} : vector<8x4xf32> to vector<8x1xf32>
    %354 = vector.broadcast %353 : vector<8x1xf32> to vector<8x1024xf32>
    %355 = vector.broadcast %1 : vector<1x1024xf32> to vector<8x1024xf32>
    %356 = arith.mulf %354, %355 : vector<8x1024xf32>
    %357 = arith.addf %352, %356 : vector<8x1024xf32>
    %358 = vector.extract_strided_slice %346 {offsets = [0, 2], sizes = [8, 1], strides = [1, 1]} : vector<8x4xf32> to vector<8x1xf32>
    %359 = vector.broadcast %358 : vector<8x1xf32> to vector<8x1024xf32>
    %360 = vector.broadcast %2 : vector<1x1024xf32> to vector<8x1024xf32>
    %361 = arith.mulf %359, %360 : vector<8x1024xf32>
    %362 = arith.addf %357, %361 : vector<8x1024xf32>
    %363 = vector.extract_strided_slice %346 {offsets = [0, 3], sizes = [8, 1], strides = [1, 1]} : vector<8x4xf32> to vector<8x1xf32>
    %364 = vector.broadcast %363 : vector<8x1xf32> to vector<8x1024xf32>
    %365 = vector.broadcast %3 : vector<1x1024xf32> to vector<8x1024xf32>
    %366 = arith.mulf %364, %365 : vector<8x1024xf32>
    %367 = arith.addf %362, %366 : vector<8x1024xf32>
    %368 = vector.broadcast %347 : vector<8x1xf32> to vector<8x1024xf32>
    %369 = arith.addf %367, %368 : vector<8x1024xf32>
    %cst_87 = arith.constant 0.000000e+00 : f32
    %370 = vector.broadcast %cst_87 : f32 to vector<8x1024xf32>
    %371 = arith.maximumf %369, %370 : vector<8x1024xf32>
    %372 = vector.broadcast %348 : vector<8x1xf32> to vector<8x1024xf32>
    %373 = arith.mulf %372, %371 : vector<8x1024xf32>
    %cst_88 = arith.constant dense<0.000000e+00> : vector<1024xf32>
    %374 = vector.multi_reduction <add>, %373, %cst_88 [0] : vector<8x1024xf32> to vector<1024xf32>
    %375 = vector.shape_cast %374 : vector<1024xf32> to vector<1x1024xf32>
    %376 = arith.addf %345, %375 : vector<1x1024xf32>
    %c96 = arith.constant 96 : index
    %c0_89 = arith.constant 0 : index
    %377 = vector.load %arg2[%c96, %c0_89] : memref<256x4xf32, #tpu.memory_space<vmem>>, vector<8x4xf32>
    %c96_90 = arith.constant 96 : index
    %c0_91 = arith.constant 0 : index
    %378 = vector.load %arg3[%c96_90, %c0_91] : memref<256x1xf32, #tpu.memory_space<vmem>>, vector<8x1xf32>
    %c96_92 = arith.constant 96 : index
    %c0_93 = arith.constant 0 : index
    %379 = vector.load %arg4[%c96_92, %c0_93] : memref<256x1xf32, #tpu.memory_space<vmem>>, vector<8x1xf32>
    %380 = vector.extract_strided_slice %377 {offsets = [0, 0], sizes = [8, 1], strides = [1, 1]} : vector<8x4xf32> to vector<8x1xf32>
    %381 = vector.broadcast %380 : vector<8x1xf32> to vector<8x1024xf32>
    %382 = vector.broadcast %0 : vector<1x1024xf32> to vector<8x1024xf32>
    %383 = arith.mulf %381, %382 : vector<8x1024xf32>
    %384 = vector.extract_strided_slice %377 {offsets = [0, 1], sizes = [8, 1], strides = [1, 1]} : vector<8x4xf32> to vector<8x1xf32>
    %385 = vector.broadcast %384 : vector<8x1xf32> to vector<8x1024xf32>
    %386 = vector.broadcast %1 : vector<1x1024xf32> to vector<8x1024xf32>
    %387 = arith.mulf %385, %386 : vector<8x1024xf32>
    %388 = arith.addf %383, %387 : vector<8x1024xf32>
    %389 = vector.extract_strided_slice %377 {offsets = [0, 2], sizes = [8, 1], strides = [1, 1]} : vector<8x4xf32> to vector<8x1xf32>
    %390 = vector.broadcast %389 : vector<8x1xf32> to vector<8x1024xf32>
    %391 = vector.broadcast %2 : vector<1x1024xf32> to vector<8x1024xf32>
    %392 = arith.mulf %390, %391 : vector<8x1024xf32>
    %393 = arith.addf %388, %392 : vector<8x1024xf32>
    %394 = vector.extract_strided_slice %377 {offsets = [0, 3], sizes = [8, 1], strides = [1, 1]} : vector<8x4xf32> to vector<8x1xf32>
    %395 = vector.broadcast %394 : vector<8x1xf32> to vector<8x1024xf32>
    %396 = vector.broadcast %3 : vector<1x1024xf32> to vector<8x1024xf32>
    %397 = arith.mulf %395, %396 : vector<8x1024xf32>
    %398 = arith.addf %393, %397 : vector<8x1024xf32>
    %399 = vector.broadcast %378 : vector<8x1xf32> to vector<8x1024xf32>
    %400 = arith.addf %398, %399 : vector<8x1024xf32>
    %cst_94 = arith.constant 0.000000e+00 : f32
    %401 = vector.broadcast %cst_94 : f32 to vector<8x1024xf32>
    %402 = arith.maximumf %400, %401 : vector<8x1024xf32>
    %403 = vector.broadcast %379 : vector<8x1xf32> to vector<8x1024xf32>
    %404 = arith.mulf %403, %402 : vector<8x1024xf32>
    %cst_95 = arith.constant dense<0.000000e+00> : vector<1024xf32>
    %405 = vector.multi_reduction <add>, %404, %cst_95 [0] : vector<8x1024xf32> to vector<1024xf32>
    %406 = vector.shape_cast %405 : vector<1024xf32> to vector<1x1024xf32>
    %407 = arith.addf %376, %406 : vector<1x1024xf32>
    %c104 = arith.constant 104 : index
    %c0_96 = arith.constant 0 : index
    %408 = vector.load %arg2[%c104, %c0_96] : memref<256x4xf32, #tpu.memory_space<vmem>>, vector<8x4xf32>
    %c104_97 = arith.constant 104 : index
    %c0_98 = arith.constant 0 : index
    %409 = vector.load %arg3[%c104_97, %c0_98] : memref<256x1xf32, #tpu.memory_space<vmem>>, vector<8x1xf32>
    %c104_99 = arith.constant 104 : index
    %c0_100 = arith.constant 0 : index
    %410 = vector.load %arg4[%c104_99, %c0_100] : memref<256x1xf32, #tpu.memory_space<vmem>>, vector<8x1xf32>
    %411 = vector.extract_strided_slice %408 {offsets = [0, 0], sizes = [8, 1], strides = [1, 1]} : vector<8x4xf32> to vector<8x1xf32>
    %412 = vector.broadcast %411 : vector<8x1xf32> to vector<8x1024xf32>
    %413 = vector.broadcast %0 : vector<1x1024xf32> to vector<8x1024xf32>
    %414 = arith.mulf %412, %413 : vector<8x1024xf32>
    %415 = vector.extract_strided_slice %408 {offsets = [0, 1], sizes = [8, 1], strides = [1, 1]} : vector<8x4xf32> to vector<8x1xf32>
    %416 = vector.broadcast %415 : vector<8x1xf32> to vector<8x1024xf32>
    %417 = vector.broadcast %1 : vector<1x1024xf32> to vector<8x1024xf32>
    %418 = arith.mulf %416, %417 : vector<8x1024xf32>
    %419 = arith.addf %414, %418 : vector<8x1024xf32>
    %420 = vector.extract_strided_slice %408 {offsets = [0, 2], sizes = [8, 1], strides = [1, 1]} : vector<8x4xf32> to vector<8x1xf32>
    %421 = vector.broadcast %420 : vector<8x1xf32> to vector<8x1024xf32>
    %422 = vector.broadcast %2 : vector<1x1024xf32> to vector<8x1024xf32>
    %423 = arith.mulf %421, %422 : vector<8x1024xf32>
    %424 = arith.addf %419, %423 : vector<8x1024xf32>
    %425 = vector.extract_strided_slice %408 {offsets = [0, 3], sizes = [8, 1], strides = [1, 1]} : vector<8x4xf32> to vector<8x1xf32>
    %426 = vector.broadcast %425 : vector<8x1xf32> to vector<8x1024xf32>
    %427 = vector.broadcast %3 : vector<1x1024xf32> to vector<8x1024xf32>
    %428 = arith.mulf %426, %427 : vector<8x1024xf32>
    %429 = arith.addf %424, %428 : vector<8x1024xf32>
    %430 = vector.broadcast %409 : vector<8x1xf32> to vector<8x1024xf32>
    %431 = arith.addf %429, %430 : vector<8x1024xf32>
    %cst_101 = arith.constant 0.000000e+00 : f32
    %432 = vector.broadcast %cst_101 : f32 to vector<8x1024xf32>
    %433 = arith.maximumf %431, %432 : vector<8x1024xf32>
    %434 = vector.broadcast %410 : vector<8x1xf32> to vector<8x1024xf32>
    %435 = arith.mulf %434, %433 : vector<8x1024xf32>
    %cst_102 = arith.constant dense<0.000000e+00> : vector<1024xf32>
    %436 = vector.multi_reduction <add>, %435, %cst_102 [0] : vector<8x1024xf32> to vector<1024xf32>
    %437 = vector.shape_cast %436 : vector<1024xf32> to vector<1x1024xf32>
    %438 = arith.addf %407, %437 : vector<1x1024xf32>
    %c112 = arith.constant 112 : index
    %c0_103 = arith.constant 0 : index
    %439 = vector.load %arg2[%c112, %c0_103] : memref<256x4xf32, #tpu.memory_space<vmem>>, vector<8x4xf32>
    %c112_104 = arith.constant 112 : index
    %c0_105 = arith.constant 0 : index
    %440 = vector.load %arg3[%c112_104, %c0_105] : memref<256x1xf32, #tpu.memory_space<vmem>>, vector<8x1xf32>
    %c112_106 = arith.constant 112 : index
    %c0_107 = arith.constant 0 : index
    %441 = vector.load %arg4[%c112_106, %c0_107] : memref<256x1xf32, #tpu.memory_space<vmem>>, vector<8x1xf32>
    %442 = vector.extract_strided_slice %439 {offsets = [0, 0], sizes = [8, 1], strides = [1, 1]} : vector<8x4xf32> to vector<8x1xf32>
    %443 = vector.broadcast %442 : vector<8x1xf32> to vector<8x1024xf32>
    %444 = vector.broadcast %0 : vector<1x1024xf32> to vector<8x1024xf32>
    %445 = arith.mulf %443, %444 : vector<8x1024xf32>
    %446 = vector.extract_strided_slice %439 {offsets = [0, 1], sizes = [8, 1], strides = [1, 1]} : vector<8x4xf32> to vector<8x1xf32>
    %447 = vector.broadcast %446 : vector<8x1xf32> to vector<8x1024xf32>
    %448 = vector.broadcast %1 : vector<1x1024xf32> to vector<8x1024xf32>
    %449 = arith.mulf %447, %448 : vector<8x1024xf32>
    %450 = arith.addf %445, %449 : vector<8x1024xf32>
    %451 = vector.extract_strided_slice %439 {offsets = [0, 2], sizes = [8, 1], strides = [1, 1]} : vector<8x4xf32> to vector<8x1xf32>
    %452 = vector.broadcast %451 : vector<8x1xf32> to vector<8x1024xf32>
    %453 = vector.broadcast %2 : vector<1x1024xf32> to vector<8x1024xf32>
    %454 = arith.mulf %452, %453 : vector<8x1024xf32>
    %455 = arith.addf %450, %454 : vector<8x1024xf32>
    %456 = vector.extract_strided_slice %439 {offsets = [0, 3], sizes = [8, 1], strides = [1, 1]} : vector<8x4xf32> to vector<8x1xf32>
    %457 = vector.broadcast %456 : vector<8x1xf32> to vector<8x1024xf32>
    %458 = vector.broadcast %3 : vector<1x1024xf32> to vector<8x1024xf32>
    %459 = arith.mulf %457, %458 : vector<8x1024xf32>
    %460 = arith.addf %455, %459 : vector<8x1024xf32>
    %461 = vector.broadcast %440 : vector<8x1xf32> to vector<8x1024xf32>
    %462 = arith.addf %460, %461 : vector<8x1024xf32>
    %cst_108 = arith.constant 0.000000e+00 : f32
    %463 = vector.broadcast %cst_108 : f32 to vector<8x1024xf32>
    %464 = arith.maximumf %462, %463 : vector<8x1024xf32>
    %465 = vector.broadcast %441 : vector<8x1xf32> to vector<8x1024xf32>
    %466 = arith.mulf %465, %464 : vector<8x1024xf32>
    %cst_109 = arith.constant dense<0.000000e+00> : vector<1024xf32>
    %467 = vector.multi_reduction <add>, %466, %cst_109 [0] : vector<8x1024xf32> to vector<1024xf32>
    %468 = vector.shape_cast %467 : vector<1024xf32> to vector<1x1024xf32>
    %469 = arith.addf %438, %468 : vector<1x1024xf32>
    %c120 = arith.constant 120 : index
    %c0_110 = arith.constant 0 : index
    %470 = vector.load %arg2[%c120, %c0_110] : memref<256x4xf32, #tpu.memory_space<vmem>>, vector<8x4xf32>
    %c120_111 = arith.constant 120 : index
    %c0_112 = arith.constant 0 : index
    %471 = vector.load %arg3[%c120_111, %c0_112] : memref<256x1xf32, #tpu.memory_space<vmem>>, vector<8x1xf32>
    %c120_113 = arith.constant 120 : index
    %c0_114 = arith.constant 0 : index
    %472 = vector.load %arg4[%c120_113, %c0_114] : memref<256x1xf32, #tpu.memory_space<vmem>>, vector<8x1xf32>
    %473 = vector.extract_strided_slice %470 {offsets = [0, 0], sizes = [8, 1], strides = [1, 1]} : vector<8x4xf32> to vector<8x1xf32>
    %474 = vector.broadcast %473 : vector<8x1xf32> to vector<8x1024xf32>
    %475 = vector.broadcast %0 : vector<1x1024xf32> to vector<8x1024xf32>
    %476 = arith.mulf %474, %475 : vector<8x1024xf32>
    %477 = vector.extract_strided_slice %470 {offsets = [0, 1], sizes = [8, 1], strides = [1, 1]} : vector<8x4xf32> to vector<8x1xf32>
    %478 = vector.broadcast %477 : vector<8x1xf32> to vector<8x1024xf32>
    %479 = vector.broadcast %1 : vector<1x1024xf32> to vector<8x1024xf32>
    %480 = arith.mulf %478, %479 : vector<8x1024xf32>
    %481 = arith.addf %476, %480 : vector<8x1024xf32>
    %482 = vector.extract_strided_slice %470 {offsets = [0, 2], sizes = [8, 1], strides = [1, 1]} : vector<8x4xf32> to vector<8x1xf32>
    %483 = vector.broadcast %482 : vector<8x1xf32> to vector<8x1024xf32>
    %484 = vector.broadcast %2 : vector<1x1024xf32> to vector<8x1024xf32>
    %485 = arith.mulf %483, %484 : vector<8x1024xf32>
    %486 = arith.addf %481, %485 : vector<8x1024xf32>
    %487 = vector.extract_strided_slice %470 {offsets = [0, 3], sizes = [8, 1], strides = [1, 1]} : vector<8x4xf32> to vector<8x1xf32>
    %488 = vector.broadcast %487 : vector<8x1xf32> to vector<8x1024xf32>
    %489 = vector.broadcast %3 : vector<1x1024xf32> to vector<8x1024xf32>
    %490 = arith.mulf %488, %489 : vector<8x1024xf32>
    %491 = arith.addf %486, %490 : vector<8x1024xf32>
    %492 = vector.broadcast %471 : vector<8x1xf32> to vector<8x1024xf32>
    %493 = arith.addf %491, %492 : vector<8x1024xf32>
    %cst_115 = arith.constant 0.000000e+00 : f32
    %494 = vector.broadcast %cst_115 : f32 to vector<8x1024xf32>
    %495 = arith.maximumf %493, %494 : vector<8x1024xf32>
    %496 = vector.broadcast %472 : vector<8x1xf32> to vector<8x1024xf32>
    %497 = arith.mulf %496, %495 : vector<8x1024xf32>
    %cst_116 = arith.constant dense<0.000000e+00> : vector<1024xf32>
    %498 = vector.multi_reduction <add>, %497, %cst_116 [0] : vector<8x1024xf32> to vector<1024xf32>
    %499 = vector.shape_cast %498 : vector<1024xf32> to vector<1x1024xf32>
    %500 = arith.addf %469, %499 : vector<1x1024xf32>
    %c128 = arith.constant 128 : index
    %c0_117 = arith.constant 0 : index
    %501 = vector.load %arg2[%c128, %c0_117] : memref<256x4xf32, #tpu.memory_space<vmem>>, vector<8x4xf32>
    %c128_118 = arith.constant 128 : index
    %c0_119 = arith.constant 0 : index
    %502 = vector.load %arg3[%c128_118, %c0_119] : memref<256x1xf32, #tpu.memory_space<vmem>>, vector<8x1xf32>
    %c128_120 = arith.constant 128 : index
    %c0_121 = arith.constant 0 : index
    %503 = vector.load %arg4[%c128_120, %c0_121] : memref<256x1xf32, #tpu.memory_space<vmem>>, vector<8x1xf32>
    %504 = vector.extract_strided_slice %501 {offsets = [0, 0], sizes = [8, 1], strides = [1, 1]} : vector<8x4xf32> to vector<8x1xf32>
    %505 = vector.broadcast %504 : vector<8x1xf32> to vector<8x1024xf32>
    %506 = vector.broadcast %0 : vector<1x1024xf32> to vector<8x1024xf32>
    %507 = arith.mulf %505, %506 : vector<8x1024xf32>
    %508 = vector.extract_strided_slice %501 {offsets = [0, 1], sizes = [8, 1], strides = [1, 1]} : vector<8x4xf32> to vector<8x1xf32>
    %509 = vector.broadcast %508 : vector<8x1xf32> to vector<8x1024xf32>
    %510 = vector.broadcast %1 : vector<1x1024xf32> to vector<8x1024xf32>
    %511 = arith.mulf %509, %510 : vector<8x1024xf32>
    %512 = arith.addf %507, %511 : vector<8x1024xf32>
    %513 = vector.extract_strided_slice %501 {offsets = [0, 2], sizes = [8, 1], strides = [1, 1]} : vector<8x4xf32> to vector<8x1xf32>
    %514 = vector.broadcast %513 : vector<8x1xf32> to vector<8x1024xf32>
    %515 = vector.broadcast %2 : vector<1x1024xf32> to vector<8x1024xf32>
    %516 = arith.mulf %514, %515 : vector<8x1024xf32>
    %517 = arith.addf %512, %516 : vector<8x1024xf32>
    %518 = vector.extract_strided_slice %501 {offsets = [0, 3], sizes = [8, 1], strides = [1, 1]} : vector<8x4xf32> to vector<8x1xf32>
    %519 = vector.broadcast %518 : vector<8x1xf32> to vector<8x1024xf32>
    %520 = vector.broadcast %3 : vector<1x1024xf32> to vector<8x1024xf32>
    %521 = arith.mulf %519, %520 : vector<8x1024xf32>
    %522 = arith.addf %517, %521 : vector<8x1024xf32>
    %523 = vector.broadcast %502 : vector<8x1xf32> to vector<8x1024xf32>
    %524 = arith.addf %522, %523 : vector<8x1024xf32>
    %cst_122 = arith.constant 0.000000e+00 : f32
    %525 = vector.broadcast %cst_122 : f32 to vector<8x1024xf32>
    %526 = arith.maximumf %524, %525 : vector<8x1024xf32>
    %527 = vector.broadcast %503 : vector<8x1xf32> to vector<8x1024xf32>
    %528 = arith.mulf %527, %526 : vector<8x1024xf32>
    %cst_123 = arith.constant dense<0.000000e+00> : vector<1024xf32>
    %529 = vector.multi_reduction <add>, %528, %cst_123 [0] : vector<8x1024xf32> to vector<1024xf32>
    %530 = vector.shape_cast %529 : vector<1024xf32> to vector<1x1024xf32>
    %531 = arith.addf %500, %530 : vector<1x1024xf32>
    %c136 = arith.constant 136 : index
    %c0_124 = arith.constant 0 : index
    %532 = vector.load %arg2[%c136, %c0_124] : memref<256x4xf32, #tpu.memory_space<vmem>>, vector<8x4xf32>
    %c136_125 = arith.constant 136 : index
    %c0_126 = arith.constant 0 : index
    %533 = vector.load %arg3[%c136_125, %c0_126] : memref<256x1xf32, #tpu.memory_space<vmem>>, vector<8x1xf32>
    %c136_127 = arith.constant 136 : index
    %c0_128 = arith.constant 0 : index
    %534 = vector.load %arg4[%c136_127, %c0_128] : memref<256x1xf32, #tpu.memory_space<vmem>>, vector<8x1xf32>
    %535 = vector.extract_strided_slice %532 {offsets = [0, 0], sizes = [8, 1], strides = [1, 1]} : vector<8x4xf32> to vector<8x1xf32>
    %536 = vector.broadcast %535 : vector<8x1xf32> to vector<8x1024xf32>
    %537 = vector.broadcast %0 : vector<1x1024xf32> to vector<8x1024xf32>
    %538 = arith.mulf %536, %537 : vector<8x1024xf32>
    %539 = vector.extract_strided_slice %532 {offsets = [0, 1], sizes = [8, 1], strides = [1, 1]} : vector<8x4xf32> to vector<8x1xf32>
    %540 = vector.broadcast %539 : vector<8x1xf32> to vector<8x1024xf32>
    %541 = vector.broadcast %1 : vector<1x1024xf32> to vector<8x1024xf32>
    %542 = arith.mulf %540, %541 : vector<8x1024xf32>
    %543 = arith.addf %538, %542 : vector<8x1024xf32>
    %544 = vector.extract_strided_slice %532 {offsets = [0, 2], sizes = [8, 1], strides = [1, 1]} : vector<8x4xf32> to vector<8x1xf32>
    %545 = vector.broadcast %544 : vector<8x1xf32> to vector<8x1024xf32>
    %546 = vector.broadcast %2 : vector<1x1024xf32> to vector<8x1024xf32>
    %547 = arith.mulf %545, %546 : vector<8x1024xf32>
    %548 = arith.addf %543, %547 : vector<8x1024xf32>
    %549 = vector.extract_strided_slice %532 {offsets = [0, 3], sizes = [8, 1], strides = [1, 1]} : vector<8x4xf32> to vector<8x1xf32>
    %550 = vector.broadcast %549 : vector<8x1xf32> to vector<8x1024xf32>
    %551 = vector.broadcast %3 : vector<1x1024xf32> to vector<8x1024xf32>
    %552 = arith.mulf %550, %551 : vector<8x1024xf32>
    %553 = arith.addf %548, %552 : vector<8x1024xf32>
    %554 = vector.broadcast %533 : vector<8x1xf32> to vector<8x1024xf32>
    %555 = arith.addf %553, %554 : vector<8x1024xf32>
    %cst_129 = arith.constant 0.000000e+00 : f32
    %556 = vector.broadcast %cst_129 : f32 to vector<8x1024xf32>
    %557 = arith.maximumf %555, %556 : vector<8x1024xf32>
    %558 = vector.broadcast %534 : vector<8x1xf32> to vector<8x1024xf32>
    %559 = arith.mulf %558, %557 : vector<8x1024xf32>
    %cst_130 = arith.constant dense<0.000000e+00> : vector<1024xf32>
    %560 = vector.multi_reduction <add>, %559, %cst_130 [0] : vector<8x1024xf32> to vector<1024xf32>
    %561 = vector.shape_cast %560 : vector<1024xf32> to vector<1x1024xf32>
    %562 = arith.addf %531, %561 : vector<1x1024xf32>
    %c144 = arith.constant 144 : index
    %c0_131 = arith.constant 0 : index
    %563 = vector.load %arg2[%c144, %c0_131] : memref<256x4xf32, #tpu.memory_space<vmem>>, vector<8x4xf32>
    %c144_132 = arith.constant 144 : index
    %c0_133 = arith.constant 0 : index
    %564 = vector.load %arg3[%c144_132, %c0_133] : memref<256x1xf32, #tpu.memory_space<vmem>>, vector<8x1xf32>
    %c144_134 = arith.constant 144 : index
    %c0_135 = arith.constant 0 : index
    %565 = vector.load %arg4[%c144_134, %c0_135] : memref<256x1xf32, #tpu.memory_space<vmem>>, vector<8x1xf32>
    %566 = vector.extract_strided_slice %563 {offsets = [0, 0], sizes = [8, 1], strides = [1, 1]} : vector<8x4xf32> to vector<8x1xf32>
    %567 = vector.broadcast %566 : vector<8x1xf32> to vector<8x1024xf32>
    %568 = vector.broadcast %0 : vector<1x1024xf32> to vector<8x1024xf32>
    %569 = arith.mulf %567, %568 : vector<8x1024xf32>
    %570 = vector.extract_strided_slice %563 {offsets = [0, 1], sizes = [8, 1], strides = [1, 1]} : vector<8x4xf32> to vector<8x1xf32>
    %571 = vector.broadcast %570 : vector<8x1xf32> to vector<8x1024xf32>
    %572 = vector.broadcast %1 : vector<1x1024xf32> to vector<8x1024xf32>
    %573 = arith.mulf %571, %572 : vector<8x1024xf32>
    %574 = arith.addf %569, %573 : vector<8x1024xf32>
    %575 = vector.extract_strided_slice %563 {offsets = [0, 2], sizes = [8, 1], strides = [1, 1]} : vector<8x4xf32> to vector<8x1xf32>
    %576 = vector.broadcast %575 : vector<8x1xf32> to vector<8x1024xf32>
    %577 = vector.broadcast %2 : vector<1x1024xf32> to vector<8x1024xf32>
    %578 = arith.mulf %576, %577 : vector<8x1024xf32>
    %579 = arith.addf %574, %578 : vector<8x1024xf32>
    %580 = vector.extract_strided_slice %563 {offsets = [0, 3], sizes = [8, 1], strides = [1, 1]} : vector<8x4xf32> to vector<8x1xf32>
    %581 = vector.broadcast %580 : vector<8x1xf32> to vector<8x1024xf32>
    %582 = vector.broadcast %3 : vector<1x1024xf32> to vector<8x1024xf32>
    %583 = arith.mulf %581, %582 : vector<8x1024xf32>
    %584 = arith.addf %579, %583 : vector<8x1024xf32>
    %585 = vector.broadcast %564 : vector<8x1xf32> to vector<8x1024xf32>
    %586 = arith.addf %584, %585 : vector<8x1024xf32>
    %cst_136 = arith.constant 0.000000e+00 : f32
    %587 = vector.broadcast %cst_136 : f32 to vector<8x1024xf32>
    %588 = arith.maximumf %586, %587 : vector<8x1024xf32>
    %589 = vector.broadcast %565 : vector<8x1xf32> to vector<8x1024xf32>
    %590 = arith.mulf %589, %588 : vector<8x1024xf32>
    %cst_137 = arith.constant dense<0.000000e+00> : vector<1024xf32>
    %591 = vector.multi_reduction <add>, %590, %cst_137 [0] : vector<8x1024xf32> to vector<1024xf32>
    %592 = vector.shape_cast %591 : vector<1024xf32> to vector<1x1024xf32>
    %593 = arith.addf %562, %592 : vector<1x1024xf32>
    %c152 = arith.constant 152 : index
    %c0_138 = arith.constant 0 : index
    %594 = vector.load %arg2[%c152, %c0_138] : memref<256x4xf32, #tpu.memory_space<vmem>>, vector<8x4xf32>
    %c152_139 = arith.constant 152 : index
    %c0_140 = arith.constant 0 : index
    %595 = vector.load %arg3[%c152_139, %c0_140] : memref<256x1xf32, #tpu.memory_space<vmem>>, vector<8x1xf32>
    %c152_141 = arith.constant 152 : index
    %c0_142 = arith.constant 0 : index
    %596 = vector.load %arg4[%c152_141, %c0_142] : memref<256x1xf32, #tpu.memory_space<vmem>>, vector<8x1xf32>
    %597 = vector.extract_strided_slice %594 {offsets = [0, 0], sizes = [8, 1], strides = [1, 1]} : vector<8x4xf32> to vector<8x1xf32>
    %598 = vector.broadcast %597 : vector<8x1xf32> to vector<8x1024xf32>
    %599 = vector.broadcast %0 : vector<1x1024xf32> to vector<8x1024xf32>
    %600 = arith.mulf %598, %599 : vector<8x1024xf32>
    %601 = vector.extract_strided_slice %594 {offsets = [0, 1], sizes = [8, 1], strides = [1, 1]} : vector<8x4xf32> to vector<8x1xf32>
    %602 = vector.broadcast %601 : vector<8x1xf32> to vector<8x1024xf32>
    %603 = vector.broadcast %1 : vector<1x1024xf32> to vector<8x1024xf32>
    %604 = arith.mulf %602, %603 : vector<8x1024xf32>
    %605 = arith.addf %600, %604 : vector<8x1024xf32>
    %606 = vector.extract_strided_slice %594 {offsets = [0, 2], sizes = [8, 1], strides = [1, 1]} : vector<8x4xf32> to vector<8x1xf32>
    %607 = vector.broadcast %606 : vector<8x1xf32> to vector<8x1024xf32>
    %608 = vector.broadcast %2 : vector<1x1024xf32> to vector<8x1024xf32>
    %609 = arith.mulf %607, %608 : vector<8x1024xf32>
    %610 = arith.addf %605, %609 : vector<8x1024xf32>
    %611 = vector.extract_strided_slice %594 {offsets = [0, 3], sizes = [8, 1], strides = [1, 1]} : vector<8x4xf32> to vector<8x1xf32>
    %612 = vector.broadcast %611 : vector<8x1xf32> to vector<8x1024xf32>
    %613 = vector.broadcast %3 : vector<1x1024xf32> to vector<8x1024xf32>
    %614 = arith.mulf %612, %613 : vector<8x1024xf32>
    %615 = arith.addf %610, %614 : vector<8x1024xf32>
    %616 = vector.broadcast %595 : vector<8x1xf32> to vector<8x1024xf32>
    %617 = arith.addf %615, %616 : vector<8x1024xf32>
    %cst_143 = arith.constant 0.000000e+00 : f32
    %618 = vector.broadcast %cst_143 : f32 to vector<8x1024xf32>
    %619 = arith.maximumf %617, %618 : vector<8x1024xf32>
    %620 = vector.broadcast %596 : vector<8x1xf32> to vector<8x1024xf32>
    %621 = arith.mulf %620, %619 : vector<8x1024xf32>
    %cst_144 = arith.constant dense<0.000000e+00> : vector<1024xf32>
    %622 = vector.multi_reduction <add>, %621, %cst_144 [0] : vector<8x1024xf32> to vector<1024xf32>
    %623 = vector.shape_cast %622 : vector<1024xf32> to vector<1x1024xf32>
    %624 = arith.addf %593, %623 : vector<1x1024xf32>
    %c160 = arith.constant 160 : index
    %c0_145 = arith.constant 0 : index
    %625 = vector.load %arg2[%c160, %c0_145] : memref<256x4xf32, #tpu.memory_space<vmem>>, vector<8x4xf32>
    %c160_146 = arith.constant 160 : index
    %c0_147 = arith.constant 0 : index
    %626 = vector.load %arg3[%c160_146, %c0_147] : memref<256x1xf32, #tpu.memory_space<vmem>>, vector<8x1xf32>
    %c160_148 = arith.constant 160 : index
    %c0_149 = arith.constant 0 : index
    %627 = vector.load %arg4[%c160_148, %c0_149] : memref<256x1xf32, #tpu.memory_space<vmem>>, vector<8x1xf32>
    %628 = vector.extract_strided_slice %625 {offsets = [0, 0], sizes = [8, 1], strides = [1, 1]} : vector<8x4xf32> to vector<8x1xf32>
    %629 = vector.broadcast %628 : vector<8x1xf32> to vector<8x1024xf32>
    %630 = vector.broadcast %0 : vector<1x1024xf32> to vector<8x1024xf32>
    %631 = arith.mulf %629, %630 : vector<8x1024xf32>
    %632 = vector.extract_strided_slice %625 {offsets = [0, 1], sizes = [8, 1], strides = [1, 1]} : vector<8x4xf32> to vector<8x1xf32>
    %633 = vector.broadcast %632 : vector<8x1xf32> to vector<8x1024xf32>
    %634 = vector.broadcast %1 : vector<1x1024xf32> to vector<8x1024xf32>
    %635 = arith.mulf %633, %634 : vector<8x1024xf32>
    %636 = arith.addf %631, %635 : vector<8x1024xf32>
    %637 = vector.extract_strided_slice %625 {offsets = [0, 2], sizes = [8, 1], strides = [1, 1]} : vector<8x4xf32> to vector<8x1xf32>
    %638 = vector.broadcast %637 : vector<8x1xf32> to vector<8x1024xf32>
    %639 = vector.broadcast %2 : vector<1x1024xf32> to vector<8x1024xf32>
    %640 = arith.mulf %638, %639 : vector<8x1024xf32>
    %641 = arith.addf %636, %640 : vector<8x1024xf32>
    %642 = vector.extract_strided_slice %625 {offsets = [0, 3], sizes = [8, 1], strides = [1, 1]} : vector<8x4xf32> to vector<8x1xf32>
    %643 = vector.broadcast %642 : vector<8x1xf32> to vector<8x1024xf32>
    %644 = vector.broadcast %3 : vector<1x1024xf32> to vector<8x1024xf32>
    %645 = arith.mulf %643, %644 : vector<8x1024xf32>
    %646 = arith.addf %641, %645 : vector<8x1024xf32>
    %647 = vector.broadcast %626 : vector<8x1xf32> to vector<8x1024xf32>
    %648 = arith.addf %646, %647 : vector<8x1024xf32>
    %cst_150 = arith.constant 0.000000e+00 : f32
    %649 = vector.broadcast %cst_150 : f32 to vector<8x1024xf32>
    %650 = arith.maximumf %648, %649 : vector<8x1024xf32>
    %651 = vector.broadcast %627 : vector<8x1xf32> to vector<8x1024xf32>
    %652 = arith.mulf %651, %650 : vector<8x1024xf32>
    %cst_151 = arith.constant dense<0.000000e+00> : vector<1024xf32>
    %653 = vector.multi_reduction <add>, %652, %cst_151 [0] : vector<8x1024xf32> to vector<1024xf32>
    %654 = vector.shape_cast %653 : vector<1024xf32> to vector<1x1024xf32>
    %655 = arith.addf %624, %654 : vector<1x1024xf32>
    %c168 = arith.constant 168 : index
    %c0_152 = arith.constant 0 : index
    %656 = vector.load %arg2[%c168, %c0_152] : memref<256x4xf32, #tpu.memory_space<vmem>>, vector<8x4xf32>
    %c168_153 = arith.constant 168 : index
    %c0_154 = arith.constant 0 : index
    %657 = vector.load %arg3[%c168_153, %c0_154] : memref<256x1xf32, #tpu.memory_space<vmem>>, vector<8x1xf32>
    %c168_155 = arith.constant 168 : index
    %c0_156 = arith.constant 0 : index
    %658 = vector.load %arg4[%c168_155, %c0_156] : memref<256x1xf32, #tpu.memory_space<vmem>>, vector<8x1xf32>
    %659 = vector.extract_strided_slice %656 {offsets = [0, 0], sizes = [8, 1], strides = [1, 1]} : vector<8x4xf32> to vector<8x1xf32>
    %660 = vector.broadcast %659 : vector<8x1xf32> to vector<8x1024xf32>
    %661 = vector.broadcast %0 : vector<1x1024xf32> to vector<8x1024xf32>
    %662 = arith.mulf %660, %661 : vector<8x1024xf32>
    %663 = vector.extract_strided_slice %656 {offsets = [0, 1], sizes = [8, 1], strides = [1, 1]} : vector<8x4xf32> to vector<8x1xf32>
    %664 = vector.broadcast %663 : vector<8x1xf32> to vector<8x1024xf32>
    %665 = vector.broadcast %1 : vector<1x1024xf32> to vector<8x1024xf32>
    %666 = arith.mulf %664, %665 : vector<8x1024xf32>
    %667 = arith.addf %662, %666 : vector<8x1024xf32>
    %668 = vector.extract_strided_slice %656 {offsets = [0, 2], sizes = [8, 1], strides = [1, 1]} : vector<8x4xf32> to vector<8x1xf32>
    %669 = vector.broadcast %668 : vector<8x1xf32> to vector<8x1024xf32>
    %670 = vector.broadcast %2 : vector<1x1024xf32> to vector<8x1024xf32>
    %671 = arith.mulf %669, %670 : vector<8x1024xf32>
    %672 = arith.addf %667, %671 : vector<8x1024xf32>
    %673 = vector.extract_strided_slice %656 {offsets = [0, 3], sizes = [8, 1], strides = [1, 1]} : vector<8x4xf32> to vector<8x1xf32>
    %674 = vector.broadcast %673 : vector<8x1xf32> to vector<8x1024xf32>
    %675 = vector.broadcast %3 : vector<1x1024xf32> to vector<8x1024xf32>
    %676 = arith.mulf %674, %675 : vector<8x1024xf32>
    %677 = arith.addf %672, %676 : vector<8x1024xf32>
    %678 = vector.broadcast %657 : vector<8x1xf32> to vector<8x1024xf32>
    %679 = arith.addf %677, %678 : vector<8x1024xf32>
    %cst_157 = arith.constant 0.000000e+00 : f32
    %680 = vector.broadcast %cst_157 : f32 to vector<8x1024xf32>
    %681 = arith.maximumf %679, %680 : vector<8x1024xf32>
    %682 = vector.broadcast %658 : vector<8x1xf32> to vector<8x1024xf32>
    %683 = arith.mulf %682, %681 : vector<8x1024xf32>
    %cst_158 = arith.constant dense<0.000000e+00> : vector<1024xf32>
    %684 = vector.multi_reduction <add>, %683, %cst_158 [0] : vector<8x1024xf32> to vector<1024xf32>
    %685 = vector.shape_cast %684 : vector<1024xf32> to vector<1x1024xf32>
    %686 = arith.addf %655, %685 : vector<1x1024xf32>
    %c176 = arith.constant 176 : index
    %c0_159 = arith.constant 0 : index
    %687 = vector.load %arg2[%c176, %c0_159] : memref<256x4xf32, #tpu.memory_space<vmem>>, vector<8x4xf32>
    %c176_160 = arith.constant 176 : index
    %c0_161 = arith.constant 0 : index
    %688 = vector.load %arg3[%c176_160, %c0_161] : memref<256x1xf32, #tpu.memory_space<vmem>>, vector<8x1xf32>
    %c176_162 = arith.constant 176 : index
    %c0_163 = arith.constant 0 : index
    %689 = vector.load %arg4[%c176_162, %c0_163] : memref<256x1xf32, #tpu.memory_space<vmem>>, vector<8x1xf32>
    %690 = vector.extract_strided_slice %687 {offsets = [0, 0], sizes = [8, 1], strides = [1, 1]} : vector<8x4xf32> to vector<8x1xf32>
    %691 = vector.broadcast %690 : vector<8x1xf32> to vector<8x1024xf32>
    %692 = vector.broadcast %0 : vector<1x1024xf32> to vector<8x1024xf32>
    %693 = arith.mulf %691, %692 : vector<8x1024xf32>
    %694 = vector.extract_strided_slice %687 {offsets = [0, 1], sizes = [8, 1], strides = [1, 1]} : vector<8x4xf32> to vector<8x1xf32>
    %695 = vector.broadcast %694 : vector<8x1xf32> to vector<8x1024xf32>
    %696 = vector.broadcast %1 : vector<1x1024xf32> to vector<8x1024xf32>
    %697 = arith.mulf %695, %696 : vector<8x1024xf32>
    %698 = arith.addf %693, %697 : vector<8x1024xf32>
    %699 = vector.extract_strided_slice %687 {offsets = [0, 2], sizes = [8, 1], strides = [1, 1]} : vector<8x4xf32> to vector<8x1xf32>
    %700 = vector.broadcast %699 : vector<8x1xf32> to vector<8x1024xf32>
    %701 = vector.broadcast %2 : vector<1x1024xf32> to vector<8x1024xf32>
    %702 = arith.mulf %700, %701 : vector<8x1024xf32>
    %703 = arith.addf %698, %702 : vector<8x1024xf32>
    %704 = vector.extract_strided_slice %687 {offsets = [0, 3], sizes = [8, 1], strides = [1, 1]} : vector<8x4xf32> to vector<8x1xf32>
    %705 = vector.broadcast %704 : vector<8x1xf32> to vector<8x1024xf32>
    %706 = vector.broadcast %3 : vector<1x1024xf32> to vector<8x1024xf32>
    %707 = arith.mulf %705, %706 : vector<8x1024xf32>
    %708 = arith.addf %703, %707 : vector<8x1024xf32>
    %709 = vector.broadcast %688 : vector<8x1xf32> to vector<8x1024xf32>
    %710 = arith.addf %708, %709 : vector<8x1024xf32>
    %cst_164 = arith.constant 0.000000e+00 : f32
    %711 = vector.broadcast %cst_164 : f32 to vector<8x1024xf32>
    %712 = arith.maximumf %710, %711 : vector<8x1024xf32>
    %713 = vector.broadcast %689 : vector<8x1xf32> to vector<8x1024xf32>
    %714 = arith.mulf %713, %712 : vector<8x1024xf32>
    %cst_165 = arith.constant dense<0.000000e+00> : vector<1024xf32>
    %715 = vector.multi_reduction <add>, %714, %cst_165 [0] : vector<8x1024xf32> to vector<1024xf32>
    %716 = vector.shape_cast %715 : vector<1024xf32> to vector<1x1024xf32>
    %717 = arith.addf %686, %716 : vector<1x1024xf32>
    %c184 = arith.constant 184 : index
    %c0_166 = arith.constant 0 : index
    %718 = vector.load %arg2[%c184, %c0_166] : memref<256x4xf32, #tpu.memory_space<vmem>>, vector<8x4xf32>
    %c184_167 = arith.constant 184 : index
    %c0_168 = arith.constant 0 : index
    %719 = vector.load %arg3[%c184_167, %c0_168] : memref<256x1xf32, #tpu.memory_space<vmem>>, vector<8x1xf32>
    %c184_169 = arith.constant 184 : index
    %c0_170 = arith.constant 0 : index
    %720 = vector.load %arg4[%c184_169, %c0_170] : memref<256x1xf32, #tpu.memory_space<vmem>>, vector<8x1xf32>
    %721 = vector.extract_strided_slice %718 {offsets = [0, 0], sizes = [8, 1], strides = [1, 1]} : vector<8x4xf32> to vector<8x1xf32>
    %722 = vector.broadcast %721 : vector<8x1xf32> to vector<8x1024xf32>
    %723 = vector.broadcast %0 : vector<1x1024xf32> to vector<8x1024xf32>
    %724 = arith.mulf %722, %723 : vector<8x1024xf32>
    %725 = vector.extract_strided_slice %718 {offsets = [0, 1], sizes = [8, 1], strides = [1, 1]} : vector<8x4xf32> to vector<8x1xf32>
    %726 = vector.broadcast %725 : vector<8x1xf32> to vector<8x1024xf32>
    %727 = vector.broadcast %1 : vector<1x1024xf32> to vector<8x1024xf32>
    %728 = arith.mulf %726, %727 : vector<8x1024xf32>
    %729 = arith.addf %724, %728 : vector<8x1024xf32>
    %730 = vector.extract_strided_slice %718 {offsets = [0, 2], sizes = [8, 1], strides = [1, 1]} : vector<8x4xf32> to vector<8x1xf32>
    %731 = vector.broadcast %730 : vector<8x1xf32> to vector<8x1024xf32>
    %732 = vector.broadcast %2 : vector<1x1024xf32> to vector<8x1024xf32>
    %733 = arith.mulf %731, %732 : vector<8x1024xf32>
    %734 = arith.addf %729, %733 : vector<8x1024xf32>
    %735 = vector.extract_strided_slice %718 {offsets = [0, 3], sizes = [8, 1], strides = [1, 1]} : vector<8x4xf32> to vector<8x1xf32>
    %736 = vector.broadcast %735 : vector<8x1xf32> to vector<8x1024xf32>
    %737 = vector.broadcast %3 : vector<1x1024xf32> to vector<8x1024xf32>
    %738 = arith.mulf %736, %737 : vector<8x1024xf32>
    %739 = arith.addf %734, %738 : vector<8x1024xf32>
    %740 = vector.broadcast %719 : vector<8x1xf32> to vector<8x1024xf32>
    %741 = arith.addf %739, %740 : vector<8x1024xf32>
    %cst_171 = arith.constant 0.000000e+00 : f32
    %742 = vector.broadcast %cst_171 : f32 to vector<8x1024xf32>
    %743 = arith.maximumf %741, %742 : vector<8x1024xf32>
    %744 = vector.broadcast %720 : vector<8x1xf32> to vector<8x1024xf32>
    %745 = arith.mulf %744, %743 : vector<8x1024xf32>
    %cst_172 = arith.constant dense<0.000000e+00> : vector<1024xf32>
    %746 = vector.multi_reduction <add>, %745, %cst_172 [0] : vector<8x1024xf32> to vector<1024xf32>
    %747 = vector.shape_cast %746 : vector<1024xf32> to vector<1x1024xf32>
    %748 = arith.addf %717, %747 : vector<1x1024xf32>
    %c192 = arith.constant 192 : index
    %c0_173 = arith.constant 0 : index
    %749 = vector.load %arg2[%c192, %c0_173] : memref<256x4xf32, #tpu.memory_space<vmem>>, vector<8x4xf32>
    %c192_174 = arith.constant 192 : index
    %c0_175 = arith.constant 0 : index
    %750 = vector.load %arg3[%c192_174, %c0_175] : memref<256x1xf32, #tpu.memory_space<vmem>>, vector<8x1xf32>
    %c192_176 = arith.constant 192 : index
    %c0_177 = arith.constant 0 : index
    %751 = vector.load %arg4[%c192_176, %c0_177] : memref<256x1xf32, #tpu.memory_space<vmem>>, vector<8x1xf32>
    %752 = vector.extract_strided_slice %749 {offsets = [0, 0], sizes = [8, 1], strides = [1, 1]} : vector<8x4xf32> to vector<8x1xf32>
    %753 = vector.broadcast %752 : vector<8x1xf32> to vector<8x1024xf32>
    %754 = vector.broadcast %0 : vector<1x1024xf32> to vector<8x1024xf32>
    %755 = arith.mulf %753, %754 : vector<8x1024xf32>
    %756 = vector.extract_strided_slice %749 {offsets = [0, 1], sizes = [8, 1], strides = [1, 1]} : vector<8x4xf32> to vector<8x1xf32>
    %757 = vector.broadcast %756 : vector<8x1xf32> to vector<8x1024xf32>
    %758 = vector.broadcast %1 : vector<1x1024xf32> to vector<8x1024xf32>
    %759 = arith.mulf %757, %758 : vector<8x1024xf32>
    %760 = arith.addf %755, %759 : vector<8x1024xf32>
    %761 = vector.extract_strided_slice %749 {offsets = [0, 2], sizes = [8, 1], strides = [1, 1]} : vector<8x4xf32> to vector<8x1xf32>
    %762 = vector.broadcast %761 : vector<8x1xf32> to vector<8x1024xf32>
    %763 = vector.broadcast %2 : vector<1x1024xf32> to vector<8x1024xf32>
    %764 = arith.mulf %762, %763 : vector<8x1024xf32>
    %765 = arith.addf %760, %764 : vector<8x1024xf32>
    %766 = vector.extract_strided_slice %749 {offsets = [0, 3], sizes = [8, 1], strides = [1, 1]} : vector<8x4xf32> to vector<8x1xf32>
    %767 = vector.broadcast %766 : vector<8x1xf32> to vector<8x1024xf32>
    %768 = vector.broadcast %3 : vector<1x1024xf32> to vector<8x1024xf32>
    %769 = arith.mulf %767, %768 : vector<8x1024xf32>
    %770 = arith.addf %765, %769 : vector<8x1024xf32>
    %771 = vector.broadcast %750 : vector<8x1xf32> to vector<8x1024xf32>
    %772 = arith.addf %770, %771 : vector<8x1024xf32>
    %cst_178 = arith.constant 0.000000e+00 : f32
    %773 = vector.broadcast %cst_178 : f32 to vector<8x1024xf32>
    %774 = arith.maximumf %772, %773 : vector<8x1024xf32>
    %775 = vector.broadcast %751 : vector<8x1xf32> to vector<8x1024xf32>
    %776 = arith.mulf %775, %774 : vector<8x1024xf32>
    %cst_179 = arith.constant dense<0.000000e+00> : vector<1024xf32>
    %777 = vector.multi_reduction <add>, %776, %cst_179 [0] : vector<8x1024xf32> to vector<1024xf32>
    %778 = vector.shape_cast %777 : vector<1024xf32> to vector<1x1024xf32>
    %779 = arith.addf %748, %778 : vector<1x1024xf32>
    %c200 = arith.constant 200 : index
    %c0_180 = arith.constant 0 : index
    %780 = vector.load %arg2[%c200, %c0_180] : memref<256x4xf32, #tpu.memory_space<vmem>>, vector<8x4xf32>
    %c200_181 = arith.constant 200 : index
    %c0_182 = arith.constant 0 : index
    %781 = vector.load %arg3[%c200_181, %c0_182] : memref<256x1xf32, #tpu.memory_space<vmem>>, vector<8x1xf32>
    %c200_183 = arith.constant 200 : index
    %c0_184 = arith.constant 0 : index
    %782 = vector.load %arg4[%c200_183, %c0_184] : memref<256x1xf32, #tpu.memory_space<vmem>>, vector<8x1xf32>
    %783 = vector.extract_strided_slice %780 {offsets = [0, 0], sizes = [8, 1], strides = [1, 1]} : vector<8x4xf32> to vector<8x1xf32>
    %784 = vector.broadcast %783 : vector<8x1xf32> to vector<8x1024xf32>
    %785 = vector.broadcast %0 : vector<1x1024xf32> to vector<8x1024xf32>
    %786 = arith.mulf %784, %785 : vector<8x1024xf32>
    %787 = vector.extract_strided_slice %780 {offsets = [0, 1], sizes = [8, 1], strides = [1, 1]} : vector<8x4xf32> to vector<8x1xf32>
    %788 = vector.broadcast %787 : vector<8x1xf32> to vector<8x1024xf32>
    %789 = vector.broadcast %1 : vector<1x1024xf32> to vector<8x1024xf32>
    %790 = arith.mulf %788, %789 : vector<8x1024xf32>
    %791 = arith.addf %786, %790 : vector<8x1024xf32>
    %792 = vector.extract_strided_slice %780 {offsets = [0, 2], sizes = [8, 1], strides = [1, 1]} : vector<8x4xf32> to vector<8x1xf32>
    %793 = vector.broadcast %792 : vector<8x1xf32> to vector<8x1024xf32>
    %794 = vector.broadcast %2 : vector<1x1024xf32> to vector<8x1024xf32>
    %795 = arith.mulf %793, %794 : vector<8x1024xf32>
    %796 = arith.addf %791, %795 : vector<8x1024xf32>
    %797 = vector.extract_strided_slice %780 {offsets = [0, 3], sizes = [8, 1], strides = [1, 1]} : vector<8x4xf32> to vector<8x1xf32>
    %798 = vector.broadcast %797 : vector<8x1xf32> to vector<8x1024xf32>
    %799 = vector.broadcast %3 : vector<1x1024xf32> to vector<8x1024xf32>
    %800 = arith.mulf %798, %799 : vector<8x1024xf32>
    %801 = arith.addf %796, %800 : vector<8x1024xf32>
    %802 = vector.broadcast %781 : vector<8x1xf32> to vector<8x1024xf32>
    %803 = arith.addf %801, %802 : vector<8x1024xf32>
    %cst_185 = arith.constant 0.000000e+00 : f32
    %804 = vector.broadcast %cst_185 : f32 to vector<8x1024xf32>
    %805 = arith.maximumf %803, %804 : vector<8x1024xf32>
    %806 = vector.broadcast %782 : vector<8x1xf32> to vector<8x1024xf32>
    %807 = arith.mulf %806, %805 : vector<8x1024xf32>
    %cst_186 = arith.constant dense<0.000000e+00> : vector<1024xf32>
    %808 = vector.multi_reduction <add>, %807, %cst_186 [0] : vector<8x1024xf32> to vector<1024xf32>
    %809 = vector.shape_cast %808 : vector<1024xf32> to vector<1x1024xf32>
    %810 = arith.addf %779, %809 : vector<1x1024xf32>
    %c208 = arith.constant 208 : index
    %c0_187 = arith.constant 0 : index
    %811 = vector.load %arg2[%c208, %c0_187] : memref<256x4xf32, #tpu.memory_space<vmem>>, vector<8x4xf32>
    %c208_188 = arith.constant 208 : index
    %c0_189 = arith.constant 0 : index
    %812 = vector.load %arg3[%c208_188, %c0_189] : memref<256x1xf32, #tpu.memory_space<vmem>>, vector<8x1xf32>
    %c208_190 = arith.constant 208 : index
    %c0_191 = arith.constant 0 : index
    %813 = vector.load %arg4[%c208_190, %c0_191] : memref<256x1xf32, #tpu.memory_space<vmem>>, vector<8x1xf32>
    %814 = vector.extract_strided_slice %811 {offsets = [0, 0], sizes = [8, 1], strides = [1, 1]} : vector<8x4xf32> to vector<8x1xf32>
    %815 = vector.broadcast %814 : vector<8x1xf32> to vector<8x1024xf32>
    %816 = vector.broadcast %0 : vector<1x1024xf32> to vector<8x1024xf32>
    %817 = arith.mulf %815, %816 : vector<8x1024xf32>
    %818 = vector.extract_strided_slice %811 {offsets = [0, 1], sizes = [8, 1], strides = [1, 1]} : vector<8x4xf32> to vector<8x1xf32>
    %819 = vector.broadcast %818 : vector<8x1xf32> to vector<8x1024xf32>
    %820 = vector.broadcast %1 : vector<1x1024xf32> to vector<8x1024xf32>
    %821 = arith.mulf %819, %820 : vector<8x1024xf32>
    %822 = arith.addf %817, %821 : vector<8x1024xf32>
    %823 = vector.extract_strided_slice %811 {offsets = [0, 2], sizes = [8, 1], strides = [1, 1]} : vector<8x4xf32> to vector<8x1xf32>
    %824 = vector.broadcast %823 : vector<8x1xf32> to vector<8x1024xf32>
    %825 = vector.broadcast %2 : vector<1x1024xf32> to vector<8x1024xf32>
    %826 = arith.mulf %824, %825 : vector<8x1024xf32>
    %827 = arith.addf %822, %826 : vector<8x1024xf32>
    %828 = vector.extract_strided_slice %811 {offsets = [0, 3], sizes = [8, 1], strides = [1, 1]} : vector<8x4xf32> to vector<8x1xf32>
    %829 = vector.broadcast %828 : vector<8x1xf32> to vector<8x1024xf32>
    %830 = vector.broadcast %3 : vector<1x1024xf32> to vector<8x1024xf32>
    %831 = arith.mulf %829, %830 : vector<8x1024xf32>
    %832 = arith.addf %827, %831 : vector<8x1024xf32>
    %833 = vector.broadcast %812 : vector<8x1xf32> to vector<8x1024xf32>
    %834 = arith.addf %832, %833 : vector<8x1024xf32>
    %cst_192 = arith.constant 0.000000e+00 : f32
    %835 = vector.broadcast %cst_192 : f32 to vector<8x1024xf32>
    %836 = arith.maximumf %834, %835 : vector<8x1024xf32>
    %837 = vector.broadcast %813 : vector<8x1xf32> to vector<8x1024xf32>
    %838 = arith.mulf %837, %836 : vector<8x1024xf32>
    %cst_193 = arith.constant dense<0.000000e+00> : vector<1024xf32>
    %839 = vector.multi_reduction <add>, %838, %cst_193 [0] : vector<8x1024xf32> to vector<1024xf32>
    %840 = vector.shape_cast %839 : vector<1024xf32> to vector<1x1024xf32>
    %841 = arith.addf %810, %840 : vector<1x1024xf32>
    %c216 = arith.constant 216 : index
    %c0_194 = arith.constant 0 : index
    %842 = vector.load %arg2[%c216, %c0_194] : memref<256x4xf32, #tpu.memory_space<vmem>>, vector<8x4xf32>
    %c216_195 = arith.constant 216 : index
    %c0_196 = arith.constant 0 : index
    %843 = vector.load %arg3[%c216_195, %c0_196] : memref<256x1xf32, #tpu.memory_space<vmem>>, vector<8x1xf32>
    %c216_197 = arith.constant 216 : index
    %c0_198 = arith.constant 0 : index
    %844 = vector.load %arg4[%c216_197, %c0_198] : memref<256x1xf32, #tpu.memory_space<vmem>>, vector<8x1xf32>
    %845 = vector.extract_strided_slice %842 {offsets = [0, 0], sizes = [8, 1], strides = [1, 1]} : vector<8x4xf32> to vector<8x1xf32>
    %846 = vector.broadcast %845 : vector<8x1xf32> to vector<8x1024xf32>
    %847 = vector.broadcast %0 : vector<1x1024xf32> to vector<8x1024xf32>
    %848 = arith.mulf %846, %847 : vector<8x1024xf32>
    %849 = vector.extract_strided_slice %842 {offsets = [0, 1], sizes = [8, 1], strides = [1, 1]} : vector<8x4xf32> to vector<8x1xf32>
    %850 = vector.broadcast %849 : vector<8x1xf32> to vector<8x1024xf32>
    %851 = vector.broadcast %1 : vector<1x1024xf32> to vector<8x1024xf32>
    %852 = arith.mulf %850, %851 : vector<8x1024xf32>
    %853 = arith.addf %848, %852 : vector<8x1024xf32>
    %854 = vector.extract_strided_slice %842 {offsets = [0, 2], sizes = [8, 1], strides = [1, 1]} : vector<8x4xf32> to vector<8x1xf32>
    %855 = vector.broadcast %854 : vector<8x1xf32> to vector<8x1024xf32>
    %856 = vector.broadcast %2 : vector<1x1024xf32> to vector<8x1024xf32>
    %857 = arith.mulf %855, %856 : vector<8x1024xf32>
    %858 = arith.addf %853, %857 : vector<8x1024xf32>
    %859 = vector.extract_strided_slice %842 {offsets = [0, 3], sizes = [8, 1], strides = [1, 1]} : vector<8x4xf32> to vector<8x1xf32>
    %860 = vector.broadcast %859 : vector<8x1xf32> to vector<8x1024xf32>
    %861 = vector.broadcast %3 : vector<1x1024xf32> to vector<8x1024xf32>
    %862 = arith.mulf %860, %861 : vector<8x1024xf32>
    %863 = arith.addf %858, %862 : vector<8x1024xf32>
    %864 = vector.broadcast %843 : vector<8x1xf32> to vector<8x1024xf32>
    %865 = arith.addf %863, %864 : vector<8x1024xf32>
    %cst_199 = arith.constant 0.000000e+00 : f32
    %866 = vector.broadcast %cst_199 : f32 to vector<8x1024xf32>
    %867 = arith.maximumf %865, %866 : vector<8x1024xf32>
    %868 = vector.broadcast %844 : vector<8x1xf32> to vector<8x1024xf32>
    %869 = arith.mulf %868, %867 : vector<8x1024xf32>
    %cst_200 = arith.constant dense<0.000000e+00> : vector<1024xf32>
    %870 = vector.multi_reduction <add>, %869, %cst_200 [0] : vector<8x1024xf32> to vector<1024xf32>
    %871 = vector.shape_cast %870 : vector<1024xf32> to vector<1x1024xf32>
    %872 = arith.addf %841, %871 : vector<1x1024xf32>
    %c224 = arith.constant 224 : index
    %c0_201 = arith.constant 0 : index
    %873 = vector.load %arg2[%c224, %c0_201] : memref<256x4xf32, #tpu.memory_space<vmem>>, vector<8x4xf32>
    %c224_202 = arith.constant 224 : index
    %c0_203 = arith.constant 0 : index
    %874 = vector.load %arg3[%c224_202, %c0_203] : memref<256x1xf32, #tpu.memory_space<vmem>>, vector<8x1xf32>
    %c224_204 = arith.constant 224 : index
    %c0_205 = arith.constant 0 : index
    %875 = vector.load %arg4[%c224_204, %c0_205] : memref<256x1xf32, #tpu.memory_space<vmem>>, vector<8x1xf32>
    %876 = vector.extract_strided_slice %873 {offsets = [0, 0], sizes = [8, 1], strides = [1, 1]} : vector<8x4xf32> to vector<8x1xf32>
    %877 = vector.broadcast %876 : vector<8x1xf32> to vector<8x1024xf32>
    %878 = vector.broadcast %0 : vector<1x1024xf32> to vector<8x1024xf32>
    %879 = arith.mulf %877, %878 : vector<8x1024xf32>
    %880 = vector.extract_strided_slice %873 {offsets = [0, 1], sizes = [8, 1], strides = [1, 1]} : vector<8x4xf32> to vector<8x1xf32>
    %881 = vector.broadcast %880 : vector<8x1xf32> to vector<8x1024xf32>
    %882 = vector.broadcast %1 : vector<1x1024xf32> to vector<8x1024xf32>
    %883 = arith.mulf %881, %882 : vector<8x1024xf32>
    %884 = arith.addf %879, %883 : vector<8x1024xf32>
    %885 = vector.extract_strided_slice %873 {offsets = [0, 2], sizes = [8, 1], strides = [1, 1]} : vector<8x4xf32> to vector<8x1xf32>
    %886 = vector.broadcast %885 : vector<8x1xf32> to vector<8x1024xf32>
    %887 = vector.broadcast %2 : vector<1x1024xf32> to vector<8x1024xf32>
    %888 = arith.mulf %886, %887 : vector<8x1024xf32>
    %889 = arith.addf %884, %888 : vector<8x1024xf32>
    %890 = vector.extract_strided_slice %873 {offsets = [0, 3], sizes = [8, 1], strides = [1, 1]} : vector<8x4xf32> to vector<8x1xf32>
    %891 = vector.broadcast %890 : vector<8x1xf32> to vector<8x1024xf32>
    %892 = vector.broadcast %3 : vector<1x1024xf32> to vector<8x1024xf32>
    %893 = arith.mulf %891, %892 : vector<8x1024xf32>
    %894 = arith.addf %889, %893 : vector<8x1024xf32>
    %895 = vector.broadcast %874 : vector<8x1xf32> to vector<8x1024xf32>
    %896 = arith.addf %894, %895 : vector<8x1024xf32>
    %cst_206 = arith.constant 0.000000e+00 : f32
    %897 = vector.broadcast %cst_206 : f32 to vector<8x1024xf32>
    %898 = arith.maximumf %896, %897 : vector<8x1024xf32>
    %899 = vector.broadcast %875 : vector<8x1xf32> to vector<8x1024xf32>
    %900 = arith.mulf %899, %898 : vector<8x1024xf32>
    %cst_207 = arith.constant dense<0.000000e+00> : vector<1024xf32>
    %901 = vector.multi_reduction <add>, %900, %cst_207 [0] : vector<8x1024xf32> to vector<1024xf32>
    %902 = vector.shape_cast %901 : vector<1024xf32> to vector<1x1024xf32>
    %903 = arith.addf %872, %902 : vector<1x1024xf32>
    %c232 = arith.constant 232 : index
    %c0_208 = arith.constant 0 : index
    %904 = vector.load %arg2[%c232, %c0_208] : memref<256x4xf32, #tpu.memory_space<vmem>>, vector<8x4xf32>
    %c232_209 = arith.constant 232 : index
    %c0_210 = arith.constant 0 : index
    %905 = vector.load %arg3[%c232_209, %c0_210] : memref<256x1xf32, #tpu.memory_space<vmem>>, vector<8x1xf32>
    %c232_211 = arith.constant 232 : index
    %c0_212 = arith.constant 0 : index
    %906 = vector.load %arg4[%c232_211, %c0_212] : memref<256x1xf32, #tpu.memory_space<vmem>>, vector<8x1xf32>
    %907 = vector.extract_strided_slice %904 {offsets = [0, 0], sizes = [8, 1], strides = [1, 1]} : vector<8x4xf32> to vector<8x1xf32>
    %908 = vector.broadcast %907 : vector<8x1xf32> to vector<8x1024xf32>
    %909 = vector.broadcast %0 : vector<1x1024xf32> to vector<8x1024xf32>
    %910 = arith.mulf %908, %909 : vector<8x1024xf32>
    %911 = vector.extract_strided_slice %904 {offsets = [0, 1], sizes = [8, 1], strides = [1, 1]} : vector<8x4xf32> to vector<8x1xf32>
    %912 = vector.broadcast %911 : vector<8x1xf32> to vector<8x1024xf32>
    %913 = vector.broadcast %1 : vector<1x1024xf32> to vector<8x1024xf32>
    %914 = arith.mulf %912, %913 : vector<8x1024xf32>
    %915 = arith.addf %910, %914 : vector<8x1024xf32>
    %916 = vector.extract_strided_slice %904 {offsets = [0, 2], sizes = [8, 1], strides = [1, 1]} : vector<8x4xf32> to vector<8x1xf32>
    %917 = vector.broadcast %916 : vector<8x1xf32> to vector<8x1024xf32>
    %918 = vector.broadcast %2 : vector<1x1024xf32> to vector<8x1024xf32>
    %919 = arith.mulf %917, %918 : vector<8x1024xf32>
    %920 = arith.addf %915, %919 : vector<8x1024xf32>
    %921 = vector.extract_strided_slice %904 {offsets = [0, 3], sizes = [8, 1], strides = [1, 1]} : vector<8x4xf32> to vector<8x1xf32>
    %922 = vector.broadcast %921 : vector<8x1xf32> to vector<8x1024xf32>
    %923 = vector.broadcast %3 : vector<1x1024xf32> to vector<8x1024xf32>
    %924 = arith.mulf %922, %923 : vector<8x1024xf32>
    %925 = arith.addf %920, %924 : vector<8x1024xf32>
    %926 = vector.broadcast %905 : vector<8x1xf32> to vector<8x1024xf32>
    %927 = arith.addf %925, %926 : vector<8x1024xf32>
    %cst_213 = arith.constant 0.000000e+00 : f32
    %928 = vector.broadcast %cst_213 : f32 to vector<8x1024xf32>
    %929 = arith.maximumf %927, %928 : vector<8x1024xf32>
    %930 = vector.broadcast %906 : vector<8x1xf32> to vector<8x1024xf32>
    %931 = arith.mulf %930, %929 : vector<8x1024xf32>
    %cst_214 = arith.constant dense<0.000000e+00> : vector<1024xf32>
    %932 = vector.multi_reduction <add>, %931, %cst_214 [0] : vector<8x1024xf32> to vector<1024xf32>
    %933 = vector.shape_cast %932 : vector<1024xf32> to vector<1x1024xf32>
    %934 = arith.addf %903, %933 : vector<1x1024xf32>
    %c240 = arith.constant 240 : index
    %c0_215 = arith.constant 0 : index
    %935 = vector.load %arg2[%c240, %c0_215] : memref<256x4xf32, #tpu.memory_space<vmem>>, vector<8x4xf32>
    %c240_216 = arith.constant 240 : index
    %c0_217 = arith.constant 0 : index
    %936 = vector.load %arg3[%c240_216, %c0_217] : memref<256x1xf32, #tpu.memory_space<vmem>>, vector<8x1xf32>
    %c240_218 = arith.constant 240 : index
    %c0_219 = arith.constant 0 : index
    %937 = vector.load %arg4[%c240_218, %c0_219] : memref<256x1xf32, #tpu.memory_space<vmem>>, vector<8x1xf32>
    %938 = vector.extract_strided_slice %935 {offsets = [0, 0], sizes = [8, 1], strides = [1, 1]} : vector<8x4xf32> to vector<8x1xf32>
    %939 = vector.broadcast %938 : vector<8x1xf32> to vector<8x1024xf32>
    %940 = vector.broadcast %0 : vector<1x1024xf32> to vector<8x1024xf32>
    %941 = arith.mulf %939, %940 : vector<8x1024xf32>
    %942 = vector.extract_strided_slice %935 {offsets = [0, 1], sizes = [8, 1], strides = [1, 1]} : vector<8x4xf32> to vector<8x1xf32>
    %943 = vector.broadcast %942 : vector<8x1xf32> to vector<8x1024xf32>
    %944 = vector.broadcast %1 : vector<1x1024xf32> to vector<8x1024xf32>
    %945 = arith.mulf %943, %944 : vector<8x1024xf32>
    %946 = arith.addf %941, %945 : vector<8x1024xf32>
    %947 = vector.extract_strided_slice %935 {offsets = [0, 2], sizes = [8, 1], strides = [1, 1]} : vector<8x4xf32> to vector<8x1xf32>
    %948 = vector.broadcast %947 : vector<8x1xf32> to vector<8x1024xf32>
    %949 = vector.broadcast %2 : vector<1x1024xf32> to vector<8x1024xf32>
    %950 = arith.mulf %948, %949 : vector<8x1024xf32>
    %951 = arith.addf %946, %950 : vector<8x1024xf32>
    %952 = vector.extract_strided_slice %935 {offsets = [0, 3], sizes = [8, 1], strides = [1, 1]} : vector<8x4xf32> to vector<8x1xf32>
    %953 = vector.broadcast %952 : vector<8x1xf32> to vector<8x1024xf32>
    %954 = vector.broadcast %3 : vector<1x1024xf32> to vector<8x1024xf32>
    %955 = arith.mulf %953, %954 : vector<8x1024xf32>
    %956 = arith.addf %951, %955 : vector<8x1024xf32>
    %957 = vector.broadcast %936 : vector<8x1xf32> to vector<8x1024xf32>
    %958 = arith.addf %956, %957 : vector<8x1024xf32>
    %cst_220 = arith.constant 0.000000e+00 : f32
    %959 = vector.broadcast %cst_220 : f32 to vector<8x1024xf32>
    %960 = arith.maximumf %958, %959 : vector<8x1024xf32>
    %961 = vector.broadcast %937 : vector<8x1xf32> to vector<8x1024xf32>
    %962 = arith.mulf %961, %960 : vector<8x1024xf32>
    %cst_221 = arith.constant dense<0.000000e+00> : vector<1024xf32>
    %963 = vector.multi_reduction <add>, %962, %cst_221 [0] : vector<8x1024xf32> to vector<1024xf32>
    %964 = vector.shape_cast %963 : vector<1024xf32> to vector<1x1024xf32>
    %965 = arith.addf %934, %964 : vector<1x1024xf32>
    %c248 = arith.constant 248 : index
    %c0_222 = arith.constant 0 : index
    %966 = vector.load %arg2[%c248, %c0_222] : memref<256x4xf32, #tpu.memory_space<vmem>>, vector<8x4xf32>
    %c248_223 = arith.constant 248 : index
    %c0_224 = arith.constant 0 : index
    %967 = vector.load %arg3[%c248_223, %c0_224] : memref<256x1xf32, #tpu.memory_space<vmem>>, vector<8x1xf32>
    %c248_225 = arith.constant 248 : index
    %c0_226 = arith.constant 0 : index
    %968 = vector.load %arg4[%c248_225, %c0_226] : memref<256x1xf32, #tpu.memory_space<vmem>>, vector<8x1xf32>
    %969 = vector.extract_strided_slice %966 {offsets = [0, 0], sizes = [8, 1], strides = [1, 1]} : vector<8x4xf32> to vector<8x1xf32>
    %970 = vector.broadcast %969 : vector<8x1xf32> to vector<8x1024xf32>
    %971 = vector.broadcast %0 : vector<1x1024xf32> to vector<8x1024xf32>
    %972 = arith.mulf %970, %971 : vector<8x1024xf32>
    %973 = vector.extract_strided_slice %966 {offsets = [0, 1], sizes = [8, 1], strides = [1, 1]} : vector<8x4xf32> to vector<8x1xf32>
    %974 = vector.broadcast %973 : vector<8x1xf32> to vector<8x1024xf32>
    %975 = vector.broadcast %1 : vector<1x1024xf32> to vector<8x1024xf32>
    %976 = arith.mulf %974, %975 : vector<8x1024xf32>
    %977 = arith.addf %972, %976 : vector<8x1024xf32>
    %978 = vector.extract_strided_slice %966 {offsets = [0, 2], sizes = [8, 1], strides = [1, 1]} : vector<8x4xf32> to vector<8x1xf32>
    %979 = vector.broadcast %978 : vector<8x1xf32> to vector<8x1024xf32>
    %980 = vector.broadcast %2 : vector<1x1024xf32> to vector<8x1024xf32>
    %981 = arith.mulf %979, %980 : vector<8x1024xf32>
    %982 = arith.addf %977, %981 : vector<8x1024xf32>
    %983 = vector.extract_strided_slice %966 {offsets = [0, 3], sizes = [8, 1], strides = [1, 1]} : vector<8x4xf32> to vector<8x1xf32>
    %984 = vector.broadcast %983 : vector<8x1xf32> to vector<8x1024xf32>
    %985 = vector.broadcast %3 : vector<1x1024xf32> to vector<8x1024xf32>
    %986 = arith.mulf %984, %985 : vector<8x1024xf32>
    %987 = arith.addf %982, %986 : vector<8x1024xf32>
    %988 = vector.broadcast %967 : vector<8x1xf32> to vector<8x1024xf32>
    %989 = arith.addf %987, %988 : vector<8x1024xf32>
    %cst_227 = arith.constant 0.000000e+00 : f32
    %990 = vector.broadcast %cst_227 : f32 to vector<8x1024xf32>
    %991 = arith.maximumf %989, %990 : vector<8x1024xf32>
    %992 = vector.broadcast %968 : vector<8x1xf32> to vector<8x1024xf32>
    %993 = arith.mulf %992, %991 : vector<8x1024xf32>
    %cst_228 = arith.constant dense<0.000000e+00> : vector<1024xf32>
    %994 = vector.multi_reduction <add>, %993, %cst_228 [0] : vector<8x1024xf32> to vector<1024xf32>
    %995 = vector.shape_cast %994 : vector<1024xf32> to vector<1x1024xf32>
    %996 = arith.addf %965, %995 : vector<1x1024xf32>
    %c0_229 = arith.constant 0 : index
    %c0_230 = arith.constant 0 : index
    %997 = memref.load %arg5[%c0_229, %c0_230] : memref<1x1xf32, #tpu.memory_space<smem>>
    %998 = vector.broadcast %997 : f32 to vector<1x1024xf32>
    %999 = arith.addf %996, %998 : vector<1x1024xf32>
    %c0_231 = arith.constant 0 : index
    %c0_232 = arith.constant 0 : index
    %1000 = vector.load %arg6[%c0_231, %c0_232] : memref<1x1024xf32, #tpu.memory_space<vmem>>, vector<1x1024xf32>
    tpu.vector_store %arg6[%c0_231, %c0_232], %999 {strides = array<i32>} : memref<1x1024xf32, #tpu.memory_space<vmem>>, vector<1x1024xf32>,
    return
  }
  func.func @transform_0(%arg0: i32) -> (i32, i32) {
    %c0_i32 = arith.constant 0 : i32
    %c0_i32_0 = arith.constant 0 : i32
    return %c0_i32, %arg0 : i32, i32
  }
  func.func @transform_1(%arg0: i32) -> (i32, i32) {
    %c0_i32 = arith.constant 0 : i32
    %c0_i32_0 = arith.constant 0 : i32
    %c0_i32_1 = arith.constant 0 : i32
    return %c0_i32, %c0_i32_0 : i32, i32
  }
  func.func @transform_2(%arg0: i32) -> (i32, i32) {
    %c0_i32 = arith.constant 0 : i32
    %c0_i32_0 = arith.constant 0 : i32
    %c0_i32_1 = arith.constant 0 : i32
    return %c0_i32, %c0_i32_0 : i32, i32
  }
  func.func @transform_3(%arg0: i32) -> (i32, i32) {
    %c0_i32 = arith.constant 0 : i32
    %c0_i32_0 = arith.constant 0 : i32
    %c0_i32_1 = arith.constant 0 : i32
    return %c0_i32, %c0_i32_0 : i32, i32
  }
  func.func @transform_4(%arg0: i32) -> (i32, i32) {
    %c0_i32 = arith.constant 0 : i32
    %c0_i32_0 = arith.constant 0 : i32
    %c0_i32_1 = arith.constant 0 : i32
    return %c0_i32, %c0_i32_0 : i32, i32
  }
  func.func @transform_5(%arg0: i32) -> (i32, i32) {
    %c0_i32 = arith.constant 0 : i32
    %c0_i32_0 = arith.constant 0 : i32
    return %c0_i32, %arg0 : i32, i32
  }
}

</mosaic_0001>

<llo_original>
// kernel: tpu_custom_call.1
$region0: #{tpu_custom_call.1}
  #allocation0 [shape = 'u32[]', space=smem, size = 0x4, offset = 0x4, fixed_abs, tag = 'smem constant byte address 0x4 - core index']
  #allocation1 [shape = 'u32[144,128]{1,0:T(1,128)}', space=vmem, size = 0x12000, scoped, tag = 'internal scratch']
  #allocation2 [shape = 'f32[1,1]{1,0:T(1,128)S(6)}', space=smem, size = 0x200, scoped, tag = 'scoped memory for tpu_custom_call.1']
  %s0 = inlined_call_operand.vmem [shape: f32[4,4096], index: 0, kind: input, shape index: {}]
  %s1 = inlined_call_operand.vmem [shape: f32[256,4], index: 1, kind: input, shape index: {}]
  %s2 = inlined_call_operand.vmem [shape: f32[256,1], index: 2, kind: input, shape index: {}]
  %s3 = inlined_call_operand.vmem [shape: f32[256,1], index: 3, kind: input, shape index: {}]
  %s4 = inlined_call_operand.<no memory space> [shape: f32[1,1], index: 4, kind: input, shape index: {}]
  %s5 = inlined_call_operand.hbm [shape: f32[1,4096], index: 5, kind: output, shape index: {}]
  %s6 = sld [smem:[#allocation0]]
  $region53: #{tpu_custom_call.1} parent=0
    _
  %s8 = ssub.s32 1, %s6
  %s9 = scalar_select 0, %s8, %s6
  %10 = sst [smem:[#allocation2]] %s4
  $region1: #{tpu_custom_call.1} parent=0
    #allocation3 [shape = 'u8[8192]{0}', space=vmem, size = 0x2000, scoped, tag = 'output window, operand 0']
    #allocation4 [shape = 's32[2]{0}', space=sflag, size = 0x8, scoped, tag = 'scoped memory for tpu_custom_call.1']
    %11 = vsyncpa [#allocation4], 0
    %s12 = scalar_lea.sflag [#allocation4], 1
    %13 = vsyncpa %s12, 0
    loop: start=0, step=1, limit=6
    $region2: #{tpu_custom_call.1} parent=1 // loop_pre_header
      _
    $region3: #{tpu_custom_call.1} parent=1 // loop_header
      %s15 = sphi 0, %s19
      %p16 = scmp.ge.s32.totalorder %s15, 6
      %s25 = sphi 0, %s27
      %s28 = sphi 0, %s25
      %s29 = sphi 0, %s28
      %s45 = sphi 0, %s29
      %s49 = sphi 0, %s49
      %s51 = sphi 0, %s49
      %s52 = sphi 0, %s51
      %s66 = sphi 0, %s52
      %s70 = sphi 0, %s70
      %s72 = sphi 0, %s70
      %s73 = sphi 0, %s72
      %s87 = sphi 0, %s73
      %s91 = sphi 0, %s91
      %s93 = sphi 0, %s91
      %s94 = sphi 0, %s93
      %s108 = sphi 0, %s94
      %s112 = sphi 0, %s112
      %s114 = sphi 0, %s112
      %s115 = sphi 0, %s114
      %s129 = sphi 0, %s115
      %s135 = sphi 0, %s137
      %s138 = sphi 0, %s135
      %s139 = sphi 0, %s138
      %s155 = sphi 0, %s139
    $region4: #{tpu_custom_call.1} parent=1 // loop_header_branch
      %18 = sbr.rel (%p16) target = $region8
    $region5: #{tpu_custom_call.1} parent=1 // loop_body
      %s20 = ssub.s32 %s15, 1
      %s21 = ssub.s32 %s15, 2
      %s22 = sadd.s32 %s15, 1
      %s23 = ssub.s32 %s15, %s22
      %p24 = scmp.eq.s32.totalorder %s23, 0
      %s26 = sadd.s32 %s25, 1
      %s27 = scalar_select %p24, %s25, %s26
      %p30 = pneg %p24
      %p31 = scmp.eq.s32.totalorder %s15, 3
      %p32 = por %p30, %p31
      %p33 = scmp.ne.s32.totalorder %s25, %s28
      %p34 = scmp.eq.s32.totalorder %s15, 0
      %p35 = por %p33, %p34
      %p36 = scmp.ne.s32.totalorder %s25, %s28
      %p37 = scmp.eq.s32.totalorder %s20, 3
      %p38 = por %p36, %p37
      %p39 = scmp.ne.s32.totalorder %s28, %s29
      %p40 = scmp.eq.s32.totalorder %s20, 0
      %p41 = por %p39, %p40
      %p42 = scmp.ne.s32.totalorder %s28, %s29
      %p43 = scmp.eq.s32.totalorder %s21, 3
      %p44 = por %p42, %p43
      %p46 = scmp.ne.s32.totalorder %s29, %s45
      %p47 = scmp.eq.s32.totalorder %s21, 0
      %p48 = por %p46, %p47
      %s50 = sadd.s32 %s49, 1
      %p53 = scmp.eq.s32.totalorder %s15, 3
      %p54 = scmp.ne.s32.totalorder %s49, %s51
      %p55 = scmp.eq.s32.totalorder %s15, 0
      %p56 = por %p54, %p55
      %p57 = scmp.ne.s32.totalorder %s49, %s51
      %p58 = scmp.eq.s32.totalorder %s20, 3
      %p59 = por %p57, %p58
      %p60 = scmp.ne.s32.totalorder %s51, %s52
      %p61 = scmp.eq.s32.totalorder %s20, 0
      %p62 = por %p60, %p61
      %p63 = scmp.ne.s32.totalorder %s51, %s52
      %p64 = scmp.eq.s32.totalorder %s21, 3
      %p65 = por %p63, %p64
      %p67 = scmp.ne.s32.totalorder %s52, %s66
      %p68 = scmp.eq.s32.totalorder %s21, 0
      %p69 = por %p67, %p68
      %s71 = sadd.s32 %s70, 1
      %p74 = scmp.eq.s32.totalorder %s15, 3
      %p75 = scmp.ne.s32.totalorder %s70, %s72
      %p76 = scmp.eq.s32.totalorder %s15, 0
      %p77 = por %p75, %p76
      %p78 = scmp.ne.s32.totalorder %s70, %s72
      %p79 = scmp.eq.s32.totalorder %s20, 3
      %p80 = por %p78, %p79
      %p81 = scmp.ne.s32.totalorder %s72, %s73
      %p82 = scmp.eq.s32.totalorder %s20, 0
      %p83 = por %p81, %p82
      %p84 = scmp.ne.s32.totalorder %s72, %s73
      %p85 = scmp.eq.s32.totalorder %s21, 3
      %p86 = por %p84, %p85
      %p88 = scmp.ne.s32.totalorder %s73, %s87
      %p89 = scmp.eq.s32.totalorder %s21, 0
      %p90 = por %p88, %p89
      %s92 = sadd.s32 %s91, 1
      %p95 = scmp.eq.s32.totalorder %s15, 3
      %p96 = scmp.ne.s32.totalorder %s91, %s93
      %p97 = scmp.eq.s32.totalorder %s15, 0
      %p98 = por %p96, %p97
      %p99 = scmp.ne.s32.totalorder %s91, %s93
      %p100 = scmp.eq.s32.totalorder %s20, 3
      %p101 = por %p99, %p100
      %p102 = scmp.ne.s32.totalorder %s93, %s94
      %p103 = scmp.eq.s32.totalorder %s20, 0
      %p104 = por %p102, %p103
      %p105 = scmp.ne.s32.totalorder %s93, %s94
      %p106 = scmp.eq.s32.totalorder %s21, 3
      %p107 = por %p105, %p106
      %p109 = scmp.ne.s32.totalorder %s94, %s108
      %p110 = scmp.eq.s32.totalorder %s21, 0
      %p111 = por %p109, %p110
      %s113 = sadd.s32 %s112, 1
      %p116 = scmp.eq.s32.totalorder %s15, 3
      %p117 = scmp.ne.s32.totalorder %s112, %s114
      %p118 = scmp.eq.s32.totalorder %s15, 0
      %p119 = por %p117, %p118
      %p120 = scmp.ne.s32.totalorder %s112, %s114
      %p121 = scmp.eq.s32.totalorder %s20, 3
      %p122 = por %p120, %p121
      %p123 = scmp.ne.s32.totalorder %s114, %s115
      %p124 = scmp.eq.s32.totalorder %s20, 0
      %p125 = por %p123, %p124
      %p126 = scmp.ne.s32.totalorder %s114, %s115
      %p127 = scmp.eq.s32.totalorder %s21, 3
      %p128 = por %p126, %p127
      %p130 = scmp.ne.s32.totalorder %s115, %s129
      %p131 = scmp.eq.s32.totalorder %s21, 0
      %p132 = por %p130, %p131
      %s133 = ssub.s32 %s15, %s22
      %p134 = scmp.eq.s32.totalorder %s133, 0
      %s136 = sadd.s32 %s135, 1
      %s137 = scalar_select %p134, %s135, %s136
      %p140 = pneg %p134
      %p141 = scmp.eq.s32.totalorder %s15, 3
      %p142 = por %p140, %p141
      %p143 = scmp.ne.s32.totalorder %s135, %s138
      %p144 = scmp.eq.s32.totalorder %s15, 0
      %p145 = por %p143, %p144
      %p146 = scmp.ne.s32.totalorder %s135, %s138
      %p147 = scmp.eq.s32.totalorder %s20, 3
      %p148 = por %p146, %p147
      %p149 = scmp.ne.s32.totalorder %s138, %s139
      %p150 = scmp.eq.s32.totalorder %s20, 0
      %p151 = por %p149, %p150
      %p152 = scmp.ne.s32.totalorder %s138, %s139
      %p153 = scmp.eq.s32.totalorder %s21, 3
      %p154 = por %p152, %p153
      %p156 = scmp.ne.s32.totalorder %s139, %s155
      %p157 = scmp.eq.s32.totalorder %s21, 0
      %p158 = por %p156, %p157
      %p159 = scmp.le.s32.totalorder 1, %s15
      %p160 = scmp.lt.s32.totalorder %s15, 5
      %p161 = pnand %p159, %p160
      %p162 = pneg %p161
      // Predicated region
      $region9: #{tpu_custom_call.1} parent=5 // pred_check
        _
      $region10: #{tpu_custom_call.1} parent=5 // pred_check_branch
        %164 = sbr.rel (%p161) target = $region12
      $region11: #{tpu_custom_call.1} parent=5 // pred_region
        %s165 = ssub.s32 %s15, 1
        // Predicated region
        $region13: #{tpu_custom_call.1} parent=11 // pred_check
          %p166 = pneg %p62
        $region14: #{tpu_custom_call.1} parent=11 // pred_check_branch
          %168 = sbr.rel (%p166) target = $region16
        $region15: #{tpu_custom_call.1} parent=11 // pred_region
          _
        $region16: #{tpu_custom_call.1} parent=11 // pred_fallthru
          _
        // Predicated region
        $region17: #{tpu_custom_call.1} parent=11 // pred_check
          %p169 = pneg %p83
        $region18: #{tpu_custom_call.1} parent=11 // pred_check_branch
          %171 = sbr.rel (%p169) target = $region20
        $region19: #{tpu_custom_call.1} parent=11 // pred_region
          _
        $region20: #{tpu_custom_call.1} parent=11 // pred_fallthru
          _
        // Predicated region
        $region21: #{tpu_custom_call.1} parent=11 // pred_check
          %p172 = pneg %p104
        $region22: #{tpu_custom_call.1} parent=11 // pred_check_branch
          %174 = sbr.rel (%p172) target = $region24
        $region23: #{tpu_custom_call.1} parent=11 // pred_region
          _
        $region24: #{tpu_custom_call.1} parent=11 // pred_fallthru
          _
        // Predicated region
        $region25: #{tpu_custom_call.1} parent=11 // pred_check
          %p175 = pneg %p125
        $region26: #{tpu_custom_call.1} parent=11 // pred_check_branch
          %177 = sbr.rel (%p175) target = $region28
        $region27: #{tpu_custom_call.1} parent=11 // pred_region
          _
        $region28: #{tpu_custom_call.1} parent=11 // pred_fallthru
          _
      $region12: #{tpu_custom_call.1} parent=5 // pred_fallthru
        _
      %p178 = scmp.lt.s32.totalorder %s15, 4
      // Predicated region
      $region29: #{tpu_custom_call.1} parent=5 // pred_check
        %p179 = pneg %p178
      $region30: #{tpu_custom_call.1} parent=5 // pred_check_branch
        %181 = sbr.rel (%p179) target = $region32
      $region31: #{tpu_custom_call.1} parent=5 // pred_region
        // Predicated region
        $region33: #{tpu_custom_call.1} parent=31 // pred_check
          %p182 = pneg %p35
        $region34: #{tpu_custom_call.1} parent=31 // pred_check_branch
          %184 = sbr.rel (%p182) target = $region36
        $region35: #{tpu_custom_call.1} parent=31 // pred_region
          %s185 = smul.u32 8, %s15
          %p186 = scmp.lt.s32.totalorder %s185, 31
          %s187 = scalar_select %p186, %s185, 31
          %s188 = smul.addr %s187, 4
          %s189 = scalar_lea.vmem %s0, %s188
          %s190 = smul.u32 8, %s15
        $region36: #{tpu_custom_call.1} parent=31 // pred_fallthru
          _
      $region32: #{tpu_custom_call.1} parent=5 // pred_fallthru
        _
      %p191 = scmp.le.s32.totalorder 1, %s15
      %p192 = scmp.lt.s32.totalorder %s15, 5
      %p193 = pnand %p191, %p192
      %p194 = pneg %p193
      // Predicated region
      $region37: #{tpu_custom_call.1} parent=5 // pred_check
        _
      $region38: #{tpu_custom_call.1} parent=5 // pred_check_branch
        %196 = sbr.rel (%p193) target = $region40
      $region39: #{tpu_custom_call.1} parent=5 // pred_region
        %s197 = ssub.s32 %s15, 1
        %s198 = smul.u32 8, %s20
        %p199 = scmp.lt.s32.totalorder %s198, 31
        %s200 = scalar_select %p199, %s198, 31
        %s201 = smul.addr %s200, 4
        %s202 = scalar_lea.vmem %s0, %s201
        %p203 = pneg %p41
        %p204 = pneg %p38
        %p205 = pneg %p62
        %p206 = pneg %p59
        %p207 = pneg %p83
        %p208 = pneg %p80
        %p209 = pneg %p104
        %p210 = pneg %p101
        %p211 = pneg %p125
        %p212 = pneg %p122
        %p213 = pneg %p151
        %p214 = pneg %p148
        %s215 = sand.u32 %s138, 1
        %s216 = scalar_lea.sflag [#allocation4], %s215
        %s217 = sand.u32 %s138, 1
        %s218 = smul.addr %s217, 8
        %s219 = scalar_lea.vmem [#allocation3], %s218
        %s220 = smul.u32 8, %s20
        %p221 = scmp.lt.s32.totalorder %s220, 31
        %s222 = scalar_select %p221, %s220, 31
        %s223 = smul.addr %s222, 4
        %s224 = scalar_lea.vmem %s0, %s223
        %s225 = smul.u32 8, %s20
        %s226 = smul.u32 8, %s20
        %v227 = vld [vmem:[%s224] ss:$4 sm:$0xff]
        %s228 = scalar_lea.vmem %s224, 1
        %v229 = vld [vmem:[%s228] ss:$4 sm:$0xff]
        %s230 = scalar_lea.vmem %s224, 2
        %v231 = vld [vmem:[%s230] ss:$4 sm:$0xff]
        %s232 = scalar_lea.vmem %s224, 3
        %v233 = vld [vmem:[%s232] ss:$4 sm:$0xff]
        %v234 = vld [vmem:[%s1] sm:$0xff]
        %v235 = vld [vmem:[%s2] sm:$0xff]
        %v236 = vld [vmem:[%s3] sm:$0xff]
        %238 = vset.pattern.permute.xlu0 0
        %239 = vperm.xlu0 %238, %v234
        %v240 = vpop.permute.xlu0 %239
        %v243 = vlaneseq
        %v244 = vshrl.u32 %v243, 7
        %v245 = vsub.s32 0, %v244
        %v246 = vrot.slane %v227, %v245
        %v247 = vlaneseq
        %v248 = vshrl.u32 %v247, 7
        %v249 = vsub.s32 1, %v248
        %v250 = vrot.slane %v227, %v249
        %v251 = vlaneseq
        %v252 = vshrl.u32 %v251, 7
        %v253 = vsub.s32 2, %v252
        %v254 = vrot.slane %v227, %v253
        %v255 = vlaneseq
        %v256 = vshrl.u32 %v255, 7
        %v257 = vsub.s32 3, %v256
        %v258 = vrot.slane %v227, %v257
        %v259 = vlaneseq
        %v260 = vshrl.u32 %v259, 7
        %v261 = vsub.s32 4, %v260
        %v262 = vrot.slane %v227, %v261
        %v263 = vlaneseq
        %v264 = vshrl.u32 %v263, 7
        %v265 = vsub.s32 5, %v264
        %v266 = vrot.slane %v227, %v265
        %v267 = vlaneseq
        %v268 = vshrl.u32 %v267, 7
        %v269 = vsub.s32 6, %v268
        %v270 = vrot.slane %v227, %v269
        %v271 = vlaneseq
        %v272 = vshrl.u32 %v271, 7
        %v273 = vsub.s32 7, %v272
        %v274 = vrot.slane %v227, %v273
        %v283 = vmul.f32 %v240, %v246
        %v284 = vmul.f32 %v240, %v250
        %v285 = vmul.f32 %v240, %v254
        %v286 = vmul.f32 %v240, %v258
        %v287 = vmul.f32 %v240, %v262
        %v288 = vmul.f32 %v240, %v266
        %v289 = vmul.f32 %v240, %v270
        %v290 = vmul.f32 %v240, %v274
        %291 = vset.pattern.permute.xlu0 1
        %292 = vperm.xlu0 %291, %v234
        %v293 = vpop.permute.xlu0 %292
        %v296 = vlaneseq
        %v297 = vshrl.u32 %v296, 7
        %v298 = vsub.s32 0, %v297
        %v299 = vrot.slane %v229, %v298
        %v300 = vlaneseq
        %v301 = vshrl.u32 %v300, 7
        %v302 = vsub.s32 1, %v301
        %v303 = vrot.slane %v229, %v302
        %v304 = vlaneseq
        %v305 = vshrl.u32 %v304, 7
        %v306 = vsub.s32 2, %v305
        %v307 = vrot.slane %v229, %v306
        %v308 = vlaneseq
        %v309 = vshrl.u32 %v308, 7
        %v310 = vsub.s32 3, %v309
        %v311 = vrot.slane %v229, %v310
        %v312 = vlaneseq
        %v313 = vshrl.u32 %v312, 7
        %v314 = vsub.s32 4, %v313
        %v315 = vrot.slane %v229, %v314
        %v316 = vlaneseq
        %v317 = vshrl.u32 %v316, 7
        %v318 = vsub.s32 5, %v317
        %v319 = vrot.slane %v229, %v318
        %v320 = vlaneseq
        %v321 = vshrl.u32 %v320, 7
        %v322 = vsub.s32 6, %v321
        %v323 = vrot.slane %v229, %v322
        %v324 = vlaneseq
        %v325 = vshrl.u32 %v324, 7
        %v326 = vsub.s32 7, %v325
        %v327 = vrot.slane %v229, %v326
        %v336 = vmul.f32 %v293, %v299
        %v337 = vmul.f32 %v293, %v303
        %v338 = vmul.f32 %v293, %v307
        %v339 = vmul.f32 %v293, %v311
        %v340 = vmul.f32 %v293, %v315
        %v341 = vmul.f32 %v293, %v319
        %v342 = vmul.f32 %v293, %v323
        %v343 = vmul.f32 %v293, %v327
        %v344 = vadd.f32 %v283, %v336
        %v345 = vadd.f32 %v284, %v337
        %v346 = vadd.f32 %v285, %v338
        %v347 = vadd.f32 %v286, %v339
        %v348 = vadd.f32 %v287, %v340
        %v349 = vadd.f32 %v288, %v341
        %v350 = vadd.f32 %v289, %v342
        %v351 = vadd.f32 %v290, %v343
        %352 = vset.pattern.permute.xlu0 2
        %353 = vperm.xlu0 %352, %v234
        %v354 = vpop.permute.xlu0 %353
        %v357 = vlaneseq
        %v358 = vshrl.u32 %v357, 7
        %v359 = vsub.s32 0, %v358
        %v360 = vrot.slane %v231, %v359
        %v361 = vlaneseq
        %v362 = vshrl.u32 %v361, 7
        %v363 = vsub.s32 1, %v362
        %v364 = vrot.slane %v231, %v363
        %v365 = vlaneseq
        %v366 = vshrl.u32 %v365, 7
        %v367 = vsub.s32 2, %v366
        %v368 = vrot.slane %v231, %v367
        %v369 = vlaneseq
        %v370 = vshrl.u32 %v369, 7
        %v371 = vsub.s32 3, %v370
        %v372 = vrot.slane %v231, %v371
        %v373 = vlaneseq
        %v374 = vshrl.u32 %v373, 7
        %v375 = vsub.s32 4, %v374
        %v376 = vrot.slane %v231, %v375
        %v377 = vlaneseq
        %v378 = vshrl.u32 %v377, 7
        %v379 = vsub.s32 5, %v378
        %v380 = vrot.slane %v231, %v379
        %v381 = vlaneseq
        %v382 = vshrl.u32 %v381, 7
        %v383 = vsub.s32 6, %v382
        %v384 = vrot.slane %v231, %v383
        %v385 = vlaneseq
        %v386 = vshrl.u32 %v385, 7
        %v387 = vsub.s32 7, %v386
        %v388 = vrot.slane %v231, %v387
        %v397 = vmul.f32 %v354, %v360
        %v398 = vmul.f32 %v354, %v364
        %v399 = vmul.f32 %v354, %v368
        %v400 = vmul.f32 %v354, %v372
        %v401 = vmul.f32 %v354, %v376
        %v402 = vmul.f32 %v354, %v380
        %v403 = vmul.f32 %v354, %v384
        %v404 = vmul.f32 %v354, %v388
        %v405 = vadd.f32 %v344, %v397
        %v406 = vadd.f32 %v345, %v398
        %v407 = vadd.f32 %v346, %v399
        %v408 = vadd.f32 %v347, %v400
        %v409 = vadd.f32 %v348, %v401
        %v410 = vadd.f32 %v349, %v402
        %v411 = vadd.f32 %v350, %v403
        %v412 = vadd.f32 %v351, %v404
        %413 = vset.pattern.permute.xlu0 3
        %414 = vperm.xlu0 %413, %v234
        %v415 = vpop.permute.xlu0 %414
        %v418 = vlaneseq
        %v419 = vshrl.u32 %v418, 7
        %v420 = vsub.s32 0, %v419
        %v421 = vrot.slane %v233, %v420
        %v422 = vlaneseq
        %v423 = vshrl.u32 %v422, 7
        %v424 = vsub.s32 1, %v423
        %v425 = vrot.slane %v233, %v424
        %v426 = vlaneseq
        %v427 = vshrl.u32 %v426, 7
        %v428 = vsub.s32 2, %v427
        %v429 = vrot.slane %v233, %v428
        %v430 = vlaneseq
        %v431 = vshrl.u32 %v430, 7
        %v432 = vsub.s32 3, %v431
        %v433 = vrot.slane %v233, %v432
        %v434 = vlaneseq
        %v435 = vshrl.u32 %v434, 7
        %v436 = vsub.s32 4, %v435
        %v437 = vrot.slane %v233, %v436
        %v438 = vlaneseq
        %v439 = vshrl.u32 %v438, 7
        %v440 = vsub.s32 5, %v439
        %v441 = vrot.slane %v233, %v440
        %v442 = vlaneseq
        %v443 = vshrl.u32 %v442, 7
        %v444 = vsub.s32 6, %v443
        %v445 = vrot.slane %v233, %v444
        %v446 = vlaneseq
        %v447 = vshrl.u32 %v446, 7
        %v448 = vsub.s32 7, %v447
        %v449 = vrot.slane %v233, %v448
        %v458 = vmul.f32 %v415, %v421
        %v459 = vmul.f32 %v415, %v425
        %v460 = vmul.f32 %v415, %v429
        %v461 = vmul.f32 %v415, %v433
        %v462 = vmul.f32 %v415, %v437
        %v463 = vmul.f32 %v415, %v441
        %v464 = vmul.f32 %v415, %v445
        %v465 = vmul.f32 %v415, %v449
        %v466 = vadd.f32 %v405, %v458
        %v467 = vadd.f32 %v406, %v459
        %v468 = vadd.f32 %v407, %v460
        %v469 = vadd.f32 %v408, %v461
        %v470 = vadd.f32 %v409, %v462
        %v471 = vadd.f32 %v410, %v463
        %v472 = vadd.f32 %v411, %v464
        %v473 = vadd.f32 %v412, %v465
        %475 = vset.pattern.permute.xlu0 0
        %476 = vperm.xlu0 %475, %v235
        %v477 = vpop.permute.xlu0 %476
        %v479 = vadd.f32 %v466, %v477
        %v480 = vadd.f32 %v467, %v477
        %v481 = vadd.f32 %v468, %v477
        %v482 = vadd.f32 %v469, %v477
        %v483 = vadd.f32 %v470, %v477
        %v484 = vadd.f32 %v471, %v477
        %v485 = vadd.f32 %v472, %v477
        %v486 = vadd.f32 %v473, %v477
        %v487 = vmax.f32 %v479, 0.0
        %v488 = vmax.f32 %v480, 0.0
        %v489 = vmax.f32 %v481, 0.0
        %v490 = vmax.f32 %v482, 0.0
        %v491 = vmax.f32 %v483, 0.0
        %v492 = vmax.f32 %v484, 0.0
        %v493 = vmax.f32 %v485, 0.0
        %v494 = vmax.f32 %v486, 0.0
        %496 = vset.pattern.permute.xlu0 0
        %497 = vperm.xlu0 %496, %v236
        %v498 = vpop.permute.xlu0 %497
        %v500 = vmul.f32 %v498, %v487
        %v501 = vmul.f32 %v498, %v488
        %v502 = vmul.f32 %v498, %v489
        %v503 = vmul.f32 %v498, %v490
        %v504 = vmul.f32 %v498, %v491
        %v505 = vmul.f32 %v498, %v492
        %v506 = vmul.f32 %v498, %v493
        %v507 = vmul.f32 %v498, %v494
        %v508 = vrot.slane %v500, 4
        %v509 = vadd.f32 %v500, %v508
        %v510 = vrot.slane %v509, 2
        %v511 = vadd.f32 %v509, %v510
        %v512 = vrot.slane %v511, 1
        %v513 = vadd.f32 %v511, %v512
        %v514 = vrot.slane %v501, 4
        %v515 = vadd.f32 %v501, %v514
        %v516 = vrot.slane %v515, 2
        %v517 = vadd.f32 %v515, %v516
        %v518 = vrot.slane %v517, 1
        %v519 = vadd.f32 %v517, %v518
        %v520 = vrot.slane %v502, 4
        %v521 = vadd.f32 %v502, %v520
        %v522 = vrot.slane %v521, 2
        %v523 = vadd.f32 %v521, %v522
        %v524 = vrot.slane %v523, 1
        %v525 = vadd.f32 %v523, %v524
        %v526 = vrot.slane %v503, 4
        %v527 = vadd.f32 %v503, %v526
        %v528 = vrot.slane %v527, 2
        %v529 = vadd.f32 %v527, %v528
        %v530 = vrot.slane %v529, 1
        %v531 = vadd.f32 %v529, %v530
        %v532 = vrot.slane %v504, 4
        %v533 = vadd.f32 %v504, %v532
        %v534 = vrot.slane %v533, 2
        %v535 = vadd.f32 %v533, %v534
        %v536 = vrot.slane %v535, 1
        %v537 = vadd.f32 %v535, %v536
        %v538 = vrot.slane %v505, 4
        %v539 = vadd.f32 %v505, %v538
        %v540 = vrot.slane %v539, 2
        %v541 = vadd.f32 %v539, %v540
        %v542 = vrot.slane %v541, 1
        %v543 = vadd.f32 %v541, %v542
        %v544 = vrot.slane %v506, 4
        %v545 = vadd.f32 %v506, %v544
        %v546 = vrot.slane %v545, 2
        %v547 = vadd.f32 %v545, %v546
        %v548 = vrot.slane %v547, 1
        %v549 = vadd.f32 %v547, %v548
        %v550 = vrot.slane %v507, 4
        %v551 = vadd.f32 %v507, %v550
        %v552 = vrot.slane %v551, 2
        %v553 = vadd.f32 %v551, %v552
        %v554 = vrot.slane %v553, 1
        %v555 = vadd.f32 %v553, %v554
        %v556 = vadd.f32 %v513, 0.0
        %v557 = vadd.f32 %v519, 0.0
        %v558 = vadd.f32 %v525, 0.0
        %v559 = vadd.f32 %v531, 0.0
        %v560 = vadd.f32 %v537, 0.0
        %v561 = vadd.f32 %v543, 0.0
        %v562 = vadd.f32 %v549, 0.0
        %v563 = vadd.f32 %v555, 0.0
        %v564 = vld [vmem:[%s1 + $0x8] sm:$0xff]
        %v565 = vld [vmem:[%s2 + $0x8] sm:$0xff]
        %v566 = vld [vmem:[%s3 + $0x8] sm:$0xff]
        %568 = vset.pattern.permute.xlu0 0
        %569 = vperm.xlu0 %568, %v564
        %v570 = vpop.permute.xlu0 %569
        %v572 = vmul.f32 %v570, %v246
        %v573 = vmul.f32 %v570, %v250
        %v574 = vmul.f32 %v570, %v254
        %v575 = vmul.f32 %v570, %v258
        %v576 = vmul.f32 %v570, %v262
        %v577 = vmul.f32 %v570, %v266
        %v578 = vmul.f32 %v570, %v270
        %v579 = vmul.f32 %v570, %v274
        %580 = vset.pattern.permute.xlu0 1
        %581 = vperm.xlu0 %580, %v564
        %v582 = vpop.permute.xlu0 %581
        %v584 = vmul.f32 %v582, %v299
        %v585 = vmul.f32 %v582, %v303
        %v586 = vmul.f32 %v582, %v307
        %v587 = vmul.f32 %v582, %v311
        %v588 = vmul.f32 %v582, %v315
        %v589 = vmul.f32 %v582, %v319
        %v590 = vmul.f32 %v582, %v323
        %v591 = vmul.f32 %v582, %v327
        %v592 = vadd.f32 %v572, %v584
        %v593 = vadd.f32 %v573, %v585
        %v594 = vadd.f32 %v574, %v586
        %v595 = vadd.f32 %v575, %v587
        %v596 = vadd.f32 %v576, %v588
        %v597 = vadd.f32 %v577, %v589
        %v598 = vadd.f32 %v578, %v590
        %v599 = vadd.f32 %v579, %v591
        %600 = vset.pattern.permute.xlu0 2
        %601 = vperm.xlu0 %600, %v564
        %v602 = vpop.permute.xlu0 %601
        %v604 = vmul.f32 %v602, %v360
        %v605 = vmul.f32 %v602, %v364
        %v606 = vmul.f32 %v602, %v368
        %v607 = vmul.f32 %v602, %v372
        %v608 = vmul.f32 %v602, %v376
        %v609 = vmul.f32 %v602, %v380
        %v610 = vmul.f32 %v602, %v384
        %v611 = vmul.f32 %v602, %v388
        %v612 = vadd.f32 %v592, %v604
        %v613 = vadd.f32 %v593, %v605
        %v614 = vadd.f32 %v594, %v606
        %v615 = vadd.f32 %v595, %v607
        %v616 = vadd.f32 %v596, %v608
        %v617 = vadd.f32 %v597, %v609
        %v618 = vadd.f32 %v598, %v610
        %v619 = vadd.f32 %v599, %v611
        %620 = vset.pattern.permute.xlu0 3
        %621 = vperm.xlu0 %620, %v564
        %v622 = vpop.permute.xlu0 %621
        %v624 = vmul.f32 %v622, %v421
        %v625 = vmul.f32 %v622, %v425
        %v626 = vmul.f32 %v622, %v429
        %v627 = vmul.f32 %v622, %v433
        %v628 = vmul.f32 %v622, %v437
        %v629 = vmul.f32 %v622, %v441
        %v630 = vmul.f32 %v622, %v445
        %v631 = vmul.f32 %v622, %v449
        %v632 = vadd.f32 %v612, %v624
        %v633 = vadd.f32 %v613, %v625
        %v634 = vadd.f32 %v614, %v626
        %v635 = vadd.f32 %v615, %v627
        %v636 = vadd.f32 %v616, %v628
        %v637 = vadd.f32 %v617, %v629
        %v638 = vadd.f32 %v618, %v630
        %v639 = vadd.f32 %v619, %v631
        %641 = vset.pattern.permute.xlu0 0
        %642 = vperm.xlu0 %641, %v565
        %v643 = vpop.permute.xlu0 %642
        %v645 = vadd.f32 %v632, %v643
        %v646 = vadd.f32 %v633, %v643
        %v647 = vadd.f32 %v634, %v643
        %v648 = vadd.f32 %v635, %v643
        %v649 = vadd.f32 %v636, %v643
        %v650 = vadd.f32 %v637, %v643
        %v651 = vadd.f32 %v638, %v643
        %v652 = vadd.f32 %v639, %v643
        %v653 = vmax.f32 %v645, 0.0
        %v654 = vmax.f32 %v646, 0.0
        %v655 = vmax.f32 %v647, 0.0
        %v656 = vmax.f32 %v648, 0.0
        %v657 = vmax.f32 %v649, 0.0
        %v658 = vmax.f32 %v650, 0.0
        %v659 = vmax.f32 %v651, 0.0
        %v660 = vmax.f32 %v652, 0.0
        %662 = vset.pattern.permute.xlu0 0
        %663 = vperm.xlu0 %662, %v566
        %v664 = vpop.permute.xlu0 %663
        %v666 = vmul.f32 %v664, %v653
        %v667 = vmul.f32 %v664, %v654
        %v668 = vmul.f32 %v664, %v655
        %v669 = vmul.f32 %v664, %v656
        %v670 = vmul.f32 %v664, %v657
        %v671 = vmul.f32 %v664, %v658
        %v672 = vmul.f32 %v664, %v659
        %v673 = vmul.f32 %v664, %v660
        %v674 = vrot.slane %v666, 4
        %v675 = vadd.f32 %v666, %v674
        %v676 = vrot.slane %v675, 2
        %v677 = vadd.f32 %v675, %v676
        %v678 = vrot.slane %v677, 1
        %v679 = vadd.f32 %v677, %v678
        %v680 = vrot.slane %v667, 4
        %v681 = vadd.f32 %v667, %v680
        %v682 = vrot.slane %v681, 2
        %v683 = vadd.f32 %v681, %v682
        %v684 = vrot.slane %v683, 1
        %v685 = vadd.f32 %v683, %v684
        %v686 = vrot.slane %v668, 4
        %v687 = vadd.f32 %v668, %v686
        %v688 = vrot.slane %v687, 2
        %v689 = vadd.f32 %v687, %v688
        %v690 = vrot.slane %v689, 1
        %v691 = vadd.f32 %v689, %v690
        %v692 = vrot.slane %v669, 4
        %v693 = vadd.f32 %v669, %v692
        %v694 = vrot.slane %v693, 2
        %v695 = vadd.f32 %v693, %v694
        %v696 = vrot.slane %v695, 1
        %v697 = vadd.f32 %v695, %v696
        %v698 = vrot.slane %v670, 4
        %v699 = vadd.f32 %v670, %v698
        %v700 = vrot.slane %v699, 2
        %v701 = vadd.f32 %v699, %v700
        %v702 = vrot.slane %v701, 1
        %v703 = vadd.f32 %v701, %v702
        %v704 = vrot.slane %v671, 4
        %v705 = vadd.f32 %v671, %v704
        %v706 = vrot.slane %v705, 2
        %v707 = vadd.f32 %v705, %v706
        %v708 = vrot.slane %v707, 1
        %v709 = vadd.f32 %v707, %v708
        %v710 = vrot.slane %v672, 4
        %v711 = vadd.f32 %v672, %v710
        %v712 = vrot.slane %v711, 2
        %v713 = vadd.f32 %v711, %v712
        %v714 = vrot.slane %v713, 1
        %v715 = vadd.f32 %v713, %v714
        %v716 = vrot.slane %v673, 4
        %v717 = vadd.f32 %v673, %v716
        %v718 = vrot.slane %v717, 2
        %v719 = vadd.f32 %v717, %v718
        %v720 = vrot.slane %v719, 1
        %v721 = vadd.f32 %v719, %v720
        %v722 = vadd.f32 %v556, %v679
        %v723 = vadd.f32 %v557, %v685
        %v724 = vadd.f32 %v558, %v691
        %v725 = vadd.f32 %v559, %v697
        %v726 = vadd.f32 %v560, %v703
        %v727 = vadd.f32 %v561, %v709
        %v728 = vadd.f32 %v562, %v715
        %v729 = vadd.f32 %v563, %v721
        %v730 = vld [vmem:[%s1 + $0x10] sm:$0xff]
        %v731 = vld [vmem:[%s2 + $0x10] sm:$0xff]
        %v732 = vld [vmem:[%s3 + $0x10] sm:$0xff]
        %734 = vset.pattern.permute.xlu0 0
        %735 = vperm.xlu0 %734, %v730
        %v736 = vpop.permute.xlu0 %735
        %v738 = vmul.f32 %v736, %v246
        %v739 = vmul.f32 %v736, %v250
        %v740 = vmul.f32 %v736, %v254
        %v741 = vmul.f32 %v736, %v258
        %v742 = vmul.f32 %v736, %v262
        %v743 = vmul.f32 %v736, %v266
        %v744 = vmul.f32 %v736, %v270
        %v745 = vmul.f32 %v736, %v274
        %746 = vset.pattern.permute.xlu0 1
        %747 = vperm.xlu0 %746, %v730
        %v748 = vpop.permute.xlu0 %747
        %v750 = vmul.f32 %v748, %v299
        %v751 = vmul.f32 %v748, %v303
        %v752 = vmul.f32 %v748, %v307
        %v753 = vmul.f32 %v748, %v311
        %v754 = vmul.f32 %v748, %v315
        %v755 = vmul.f32 %v748, %v319
        %v756 = vmul.f32 %v748, %v323
        %v757 = vmul.f32 %v748, %v327
        %v758 = vadd.f32 %v738, %v750
        %v759 = vadd.f32 %v739, %v751
        %v760 = vadd.f32 %v740, %v752
        %v761 = vadd.f32 %v741, %v753
        %v762 = vadd.f32 %v742, %v754
        %v763 = vadd.f32 %v743, %v755
        %v764 = vadd.f32 %v744, %v756
        %v765 = vadd.f32 %v745, %v757
        %766 = vset.pattern.permute.xlu0 2
        %767 = vperm.xlu0 %766, %v730
        %v768 = vpop.permute.xlu0 %767
        %v770 = vmul.f32 %v768, %v360
        %v771 = vmul.f32 %v768, %v364
        %v772 = vmul.f32 %v768, %v368
        %v773 = vmul.f32 %v768, %v372
        %v774 = vmul.f32 %v768, %v376
        %v775 = vmul.f32 %v768, %v380
        %v776 = vmul.f32 %v768, %v384
        %v777 = vmul.f32 %v768, %v388
        %v778 = vadd.f32 %v758, %v770
        %v779 = vadd.f32 %v759, %v771
        %v780 = vadd.f32 %v760, %v772
        %v781 = vadd.f32 %v761, %v773
        %v782 = vadd.f32 %v762, %v774
        %v783 = vadd.f32 %v763, %v775
        %v784 = vadd.f32 %v764, %v776
        %v785 = vadd.f32 %v765, %v777
        %786 = vset.pattern.permute.xlu0 3
        %787 = vperm.xlu0 %786, %v730
        %v788 = vpop.permute.xlu0 %787
        %v790 = vmul.f32 %v788, %v421
        %v791 = vmul.f32 %v788, %v425
        %v792 = vmul.f32 %v788, %v429
        %v793 = vmul.f32 %v788, %v433
        %v794 = vmul.f32 %v788, %v437
        %v795 = vmul.f32 %v788, %v441
        %v796 = vmul.f32 %v788, %v445
        %v797 = vmul.f32 %v788, %v449
        %v798 = vadd.f32 %v778, %v790
        %v799 = vadd.f32 %v779, %v791
        %v800 = vadd.f32 %v780, %v792
        %v801 = vadd.f32 %v781, %v793
        %v802 = vadd.f32 %v782, %v794
        %v803 = vadd.f32 %v783, %v795
        %v804 = vadd.f32 %v784, %v796
        %v805 = vadd.f32 %v785, %v797
        %807 = vset.pattern.permute.xlu0 0
        %808 = vperm.xlu0 %807, %v731
        %v809 = vpop.permute.xlu0 %808
        %v811 = vadd.f32 %v798, %v809
        %v812 = vadd.f32 %v799, %v809
        %v813 = vadd.f32 %v800, %v809
        %v814 = vadd.f32 %v801, %v809
        %v815 = vadd.f32 %v802, %v809
        %v816 = vadd.f32 %v803, %v809
        %v817 = vadd.f32 %v804, %v809
        %v818 = vadd.f32 %v805, %v809
        %v819 = vmax.f32 %v811, 0.0
        %v820 = vmax.f32 %v812, 0.0
        %v821 = vmax.f32 %v813, 0.0
        %v822 = vmax.f32 %v814, 0.0
        %v823 = vmax.f32 %v815, 0.0
        %v824 = vmax.f32 %v816, 0.0
        %v825 = vmax.f32 %v817, 0.0
        %v826 = vmax.f32 %v818, 0.0
        %828 = vset.pattern.permute.xlu0 0
        %829 = vperm.xlu0 %828, %v732
        %v830 = vpop.permute.xlu0 %829
        %v832 = vmul.f32 %v830, %v819
        %v833 = vmul.f32 %v830, %v820
        %v834 = vmul.f32 %v830, %v821
        %v835 = vmul.f32 %v830, %v822
        %v836 = vmul.f32 %v830, %v823
        %v837 = vmul.f32 %v830, %v824
        %v838 = vmul.f32 %v830, %v825
        %v839 = vmul.f32 %v830, %v826
        %v840 = vrot.slane %v832, 4
        %v841 = vadd.f32 %v832, %v840
        %v842 = vrot.slane %v841, 2
        %v843 = vadd.f32 %v841, %v842
        %v844 = vrot.slane %v843, 1
        %v845 = vadd.f32 %v843, %v844
        %v846 = vrot.slane %v833, 4
        %v847 = vadd.f32 %v833, %v846
        %v848 = vrot.slane %v847, 2
        %v849 = vadd.f32 %v847, %v848
        %v850 = vrot.slane %v849, 1
        %v851 = vadd.f32 %v849, %v850
        %v852 = vrot.slane %v834, 4
        %v853 = vadd.f32 %v834, %v852
        %v854 = vrot.slane %v853, 2
        %v855 = vadd.f32 %v853, %v854
        %v856 = vrot.slane %v855, 1
        %v857 = vadd.f32 %v855, %v856
        %v858 = vrot.slane %v835, 4
        %v859 = vadd.f32 %v835, %v858
        %v860 = vrot.slane %v859, 2
        %v861 = vadd.f32 %v859, %v860
        %v862 = vrot.slane %v861, 1
        %v863 = vadd.f32 %v861, %v862
        %v864 = vrot.slane %v836, 4
        %v865 = vadd.f32 %v836, %v864
        %v866 = vrot.slane %v865, 2
        %v867 = vadd.f32 %v865, %v866
        %v868 = vrot.slane %v867, 1
        %v869 = vadd.f32 %v867, %v868
        %v870 = vrot.slane %v837, 4
        %v871 = vadd.f32 %v837, %v870
        %v872 = vrot.slane %v871, 2
        %v873 = vadd.f32 %v871, %v872
        %v874 = vrot.slane %v873, 1
        %v875 = vadd.f32 %v873, %v874
        %v876 = vrot.slane %v838, 4
        %v877 = vadd.f32 %v838, %v876
        %v878 = vrot.slane %v877, 2
        %v879 = vadd.f32 %v877, %v878
        %v880 = vrot.slane %v879, 1
        %v881 = vadd.f32 %v879, %v880
        %v882 = vrot.slane %v839, 4
        %v883 = vadd.f32 %v839, %v882
        %v884 = vrot.slane %v883, 2
        %v885 = vadd.f32 %v883, %v884
        %v886 = vrot.slane %v885, 1
        %v887 = vadd.f32 %v885, %v886
        %v888 = vadd.f32 %v722, %v845
        %v889 = vadd.f32 %v723, %v851
        %v890 = vadd.f32 %v724, %v857
        %v891 = vadd.f32 %v725, %v863
        %v892 = vadd.f32 %v726, %v869
        %v893 = vadd.f32 %v727, %v875
        %v894 = vadd.f32 %v728, %v881
        %v895 = vadd.f32 %v729, %v887
        %v896 = vld [vmem:[%s1 + $0x18] sm:$0xff]
        %v897 = vld [vmem:[%s2 + $0x18] sm:$0xff]
        %v898 = vld [vmem:[%s3 + $0x18] sm:$0xff]
        %900 = vset.pattern.permute.xlu0 0
        %901 = vperm.xlu0 %900, %v896
        %v902 = vpop.permute.xlu0 %901
        %v904 = vmul.f32 %v902, %v246
        %v905 = vmul.f32 %v902, %v250
        %v906 = vmul.f32 %v902, %v254
        %v907 = vmul.f32 %v902, %v258
        %v908 = vmul.f32 %v902, %v262
        %v909 = vmul.f32 %v902, %v266
        %v910 = vmul.f32 %v902, %v270
        %v911 = vmul.f32 %v902, %v274
        %912 = vset.pattern.permute.xlu0 1
        %913 = vperm.xlu0 %912, %v896
        %v914 = vpop.permute.xlu0 %913
        %v916 = vmul.f32 %v914, %v299
        %v917 = vmul.f32 %v914, %v303
        %v918 = vmul.f32 %v914, %v307
        %v919 = vmul.f32 %v914, %v311
        %v920 = vmul.f32 %v914, %v315
        %v921 = vmul.f32 %v914, %v319
        %v922 = vmul.f32 %v914, %v323
        %v923 = vmul.f32 %v914, %v327
        %v924 = vadd.f32 %v904, %v916
        %v925 = vadd.f32 %v905, %v917
        %v926 = vadd.f32 %v906, %v918
        %v927 = vadd.f32 %v907, %v919
        %v928 = vadd.f32 %v908, %v920
        %v929 = vadd.f32 %v909, %v921
        %v930 = vadd.f32 %v910, %v922
        %v931 = vadd.f32 %v911, %v923
        %932 = vset.pattern.permute.xlu0 2
        %933 = vperm.xlu0 %932, %v896
        %v934 = vpop.permute.xlu0 %933
        %v936 = vmul.f32 %v934, %v360
        %v937 = vmul.f32 %v934, %v364
        %v938 = vmul.f32 %v934, %v368
        %v939 = vmul.f32 %v934, %v372
        %v940 = vmul.f32 %v934, %v376
        %v941 = vmul.f32 %v934, %v380
        %v942 = vmul.f32 %v934, %v384
        %v943 = vmul.f32 %v934, %v388
        %v944 = vadd.f32 %v924, %v936
        %v945 = vadd.f32 %v925, %v937
        %v946 = vadd.f32 %v926, %v938
        %v947 = vadd.f32 %v927, %v939
        %v948 = vadd.f32 %v928, %v940
        %v949 = vadd.f32 %v929, %v941
        %v950 = vadd.f32 %v930, %v942
        %v951 = vadd.f32 %v931, %v943
        %952 = vset.pattern.permute.xlu0 3
        %953 = vperm.xlu0 %952, %v896
        %v954 = vpop.permute.xlu0 %953
        %v956 = vmul.f32 %v954, %v421
        %v957 = vmul.f32 %v954, %v425
        %v958 = vmul.f32 %v954, %v429
        %v959 = vmul.f32 %v954, %v433
        %v960 = vmul.f32 %v954, %v437
        %v961 = vmul.f32 %v954, %v441
        %v962 = vmul.f32 %v954, %v445
        %v963 = vmul.f32 %v954, %v449
        %v964 = vadd.f32 %v944, %v956
        %v965 = vadd.f32 %v945, %v957
        %v966 = vadd.f32 %v946, %v958
        %v967 = vadd.f32 %v947, %v959
        %v968 = vadd.f32 %v948, %v960
        %v969 = vadd.f32 %v949, %v961
        %v970 = vadd.f32 %v950, %v962
        %v971 = vadd.f32 %v951, %v963
        %973 = vset.pattern.permute.xlu0 0
        %974 = vperm.xlu0 %973, %v897
        %v975 = vpop.permute.xlu0 %974
        %v977 = vadd.f32 %v964, %v975
        %v978 = vadd.f32 %v965, %v975
        %v979 = vadd.f32 %v966, %v975
        %v980 = vadd.f32 %v967, %v975
        %v981 = vadd.f32 %v968, %v975
        %v982 = vadd.f32 %v969, %v975
        %v983 = vadd.f32 %v970, %v975
        %v984 = vadd.f32 %v971, %v975
        %v985 = vmax.f32 %v977, 0.0
        %v986 = vmax.f32 %v978, 0.0
        %v987 = vmax.f32 %v979, 0.0
        %v988 = vmax.f32 %v980, 0.0
        %v989 = vmax.f32 %v981, 0.0
        %v990 = vmax.f32 %v982, 0.0
        %v991 = vmax.f32 %v983, 0.0
        %v992 = vmax.f32 %v984, 0.0
        %994 = vset.pattern.permute.xlu0 0
        %995 = vperm.xlu0 %994, %v898
        %v996 = vpop.permute.xlu0 %995
        %v998 = vmul.f32 %v996, %v985
        %v999 = vmul.f32 %v996, %v986
        %v1000 = vmul.f32 %v996, %v987
        %v1001 = vmul.f32 %v996, %v988
        %v1002 = vmul.f32 %v996, %v989
        %v1003 = vmul.f32 %v996, %v990
        %v1004 = vmul.f32 %v996, %v991
        %v1005 = vmul.f32 %v996, %v992
        %v1006 = vrot.slane %v998, 4
        %v1007 = vadd.f32 %v998, %v1006
        %v1008 = vrot.slane %v1007, 2
        %v1009 = vadd.f32 %v1007, %v1008
        %v1010 = vrot.slane %v1009, 1
        %v1011 = vadd.f32 %v1009, %v1010
        %v1012 = vrot.slane %v999, 4
        %v1013 = vadd.f32 %v999, %v1012
        %v1014 = vrot.slane %v1013, 2
        %v1015 = vadd.f32 %v1013, %v1014
        %v1016 = vrot.slane %v1015, 1
        %v1017 = vadd.f32 %v1015, %v1016
        %v1018 = vrot.slane %v1000, 4
        %v1019 = vadd.f32 %v1000, %v1018
        %v1020 = vrot.slane %v1019, 2
        %v1021 = vadd.f32 %v1019, %v1020
        %v1022 = vrot.slane %v1021, 1
        %v1023 = vadd.f32 %v1021, %v1022
        %v1024 = vrot.slane %v1001, 4
        %v1025 = vadd.f32 %v1001, %v1024
        %v1026 = vrot.slane %v1025, 2
        %v1027 = vadd.f32 %v1025, %v1026
        %v1028 = vrot.slane %v1027, 1
        %v1029 = vadd.f32 %v1027, %v1028
        %v1030 = vrot.slane %v1002, 4
        %v1031 = vadd.f32 %v1002, %v1030
        %v1032 = vrot.slane %v1031, 2
        %v1033 = vadd.f32 %v1031, %v1032
        %v1034 = vrot.slane %v1033, 1
        %v1035 = vadd.f32 %v1033, %v1034
        %v1036 = vrot.slane %v1003, 4
        %v1037 = vadd.f32 %v1003, %v1036
        %v1038 = vrot.slane %v1037, 2
        %v1039 = vadd.f32 %v1037, %v1038
        %v1040 = vrot.slane %v1039, 1
        %v1041 = vadd.f32 %v1039, %v1040
        %v1042 = vrot.slane %v1004, 4
        %v1043 = vadd.f32 %v1004, %v1042
        %v1044 = vrot.slane %v1043, 2
        %v1045 = vadd.f32 %v1043, %v1044
        %v1046 = vrot.slane %v1045, 1
        %v1047 = vadd.f32 %v1045, %v1046
        %v1048 = vrot.slane %v1005, 4
        %v1049 = vadd.f32 %v1005, %v1048
        %v1050 = vrot.slane %v1049, 2
        %v1051 = vadd.f32 %v1049, %v1050
        %v1052 = vrot.slane %v1051, 1
        %v1053 = vadd.f32 %v1051, %v1052
        %v1054 = vadd.f32 %v888, %v1011
        %v1055 = vadd.f32 %v889, %v1017
        %v1056 = vadd.f32 %v890, %v1023
        %v1057 = vadd.f32 %v891, %v1029
        %v1058 = vadd.f32 %v892, %v1035
        %v1059 = vadd.f32 %v893, %v1041
        %v1060 = vadd.f32 %v894, %v1047
        %v1061 = vadd.f32 %v895, %v1053
        %v1062 = vld [vmem:[%s1 + $0x20] sm:$0xff]
        %v1063 = vld [vmem:[%s2 + $0x20] sm:$0xff]
        %v1064 = vld [vmem:[%s3 + $0x20] sm:$0xff]
        %1066 = vset.pattern.permute.xlu0 0
        %1067 = vperm.xlu0 %1066, %v1062
        %v1068 = vpop.permute.xlu0 %1067
        %v1070 = vmul.f32 %v1068, %v246
        %v1071 = vmul.f32 %v1068, %v250
        %v1072 = vmul.f32 %v1068, %v254
        %v1073 = vmul.f32 %v1068, %v258
        %v1074 = vmul.f32 %v1068, %v262
        %v1075 = vmul.f32 %v1068, %v266
        %v1076 = vmul.f32 %v1068, %v270
        %v1077 = vmul.f32 %v1068, %v274
        %1078 = vset.pattern.permute.xlu0 1
        %1079 = vperm.xlu0 %1078, %v1062
        %v1080 = vpop.permute.xlu0 %1079
        %v1082 = vmul.f32 %v1080, %v299
        %v1083 = vmul.f32 %v1080, %v303
        %v1084 = vmul.f32 %v1080, %v307
        %v1085 = vmul.f32 %v1080, %v311
        %v1086 = vmul.f32 %v1080, %v315
        %v1087 = vmul.f32 %v1080, %v319
        %v1088 = vmul.f32 %v1080, %v323
        %v1089 = vmul.f32 %v1080, %v327
        %v1090 = vadd.f32 %v1070, %v1082
        %v1091 = vadd.f32 %v1071, %v1083
        %v1092 = vadd.f32 %v1072, %v1084
        %v1093 = vadd.f32 %v1073, %v1085
        %v1094 = vadd.f32 %v1074, %v1086
        %v1095 = vadd.f32 %v1075, %v1087
        %v1096 = vadd.f32 %v1076, %v1088
        %v1097 = vadd.f32 %v1077, %v1089
        %1098 = vset.pattern.permute.xlu0 2
        %1099 = vperm.xlu0 %1098, %v1062
        %v1100 = vpop.permute.xlu0 %1099
        %v1102 = vmul.f32 %v1100, %v360
        %v1103 = vmul.f32 %v1100, %v364
        %v1104 = vmul.f32 %v1100, %v368
        %v1105 = vmul.f32 %v1100, %v372
        %v1106 = vmul.f32 %v1100, %v376
        %v1107 = vmul.f32 %v1100, %v380
        %v1108 = vmul.f32 %v1100, %v384
        %v1109 = vmul.f32 %v1100, %v388
        %v1110 = vadd.f32 %v1090, %v1102
        %v1111 = vadd.f32 %v1091, %v1103
        %v1112 = vadd.f32 %v1092, %v1104
        %v1113 = vadd.f32 %v1093, %v1105
        %v1114 = vadd.f32 %v1094, %v1106
        %v1115 = vadd.f32 %v1095, %v1107
        %v1116 = vadd.f32 %v1096, %v1108
        %v1117 = vadd.f32 %v1097, %v1109
        %1118 = vset.pattern.permute.xlu0 3
        %1119 = vperm.xlu0 %1118, %v1062
        %v1120 = vpop.permute.xlu0 %1119
        %v1122 = vmul.f32 %v1120, %v421
        %v1123 = vmul.f32 %v1120, %v425
        %v1124 = vmul.f32 %v1120, %v429
        %v1125 = vmul.f32 %v1120, %v433
        %v1126 = vmul.f32 %v1120, %v437
        %v1127 = vmul.f32 %v1120, %v441
        %v1128 = vmul.f32 %v1120, %v445
        %v1129 = vmul.f32 %v1120, %v449
        %v1130 = vadd.f32 %v1110, %v1122
        %v1131 = vadd.f32 %v1111, %v1123
        %v1132 = vadd.f32 %v1112, %v1124
        %v1133 = vadd.f32 %v1113, %v1125
        %v1134 = vadd.f32 %v1114, %v1126
        %v1135 = vadd.f32 %v1115, %v1127
        %v1136 = vadd.f32 %v1116, %v1128
        %v1137 = vadd.f32 %v1117, %v1129
        %1139 = vset.pattern.permute.xlu0 0
        %1140 = vperm.xlu0 %1139, %v1063
        %v1141 = vpop.permute.xlu0 %1140
        %v1143 = vadd.f32 %v1130, %v1141
        %v1144 = vadd.f32 %v1131, %v1141
        %v1145 = vadd.f32 %v1132, %v1141
        %v1146 = vadd.f32 %v1133, %v1141
        %v1147 = vadd.f32 %v1134, %v1141
        %v1148 = vadd.f32 %v1135, %v1141
        %v1149 = vadd.f32 %v1136, %v1141
        %v1150 = vadd.f32 %v1137, %v1141
        %v1151 = vmax.f32 %v1143, 0.0
        %v1152 = vmax.f32 %v1144, 0.0
        %v1153 = vmax.f32 %v1145, 0.0
        %v1154 = vmax.f32 %v1146, 0.0
        %v1155 = vmax.f32 %v1147, 0.0
        %v1156 = vmax.f32 %v1148, 0.0
        %v1157 = vmax.f32 %v1149, 0.0
        %v1158 = vmax.f32 %v1150, 0.0
        %1160 = vset.pattern.permute.xlu0 0
        %1161 = vperm.xlu0 %1160, %v1064
        %v1162 = vpop.permute.xlu0 %1161
        %v1164 = vmul.f32 %v1162, %v1151
        %v1165 = vmul.f32 %v1162, %v1152
        %v1166 = vmul.f32 %v1162, %v1153
        %v1167 = vmul.f32 %v1162, %v1154
        %v1168 = vmul.f32 %v1162, %v1155
        %v1169 = vmul.f32 %v1162, %v1156
        %v1170 = vmul.f32 %v1162, %v1157
        %v1171 = vmul.f32 %v1162, %v1158
        %v1172 = vrot.slane %v1164, 4
        %v1173 = vadd.f32 %v1164, %v1172
        %v1174 = vrot.slane %v1173, 2
        %v1175 = vadd.f32 %v1173, %v1174
        %v1176 = vrot.slane %v1175, 1
        %v1177 = vadd.f32 %v1175, %v1176
        %v1178 = vrot.slane %v1165, 4
        %v1179 = vadd.f32 %v1165, %v1178
        %v1180 = vrot.slane %v1179, 2
        %v1181 = vadd.f32 %v1179, %v1180
        %v1182 = vrot.slane %v1181, 1
        %v1183 = vadd.f32 %v1181, %v1182
        %v1184 = vrot.slane %v1166, 4
        %v1185 = vadd.f32 %v1166, %v1184
        %v1186 = vrot.slane %v1185, 2
        %v1187 = vadd.f32 %v1185, %v1186
        %v1188 = vrot.slane %v1187, 1
        %v1189 = vadd.f32 %v1187, %v1188
        %v1190 = vrot.slane %v1167, 4
        %v1191 = vadd.f32 %v1167, %v1190
        %v1192 = vrot.slane %v1191, 2
        %v1193 = vadd.f32 %v1191, %v1192
        %v1194 = vrot.slane %v1193, 1
        %v1195 = vadd.f32 %v1193, %v1194
        %v1196 = vrot.slane %v1168, 4
        %v1197 = vadd.f32 %v1168, %v1196
        %v1198 = vrot.slane %v1197, 2
        %v1199 = vadd.f32 %v1197, %v1198
        %v1200 = vrot.slane %v1199, 1
        %v1201 = vadd.f32 %v1199, %v1200
        %v1202 = vrot.slane %v1169, 4
        %v1203 = vadd.f32 %v1169, %v1202
        %v1204 = vrot.slane %v1203, 2
        %v1205 = vadd.f32 %v1203, %v1204
        %v1206 = vrot.slane %v1205, 1
        %v1207 = vadd.f32 %v1205, %v1206
        %v1208 = vrot.slane %v1170, 4
        %v1209 = vadd.f32 %v1170, %v1208
        %v1210 = vrot.slane %v1209, 2
        %v1211 = vadd.f32 %v1209, %v1210
        %v1212 = vrot.slane %v1211, 1
        %v1213 = vadd.f32 %v1211, %v1212
        %v1214 = vrot.slane %v1171, 4
        %v1215 = vadd.f32 %v1171, %v1214
        %v1216 = vrot.slane %v1215, 2
        %v1217 = vadd.f32 %v1215, %v1216
        %v1218 = vrot.slane %v1217, 1
        %v1219 = vadd.f32 %v1217, %v1218
        %v1220 = vadd.f32 %v1054, %v1177
        %v1221 = vadd.f32 %v1055, %v1183
        %v1222 = vadd.f32 %v1056, %v1189
        %v1223 = vadd.f32 %v1057, %v1195
        %v1224 = vadd.f32 %v1058, %v1201
        %v1225 = vadd.f32 %v1059, %v1207
        %v1226 = vadd.f32 %v1060, %v1213
        %v1227 = vadd.f32 %v1061, %v1219
        %v1228 = vld [vmem:[%s1 + $0x28] sm:$0xff]
        %v1229 = vld [vmem:[%s2 + $0x28] sm:$0xff]
        %v1230 = vld [vmem:[%s3 + $0x28] sm:$0xff]
        %1232 = vset.pattern.permute.xlu0 0
        %1233 = vperm.xlu0 %1232, %v1228
        %v1234 = vpop.permute.xlu0 %1233
        %v1236 = vmul.f32 %v1234, %v246
        %v1237 = vmul.f32 %v1234, %v250
        %v1238 = vmul.f32 %v1234, %v254
        %v1239 = vmul.f32 %v1234, %v258
        %v1240 = vmul.f32 %v1234, %v262
        %v1241 = vmul.f32 %v1234, %v266
        %v1242 = vmul.f32 %v1234, %v270
        %v1243 = vmul.f32 %v1234, %v274
        %1244 = vset.pattern.permute.xlu0 1
        %1245 = vperm.xlu0 %1244, %v1228
        %v1246 = vpop.permute.xlu0 %1245
        %v1248 = vmul.f32 %v1246, %v299
        %v1249 = vmul.f32 %v1246, %v303
        %v1250 = vmul.f32 %v1246, %v307
        %v1251 = vmul.f32 %v1246, %v311
        %v1252 = vmul.f32 %v1246, %v315
        %v1253 = vmul.f32 %v1246, %v319
        %v1254 = vmul.f32 %v1246, %v323
        %v1255 = vmul.f32 %v1246, %v327
        %v1256 = vadd.f32 %v1236, %v1248
        %v1257 = vadd.f32 %v1237, %v1249
        %v1258 = vadd.f32 %v1238, %v1250
        %v1259 = vadd.f32 %v1239, %v1251
        %v1260 = vadd.f32 %v1240, %v1252
        %v1261 = vadd.f32 %v1241, %v1253
        %v1262 = vadd.f32 %v1242, %v1254
        %v1263 = vadd.f32 %v1243, %v1255
        %1264 = vset.pattern.permute.xlu0 2
        %1265 = vperm.xlu0 %1264, %v1228
        %v1266 = vpop.permute.xlu0 %1265
        %v1268 = vmul.f32 %v1266, %v360
        %v1269 = vmul.f32 %v1266, %v364
        %v1270 = vmul.f32 %v1266, %v368
        %v1271 = vmul.f32 %v1266, %v372
        %v1272 = vmul.f32 %v1266, %v376
        %v1273 = vmul.f32 %v1266, %v380
        %v1274 = vmul.f32 %v1266, %v384
        %v1275 = vmul.f32 %v1266, %v388
        %v1276 = vadd.f32 %v1256, %v1268
        %v1277 = vadd.f32 %v1257, %v1269
        %v1278 = vadd.f32 %v1258, %v1270
        %v1279 = vadd.f32 %v1259, %v1271
        %v1280 = vadd.f32 %v1260, %v1272
        %v1281 = vadd.f32 %v1261, %v1273
        %v1282 = vadd.f32 %v1262, %v1274
        %v1283 = vadd.f32 %v1263, %v1275
        %1284 = vset.pattern.permute.xlu0 3
        %1285 = vperm.xlu0 %1284, %v1228
        %v1286 = vpop.permute.xlu0 %1285
        %v1288 = vmul.f32 %v1286, %v421
        %v1289 = vmul.f32 %v1286, %v425
        %v1290 = vmul.f32 %v1286, %v429
        %v1291 = vmul.f32 %v1286, %v433
        %v1292 = vmul.f32 %v1286, %v437
        %v1293 = vmul.f32 %v1286, %v441
        %v1294 = vmul.f32 %v1286, %v445
        %v1295 = vmul.f32 %v1286, %v449
        %v1296 = vadd.f32 %v1276, %v1288
        %v1297 = vadd.f32 %v1277, %v1289
        %v1298 = vadd.f32 %v1278, %v1290
        %v1299 = vadd.f32 %v1279, %v1291
        %v1300 = vadd.f32 %v1280, %v1292
        %v1301 = vadd.f32 %v1281, %v1293
        %v1302 = vadd.f32 %v1282, %v1294
        %v1303 = vadd.f32 %v1283, %v1295
        %1305 = vset.pattern.permute.xlu0 0
        %1306 = vperm.xlu0 %1305, %v1229
        %v1307 = vpop.permute.xlu0 %1306
        %v1309 = vadd.f32 %v1296, %v1307
        %v1310 = vadd.f32 %v1297, %v1307
        %v1311 = vadd.f32 %v1298, %v1307
        %v1312 = vadd.f32 %v1299, %v1307
        %v1313 = vadd.f32 %v1300, %v1307
        %v1314 = vadd.f32 %v1301, %v1307
        %v1315 = vadd.f32 %v1302, %v1307
        %v1316 = vadd.f32 %v1303, %v1307
        %v1317 = vmax.f32 %v1309, 0.0
        %v1318 = vmax.f32 %v1310, 0.0
        %v1319 = vmax.f32 %v1311, 0.0
        %v1320 = vmax.f32 %v1312, 0.0
        %v1321 = vmax.f32 %v1313, 0.0
        %v1322 = vmax.f32 %v1314, 0.0
        %v1323 = vmax.f32 %v1315, 0.0
        %v1324 = vmax.f32 %v1316, 0.0
        %1326 = vset.pattern.permute.xlu0 0
        %1327 = vperm.xlu0 %1326, %v1230
        %v1328 = vpop.permute.xlu0 %1327
        %v1330 = vmul.f32 %v1328, %v1317
        %v1331 = vmul.f32 %v1328, %v1318
        %v1332 = vmul.f32 %v1328, %v1319
        %v1333 = vmul.f32 %v1328, %v1320
        %v1334 = vmul.f32 %v1328, %v1321
        %v1335 = vmul.f32 %v1328, %v1322
        %v1336 = vmul.f32 %v1328, %v1323
        %v1337 = vmul.f32 %v1328, %v1324
        %v1338 = vrot.slane %v1330, 4
        %v1339 = vadd.f32 %v1330, %v1338
        %v1340 = vrot.slane %v1339, 2
        %v1341 = vadd.f32 %v1339, %v1340
        %v1342 = vrot.slane %v1341, 1
        %v1343 = vadd.f32 %v1341, %v1342
        %v1344 = vrot.slane %v1331, 4
        %v1345 = vadd.f32 %v1331, %v1344
        %v1346 = vrot.slane %v1345, 2
        %v1347 = vadd.f32 %v1345, %v1346
        %v1348 = vrot.slane %v1347, 1
        %v1349 = vadd.f32 %v1347, %v1348
        %v1350 = vrot.slane %v1332, 4
        %v1351 = vadd.f32 %v1332, %v1350
        %v1352 = vrot.slane %v1351, 2
        %v1353 = vadd.f32 %v1351, %v1352
        %v1354 = vrot.slane %v1353, 1
        %v1355 = vadd.f32 %v1353, %v1354
        %v1356 = vrot.slane %v1333, 4
        %v1357 = vadd.f32 %v1333, %v1356
        %v1358 = vrot.slane %v1357, 2
        %v1359 = vadd.f32 %v1357, %v1358
        %v1360 = vrot.slane %v1359, 1
        %v1361 = vadd.f32 %v1359, %v1360
        %v1362 = vrot.slane %v1334, 4
        %v1363 = vadd.f32 %v1334, %v1362
        %v1364 = vrot.slane %v1363, 2
        %v1365 = vadd.f32 %v1363, %v1364
        %v1366 = vrot.slane %v1365, 1
        %v1367 = vadd.f32 %v1365, %v1366
        %v1368 = vrot.slane %v1335, 4
        %v1369 = vadd.f32 %v1335, %v1368
        %v1370 = vrot.slane %v1369, 2
        %v1371 = vadd.f32 %v1369, %v1370
        %v1372 = vrot.slane %v1371, 1
        %v1373 = vadd.f32 %v1371, %v1372
        %v1374 = vrot.slane %v1336, 4
        %v1375 = vadd.f32 %v1336, %v1374
        %v1376 = vrot.slane %v1375, 2
        %v1377 = vadd.f32 %v1375, %v1376
        %v1378 = vrot.slane %v1377, 1
        %v1379 = vadd.f32 %v1377, %v1378
        %v1380 = vrot.slane %v1337, 4
        %v1381 = vadd.f32 %v1337, %v1380
        %v1382 = vrot.slane %v1381, 2
        %v1383 = vadd.f32 %v1381, %v1382
        %v1384 = vrot.slane %v1383, 1
        %v1385 = vadd.f32 %v1383, %v1384
        %v1386 = vadd.f32 %v1220, %v1343
        %v1387 = vadd.f32 %v1221, %v1349
        %v1388 = vadd.f32 %v1222, %v1355
        %v1389 = vadd.f32 %v1223, %v1361
        %v1390 = vadd.f32 %v1224, %v1367
        %v1391 = vadd.f32 %v1225, %v1373
        %v1392 = vadd.f32 %v1226, %v1379
        %v1393 = vadd.f32 %v1227, %v1385
        %v1394 = vld [vmem:[%s1 + $0x30] sm:$0xff]
        %v1395 = vld [vmem:[%s2 + $0x30] sm:$0xff]
        %v1396 = vld [vmem:[%s3 + $0x30] sm:$0xff]
        %1398 = vset.pattern.permute.xlu0 0
        %1399 = vperm.xlu0 %1398, %v1394
        %v1400 = vpop.permute.xlu0 %1399
        %v1402 = vmul.f32 %v1400, %v246
        %v1403 = vmul.f32 %v1400, %v250
        %v1404 = vmul.f32 %v1400, %v254
        %v1405 = vmul.f32 %v1400, %v258
        %v1406 = vmul.f32 %v1400, %v262
        %v1407 = vmul.f32 %v1400, %v266
        %v1408 = vmul.f32 %v1400, %v270
        %v1409 = vmul.f32 %v1400, %v274
        %1410 = vset.pattern.permute.xlu0 1
        %1411 = vperm.xlu0 %1410, %v1394
        %v1412 = vpop.permute.xlu0 %1411
        %v1414 = vmul.f32 %v1412, %v299
        %v1415 = vmul.f32 %v1412, %v303
        %v1416 = vmul.f32 %v1412, %v307
        %v1417 = vmul.f32 %v1412, %v311
        %v1418 = vmul.f32 %v1412, %v315
        %v1419 = vmul.f32 %v1412, %v319
        %v1420 = vmul.f32 %v1412, %v323
        %v1421 = vmul.f32 %v1412, %v327
        %v1422 = vadd.f32 %v1402, %v1414
        %v1423 = vadd.f32 %v1403, %v1415
        %v1424 = vadd.f32 %v1404, %v1416
        %v1425 = vadd.f32 %v1405, %v1417
        %v1426 = vadd.f32 %v1406, %v1418
        %v1427 = vadd.f32 %v1407, %v1419
        %v1428 = vadd.f32 %v1408, %v1420
        %v1429 = vadd.f32 %v1409, %v1421
        %1430 = vset.pattern.permute.xlu0 2
        %1431 = vperm.xlu0 %1430, %v1394
        %v1432 = vpop.permute.xlu0 %1431
        %v1434 = vmul.f32 %v1432, %v360
        %v1435 = vmul.f32 %v1432, %v364
        %v1436 = vmul.f32 %v1432, %v368
        %v1437 = vmul.f32 %v1432, %v372
        %v1438 = vmul.f32 %v1432, %v376
        %v1439 = vmul.f32 %v1432, %v380
        %v1440 = vmul.f32 %v1432, %v384
        %v1441 = vmul.f32 %v1432, %v388
        %v1442 = vadd.f32 %v1422, %v1434
        %v1443 = vadd.f32 %v1423, %v1435
        %v1444 = vadd.f32 %v1424, %v1436
        %v1445 = vadd.f32 %v1425, %v1437
        %v1446 = vadd.f32 %v1426, %v1438
        %v1447 = vadd.f32 %v1427, %v1439
        %v1448 = vadd.f32 %v1428, %v1440
        %v1449 = vadd.f32 %v1429, %v1441
        %1450 = vset.pattern.permute.xlu0 3
        %1451 = vperm.xlu0 %1450, %v1394
        %v1452 = vpop.permute.xlu0 %1451
        %v1454 = vmul.f32 %v1452, %v421
        %v1455 = vmul.f32 %v1452, %v425
        %v1456 = vmul.f32 %v1452, %v429
        %v1457 = vmul.f32 %v1452, %v433
        %v1458 = vmul.f32 %v1452, %v437
        %v1459 = vmul.f32 %v1452, %v441
        %v1460 = vmul.f32 %v1452, %v445
        %v1461 = vmul.f32 %v1452, %v449
        %v1462 = vadd.f32 %v1442, %v1454
        %v1463 = vadd.f32 %v1443, %v1455
        %v1464 = vadd.f32 %v1444, %v1456
        %v1465 = vadd.f32 %v1445, %v1457
        %v1466 = vadd.f32 %v1446, %v1458
        %v1467 = vadd.f32 %v1447, %v1459
        %v1468 = vadd.f32 %v1448, %v1460
        %v1469 = vadd.f32 %v1449, %v1461
        %1471 = vset.pattern.permute.xlu0 0
        %1472 = vperm.xlu0 %1471, %v1395
        %v1473 = vpop.permute.xlu0 %1472
        %v1475 = vadd.f32 %v1462, %v1473
        %v1476 = vadd.f32 %v1463, %v1473
        %v1477 = vadd.f32 %v1464, %v1473
        %v1478 = vadd.f32 %v1465, %v1473
        %v1479 = vadd.f32 %v1466, %v1473
        %v1480 = vadd.f32 %v1467, %v1473
        %v1481 = vadd.f32 %v1468, %v1473
        %v1482 = vadd.f32 %v1469, %v1473
        %v1483 = vmax.f32 %v1475, 0.0
        %v1484 = vmax.f32 %v1476, 0.0
        %v1485 = vmax.f32 %v1477, 0.0
        %v1486 = vmax.f32 %v1478, 0.0
        %v1487 = vmax.f32 %v1479, 0.0
        %v1488 = vmax.f32 %v1480, 0.0
        %v1489 = vmax.f32 %v1481, 0.0
        %v1490 = vmax.f32 %v1482, 0.0
        %1492 = vset.pattern.permute.xlu0 0
        %1493 = vperm.xlu0 %1492, %v1396
        %v1494 = vpop.permute.xlu0 %1493
        %v1496 = vmul.f32 %v1494, %v1483
        %v1497 = vmul.f32 %v1494, %v1484
        %v1498 = vmul.f32 %v1494, %v1485
        %v1499 = vmul.f32 %v1494, %v1486
        %v1500 = vmul.f32 %v1494, %v1487
        %v1501 = vmul.f32 %v1494, %v1488
        %v1502 = vmul.f32 %v1494, %v1489
        %v1503 = vmul.f32 %v1494, %v1490
        %v1504 = vrot.slane %v1496, 4
        %v1505 = vadd.f32 %v1496, %v1504
        %v1506 = vrot.slane %v1505, 2
        %v1507 = vadd.f32 %v1505, %v1506
        %v1508 = vrot.slane %v1507, 1
        %v1509 = vadd.f32 %v1507, %v1508
        %v1510 = vrot.slane %v1497, 4
        %v1511 = vadd.f32 %v1497, %v1510
        %v1512 = vrot.slane %v1511, 2
        %v1513 = vadd.f32 %v1511, %v1512
        %v1514 = vrot.slane %v1513, 1
        %v1515 = vadd.f32 %v1513, %v1514
        %v1516 = vrot.slane %v1498, 4
        %v1517 = vadd.f32 %v1498, %v1516
        %v1518 = vrot.slane %v1517, 2
        %v1519 = vadd.f32 %v1517, %v1518
        %v1520 = vrot.slane %v1519, 1
        %v1521 = vadd.f32 %v1519, %v1520
        %v1522 = vrot.slane %v1499, 4
        %v1523 = vadd.f32 %v1499, %v1522
        %v1524 = vrot.slane %v1523, 2
        %v1525 = vadd.f32 %v1523, %v1524
        %v1526 = vrot.slane %v1525, 1
        %v1527 = vadd.f32 %v1525, %v1526
        %v1528 = vrot.slane %v1500, 4
        %v1529 = vadd.f32 %v1500, %v1528
        %v1530 = vrot.slane %v1529, 2
        %v1531 = vadd.f32 %v1529, %v1530
        %v1532 = vrot.slane %v1531, 1
        %v1533 = vadd.f32 %v1531, %v1532
        %v1534 = vrot.slane %v1501, 4
        %v1535 = vadd.f32 %v1501, %v1534
        %v1536 = vrot.slane %v1535, 2
        %v1537 = vadd.f32 %v1535, %v1536
        %v1538 = vrot.slane %v1537, 1
        %v1539 = vadd.f32 %v1537, %v1538
        %v1540 = vrot.slane %v1502, 4
        %v1541 = vadd.f32 %v1502, %v1540
        %v1542 = vrot.slane %v1541, 2
        %v1543 = vadd.f32 %v1541, %v1542
        %v1544 = vrot.slane %v1543, 1
        %v1545 = vadd.f32 %v1543, %v1544
        %v1546 = vrot.slane %v1503, 4
        %v1547 = vadd.f32 %v1503, %v1546
        %v1548 = vrot.slane %v1547, 2
        %v1549 = vadd.f32 %v1547, %v1548
        %v1550 = vrot.slane %v1549, 1
        %v1551 = vadd.f32 %v1549, %v1550
        %v1552 = vadd.f32 %v1386, %v1509
        %v1553 = vadd.f32 %v1387, %v1515
        %v1554 = vadd.f32 %v1388, %v1521
        %v1555 = vadd.f32 %v1389, %v1527
        %v1556 = vadd.f32 %v1390, %v1533
        %v1557 = vadd.f32 %v1391, %v1539
        %v1558 = vadd.f32 %v1392, %v1545
        %v1559 = vadd.f32 %v1393, %v1551
        %v1560 = vld [vmem:[%s1 + $0x38] sm:$0xff]
        %v1561 = vld [vmem:[%s2 + $0x38] sm:$0xff]
        %v1562 = vld [vmem:[%s3 + $0x38] sm:$0xff]
        %1564 = vset.pattern.permute.xlu0 0
        %1565 = vperm.xlu0 %1564, %v1560
        %v1566 = vpop.permute.xlu0 %1565
        %v1568 = vmul.f32 %v1566, %v246
        %v1569 = vmul.f32 %v1566, %v250
        %v1570 = vmul.f32 %v1566, %v254
        %v1571 = vmul.f32 %v1566, %v258
        %v1572 = vmul.f32 %v1566, %v262
        %v1573 = vmul.f32 %v1566, %v266
        %v1574 = vmul.f32 %v1566, %v270
        %v1575 = vmul.f32 %v1566, %v274
        %1576 = vset.pattern.permute.xlu0 1
        %1577 = vperm.xlu0 %1576, %v1560
        %v1578 = vpop.permute.xlu0 %1577
        %v1580 = vmul.f32 %v1578, %v299
        %v1581 = vmul.f32 %v1578, %v303
        %v1582 = vmul.f32 %v1578, %v307
        %v1583 = vmul.f32 %v1578, %v311
        %v1584 = vmul.f32 %v1578, %v315
        %v1585 = vmul.f32 %v1578, %v319
        %v1586 = vmul.f32 %v1578, %v323
        %v1587 = vmul.f32 %v1578, %v327
        %v1588 = vadd.f32 %v1568, %v1580
        %v1589 = vadd.f32 %v1569, %v1581
        %v1590 = vadd.f32 %v1570, %v1582
        %v1591 = vadd.f32 %v1571, %v1583
        %v1592 = vadd.f32 %v1572, %v1584
        %v1593 = vadd.f32 %v1573, %v1585
        %v1594 = vadd.f32 %v1574, %v1586
        %v1595 = vadd.f32 %v1575, %v1587
        %1596 = vset.pattern.permute.xlu0 2
        %1597 = vperm.xlu0 %1596, %v1560
        %v1598 = vpop.permute.xlu0 %1597
        %v1600 = vmul.f32 %v1598, %v360
        %v1601 = vmul.f32 %v1598, %v364
        %v1602 = vmul.f32 %v1598, %v368
        %v1603 = vmul.f32 %v1598, %v372
        %v1604 = vmul.f32 %v1598, %v376
        %v1605 = vmul.f32 %v1598, %v380
        %v1606 = vmul.f32 %v1598, %v384
        %v1607 = vmul.f32 %v1598, %v388
        %v1608 = vadd.f32 %v1588, %v1600
        %v1609 = vadd.f32 %v1589, %v1601
        %v1610 = vadd.f32 %v1590, %v1602
        %v1611 = vadd.f32 %v1591, %v1603
        %v1612 = vadd.f32 %v1592, %v1604
        %v1613 = vadd.f32 %v1593, %v1605
        %v1614 = vadd.f32 %v1594, %v1606
        %v1615 = vadd.f32 %v1595, %v1607
        %1616 = vset.pattern.permute.xlu0 3
        %1617 = vperm.xlu0 %1616, %v1560
        %v1618 = vpop.permute.xlu0 %1617
        %v1620 = vmul.f32 %v1618, %v421
        %v1621 = vmul.f32 %v1618, %v425
        %v1622 = vmul.f32 %v1618, %v429
        %v1623 = vmul.f32 %v1618, %v433
        %v1624 = vmul.f32 %v1618, %v437
        %v1625 = vmul.f32 %v1618, %v441
        %v1626 = vmul.f32 %v1618, %v445
        %v1627 = vmul.f32 %v1618, %v449
        %v1628 = vadd.f32 %v1608, %v1620
        %v1629 = vadd.f32 %v1609, %v1621
        %v1630 = vadd.f32 %v1610, %v1622
        %v1631 = vadd.f32 %v1611, %v1623
        %v1632 = vadd.f32 %v1612, %v1624
        %v1633 = vadd.f32 %v1613, %v1625
        %v1634 = vadd.f32 %v1614, %v1626
        %v1635 = vadd.f32 %v1615, %v1627
        %1637 = vset.pattern.permute.xlu0 0
        %1638 = vperm.xlu0 %1637, %v1561
        %v1639 = vpop.permute.xlu0 %1638
        %v1641 = vadd.f32 %v1628, %v1639
        %v1642 = vadd.f32 %v1629, %v1639
        %v1643 = vadd.f32 %v1630, %v1639
        %v1644 = vadd.f32 %v1631, %v1639
        %v1645 = vadd.f32 %v1632, %v1639
        %v1646 = vadd.f32 %v1633, %v1639
        %v1647 = vadd.f32 %v1634, %v1639
        %v1648 = vadd.f32 %v1635, %v1639
        %v1649 = vmax.f32 %v1641, 0.0
        %v1650 = vmax.f32 %v1642, 0.0
        %v1651 = vmax.f32 %v1643, 0.0
        %v1652 = vmax.f32 %v1644, 0.0
        %v1653 = vmax.f32 %v1645, 0.0
        %v1654 = vmax.f32 %v1646, 0.0
        %v1655 = vmax.f32 %v1647, 0.0
        %v1656 = vmax.f32 %v1648, 0.0
        %1658 = vset.pattern.permute.xlu0 0
        %1659 = vperm.xlu0 %1658, %v1562
        %v1660 = vpop.permute.xlu0 %1659
        %v1662 = vmul.f32 %v1660, %v1649
        %v1663 = vmul.f32 %v1660, %v1650
        %v1664 = vmul.f32 %v1660, %v1651
        %v1665 = vmul.f32 %v1660, %v1652
        %v1666 = vmul.f32 %v1660, %v1653
        %v1667 = vmul.f32 %v1660, %v1654
        %v1668 = vmul.f32 %v1660, %v1655
        %v1669 = vmul.f32 %v1660, %v1656
        %v1670 = vrot.slane %v1662, 4
        %v1671 = vadd.f32 %v1662, %v1670
        %v1672 = vrot.slane %v1671, 2
        %v1673 = vadd.f32 %v1671, %v1672
        %v1674 = vrot.slane %v1673, 1
        %v1675 = vadd.f32 %v1673, %v1674
        %v1676 = vrot.slane %v1663, 4
        %v1677 = vadd.f32 %v1663, %v1676
        %v1678 = vrot.slane %v1677, 2
        %v1679 = vadd.f32 %v1677, %v1678
        %v1680 = vrot.slane %v1679, 1
        %v1681 = vadd.f32 %v1679, %v1680
        %v1682 = vrot.slane %v1664, 4
        %v1683 = vadd.f32 %v1664, %v1682
        %v1684 = vrot.slane %v1683, 2
        %v1685 = vadd.f32 %v1683, %v1684
        %v1686 = vrot.slane %v1685, 1
        %v1687 = vadd.f32 %v1685, %v1686
        %v1688 = vrot.slane %v1665, 4
        %v1689 = vadd.f32 %v1665, %v1688
        %v1690 = vrot.slane %v1689, 2
        %v1691 = vadd.f32 %v1689, %v1690
        %v1692 = vrot.slane %v1691, 1
        %v1693 = vadd.f32 %v1691, %v1692
        %v1694 = vrot.slane %v1666, 4
        %v1695 = vadd.f32 %v1666, %v1694
        %v1696 = vrot.slane %v1695, 2
        %v1697 = vadd.f32 %v1695, %v1696
        %v1698 = vrot.slane %v1697, 1
        %v1699 = vadd.f32 %v1697, %v1698
        %v1700 = vrot.slane %v1667, 4
        %v1701 = vadd.f32 %v1667, %v1700
        %v1702 = vrot.slane %v1701, 2
        %v1703 = vadd.f32 %v1701, %v1702
        %v1704 = vrot.slane %v1703, 1
        %v1705 = vadd.f32 %v1703, %v1704
        %v1706 = vrot.slane %v1668, 4
        %v1707 = vadd.f32 %v1668, %v1706
        %v1708 = vrot.slane %v1707, 2
        %v1709 = vadd.f32 %v1707, %v1708
        %v1710 = vrot.slane %v1709, 1
        %v1711 = vadd.f32 %v1709, %v1710
        %v1712 = vrot.slane %v1669, 4
        %v1713 = vadd.f32 %v1669, %v1712
        %v1714 = vrot.slane %v1713, 2
        %v1715 = vadd.f32 %v1713, %v1714
        %v1716 = vrot.slane %v1715, 1
        %v1717 = vadd.f32 %v1715, %v1716
        %v1718 = vadd.f32 %v1552, %v1675
        %v1719 = vadd.f32 %v1553, %v1681
        %v1720 = vadd.f32 %v1554, %v1687
        %v1721 = vadd.f32 %v1555, %v1693
        %v1722 = vadd.f32 %v1556, %v1699
        %v1723 = vadd.f32 %v1557, %v1705
        %v1724 = vadd.f32 %v1558, %v1711
        %v1725 = vadd.f32 %v1559, %v1717
        %v1726 = vld [vmem:[%s1 + $0x40] sm:$0xff]
        %v1727 = vld [vmem:[%s2 + $0x40] sm:$0xff]
        %v1728 = vld [vmem:[%s3 + $0x40] sm:$0xff]
        %1730 = vset.pattern.permute.xlu0 0
        %1731 = vperm.xlu0 %1730, %v1726
        %v1732 = vpop.permute.xlu0 %1731
        %v1734 = vmul.f32 %v1732, %v246
        %v1735 = vmul.f32 %v1732, %v250
        %v1736 = vmul.f32 %v1732, %v254
        %v1737 = vmul.f32 %v1732, %v258
        %v1738 = vmul.f32 %v1732, %v262
        %v1739 = vmul.f32 %v1732, %v266
        %v1740 = vmul.f32 %v1732, %v270
        %v1741 = vmul.f32 %v1732, %v274
        %1742 = vset.pattern.permute.xlu0 1
        %1743 = vperm.xlu0 %1742, %v1726
        %v1744 = vpop.permute.xlu0 %1743
        %v1746 = vmul.f32 %v1744, %v299
        %v1747 = vmul.f32 %v1744, %v303
        %v1748 = vmul.f32 %v1744, %v307
        %v1749 = vmul.f32 %v1744, %v311
        %v1750 = vmul.f32 %v1744, %v315
        %v1751 = vmul.f32 %v1744, %v319
        %v1752 = vmul.f32 %v1744, %v323
        %v1753 = vmul.f32 %v1744, %v327
        %v1754 = vadd.f32 %v1734, %v1746
        %v1755 = vadd.f32 %v1735, %v1747
        %v1756 = vadd.f32 %v1736, %v1748
        %v1757 = vadd.f32 %v1737, %v1749
        %v1758 = vadd.f32 %v1738, %v1750
        %v1759 = vadd.f32 %v1739, %v1751
        %v1760 = vadd.f32 %v1740, %v1752
        %v1761 = vadd.f32 %v1741, %v1753
        %1762 = vset.pattern.permute.xlu0 2
        %1763 = vperm.xlu0 %1762, %v1726
        %v1764 = vpop.permute.xlu0 %1763
        %v1766 = vmul.f32 %v1764, %v360
        %v1767 = vmul.f32 %v1764, %v364
        %v1768 = vmul.f32 %v1764, %v368
        %v1769 = vmul.f32 %v1764, %v372
        %v1770 = vmul.f32 %v1764, %v376
        %v1771 = vmul.f32 %v1764, %v380
        %v1772 = vmul.f32 %v1764, %v384
        %v1773 = vmul.f32 %v1764, %v388
        %v1774 = vadd.f32 %v1754, %v1766
        %v1775 = vadd.f32 %v1755, %v1767
        %v1776 = vadd.f32 %v1756, %v1768
        %v1777 = vadd.f32 %v1757, %v1769
        %v1778 = vadd.f32 %v1758, %v1770
        %v1779 = vadd.f32 %v1759, %v1771
        %v1780 = vadd.f32 %v1760, %v1772
        %v1781 = vadd.f32 %v1761, %v1773
        %1782 = vset.pattern.permute.xlu0 3
        %1783 = vperm.xlu0 %1782, %v1726
        %v1784 = vpop.permute.xlu0 %1783
        %v1786 = vmul.f32 %v1784, %v421
        %v1787 = vmul.f32 %v1784, %v425
        %v1788 = vmul.f32 %v1784, %v429
        %v1789 = vmul.f32 %v1784, %v433
        %v1790 = vmul.f32 %v1784, %v437
        %v1791 = vmul.f32 %v1784, %v441
        %v1792 = vmul.f32 %v1784, %v445
        %v1793 = vmul.f32 %v1784, %v449
        %v1794 = vadd.f32 %v1774, %v1786
        %v1795 = vadd.f32 %v1775, %v1787
        %v1796 = vadd.f32 %v1776, %v1788
        %v1797 = vadd.f32 %v1777, %v1789
        %v1798 = vadd.f32 %v1778, %v1790
        %v1799 = vadd.f32 %v1779, %v1791
        %v1800 = vadd.f32 %v1780, %v1792
        %v1801 = vadd.f32 %v1781, %v1793
        %1803 = vset.pattern.permute.xlu0 0
        %1804 = vperm.xlu0 %1803, %v1727
        %v1805 = vpop.permute.xlu0 %1804
        %v1807 = vadd.f32 %v1794, %v1805
        %v1808 = vadd.f32 %v1795, %v1805
        %v1809 = vadd.f32 %v1796, %v1805
        %v1810 = vadd.f32 %v1797, %v1805
        %v1811 = vadd.f32 %v1798, %v1805
        %v1812 = vadd.f32 %v1799, %v1805
        %v1813 = vadd.f32 %v1800, %v1805
        %v1814 = vadd.f32 %v1801, %v1805
        %v1815 = vmax.f32 %v1807, 0.0
        %v1816 = vmax.f32 %v1808, 0.0
        %v1817 = vmax.f32 %v1809, 0.0
        %v1818 = vmax.f32 %v1810, 0.0
        %v1819 = vmax.f32 %v1811, 0.0
        %v1820 = vmax.f32 %v1812, 0.0
        %v1821 = vmax.f32 %v1813, 0.0
        %v1822 = vmax.f32 %v1814, 0.0
        %1824 = vset.pattern.permute.xlu0 0
        %1825 = vperm.xlu0 %1824, %v1728
        %v1826 = vpop.permute.xlu0 %1825
        %v1828 = vmul.f32 %v1826, %v1815
        %v1829 = vmul.f32 %v1826, %v1816
        %v1830 = vmul.f32 %v1826, %v1817
        %v1831 = vmul.f32 %v1826, %v1818
        %v1832 = vmul.f32 %v1826, %v1819
        %v1833 = vmul.f32 %v1826, %v1820
        %v1834 = vmul.f32 %v1826, %v1821
        %v1835 = vmul.f32 %v1826, %v1822
        %v1836 = vrot.slane %v1828, 4
        %v1837 = vadd.f32 %v1828, %v1836
        %v1838 = vrot.slane %v1837, 2
        %v1839 = vadd.f32 %v1837, %v1838
        %v1840 = vrot.slane %v1839, 1
        %v1841 = vadd.f32 %v1839, %v1840
        %v1842 = vrot.slane %v1829, 4
        %v1843 = vadd.f32 %v1829, %v1842
        %v1844 = vrot.slane %v1843, 2
        %v1845 = vadd.f32 %v1843, %v1844
        %v1846 = vrot.slane %v1845, 1
        %v1847 = vadd.f32 %v1845, %v1846
        %v1848 = vrot.slane %v1830, 4
        %v1849 = vadd.f32 %v1830, %v1848
        %v1850 = vrot.slane %v1849, 2
        %v1851 = vadd.f32 %v1849, %v1850
        %v1852 = vrot.slane %v1851, 1
        %v1853 = vadd.f32 %v1851, %v1852
        %v1854 = vrot.slane %v1831, 4
        %v1855 = vadd.f32 %v1831, %v1854
        %v1856 = vrot.slane %v1855, 2
        %v1857 = vadd.f32 %v1855, %v1856
        %v1858 = vrot.slane %v1857, 1
        %v1859 = vadd.f32 %v1857, %v1858
        %v1860 = vrot.slane %v1832, 4
        %v1861 = vadd.f32 %v1832, %v1860
        %v1862 = vrot.slane %v1861, 2
        %v1863 = vadd.f32 %v1861, %v1862
        %v1864 = vrot.slane %v1863, 1
        %v1865 = vadd.f32 %v1863, %v1864
        %v1866 = vrot.slane %v1833, 4
        %v1867 = vadd.f32 %v1833, %v1866
        %v1868 = vrot.slane %v1867, 2
        %v1869 = vadd.f32 %v1867, %v1868
        %v1870 = vrot.slane %v1869, 1
        %v1871 = vadd.f32 %v1869, %v1870
        %v1872 = vrot.slane %v1834, 4
        %v1873 = vadd.f32 %v1834, %v1872
        %v1874 = vrot.slane %v1873, 2
        %v1875 = vadd.f32 %v1873, %v1874
        %v1876 = vrot.slane %v1875, 1
        %v1877 = vadd.f32 %v1875, %v1876
        %v1878 = vrot.slane %v1835, 4
        %v1879 = vadd.f32 %v1835, %v1878
        %v1880 = vrot.slane %v1879, 2
        %v1881 = vadd.f32 %v1879, %v1880
        %v1882 = vrot.slane %v1881, 1
        %v1883 = vadd.f32 %v1881, %v1882
        %v1884 = vadd.f32 %v1718, %v1841
        %v1885 = vadd.f32 %v1719, %v1847
        %v1886 = vadd.f32 %v1720, %v1853
        %v1887 = vadd.f32 %v1721, %v1859
        %v1888 = vadd.f32 %v1722, %v1865
        %v1889 = vadd.f32 %v1723, %v1871
        %v1890 = vadd.f32 %v1724, %v1877
        %v1891 = vadd.f32 %v1725, %v1883
        %v1892 = vld [vmem:[%s1 + $0x48] sm:$0xff]
        %v1893 = vld [vmem:[%s2 + $0x48] sm:$0xff]
        %v1894 = vld [vmem:[%s3 + $0x48] sm:$0xff]
        %1896 = vset.pattern.permute.xlu0 0
        %1897 = vperm.xlu0 %1896, %v1892
        %v1898 = vpop.permute.xlu0 %1897
        %v1900 = vmul.f32 %v1898, %v246
        %v1901 = vmul.f32 %v1898, %v250
        %v1902 = vmul.f32 %v1898, %v254
        %v1903 = vmul.f32 %v1898, %v258
        %v1904 = vmul.f32 %v1898, %v262
        %v1905 = vmul.f32 %v1898, %v266
        %v1906 = vmul.f32 %v1898, %v270
        %v1907 = vmul.f32 %v1898, %v274
        %1908 = vset.pattern.permute.xlu0 1
        %1909 = vperm.xlu0 %1908, %v1892
        %v1910 = vpop.permute.xlu0 %1909
        %v1912 = vmul.f32 %v1910, %v299
        %v1913 = vmul.f32 %v1910, %v303
        %v1914 = vmul.f32 %v1910, %v307
        %v1915 = vmul.f32 %v1910, %v311
        %v1916 = vmul.f32 %v1910, %v315
        %v1917 = vmul.f32 %v1910, %v319
        %v1918 = vmul.f32 %v1910, %v323
        %v1919 = vmul.f32 %v1910, %v327
        %v1920 = vadd.f32 %v1900, %v1912
        %v1921 = vadd.f32 %v1901, %v1913
        %v1922 = vadd.f32 %v1902, %v1914
        %v1923 = vadd.f32 %v1903, %v1915
        %v1924 = vadd.f32 %v1904, %v1916
        %v1925 = vadd.f32 %v1905, %v1917
        %v1926 = vadd.f32 %v1906, %v1918
        %v1927 = vadd.f32 %v1907, %v1919
        %1928 = vset.pattern.permute.xlu0 2
        %1929 = vperm.xlu0 %1928, %v1892
        %v1930 = vpop.permute.xlu0 %1929
        %v1932 = vmul.f32 %v1930, %v360
        %v1933 = vmul.f32 %v1930, %v364
        %v1934 = vmul.f32 %v1930, %v368
        %v1935 = vmul.f32 %v1930, %v372
        %v1936 = vmul.f32 %v1930, %v376
        %v1937 = vmul.f32 %v1930, %v380
        %v1938 = vmul.f32 %v1930, %v384
        %v1939 = vmul.f32 %v1930, %v388
        %v1940 = vadd.f32 %v1920, %v1932
        %v1941 = vadd.f32 %v1921, %v1933
        %v1942 = vadd.f32 %v1922, %v1934
        %v1943 = vadd.f32 %v1923, %v1935
        %v1944 = vadd.f32 %v1924, %v1936
        %v1945 = vadd.f32 %v1925, %v1937
        %v1946 = vadd.f32 %v1926, %v1938
        %v1947 = vadd.f32 %v1927, %v1939
        %1948 = vset.pattern.permute.xlu0 3
        %1949 = vperm.xlu0 %1948, %v1892
        %v1950 = vpop.permute.xlu0 %1949
        %v1952 = vmul.f32 %v1950, %v421
        %v1953 = vmul.f32 %v1950, %v425
        %v1954 = vmul.f32 %v1950, %v429
        %v1955 = vmul.f32 %v1950, %v433
        %v1956 = vmul.f32 %v1950, %v437
        %v1957 = vmul.f32 %v1950, %v441
        %v1958 = vmul.f32 %v1950, %v445
        %v1959 = vmul.f32 %v1950, %v449
        %v1960 = vadd.f32 %v1940, %v1952
        %v1961 = vadd.f32 %v1941, %v1953
        %v1962 = vadd.f32 %v1942, %v1954
        %v1963 = vadd.f32 %v1943, %v1955
        %v1964 = vadd.f32 %v1944, %v1956
        %v1965 = vadd.f32 %v1945, %v1957
        %v1966 = vadd.f32 %v1946, %v1958
        %v1967 = vadd.f32 %v1947, %v1959
        %1969 = vset.pattern.permute.xlu0 0
        %1970 = vperm.xlu0 %1969, %v1893
        %v1971 = vpop.permute.xlu0 %1970
        %v1973 = vadd.f32 %v1960, %v1971
        %v1974 = vadd.f32 %v1961, %v1971
        %v1975 = vadd.f32 %v1962, %v1971
        %v1976 = vadd.f32 %v1963, %v1971
        %v1977 = vadd.f32 %v1964, %v1971
        %v1978 = vadd.f32 %v1965, %v1971
        %v1979 = vadd.f32 %v1966, %v1971
        %v1980 = vadd.f32 %v1967, %v1971
        %v1981 = vmax.f32 %v1973, 0.0
        %v1982 = vmax.f32 %v1974, 0.0
        %v1983 = vmax.f32 %v1975, 0.0
        %v1984 = vmax.f32 %v1976, 0.0
        %v1985 = vmax.f32 %v1977, 0.0
        %v1986 = vmax.f32 %v1978, 0.0
        %v1987 = vmax.f32 %v1979, 0.0
        %v1988 = vmax.f32 %v1980, 0.0
        %1990 = vset.pattern.permute.xlu0 0
        %1991 = vperm.xlu0 %1990, %v1894
        %v1992 = vpop.permute.xlu0 %1991
        %v1994 = vmul.f32 %v1992, %v1981
        %v1995 = vmul.f32 %v1992, %v1982
        %v1996 = vmul.f32 %v1992, %v1983
        %v1997 = vmul.f32 %v1992, %v1984
        %v1998 = vmul.f32 %v1992, %v1985
        %v1999 = vmul.f32 %v1992, %v1986
        %v2000 = vmul.f32 %v1992, %v1987
        %v2001 = vmul.f32 %v1992, %v1988
        %v2002 = vrot.slane %v1994, 4
        %v2003 = vadd.f32 %v1994, %v2002
        %v2004 = vrot.slane %v2003, 2
        %v2005 = vadd.f32 %v2003, %v2004
        %v2006 = vrot.slane %v2005, 1
        %v2007 = vadd.f32 %v2005, %v2006
        %v2008 = vrot.slane %v1995, 4
        %v2009 = vadd.f32 %v1995, %v2008
        %v2010 = vrot.slane %v2009, 2
        %v2011 = vadd.f32 %v2009, %v2010
        %v2012 = vrot.slane %v2011, 1
        %v2013 = vadd.f32 %v2011, %v2012
        %v2014 = vrot.slane %v1996, 4
        %v2015 = vadd.f32 %v1996, %v2014
        %v2016 = vrot.slane %v2015, 2
        %v2017 = vadd.f32 %v2015, %v2016
        %v2018 = vrot.slane %v2017, 1
        %v2019 = vadd.f32 %v2017, %v2018
        %v2020 = vrot.slane %v1997, 4
        %v2021 = vadd.f32 %v1997, %v2020
        %v2022 = vrot.slane %v2021, 2
        %v2023 = vadd.f32 %v2021, %v2022
        %v2024 = vrot.slane %v2023, 1
        %v2025 = vadd.f32 %v2023, %v2024
        %v2026 = vrot.slane %v1998, 4
        %v2027 = vadd.f32 %v1998, %v2026
        %v2028 = vrot.slane %v2027, 2
        %v2029 = vadd.f32 %v2027, %v2028
        %v2030 = vrot.slane %v2029, 1
        %v2031 = vadd.f32 %v2029, %v2030
        %v2032 = vrot.slane %v1999, 4
        %v2033 = vadd.f32 %v1999, %v2032
        %v2034 = vrot.slane %v2033, 2
        %v2035 = vadd.f32 %v2033, %v2034
        %v2036 = vrot.slane %v2035, 1
        %v2037 = vadd.f32 %v2035, %v2036
        %v2038 = vrot.slane %v2000, 4
        %v2039 = vadd.f32 %v2000, %v2038
        %v2040 = vrot.slane %v2039, 2
        %v2041 = vadd.f32 %v2039, %v2040
        %v2042 = vrot.slane %v2041, 1
        %v2043 = vadd.f32 %v2041, %v2042
        %v2044 = vrot.slane %v2001, 4
        %v2045 = vadd.f32 %v2001, %v2044
        %v2046 = vrot.slane %v2045, 2
        %v2047 = vadd.f32 %v2045, %v2046
        %v2048 = vrot.slane %v2047, 1
        %v2049 = vadd.f32 %v2047, %v2048
        %v2050 = vadd.f32 %v1884, %v2007
        %v2051 = vadd.f32 %v1885, %v2013
        %v2052 = vadd.f32 %v1886, %v2019
        %v2053 = vadd.f32 %v1887, %v2025
        %v2054 = vadd.f32 %v1888, %v2031
        %v2055 = vadd.f32 %v1889, %v2037
        %v2056 = vadd.f32 %v1890, %v2043
        %v2057 = vadd.f32 %v1891, %v2049
        %v2058 = vld [vmem:[%s1 + $0x50] sm:$0xff]
        %v2059 = vld [vmem:[%s2 + $0x50] sm:$0xff]
        %v2060 = vld [vmem:[%s3 + $0x50] sm:$0xff]
        %2062 = vset.pattern.permute.xlu0 0
        %2063 = vperm.xlu0 %2062, %v2058
        %v2064 = vpop.permute.xlu0 %2063
        %v2066 = vmul.f32 %v2064, %v246
        %v2067 = vmul.f32 %v2064, %v250
        %v2068 = vmul.f32 %v2064, %v254
        %v2069 = vmul.f32 %v2064, %v258
        %v2070 = vmul.f32 %v2064, %v262
        %v2071 = vmul.f32 %v2064, %v266
        %v2072 = vmul.f32 %v2064, %v270
        %v2073 = vmul.f32 %v2064, %v274
        %2074 = vset.pattern.permute.xlu0 1
        %2075 = vperm.xlu0 %2074, %v2058
        %v2076 = vpop.permute.xlu0 %2075
        %v2078 = vmul.f32 %v2076, %v299
        %v2079 = vmul.f32 %v2076, %v303
        %v2080 = vmul.f32 %v2076, %v307
        %v2081 = vmul.f32 %v2076, %v311
        %v2082 = vmul.f32 %v2076, %v315
        %v2083 = vmul.f32 %v2076, %v319
        %v2084 = vmul.f32 %v2076, %v323
        %v2085 = vmul.f32 %v2076, %v327
        %v2086 = vadd.f32 %v2066, %v2078
        %v2087 = vadd.f32 %v2067, %v2079
        %v2088 = vadd.f32 %v2068, %v2080
        %v2089 = vadd.f32 %v2069, %v2081
        %v2090 = vadd.f32 %v2070, %v2082
        %v2091 = vadd.f32 %v2071, %v2083
        %v2092 = vadd.f32 %v2072, %v2084
        %v2093 = vadd.f32 %v2073, %v2085
        %2094 = vset.pattern.permute.xlu0 2
        %2095 = vperm.xlu0 %2094, %v2058
        %v2096 = vpop.permute.xlu0 %2095
        %v2098 = vmul.f32 %v2096, %v360
        %v2099 = vmul.f32 %v2096, %v364
        %v2100 = vmul.f32 %v2096, %v368
        %v2101 = vmul.f32 %v2096, %v372
        %v2102 = vmul.f32 %v2096, %v376
        %v2103 = vmul.f32 %v2096, %v380
        %v2104 = vmul.f32 %v2096, %v384
        %v2105 = vmul.f32 %v2096, %v388
        %v2106 = vadd.f32 %v2086, %v2098
        %v2107 = vadd.f32 %v2087, %v2099
        %v2108 = vadd.f32 %v2088, %v2100
        %v2109 = vadd.f32 %v2089, %v2101
        %v2110 = vadd.f32 %v2090, %v2102
        %v2111 = vadd.f32 %v2091, %v2103
        %v2112 = vadd.f32 %v2092, %v2104
        %v2113 = vadd.f32 %v2093, %v2105
        %2114 = vset.pattern.permute.xlu0 3
        %2115 = vperm.xlu0 %2114, %v2058
        %v2116 = vpop.permute.xlu0 %2115
        %v2118 = vmul.f32 %v2116, %v421
        %v2119 = vmul.f32 %v2116, %v425
        %v2120 = vmul.f32 %v2116, %v429
        %v2121 = vmul.f32 %v2116, %v433
        %v2122 = vmul.f32 %v2116, %v437
        %v2123 = vmul.f32 %v2116, %v441
        %v2124 = vmul.f32 %v2116, %v445
        %v2125 = vmul.f32 %v2116, %v449
        %v2126 = vadd.f32 %v2106, %v2118
        %v2127 = vadd.f32 %v2107, %v2119
        %v2128 = vadd.f32 %v2108, %v2120
        %v2129 = vadd.f32 %v2109, %v2121
        %v2130 = vadd.f32 %v2110, %v2122
        %v2131 = vadd.f32 %v2111, %v2123
        %v2132 = vadd.f32 %v2112, %v2124
        %v2133 = vadd.f32 %v2113, %v2125
        %2135 = vset.pattern.permute.xlu0 0
        %2136 = vperm.xlu0 %2135, %v2059
        %v2137 = vpop.permute.xlu0 %2136
        %v2139 = vadd.f32 %v2126, %v2137
        %v2140 = vadd.f32 %v2127, %v2137
        %v2141 = vadd.f32 %v2128, %v2137
        %v2142 = vadd.f32 %v2129, %v2137
        %v2143 = vadd.f32 %v2130, %v2137
        %v2144 = vadd.f32 %v2131, %v2137
        %v2145 = vadd.f32 %v2132, %v2137
        %v2146 = vadd.f32 %v2133, %v2137
        %v2147 = vmax.f32 %v2139, 0.0
        %v2148 = vmax.f32 %v2140, 0.0
        %v2149 = vmax.f32 %v2141, 0.0
        %v2150 = vmax.f32 %v2142, 0.0
        %v2151 = vmax.f32 %v2143, 0.0
        %v2152 = vmax.f32 %v2144, 0.0
        %v2153 = vmax.f32 %v2145, 0.0
        %v2154 = vmax.f32 %v2146, 0.0
        %2156 = vset.pattern.permute.xlu0 0
        %2157 = vperm.xlu0 %2156, %v2060
        %v2158 = vpop.permute.xlu0 %2157
        %v2160 = vmul.f32 %v2158, %v2147
        %v2161 = vmul.f32 %v2158, %v2148
        %v2162 = vmul.f32 %v2158, %v2149
        %v2163 = vmul.f32 %v2158, %v2150
        %v2164 = vmul.f32 %v2158, %v2151
        %v2165 = vmul.f32 %v2158, %v2152
        %v2166 = vmul.f32 %v2158, %v2153
        %v2167 = vmul.f32 %v2158, %v2154
        %v2168 = vrot.slane %v2160, 4
        %v2169 = vadd.f32 %v2160, %v2168
        %v2170 = vrot.slane %v2169, 2
        %v2171 = vadd.f32 %v2169, %v2170
        %v2172 = vrot.slane %v2171, 1
        %v2173 = vadd.f32 %v2171, %v2172
        %v2174 = vrot.slane %v2161, 4
        %v2175 = vadd.f32 %v2161, %v2174
        %v2176 = vrot.slane %v2175, 2
        %v2177 = vadd.f32 %v2175, %v2176
        %v2178 = vrot.slane %v2177, 1
        %v2179 = vadd.f32 %v2177, %v2178
        %v2180 = vrot.slane %v2162, 4
        %v2181 = vadd.f32 %v2162, %v2180
        %v2182 = vrot.slane %v2181, 2
        %v2183 = vadd.f32 %v2181, %v2182
        %v2184 = vrot.slane %v2183, 1
        %v2185 = vadd.f32 %v2183, %v2184
        %v2186 = vrot.slane %v2163, 4
        %v2187 = vadd.f32 %v2163, %v2186
        %v2188 = vrot.slane %v2187, 2
        %v2189 = vadd.f32 %v2187, %v2188
        %v2190 = vrot.slane %v2189, 1
        %v2191 = vadd.f32 %v2189, %v2190
        %v2192 = vrot.slane %v2164, 4
        %v2193 = vadd.f32 %v2164, %v2192
        %v2194 = vrot.slane %v2193, 2
        %v2195 = vadd.f32 %v2193, %v2194
        %v2196 = vrot.slane %v2195, 1
        %v2197 = vadd.f32 %v2195, %v2196
        %v2198 = vrot.slane %v2165, 4
        %v2199 = vadd.f32 %v2165, %v2198
        %v2200 = vrot.slane %v2199, 2
        %v2201 = vadd.f32 %v2199, %v2200
        %v2202 = vrot.slane %v2201, 1
        %v2203 = vadd.f32 %v2201, %v2202
        %v2204 = vrot.slane %v2166, 4
        %v2205 = vadd.f32 %v2166, %v2204
        %v2206 = vrot.slane %v2205, 2
        %v2207 = vadd.f32 %v2205, %v2206
        %v2208 = vrot.slane %v2207, 1
        %v2209 = vadd.f32 %v2207, %v2208
        %v2210 = vrot.slane %v2167, 4
        %v2211 = vadd.f32 %v2167, %v2210
        %v2212 = vrot.slane %v2211, 2
        %v2213 = vadd.f32 %v2211, %v2212
        %v2214 = vrot.slane %v2213, 1
        %v2215 = vadd.f32 %v2213, %v2214
        %v2216 = vadd.f32 %v2050, %v2173
        %v2217 = vadd.f32 %v2051, %v2179
        %v2218 = vadd.f32 %v2052, %v2185
        %v2219 = vadd.f32 %v2053, %v2191
        %v2220 = vadd.f32 %v2054, %v2197
        %v2221 = vadd.f32 %v2055, %v2203
        %v2222 = vadd.f32 %v2056, %v2209
        %v2223 = vadd.f32 %v2057, %v2215
        %v2224 = vld [vmem:[%s1 + $0x58] sm:$0xff]
        %v2225 = vld [vmem:[%s2 + $0x58] sm:$0xff]
        %v2226 = vld [vmem:[%s3 + $0x58] sm:$0xff]
        %2228 = vset.pattern.permute.xlu0 0
        %2229 = vperm.xlu0 %2228, %v2224
        %v2230 = vpop.permute.xlu0 %2229
        %v2232 = vmul.f32 %v2230, %v246
        %v2233 = vmul.f32 %v2230, %v250
        %v2234 = vmul.f32 %v2230, %v254
        %v2235 = vmul.f32 %v2230, %v258
        %v2236 = vmul.f32 %v2230, %v262
        %v2237 = vmul.f32 %v2230, %v266
        %v2238 = vmul.f32 %v2230, %v270
        %v2239 = vmul.f32 %v2230, %v274
        %2240 = vset.pattern.permute.xlu0 1
        %2241 = vperm.xlu0 %2240, %v2224
        %v2242 = vpop.permute.xlu0 %2241
        %v2244 = vmul.f32 %v2242, %v299
        %v2245 = vmul.f32 %v2242, %v303
        %v2246 = vmul.f32 %v2242, %v307
        %v2247 = vmul.f32 %v2242, %v311
        %v2248 = vmul.f32 %v2242, %v315
        %v2249 = vmul.f32 %v2242, %v319
        %v2250 = vmul.f32 %v2242, %v323
        %v2251 = vmul.f32 %v2242, %v327
        %v2252 = vadd.f32 %v2232, %v2244
        %v2253 = vadd.f32 %v2233, %v2245
        %v2254 = vadd.f32 %v2234, %v2246
        %v2255 = vadd.f32 %v2235, %v2247
        %v2256 = vadd.f32 %v2236, %v2248
        %v2257 = vadd.f32 %v2237, %v2249
        %v2258 = vadd.f32 %v2238, %v2250
        %v2259 = vadd.f32 %v2239, %v2251
        %2260 = vset.pattern.permute.xlu0 2
        %2261 = vperm.xlu0 %2260, %v2224
        %v2262 = vpop.permute.xlu0 %2261
        %v2264 = vmul.f32 %v2262, %v360
        %v2265 = vmul.f32 %v2262, %v364
        %v2266 = vmul.f32 %v2262, %v368
        %v2267 = vmul.f32 %v2262, %v372
        %v2268 = vmul.f32 %v2262, %v376
        %v2269 = vmul.f32 %v2262, %v380
        %v2270 = vmul.f32 %v2262, %v384
        %v2271 = vmul.f32 %v2262, %v388
        %v2272 = vadd.f32 %v2252, %v2264
        %v2273 = vadd.f32 %v2253, %v2265
        %v2274 = vadd.f32 %v2254, %v2266
        %v2275 = vadd.f32 %v2255, %v2267
        %v2276 = vadd.f32 %v2256, %v2268
        %v2277 = vadd.f32 %v2257, %v2269
        %v2278 = vadd.f32 %v2258, %v2270
        %v2279 = vadd.f32 %v2259, %v2271
        %2280 = vset.pattern.permute.xlu0 3
        %2281 = vperm.xlu0 %2280, %v2224
        %v2282 = vpop.permute.xlu0 %2281
        %v2284 = vmul.f32 %v2282, %v421
        %v2285 = vmul.f32 %v2282, %v425
        %v2286 = vmul.f32 %v2282, %v429
        %v2287 = vmul.f32 %v2282, %v433
        %v2288 = vmul.f32 %v2282, %v437
        %v2289 = vmul.f32 %v2282, %v441
        %v2290 = vmul.f32 %v2282, %v445
        %v2291 = vmul.f32 %v2282, %v449
        %v2292 = vadd.f32 %v2272, %v2284
        %v2293 = vadd.f32 %v2273, %v2285
        %v2294 = vadd.f32 %v2274, %v2286
        %v2295 = vadd.f32 %v2275, %v2287
        %v2296 = vadd.f32 %v2276, %v2288
        %v2297 = vadd.f32 %v2277, %v2289
        %v2298 = vadd.f32 %v2278, %v2290
        %v2299 = vadd.f32 %v2279, %v2291
        %2301 = vset.pattern.permute.xlu0 0
        %2302 = vperm.xlu0 %2301, %v2225
        %v2303 = vpop.permute.xlu0 %2302
        %v2305 = vadd.f32 %v2292, %v2303
        %v2306 = vadd.f32 %v2293, %v2303
        %v2307 = vadd.f32 %v2294, %v2303
        %v2308 = vadd.f32 %v2295, %v2303
        %v2309 = vadd.f32 %v2296, %v2303
        %v2310 = vadd.f32 %v2297, %v2303
        %v2311 = vadd.f32 %v2298, %v2303
        %v2312 = vadd.f32 %v2299, %v2303
        %v2313 = vmax.f32 %v2305, 0.0
        %v2314 = vmax.f32 %v2306, 0.0
        %v2315 = vmax.f32 %v2307, 0.0
        %v2316 = vmax.f32 %v2308, 0.0
        %v2317 = vmax.f32 %v2309, 0.0
        %v2318 = vmax.f32 %v2310, 0.0
        %v2319 = vmax.f32 %v2311, 0.0
        %v2320 = vmax.f32 %v2312, 0.0
        %2322 = vset.pattern.permute.xlu0 0
        %2323 = vperm.xlu0 %2322, %v2226
        %v2324 = vpop.permute.xlu0 %2323
        %v2326 = vmul.f32 %v2324, %v2313
        %v2327 = vmul.f32 %v2324, %v2314
        %v2328 = vmul.f32 %v2324, %v2315
        %v2329 = vmul.f32 %v2324, %v2316
        %v2330 = vmul.f32 %v2324, %v2317
        %v2331 = vmul.f32 %v2324, %v2318
        %v2332 = vmul.f32 %v2324, %v2319
        %v2333 = vmul.f32 %v2324, %v2320
        %v2334 = vrot.slane %v2326, 4
        %v2335 = vadd.f32 %v2326, %v2334
        %v2336 = vrot.slane %v2335, 2
        %v2337 = vadd.f32 %v2335, %v2336
        %v2338 = vrot.slane %v2337, 1
        %v2339 = vadd.f32 %v2337, %v2338
        %v2340 = vrot.slane %v2327, 4
        %v2341 = vadd.f32 %v2327, %v2340
        %v2342 = vrot.slane %v2341, 2
        %v2343 = vadd.f32 %v2341, %v2342
        %v2344 = vrot.slane %v2343, 1
        %v2345 = vadd.f32 %v2343, %v2344
        %v2346 = vrot.slane %v2328, 4
        %v2347 = vadd.f32 %v2328, %v2346
        %v2348 = vrot.slane %v2347, 2
        %v2349 = vadd.f32 %v2347, %v2348
        %v2350 = vrot.slane %v2349, 1
        %v2351 = vadd.f32 %v2349, %v2350
        %v2352 = vrot.slane %v2329, 4
        %v2353 = vadd.f32 %v2329, %v2352
        %v2354 = vrot.slane %v2353, 2
        %v2355 = vadd.f32 %v2353, %v2354
        %v2356 = vrot.slane %v2355, 1
        %v2357 = vadd.f32 %v2355, %v2356
        %v2358 = vrot.slane %v2330, 4
        %v2359 = vadd.f32 %v2330, %v2358
        %v2360 = vrot.slane %v2359, 2
        %v2361 = vadd.f32 %v2359, %v2360
        %v2362 = vrot.slane %v2361, 1
        %v2363 = vadd.f32 %v2361, %v2362
        %v2364 = vrot.slane %v2331, 4
        %v2365 = vadd.f32 %v2331, %v2364
        %v2366 = vrot.slane %v2365, 2
        %v2367 = vadd.f32 %v2365, %v2366
        %v2368 = vrot.slane %v2367, 1
        %v2369 = vadd.f32 %v2367, %v2368
        %v2370 = vrot.slane %v2332, 4
        %v2371 = vadd.f32 %v2332, %v2370
        %v2372 = vrot.slane %v2371, 2
        %v2373 = vadd.f32 %v2371, %v2372
        %v2374 = vrot.slane %v2373, 1
        %v2375 = vadd.f32 %v2373, %v2374
        %v2376 = vrot.slane %v2333, 4
        %v2377 = vadd.f32 %v2333, %v2376
        %v2378 = vrot.slane %v2377, 2
        %v2379 = vadd.f32 %v2377, %v2378
        %v2380 = vrot.slane %v2379, 1
        %v2381 = vadd.f32 %v2379, %v2380
        %v2382 = vadd.f32 %v2216, %v2339
        %v2383 = vadd.f32 %v2217, %v2345
        %v2384 = vadd.f32 %v2218, %v2351
        %v2385 = vadd.f32 %v2219, %v2357
        %v2386 = vadd.f32 %v2220, %v2363
        %v2387 = vadd.f32 %v2221, %v2369
        %v2388 = vadd.f32 %v2222, %v2375
        %v2389 = vadd.f32 %v2223, %v2381
        %v2390 = vld [vmem:[%s1 + $0x60] sm:$0xff]
        %v2391 = vld [vmem:[%s2 + $0x60] sm:$0xff]
        %v2392 = vld [vmem:[%s3 + $0x60] sm:$0xff]
        %2394 = vset.pattern.permute.xlu0 0
        %2395 = vperm.xlu0 %2394, %v2390
        %v2396 = vpop.permute.xlu0 %2395
        %v2398 = vmul.f32 %v2396, %v246
        %v2399 = vmul.f32 %v2396, %v250
        %v2400 = vmul.f32 %v2396, %v254
        %v2401 = vmul.f32 %v2396, %v258
        %v2402 = vmul.f32 %v2396, %v262
        %v2403 = vmul.f32 %v2396, %v266
        %v2404 = vmul.f32 %v2396, %v270
        %v2405 = vmul.f32 %v2396, %v274
        %2406 = vset.pattern.permute.xlu0 1
        %2407 = vperm.xlu0 %2406, %v2390
        %v2408 = vpop.permute.xlu0 %2407
        %v2410 = vmul.f32 %v2408, %v299
        %v2411 = vmul.f32 %v2408, %v303
        %v2412 = vmul.f32 %v2408, %v307
        %v2413 = vmul.f32 %v2408, %v311
        %v2414 = vmul.f32 %v2408, %v315
        %v2415 = vmul.f32 %v2408, %v319
        %v2416 = vmul.f32 %v2408, %v323
        %v2417 = vmul.f32 %v2408, %v327
        %v2418 = vadd.f32 %v2398, %v2410
        %v2419 = vadd.f32 %v2399, %v2411
        %v2420 = vadd.f32 %v2400, %v2412
        %v2421 = vadd.f32 %v2401, %v2413
        %v2422 = vadd.f32 %v2402, %v2414
        %v2423 = vadd.f32 %v2403, %v2415
        %v2424 = vadd.f32 %v2404, %v2416
        %v2425 = vadd.f32 %v2405, %v2417
        %2426 = vset.pattern.permute.xlu0 2
        %2427 = vperm.xlu0 %2426, %v2390
        %v2428 = vpop.permute.xlu0 %2427
        %v2430 = vmul.f32 %v2428, %v360
        %v2431 = vmul.f32 %v2428, %v364
        %v2432 = vmul.f32 %v2428, %v368
        %v2433 = vmul.f32 %v2428, %v372
        %v2434 = vmul.f32 %v2428, %v376
        %v2435 = vmul.f32 %v2428, %v380
        %v2436 = vmul.f32 %v2428, %v384
        %v2437 = vmul.f32 %v2428, %v388
        %v2438 = vadd.f32 %v2418, %v2430
        %v2439 = vadd.f32 %v2419, %v2431
        %v2440 = vadd.f32 %v2420, %v2432
        %v2441 = vadd.f32 %v2421, %v2433
        %v2442 = vadd.f32 %v2422, %v2434
        %v2443 = vadd.f32 %v2423, %v2435
        %v2444 = vadd.f32 %v2424, %v2436
        %v2445 = vadd.f32 %v2425, %v2437
        %2446 = vset.pattern.permute.xlu0 3
        %2447 = vperm.xlu0 %2446, %v2390
        %v2448 = vpop.permute.xlu0 %2447
        %v2450 = vmul.f32 %v2448, %v421
        %v2451 = vmul.f32 %v2448, %v425
        %v2452 = vmul.f32 %v2448, %v429
        %v2453 = vmul.f32 %v2448, %v433
        %v2454 = vmul.f32 %v2448, %v437
        %v2455 = vmul.f32 %v2448, %v441
        %v2456 = vmul.f32 %v2448, %v445
        %v2457 = vmul.f32 %v2448, %v449
        %v2458 = vadd.f32 %v2438, %v2450
        %v2459 = vadd.f32 %v2439, %v2451
        %v2460 = vadd.f32 %v2440, %v2452
        %v2461 = vadd.f32 %v2441, %v2453
        %v2462 = vadd.f32 %v2442, %v2454
        %v2463 = vadd.f32 %v2443, %v2455
        %v2464 = vadd.f32 %v2444, %v2456
        %v2465 = vadd.f32 %v2445, %v2457
        %2467 = vset.pattern.permute.xlu0 0
        %2468 = vperm.xlu0 %2467, %v2391
        %v2469 = vpop.permute.xlu0 %2468
        %v2471 = vadd.f32 %v2458, %v2469
        %v2472 = vadd.f32 %v2459, %v2469
        %v2473 = vadd.f32 %v2460, %v2469
        %v2474 = vadd.f32 %v2461, %v2469
        %v2475 = vadd.f32 %v2462, %v2469
        %v2476 = vadd.f32 %v2463, %v2469
        %v2477 = vadd.f32 %v2464, %v2469
        %v2478 = vadd.f32 %v2465, %v2469
        %v2479 = vmax.f32 %v2471, 0.0
        %v2480 = vmax.f32 %v2472, 0.0
        %v2481 = vmax.f32 %v2473, 0.0
        %v2482 = vmax.f32 %v2474, 0.0
        %v2483 = vmax.f32 %v2475, 0.0
        %v2484 = vmax.f32 %v2476, 0.0
        %v2485 = vmax.f32 %v2477, 0.0
        %v2486 = vmax.f32 %v2478, 0.0
        %2488 = vset.pattern.permute.xlu0 0
        %2489 = vperm.xlu0 %2488, %v2392
        %v2490 = vpop.permute.xlu0 %2489
        %v2492 = vmul.f32 %v2490, %v2479
        %v2493 = vmul.f32 %v2490, %v2480
        %v2494 = vmul.f32 %v2490, %v2481
        %v2495 = vmul.f32 %v2490, %v2482
        %v2496 = vmul.f32 %v2490, %v2483
        %v2497 = vmul.f32 %v2490, %v2484
        %v2498 = vmul.f32 %v2490, %v2485
        %v2499 = vmul.f32 %v2490, %v2486
        %v2500 = vrot.slane %v2492, 4
        %v2501 = vadd.f32 %v2492, %v2500
        %v2502 = vrot.slane %v2501, 2
        %v2503 = vadd.f32 %v2501, %v2502
        %v2504 = vrot.slane %v2503, 1
        %v2505 = vadd.f32 %v2503, %v2504
        %v2506 = vrot.slane %v2493, 4
        %v2507 = vadd.f32 %v2493, %v2506
        %v2508 = vrot.slane %v2507, 2
        %v2509 = vadd.f32 %v2507, %v2508
        %v2510 = vrot.slane %v2509, 1
        %v2511 = vadd.f32 %v2509, %v2510
        %v2512 = vrot.slane %v2494, 4
        %v2513 = vadd.f32 %v2494, %v2512
        %v2514 = vrot.slane %v2513, 2
        %v2515 = vadd.f32 %v2513, %v2514
        %v2516 = vrot.slane %v2515, 1
        %v2517 = vadd.f32 %v2515, %v2516
        %v2518 = vrot.slane %v2495, 4
        %v2519 = vadd.f32 %v2495, %v2518
        %v2520 = vrot.slane %v2519, 2
        %v2521 = vadd.f32 %v2519, %v2520
        %v2522 = vrot.slane %v2521, 1
        %v2523 = vadd.f32 %v2521, %v2522
        %v2524 = vrot.slane %v2496, 4
        %v2525 = vadd.f32 %v2496, %v2524
        %v2526 = vrot.slane %v2525, 2
        %v2527 = vadd.f32 %v2525, %v2526
        %v2528 = vrot.slane %v2527, 1
        %v2529 = vadd.f32 %v2527, %v2528
        %v2530 = vrot.slane %v2497, 4
        %v2531 = vadd.f32 %v2497, %v2530
        %v2532 = vrot.slane %v2531, 2
        %v2533 = vadd.f32 %v2531, %v2532
        %v2534 = vrot.slane %v2533, 1
        %v2535 = vadd.f32 %v2533, %v2534
        %v2536 = vrot.slane %v2498, 4
        %v2537 = vadd.f32 %v2498, %v2536
        %v2538 = vrot.slane %v2537, 2
        %v2539 = vadd.f32 %v2537, %v2538
        %v2540 = vrot.slane %v2539, 1
        %v2541 = vadd.f32 %v2539, %v2540
        %v2542 = vrot.slane %v2499, 4
        %v2543 = vadd.f32 %v2499, %v2542
        %v2544 = vrot.slane %v2543, 2
        %v2545 = vadd.f32 %v2543, %v2544
        %v2546 = vrot.slane %v2545, 1
        %v2547 = vadd.f32 %v2545, %v2546
        %v2548 = vadd.f32 %v2382, %v2505
        %v2549 = vadd.f32 %v2383, %v2511
        %v2550 = vadd.f32 %v2384, %v2517
        %v2551 = vadd.f32 %v2385, %v2523
        %v2552 = vadd.f32 %v2386, %v2529
        %v2553 = vadd.f32 %v2387, %v2535
        %v2554 = vadd.f32 %v2388, %v2541
        %v2555 = vadd.f32 %v2389, %v2547
        %v2556 = vld [vmem:[%s1 + $0x68] sm:$0xff]
        %v2557 = vld [vmem:[%s2 + $0x68] sm:$0xff]
        %v2558 = vld [vmem:[%s3 + $0x68] sm:$0xff]
        %2560 = vset.pattern.permute.xlu0 0
        %2561 = vperm.xlu0 %2560, %v2556
        %v2562 = vpop.permute.xlu0 %2561
        %v2564 = vmul.f32 %v2562, %v246
        %v2565 = vmul.f32 %v2562, %v250
        %v2566 = vmul.f32 %v2562, %v254
        %v2567 = vmul.f32 %v2562, %v258
        %v2568 = vmul.f32 %v2562, %v262
        %v2569 = vmul.f32 %v2562, %v266
        %v2570 = vmul.f32 %v2562, %v270
        %v2571 = vmul.f32 %v2562, %v274
        %2572 = vset.pattern.permute.xlu0 1
        %2573 = vperm.xlu0 %2572, %v2556
        %v2574 = vpop.permute.xlu0 %2573
        %v2576 = vmul.f32 %v2574, %v299
        %v2577 = vmul.f32 %v2574, %v303
        %v2578 = vmul.f32 %v2574, %v307
        %v2579 = vmul.f32 %v2574, %v311
        %v2580 = vmul.f32 %v2574, %v315
        %v2581 = vmul.f32 %v2574, %v319
        %v2582 = vmul.f32 %v2574, %v323
        %v2583 = vmul.f32 %v2574, %v327
        %v2584 = vadd.f32 %v2564, %v2576
        %v2585 = vadd.f32 %v2565, %v2577
        %v2586 = vadd.f32 %v2566, %v2578
        %v2587 = vadd.f32 %v2567, %v2579
        %v2588 = vadd.f32 %v2568, %v2580
        %v2589 = vadd.f32 %v2569, %v2581
        %v2590 = vadd.f32 %v2570, %v2582
        %v2591 = vadd.f32 %v2571, %v2583
        %2592 = vset.pattern.permute.xlu0 2
        %2593 = vperm.xlu0 %2592, %v2556
        %v2594 = vpop.permute.xlu0 %2593
        %v2596 = vmul.f32 %v2594, %v360
        %v2597 = vmul.f32 %v2594, %v364
        %v2598 = vmul.f32 %v2594, %v368
        %v2599 = vmul.f32 %v2594, %v372
        %v2600 = vmul.f32 %v2594, %v376
        %v2601 = vmul.f32 %v2594, %v380
        %v2602 = vmul.f32 %v2594, %v384
        %v2603 = vmul.f32 %v2594, %v388
        %v2604 = vadd.f32 %v2584, %v2596
        %v2605 = vadd.f32 %v2585, %v2597
        %v2606 = vadd.f32 %v2586, %v2598
        %v2607 = vadd.f32 %v2587, %v2599
        %v2608 = vadd.f32 %v2588, %v2600
        %v2609 = vadd.f32 %v2589, %v2601
        %v2610 = vadd.f32 %v2590, %v2602
        %v2611 = vadd.f32 %v2591, %v2603
        %2612 = vset.pattern.permute.xlu0 3
        %2613 = vperm.xlu0 %2612, %v2556
        %v2614 = vpop.permute.xlu0 %2613
        %v2616 = vmul.f32 %v2614, %v421
        %v2617 = vmul.f32 %v2614, %v425
        %v2618 = vmul.f32 %v2614, %v429
        %v2619 = vmul.f32 %v2614, %v433
        %v2620 = vmul.f32 %v2614, %v437
        %v2621 = vmul.f32 %v2614, %v441
        %v2622 = vmul.f32 %v2614, %v445
        %v2623 = vmul.f32 %v2614, %v449
        %v2624 = vadd.f32 %v2604, %v2616
        %v2625 = vadd.f32 %v2605, %v2617
        %v2626 = vadd.f32 %v2606, %v2618
        %v2627 = vadd.f32 %v2607, %v2619
        %v2628 = vadd.f32 %v2608, %v2620
        %v2629 = vadd.f32 %v2609, %v2621
        %v2630 = vadd.f32 %v2610, %v2622
        %v2631 = vadd.f32 %v2611, %v2623
        %2633 = vset.pattern.permute.xlu0 0
        %2634 = vperm.xlu0 %2633, %v2557
        %v2635 = vpop.permute.xlu0 %2634
        %v2637 = vadd.f32 %v2624, %v2635
        %v2638 = vadd.f32 %v2625, %v2635
        %v2639 = vadd.f32 %v2626, %v2635
        %v2640 = vadd.f32 %v2627, %v2635
        %v2641 = vadd.f32 %v2628, %v2635
        %v2642 = vadd.f32 %v2629, %v2635
        %v2643 = vadd.f32 %v2630, %v2635
        %v2644 = vadd.f32 %v2631, %v2635
        %v2645 = vmax.f32 %v2637, 0.0
        %v2646 = vmax.f32 %v2638, 0.0
        %v2647 = vmax.f32 %v2639, 0.0
        %v2648 = vmax.f32 %v2640, 0.0
        %v2649 = vmax.f32 %v2641, 0.0
        %v2650 = vmax.f32 %v2642, 0.0
        %v2651 = vmax.f32 %v2643, 0.0
        %v2652 = vmax.f32 %v2644, 0.0
        %2654 = vset.pattern.permute.xlu0 0
        %2655 = vperm.xlu0 %2654, %v2558
        %v2656 = vpop.permute.xlu0 %2655
        %v2658 = vmul.f32 %v2656, %v2645
        %v2659 = vmul.f32 %v2656, %v2646
        %v2660 = vmul.f32 %v2656, %v2647
        %v2661 = vmul.f32 %v2656, %v2648
        %v2662 = vmul.f32 %v2656, %v2649
        %v2663 = vmul.f32 %v2656, %v2650
        %v2664 = vmul.f32 %v2656, %v2651
        %v2665 = vmul.f32 %v2656, %v2652
        %v2666 = vrot.slane %v2658, 4
        %v2667 = vadd.f32 %v2658, %v2666
        %v2668 = vrot.slane %v2667, 2
        %v2669 = vadd.f32 %v2667, %v2668
        %v2670 = vrot.slane %v2669, 1
        %v2671 = vadd.f32 %v2669, %v2670
        %v2672 = vrot.slane %v2659, 4
        %v2673 = vadd.f32 %v2659, %v2672
        %v2674 = vrot.slane %v2673, 2
        %v2675 = vadd.f32 %v2673, %v2674
        %v2676 = vrot.slane %v2675, 1
        %v2677 = vadd.f32 %v2675, %v2676
        %v2678 = vrot.slane %v2660, 4
        %v2679 = vadd.f32 %v2660, %v2678
        %v2680 = vrot.slane %v2679, 2
        %v2681 = vadd.f32 %v2679, %v2680
        %v2682 = vrot.slane %v2681, 1
        %v2683 = vadd.f32 %v2681, %v2682
        %v2684 = vrot.slane %v2661, 4
        %v2685 = vadd.f32 %v2661, %v2684
        %v2686 = vrot.slane %v2685, 2
        %v2687 = vadd.f32 %v2685, %v2686
        %v2688 = vrot.slane %v2687, 1
        %v2689 = vadd.f32 %v2687, %v2688
        %v2690 = vrot.slane %v2662, 4
        %v2691 = vadd.f32 %v2662, %v2690
        %v2692 = vrot.slane %v2691, 2
        %v2693 = vadd.f32 %v2691, %v2692
        %v2694 = vrot.slane %v2693, 1
        %v2695 = vadd.f32 %v2693, %v2694
        %v2696 = vrot.slane %v2663, 4
        %v2697 = vadd.f32 %v2663, %v2696
        %v2698 = vrot.slane %v2697, 2
        %v2699 = vadd.f32 %v2697, %v2698
        %v2700 = vrot.slane %v2699, 1
        %v2701 = vadd.f32 %v2699, %v2700
        %v2702 = vrot.slane %v2664, 4
        %v2703 = vadd.f32 %v2664, %v2702
        %v2704 = vrot.slane %v2703, 2
        %v2705 = vadd.f32 %v2703, %v2704
        %v2706 = vrot.slane %v2705, 1
        %v2707 = vadd.f32 %v2705, %v2706
        %v2708 = vrot.slane %v2665, 4
        %v2709 = vadd.f32 %v2665, %v2708
        %v2710 = vrot.slane %v2709, 2
        %v2711 = vadd.f32 %v2709, %v2710
        %v2712 = vrot.slane %v2711, 1
        %v2713 = vadd.f32 %v2711, %v2712
        %v2714 = vadd.f32 %v2548, %v2671
        %v2715 = vadd.f32 %v2549, %v2677
        %v2716 = vadd.f32 %v2550, %v2683
        %v2717 = vadd.f32 %v2551, %v2689
        %v2718 = vadd.f32 %v2552, %v2695
        %v2719 = vadd.f32 %v2553, %v2701
        %v2720 = vadd.f32 %v2554, %v2707
        %v2721 = vadd.f32 %v2555, %v2713
        %v2722 = vld [vmem:[%s1 + $0x70] sm:$0xff]
        %v2723 = vld [vmem:[%s2 + $0x70] sm:$0xff]
        %v2724 = vld [vmem:[%s3 + $0x70] sm:$0xff]
        %2726 = vset.pattern.permute.xlu0 0
        %2727 = vperm.xlu0 %2726, %v2722
        %v2728 = vpop.permute.xlu0 %2727
        %v2730 = vmul.f32 %v2728, %v246
        %v2731 = vmul.f32 %v2728, %v250
        %v2732 = vmul.f32 %v2728, %v254
        %v2733 = vmul.f32 %v2728, %v258
        %v2734 = vmul.f32 %v2728, %v262
        %v2735 = vmul.f32 %v2728, %v266
        %v2736 = vmul.f32 %v2728, %v270
        %v2737 = vmul.f32 %v2728, %v274
        %2738 = vset.pattern.permute.xlu0 1
        %2739 = vperm.xlu0 %2738, %v2722
        %v2740 = vpop.permute.xlu0 %2739
        %v2742 = vmul.f32 %v2740, %v299
        %v2743 = vmul.f32 %v2740, %v303
        %v2744 = vmul.f32 %v2740, %v307
        %v2745 = vmul.f32 %v2740, %v311
        %v2746 = vmul.f32 %v2740, %v315
        %v2747 = vmul.f32 %v2740, %v319
        %v2748 = vmul.f32 %v2740, %v323
        %v2749 = vmul.f32 %v2740, %v327
        %v2750 = vadd.f32 %v2730, %v2742
        %v2751 = vadd.f32 %v2731, %v2743
        %v2752 = vadd.f32 %v2732, %v2744
        %v2753 = vadd.f32 %v2733, %v2745
        %v2754 = vadd.f32 %v2734, %v2746
        %v2755 = vadd.f32 %v2735, %v2747
        %v2756 = vadd.f32 %v2736, %v2748
        %v2757 = vadd.f32 %v2737, %v2749
        %2758 = vset.pattern.permute.xlu0 2
        %2759 = vperm.xlu0 %2758, %v2722
        %v2760 = vpop.permute.xlu0 %2759
        %v2762 = vmul.f32 %v2760, %v360
        %v2763 = vmul.f32 %v2760, %v364
        %v2764 = vmul.f32 %v2760, %v368
        %v2765 = vmul.f32 %v2760, %v372
        %v2766 = vmul.f32 %v2760, %v376
        %v2767 = vmul.f32 %v2760, %v380
        %v2768 = vmul.f32 %v2760, %v384
        %v2769 = vmul.f32 %v2760, %v388
        %v2770 = vadd.f32 %v2750, %v2762
        %v2771 = vadd.f32 %v2751, %v2763
        %v2772 = vadd.f32 %v2752, %v2764
        %v2773 = vadd.f32 %v2753, %v2765
        %v2774 = vadd.f32 %v2754, %v2766
        %v2775 = vadd.f32 %v2755, %v2767
        %v2776 = vadd.f32 %v2756, %v2768
        %v2777 = vadd.f32 %v2757, %v2769
        %2778 = vset.pattern.permute.xlu0 3
        %2779 = vperm.xlu0 %2778, %v2722
        %v2780 = vpop.permute.xlu0 %2779
        %v2782 = vmul.f32 %v2780, %v421
        %v2783 = vmul.f32 %v2780, %v425
        %v2784 = vmul.f32 %v2780, %v429
        %v2785 = vmul.f32 %v2780, %v433
        %v2786 = vmul.f32 %v2780, %v437
        %v2787 = vmul.f32 %v2780, %v441
        %v2788 = vmul.f32 %v2780, %v445
        %v2789 = vmul.f32 %v2780, %v449
        %v2790 = vadd.f32 %v2770, %v2782
        %v2791 = vadd.f32 %v2771, %v2783
        %v2792 = vadd.f32 %v2772, %v2784
        %v2793 = vadd.f32 %v2773, %v2785
        %v2794 = vadd.f32 %v2774, %v2786
        %v2795 = vadd.f32 %v2775, %v2787
        %v2796 = vadd.f32 %v2776, %v2788
        %v2797 = vadd.f32 %v2777, %v2789
        %2799 = vset.pattern.permute.xlu0 0
        %2800 = vperm.xlu0 %2799, %v2723
        %v2801 = vpop.permute.xlu0 %2800
        %v2803 = vadd.f32 %v2790, %v2801
        %v2804 = vadd.f32 %v2791, %v2801
        %v2805 = vadd.f32 %v2792, %v2801
        %v2806 = vadd.f32 %v2793, %v2801
        %v2807 = vadd.f32 %v2794, %v2801
        %v2808 = vadd.f32 %v2795, %v2801
        %v2809 = vadd.f32 %v2796, %v2801
        %v2810 = vadd.f32 %v2797, %v2801
        %v2811 = vmax.f32 %v2803, 0.0
        %v2812 = vmax.f32 %v2804, 0.0
        %v2813 = vmax.f32 %v2805, 0.0
        %v2814 = vmax.f32 %v2806, 0.0
        %v2815 = vmax.f32 %v2807, 0.0
        %v2816 = vmax.f32 %v2808, 0.0
        %v2817 = vmax.f32 %v2809, 0.0
        %v2818 = vmax.f32 %v2810, 0.0
        %2820 = vset.pattern.permute.xlu0 0
        %2821 = vperm.xlu0 %2820, %v2724
        %v2822 = vpop.permute.xlu0 %2821
        %v2824 = vmul.f32 %v2822, %v2811
        %v2825 = vmul.f32 %v2822, %v2812
        %v2826 = vmul.f32 %v2822, %v2813
        %v2827 = vmul.f32 %v2822, %v2814
        %v2828 = vmul.f32 %v2822, %v2815
        %v2829 = vmul.f32 %v2822, %v2816
        %v2830 = vmul.f32 %v2822, %v2817
        %v2831 = vmul.f32 %v2822, %v2818
        %v2832 = vrot.slane %v2824, 4
        %v2833 = vadd.f32 %v2824, %v2832
        %v2834 = vrot.slane %v2833, 2
        %v2835 = vadd.f32 %v2833, %v2834
        %v2836 = vrot.slane %v2835, 1
        %v2837 = vadd.f32 %v2835, %v2836
        %v2838 = vrot.slane %v2825, 4
        %v2839 = vadd.f32 %v2825, %v2838
        %v2840 = vrot.slane %v2839, 2
        %v2841 = vadd.f32 %v2839, %v2840
        %v2842 = vrot.slane %v2841, 1
        %v2843 = vadd.f32 %v2841, %v2842
        %v2844 = vrot.slane %v2826, 4
        %v2845 = vadd.f32 %v2826, %v2844
        %v2846 = vrot.slane %v2845, 2
        %v2847 = vadd.f32 %v2845, %v2846
        %v2848 = vrot.slane %v2847, 1
        %v2849 = vadd.f32 %v2847, %v2848
        %v2850 = vrot.slane %v2827, 4
        %v2851 = vadd.f32 %v2827, %v2850
        %v2852 = vrot.slane %v2851, 2
        %v2853 = vadd.f32 %v2851, %v2852
        %v2854 = vrot.slane %v2853, 1
        %v2855 = vadd.f32 %v2853, %v2854
        %v2856 = vrot.slane %v2828, 4
        %v2857 = vadd.f32 %v2828, %v2856
        %v2858 = vrot.slane %v2857, 2
        %v2859 = vadd.f32 %v2857, %v2858
        %v2860 = vrot.slane %v2859, 1
        %v2861 = vadd.f32 %v2859, %v2860
        %v2862 = vrot.slane %v2829, 4
        %v2863 = vadd.f32 %v2829, %v2862
        %v2864 = vrot.slane %v2863, 2
        %v2865 = vadd.f32 %v2863, %v2864
        %v2866 = vrot.slane %v2865, 1
        %v2867 = vadd.f32 %v2865, %v2866
        %v2868 = vrot.slane %v2830, 4
        %v2869 = vadd.f32 %v2830, %v2868
        %v2870 = vrot.slane %v2869, 2
        %v2871 = vadd.f32 %v2869, %v2870
        %v2872 = vrot.slane %v2871, 1
        %v2873 = vadd.f32 %v2871, %v2872
        %v2874 = vrot.slane %v2831, 4
        %v2875 = vadd.f32 %v2831, %v2874
        %v2876 = vrot.slane %v2875, 2
        %v2877 = vadd.f32 %v2875, %v2876
        %v2878 = vrot.slane %v2877, 1
        %v2879 = vadd.f32 %v2877, %v2878
        %v2880 = vadd.f32 %v2714, %v2837
        %v2881 = vadd.f32 %v2715, %v2843
        %v2882 = vadd.f32 %v2716, %v2849
        %v2883 = vadd.f32 %v2717, %v2855
        %v2884 = vadd.f32 %v2718, %v2861
        %v2885 = vadd.f32 %v2719, %v2867
        %v2886 = vadd.f32 %v2720, %v2873
        %v2887 = vadd.f32 %v2721, %v2879
        %v2888 = vld [vmem:[%s1 + $0x78] sm:$0xff]
        %v2889 = vld [vmem:[%s2 + $0x78] sm:$0xff]
        %v2890 = vld [vmem:[%s3 + $0x78] sm:$0xff]
        %2892 = vset.pattern.permute.xlu0 0
        %2893 = vperm.xlu0 %2892, %v2888
        %v2894 = vpop.permute.xlu0 %2893
        %v2896 = vmul.f32 %v2894, %v246
        %v2897 = vmul.f32 %v2894, %v250
        %v2898 = vmul.f32 %v2894, %v254
        %v2899 = vmul.f32 %v2894, %v258
        %v2900 = vmul.f32 %v2894, %v262
        %v2901 = vmul.f32 %v2894, %v266
        %v2902 = vmul.f32 %v2894, %v270
        %v2903 = vmul.f32 %v2894, %v274
        %2904 = vset.pattern.permute.xlu0 1
        %2905 = vperm.xlu0 %2904, %v2888
        %v2906 = vpop.permute.xlu0 %2905
        %v2908 = vmul.f32 %v2906, %v299
        %v2909 = vmul.f32 %v2906, %v303
        %v2910 = vmul.f32 %v2906, %v307
        %v2911 = vmul.f32 %v2906, %v311
        %v2912 = vmul.f32 %v2906, %v315
        %v2913 = vmul.f32 %v2906, %v319
        %v2914 = vmul.f32 %v2906, %v323
        %v2915 = vmul.f32 %v2906, %v327
        %v2916 = vadd.f32 %v2896, %v2908
        %v2917 = vadd.f32 %v2897, %v2909
        %v2918 = vadd.f32 %v2898, %v2910
        %v2919 = vadd.f32 %v2899, %v2911
        %v2920 = vadd.f32 %v2900, %v2912
        %v2921 = vadd.f32 %v2901, %v2913
        %v2922 = vadd.f32 %v2902, %v2914
        %v2923 = vadd.f32 %v2903, %v2915
        %2924 = vset.pattern.permute.xlu0 2
        %2925 = vperm.xlu0 %2924, %v2888
        %v2926 = vpop.permute.xlu0 %2925
        %v2928 = vmul.f32 %v2926, %v360
        %v2929 = vmul.f32 %v2926, %v364
        %v2930 = vmul.f32 %v2926, %v368
        %v2931 = vmul.f32 %v2926, %v372
        %v2932 = vmul.f32 %v2926, %v376
        %v2933 = vmul.f32 %v2926, %v380
        %v2934 = vmul.f32 %v2926, %v384
        %v2935 = vmul.f32 %v2926, %v388
        %v2936 = vadd.f32 %v2916, %v2928
        %v2937 = vadd.f32 %v2917, %v2929
        %v2938 = vadd.f32 %v2918, %v2930
        %v2939 = vadd.f32 %v2919, %v2931
        %v2940 = vadd.f32 %v2920, %v2932
        %v2941 = vadd.f32 %v2921, %v2933
        %v2942 = vadd.f32 %v2922, %v2934
        %v2943 = vadd.f32 %v2923, %v2935
        %2944 = vset.pattern.permute.xlu0 3
        %2945 = vperm.xlu0 %2944, %v2888
        %v2946 = vpop.permute.xlu0 %2945
        %v2948 = vmul.f32 %v2946, %v421
        %v2949 = vmul.f32 %v2946, %v425
        %v2950 = vmul.f32 %v2946, %v429
        %v2951 = vmul.f32 %v2946, %v433
        %v2952 = vmul.f32 %v2946, %v437
        %v2953 = vmul.f32 %v2946, %v441
        %v2954 = vmul.f32 %v2946, %v445
        %v2955 = vmul.f32 %v2946, %v449
        %v2956 = vadd.f32 %v2936, %v2948
        %v2957 = vadd.f32 %v2937, %v2949
        %v2958 = vadd.f32 %v2938, %v2950
        %v2959 = vadd.f32 %v2939, %v2951
        %v2960 = vadd.f32 %v2940, %v2952
        %v2961 = vadd.f32 %v2941, %v2953
        %v2962 = vadd.f32 %v2942, %v2954
        %v2963 = vadd.f32 %v2943, %v2955
        %2965 = vset.pattern.permute.xlu0 0
        %2966 = vperm.xlu0 %2965, %v2889
        %v2967 = vpop.permute.xlu0 %2966
        %v2969 = vadd.f32 %v2956, %v2967
        %v2970 = vadd.f32 %v2957, %v2967
        %v2971 = vadd.f32 %v2958, %v2967
        %v2972 = vadd.f32 %v2959, %v2967
        %v2973 = vadd.f32 %v2960, %v2967
        %v2974 = vadd.f32 %v2961, %v2967
        %v2975 = vadd.f32 %v2962, %v2967
        %v2976 = vadd.f32 %v2963, %v2967
        %v2977 = vmax.f32 %v2969, 0.0
        %v2978 = vmax.f32 %v2970, 0.0
        %v2979 = vmax.f32 %v2971, 0.0
        %v2980 = vmax.f32 %v2972, 0.0
        %v2981 = vmax.f32 %v2973, 0.0
        %v2982 = vmax.f32 %v2974, 0.0
        %v2983 = vmax.f32 %v2975, 0.0
        %v2984 = vmax.f32 %v2976, 0.0
        %2986 = vset.pattern.permute.xlu0 0
        %2987 = vperm.xlu0 %2986, %v2890
        %v2988 = vpop.permute.xlu0 %2987
        %v2990 = vmul.f32 %v2988, %v2977
        %v2991 = vmul.f32 %v2988, %v2978
        %v2992 = vmul.f32 %v2988, %v2979
        %v2993 = vmul.f32 %v2988, %v2980
        %v2994 = vmul.f32 %v2988, %v2981
        %v2995 = vmul.f32 %v2988, %v2982
        %v2996 = vmul.f32 %v2988, %v2983
        %v2997 = vmul.f32 %v2988, %v2984
        %v2998 = vrot.slane %v2990, 4
        %v2999 = vadd.f32 %v2990, %v2998
        %v3000 = vrot.slane %v2999, 2
        %v3001 = vadd.f32 %v2999, %v3000
        %v3002 = vrot.slane %v3001, 1
        %v3003 = vadd.f32 %v3001, %v3002
        %v3004 = vrot.slane %v2991, 4
        %v3005 = vadd.f32 %v2991, %v3004
        %v3006 = vrot.slane %v3005, 2
        %v3007 = vadd.f32 %v3005, %v3006
        %v3008 = vrot.slane %v3007, 1
        %v3009 = vadd.f32 %v3007, %v3008
        %v3010 = vrot.slane %v2992, 4
        %v3011 = vadd.f32 %v2992, %v3010
        %v3012 = vrot.slane %v3011, 2
        %v3013 = vadd.f32 %v3011, %v3012
        %v3014 = vrot.slane %v3013, 1
        %v3015 = vadd.f32 %v3013, %v3014
        %v3016 = vrot.slane %v2993, 4
        %v3017 = vadd.f32 %v2993, %v3016
        %v3018 = vrot.slane %v3017, 2
        %v3019 = vadd.f32 %v3017, %v3018
        %v3020 = vrot.slane %v3019, 1
        %v3021 = vadd.f32 %v3019, %v3020
        %v3022 = vrot.slane %v2994, 4
        %v3023 = vadd.f32 %v2994, %v3022
        %v3024 = vrot.slane %v3023, 2
        %v3025 = vadd.f32 %v3023, %v3024
        %v3026 = vrot.slane %v3025, 1
        %v3027 = vadd.f32 %v3025, %v3026
        %v3028 = vrot.slane %v2995, 4
        %v3029 = vadd.f32 %v2995, %v3028
        %v3030 = vrot.slane %v3029, 2
        %v3031 = vadd.f32 %v3029, %v3030
        %v3032 = vrot.slane %v3031, 1
        %v3033 = vadd.f32 %v3031, %v3032
        %v3034 = vrot.slane %v2996, 4
        %v3035 = vadd.f32 %v2996, %v3034
        %v3036 = vrot.slane %v3035, 2
        %v3037 = vadd.f32 %v3035, %v3036
        %v3038 = vrot.slane %v3037, 1
        %v3039 = vadd.f32 %v3037, %v3038
        %v3040 = vrot.slane %v2997, 4
        %v3041 = vadd.f32 %v2997, %v3040
        %v3042 = vrot.slane %v3041, 2
        %v3043 = vadd.f32 %v3041, %v3042
        %v3044 = vrot.slane %v3043, 1
        %v3045 = vadd.f32 %v3043, %v3044
        %v3046 = vadd.f32 %v2880, %v3003
        %v3047 = vadd.f32 %v2881, %v3009
        %v3048 = vadd.f32 %v2882, %v3015
        %v3049 = vadd.f32 %v2883, %v3021
        %v3050 = vadd.f32 %v2884, %v3027
        %v3051 = vadd.f32 %v2885, %v3033
        %v3052 = vadd.f32 %v2886, %v3039
        %v3053 = vadd.f32 %v2887, %v3045
        %v3054 = vld [vmem:[%s1 + $0x80] sm:$0xff]
        %v3055 = vld [vmem:[%s2 + $0x80] sm:$0xff]
        %v3056 = vld [vmem:[%s3 + $0x80] sm:$0xff]
        %3058 = vset.pattern.permute.xlu0 0
        %3059 = vperm.xlu0 %3058, %v3054
        %v3060 = vpop.permute.xlu0 %3059
        %v3062 = vmul.f32 %v3060, %v246
        %v3063 = vmul.f32 %v3060, %v250
        %v3064 = vmul.f32 %v3060, %v254
        %v3065 = vmul.f32 %v3060, %v258
        %v3066 = vmul.f32 %v3060, %v262
        %v3067 = vmul.f32 %v3060, %v266
        %v3068 = vmul.f32 %v3060, %v270
        %v3069 = vmul.f32 %v3060, %v274
        %3070 = vset.pattern.permute.xlu0 1
        %3071 = vperm.xlu0 %3070, %v3054
        %v3072 = vpop.permute.xlu0 %3071
        %v3074 = vmul.f32 %v3072, %v299
        %v3075 = vmul.f32 %v3072, %v303
        %v3076 = vmul.f32 %v3072, %v307
        %v3077 = vmul.f32 %v3072, %v311
        %v3078 = vmul.f32 %v3072, %v315
        %v3079 = vmul.f32 %v3072, %v319
        %v3080 = vmul.f32 %v3072, %v323
        %v3081 = vmul.f32 %v3072, %v327
        %v3082 = vadd.f32 %v3062, %v3074
        %v3083 = vadd.f32 %v3063, %v3075
        %v3084 = vadd.f32 %v3064, %v3076
        %v3085 = vadd.f32 %v3065, %v3077
        %v3086 = vadd.f32 %v3066, %v3078
        %v3087 = vadd.f32 %v3067, %v3079
        %v3088 = vadd.f32 %v3068, %v3080
        %v3089 = vadd.f32 %v3069, %v3081
        %3090 = vset.pattern.permute.xlu0 2
        %3091 = vperm.xlu0 %3090, %v3054
        %v3092 = vpop.permute.xlu0 %3091
        %v3094 = vmul.f32 %v3092, %v360
        %v3095 = vmul.f32 %v3092, %v364
        %v3096 = vmul.f32 %v3092, %v368
        %v3097 = vmul.f32 %v3092, %v372
        %v3098 = vmul.f32 %v3092, %v376
        %v3099 = vmul.f32 %v3092, %v380
        %v3100 = vmul.f32 %v3092, %v384
        %v3101 = vmul.f32 %v3092, %v388
        %v3102 = vadd.f32 %v3082, %v3094
        %v3103 = vadd.f32 %v3083, %v3095
        %v3104 = vadd.f32 %v3084, %v3096
        %v3105 = vadd.f32 %v3085, %v3097
        %v3106 = vadd.f32 %v3086, %v3098
        %v3107 = vadd.f32 %v3087, %v3099
        %v3108 = vadd.f32 %v3088, %v3100
        %v3109 = vadd.f32 %v3089, %v3101
        %3110 = vset.pattern.permute.xlu0 3
        %3111 = vperm.xlu0 %3110, %v3054
        %v3112 = vpop.permute.xlu0 %3111
        %v3114 = vmul.f32 %v3112, %v421
        %v3115 = vmul.f32 %v3112, %v425
        %v3116 = vmul.f32 %v3112, %v429
        %v3117 = vmul.f32 %v3112, %v433
        %v3118 = vmul.f32 %v3112, %v437
        %v3119 = vmul.f32 %v3112, %v441
        %v3120 = vmul.f32 %v3112, %v445
        %v3121 = vmul.f32 %v3112, %v449
        %v3122 = vadd.f32 %v3102, %v3114
        %v3123 = vadd.f32 %v3103, %v3115
        %v3124 = vadd.f32 %v3104, %v3116
        %v3125 = vadd.f32 %v3105, %v3117
        %v3126 = vadd.f32 %v3106, %v3118
        %v3127 = vadd.f32 %v3107, %v3119
        %v3128 = vadd.f32 %v3108, %v3120
        %v3129 = vadd.f32 %v3109, %v3121
        %3131 = vset.pattern.permute.xlu0 0
        %3132 = vperm.xlu0 %3131, %v3055
        %v3133 = vpop.permute.xlu0 %3132
        %v3135 = vadd.f32 %v3122, %v3133
        %v3136 = vadd.f32 %v3123, %v3133
        %v3137 = vadd.f32 %v3124, %v3133
        %v3138 = vadd.f32 %v3125, %v3133
        %v3139 = vadd.f32 %v3126, %v3133
        %v3140 = vadd.f32 %v3127, %v3133
        %v3141 = vadd.f32 %v3128, %v3133
        %v3142 = vadd.f32 %v3129, %v3133
        %v3143 = vmax.f32 %v3135, 0.0
        %v3144 = vmax.f32 %v3136, 0.0
        %v3145 = vmax.f32 %v3137, 0.0
        %v3146 = vmax.f32 %v3138, 0.0
        %v3147 = vmax.f32 %v3139, 0.0
        %v3148 = vmax.f32 %v3140, 0.0
        %v3149 = vmax.f32 %v3141, 0.0
        %v3150 = vmax.f32 %v3142, 0.0
        %3152 = vset.pattern.permute.xlu0 0
        %3153 = vperm.xlu0 %3152, %v3056
        %v3154 = vpop.permute.xlu0 %3153
        %v3156 = vmul.f32 %v3154, %v3143
        %v3157 = vmul.f32 %v3154, %v3144
        %v3158 = vmul.f32 %v3154, %v3145
        %v3159 = vmul.f32 %v3154, %v3146
        %v3160 = vmul.f32 %v3154, %v3147
        %v3161 = vmul.f32 %v3154, %v3148
        %v3162 = vmul.f32 %v3154, %v3149
        %v3163 = vmul.f32 %v3154, %v3150
        %v3164 = vrot.slane %v3156, 4
        %v3165 = vadd.f32 %v3156, %v3164
        %v3166 = vrot.slane %v3165, 2
        %v3167 = vadd.f32 %v3165, %v3166
        %v3168 = vrot.slane %v3167, 1
        %v3169 = vadd.f32 %v3167, %v3168
        %v3170 = vrot.slane %v3157, 4
        %v3171 = vadd.f32 %v3157, %v3170
        %v3172 = vrot.slane %v3171, 2
        %v3173 = vadd.f32 %v3171, %v3172
        %v3174 = vrot.slane %v3173, 1
        %v3175 = vadd.f32 %v3173, %v3174
        %v3176 = vrot.slane %v3158, 4
        %v3177 = vadd.f32 %v3158, %v3176
        %v3178 = vrot.slane %v3177, 2
        %v3179 = vadd.f32 %v3177, %v3178
        %v3180 = vrot.slane %v3179, 1
        %v3181 = vadd.f32 %v3179, %v3180
        %v3182 = vrot.slane %v3159, 4
        %v3183 = vadd.f32 %v3159, %v3182
        %v3184 = vrot.slane %v3183, 2
        %v3185 = vadd.f32 %v3183, %v3184
        %v3186 = vrot.slane %v3185, 1
        %v3187 = vadd.f32 %v3185, %v3186
        %v3188 = vrot.slane %v3160, 4
        %v3189 = vadd.f32 %v3160, %v3188
        %v3190 = vrot.slane %v3189, 2
        %v3191 = vadd.f32 %v3189, %v3190
        %v3192 = vrot.slane %v3191, 1
        %v3193 = vadd.f32 %v3191, %v3192
        %v3194 = vrot.slane %v3161, 4
        %v3195 = vadd.f32 %v3161, %v3194
        %v3196 = vrot.slane %v3195, 2
        %v3197 = vadd.f32 %v3195, %v3196
        %v3198 = vrot.slane %v3197, 1
        %v3199 = vadd.f32 %v3197, %v3198
        %v3200 = vrot.slane %v3162, 4
        %v3201 = vadd.f32 %v3162, %v3200
        %v3202 = vrot.slane %v3201, 2
        %v3203 = vadd.f32 %v3201, %v3202
        %v3204 = vrot.slane %v3203, 1
        %v3205 = vadd.f32 %v3203, %v3204
        %v3206 = vrot.slane %v3163, 4
        %v3207 = vadd.f32 %v3163, %v3206
        %v3208 = vrot.slane %v3207, 2
        %v3209 = vadd.f32 %v3207, %v3208
        %v3210 = vrot.slane %v3209, 1
        %v3211 = vadd.f32 %v3209, %v3210
        %v3212 = vadd.f32 %v3046, %v3169
        %v3213 = vadd.f32 %v3047, %v3175
        %v3214 = vadd.f32 %v3048, %v3181
        %v3215 = vadd.f32 %v3049, %v3187
        %v3216 = vadd.f32 %v3050, %v3193
        %v3217 = vadd.f32 %v3051, %v3199
        %v3218 = vadd.f32 %v3052, %v3205
        %v3219 = vadd.f32 %v3053, %v3211
        %v3220 = vld [vmem:[%s1 + $0x88] sm:$0xff]
        %v3221 = vld [vmem:[%s2 + $0x88] sm:$0xff]
        %v3222 = vld [vmem:[%s3 + $0x88] sm:$0xff]
        %3224 = vset.pattern.permute.xlu0 0
        %3225 = vperm.xlu0 %3224, %v3220
        %v3226 = vpop.permute.xlu0 %3225
        %v3228 = vmul.f32 %v3226, %v246
        %v3229 = vmul.f32 %v3226, %v250
        %v3230 = vmul.f32 %v3226, %v254
        %v3231 = vmul.f32 %v3226, %v258
        %v3232 = vmul.f32 %v3226, %v262
        %v3233 = vmul.f32 %v3226, %v266
        %v3234 = vmul.f32 %v3226, %v270
        %v3235 = vmul.f32 %v3226, %v274
        %3236 = vset.pattern.permute.xlu0 1
        %3237 = vperm.xlu0 %3236, %v3220
        %v3238 = vpop.permute.xlu0 %3237
        %v3240 = vmul.f32 %v3238, %v299
        %v3241 = vmul.f32 %v3238, %v303
        %v3242 = vmul.f32 %v3238, %v307
        %v3243 = vmul.f32 %v3238, %v311
        %v3244 = vmul.f32 %v3238, %v315
        %v3245 = vmul.f32 %v3238, %v319
        %v3246 = vmul.f32 %v3238, %v323
        %v3247 = vmul.f32 %v3238, %v327
        %v3248 = vadd.f32 %v3228, %v3240
        %v3249 = vadd.f32 %v3229, %v3241
        %v3250 = vadd.f32 %v3230, %v3242
        %v3251 = vadd.f32 %v3231, %v3243
        %v3252 = vadd.f32 %v3232, %v3244
        %v3253 = vadd.f32 %v3233, %v3245
        %v3254 = vadd.f32 %v3234, %v3246
        %v3255 = vadd.f32 %v3235, %v3247
        %3256 = vset.pattern.permute.xlu0 2
        %3257 = vperm.xlu0 %3256, %v3220
        %v3258 = vpop.permute.xlu0 %3257
        %v3260 = vmul.f32 %v3258, %v360
        %v3261 = vmul.f32 %v3258, %v364
        %v3262 = vmul.f32 %v3258, %v368
        %v3263 = vmul.f32 %v3258, %v372
        %v3264 = vmul.f32 %v3258, %v376
        %v3265 = vmul.f32 %v3258, %v380
        %v3266 = vmul.f32 %v3258, %v384
        %v3267 = vmul.f32 %v3258, %v388
        %v3268 = vadd.f32 %v3248, %v3260
        %v3269 = vadd.f32 %v3249, %v3261
        %v3270 = vadd.f32 %v3250, %v3262
        %v3271 = vadd.f32 %v3251, %v3263
        %v3272 = vadd.f32 %v3252, %v3264
        %v3273 = vadd.f32 %v3253, %v3265
        %v3274 = vadd.f32 %v3254, %v3266
        %v3275 = vadd.f32 %v3255, %v3267
        %3276 = vset.pattern.permute.xlu0 3
        %3277 = vperm.xlu0 %3276, %v3220
        %v3278 = vpop.permute.xlu0 %3277
        %v3280 = vmul.f32 %v3278, %v421
        %v3281 = vmul.f32 %v3278, %v425
        %v3282 = vmul.f32 %v3278, %v429
        %v3283 = vmul.f32 %v3278, %v433
        %v3284 = vmul.f32 %v3278, %v437
        %v3285 = vmul.f32 %v3278, %v441
        %v3286 = vmul.f32 %v3278, %v445
        %v3287 = vmul.f32 %v3278, %v449
        %v3288 = vadd.f32 %v3268, %v3280
        %v3289 = vadd.f32 %v3269, %v3281
        %v3290 = vadd.f32 %v3270, %v3282
        %v3291 = vadd.f32 %v3271, %v3283
        %v3292 = vadd.f32 %v3272, %v3284
        %v3293 = vadd.f32 %v3273, %v3285
        %v3294 = vadd.f32 %v3274, %v3286
        %v3295 = vadd.f32 %v3275, %v3287
        %3297 = vset.pattern.permute.xlu0 0
        %3298 = vperm.xlu0 %3297, %v3221
        %v3299 = vpop.permute.xlu0 %3298
        %v3301 = vadd.f32 %v3288, %v3299
        %v3302 = vadd.f32 %v3289, %v3299
        %v3303 = vadd.f32 %v3290, %v3299
        %v3304 = vadd.f32 %v3291, %v3299
        %v3305 = vadd.f32 %v3292, %v3299
        %v3306 = vadd.f32 %v3293, %v3299
        %v3307 = vadd.f32 %v3294, %v3299
        %v3308 = vadd.f32 %v3295, %v3299
        %v3309 = vmax.f32 %v3301, 0.0
        %v3310 = vmax.f32 %v3302, 0.0
        %v3311 = vmax.f32 %v3303, 0.0
        %v3312 = vmax.f32 %v3304, 0.0
        %v3313 = vmax.f32 %v3305, 0.0
        %v3314 = vmax.f32 %v3306, 0.0
        %v3315 = vmax.f32 %v3307, 0.0
        %v3316 = vmax.f32 %v3308, 0.0
        %3318 = vset.pattern.permute.xlu0 0
        %3319 = vperm.xlu0 %3318, %v3222
        %v3320 = vpop.permute.xlu0 %3319
        %v3322 = vmul.f32 %v3320, %v3309
        %v3323 = vmul.f32 %v3320, %v3310
        %v3324 = vmul.f32 %v3320, %v3311
        %v3325 = vmul.f32 %v3320, %v3312
        %v3326 = vmul.f32 %v3320, %v3313
        %v3327 = vmul.f32 %v3320, %v3314
        %v3328 = vmul.f32 %v3320, %v3315
        %v3329 = vmul.f32 %v3320, %v3316
        %v3330 = vrot.slane %v3322, 4
        %v3331 = vadd.f32 %v3322, %v3330
        %v3332 = vrot.slane %v3331, 2
        %v3333 = vadd.f32 %v3331, %v3332
        %v3334 = vrot.slane %v3333, 1
        %v3335 = vadd.f32 %v3333, %v3334
        %v3336 = vrot.slane %v3323, 4
        %v3337 = vadd.f32 %v3323, %v3336
        %v3338 = vrot.slane %v3337, 2
        %v3339 = vadd.f32 %v3337, %v3338
        %v3340 = vrot.slane %v3339, 1
        %v3341 = vadd.f32 %v3339, %v3340
        %v3342 = vrot.slane %v3324, 4
        %v3343 = vadd.f32 %v3324, %v3342
        %v3344 = vrot.slane %v3343, 2
        %v3345 = vadd.f32 %v3343, %v3344
        %v3346 = vrot.slane %v3345, 1
        %v3347 = vadd.f32 %v3345, %v3346
        %v3348 = vrot.slane %v3325, 4
        %v3349 = vadd.f32 %v3325, %v3348
        %v3350 = vrot.slane %v3349, 2
        %v3351 = vadd.f32 %v3349, %v3350
        %v3352 = vrot.slane %v3351, 1
        %v3353 = vadd.f32 %v3351, %v3352
        %v3354 = vrot.slane %v3326, 4
        %v3355 = vadd.f32 %v3326, %v3354
        %v3356 = vrot.slane %v3355, 2
        %v3357 = vadd.f32 %v3355, %v3356
        %v3358 = vrot.slane %v3357, 1
        %v3359 = vadd.f32 %v3357, %v3358
        %v3360 = vrot.slane %v3327, 4
        %v3361 = vadd.f32 %v3327, %v3360
        %v3362 = vrot.slane %v3361, 2
        %v3363 = vadd.f32 %v3361, %v3362
        %v3364 = vrot.slane %v3363, 1
        %v3365 = vadd.f32 %v3363, %v3364
        %v3366 = vrot.slane %v3328, 4
        %v3367 = vadd.f32 %v3328, %v3366
        %v3368 = vrot.slane %v3367, 2
        %v3369 = vadd.f32 %v3367, %v3368
        %v3370 = vrot.slane %v3369, 1
        %v3371 = vadd.f32 %v3369, %v3370
        %v3372 = vrot.slane %v3329, 4
        %v3373 = vadd.f32 %v3329, %v3372
        %v3374 = vrot.slane %v3373, 2
        %v3375 = vadd.f32 %v3373, %v3374
        %v3376 = vrot.slane %v3375, 1
        %v3377 = vadd.f32 %v3375, %v3376
        %v3378 = vadd.f32 %v3212, %v3335
        %v3379 = vadd.f32 %v3213, %v3341
        %v3380 = vadd.f32 %v3214, %v3347
        %v3381 = vadd.f32 %v3215, %v3353
        %v3382 = vadd.f32 %v3216, %v3359
        %v3383 = vadd.f32 %v3217, %v3365
        %v3384 = vadd.f32 %v3218, %v3371
        %v3385 = vadd.f32 %v3219, %v3377
        %v3386 = vld [vmem:[%s1 + $0x90] sm:$0xff]
        %v3387 = vld [vmem:[%s2 + $0x90] sm:$0xff]
        %v3388 = vld [vmem:[%s3 + $0x90] sm:$0xff]
        %3390 = vset.pattern.permute.xlu0 0
        %3391 = vperm.xlu0 %3390, %v3386
        %v3392 = vpop.permute.xlu0 %3391
        %v3394 = vmul.f32 %v3392, %v246
        %v3395 = vmul.f32 %v3392, %v250
        %v3396 = vmul.f32 %v3392, %v254
        %v3397 = vmul.f32 %v3392, %v258
        %v3398 = vmul.f32 %v3392, %v262
        %v3399 = vmul.f32 %v3392, %v266
        %v3400 = vmul.f32 %v3392, %v270
        %v3401 = vmul.f32 %v3392, %v274
        %3402 = vset.pattern.permute.xlu0 1
        %3403 = vperm.xlu0 %3402, %v3386
        %v3404 = vpop.permute.xlu0 %3403
        %v3406 = vmul.f32 %v3404, %v299
        %v3407 = vmul.f32 %v3404, %v303
        %v3408 = vmul.f32 %v3404, %v307
        %v3409 = vmul.f32 %v3404, %v311
        %v3410 = vmul.f32 %v3404, %v315
        %v3411 = vmul.f32 %v3404, %v319
        %v3412 = vmul.f32 %v3404, %v323
        %v3413 = vmul.f32 %v3404, %v327
        %v3414 = vadd.f32 %v3394, %v3406
        %v3415 = vadd.f32 %v3395, %v3407
        %v3416 = vadd.f32 %v3396, %v3408
        %v3417 = vadd.f32 %v3397, %v3409
        %v3418 = vadd.f32 %v3398, %v3410
        %v3419 = vadd.f32 %v3399, %v3411
        %v3420 = vadd.f32 %v3400, %v3412
        %v3421 = vadd.f32 %v3401, %v3413
        %3422 = vset.pattern.permute.xlu0 2
        %3423 = vperm.xlu0 %3422, %v3386
        %v3424 = vpop.permute.xlu0 %3423
        %v3426 = vmul.f32 %v3424, %v360
        %v3427 = vmul.f32 %v3424, %v364
        %v3428 = vmul.f32 %v3424, %v368
        %v3429 = vmul.f32 %v3424, %v372
        %v3430 = vmul.f32 %v3424, %v376
        %v3431 = vmul.f32 %v3424, %v380
        %v3432 = vmul.f32 %v3424, %v384
        %v3433 = vmul.f32 %v3424, %v388
        %v3434 = vadd.f32 %v3414, %v3426
        %v3435 = vadd.f32 %v3415, %v3427
        %v3436 = vadd.f32 %v3416, %v3428
        %v3437 = vadd.f32 %v3417, %v3429
        %v3438 = vadd.f32 %v3418, %v3430
        %v3439 = vadd.f32 %v3419, %v3431
        %v3440 = vadd.f32 %v3420, %v3432
        %v3441 = vadd.f32 %v3421, %v3433
        %3442 = vset.pattern.permute.xlu0 3
        %3443 = vperm.xlu0 %3442, %v3386
        %v3444 = vpop.permute.xlu0 %3443
        %v3446 = vmul.f32 %v3444, %v421
        %v3447 = vmul.f32 %v3444, %v425
        %v3448 = vmul.f32 %v3444, %v429
        %v3449 = vmul.f32 %v3444, %v433
        %v3450 = vmul.f32 %v3444, %v437
        %v3451 = vmul.f32 %v3444, %v441
        %v3452 = vmul.f32 %v3444, %v445
        %v3453 = vmul.f32 %v3444, %v449
        %v3454 = vadd.f32 %v3434, %v3446
        %v3455 = vadd.f32 %v3435, %v3447
        %v3456 = vadd.f32 %v3436, %v3448
        %v3457 = vadd.f32 %v3437, %v3449
        %v3458 = vadd.f32 %v3438, %v3450
        %v3459 = vadd.f32 %v3439, %v3451
        %v3460 = vadd.f32 %v3440, %v3452
        %v3461 = vadd.f32 %v3441, %v3453
        %3463 = vset.pattern.permute.xlu0 0
        %3464 = vperm.xlu0 %3463, %v3387
        %v3465 = vpop.permute.xlu0 %3464
        %v3467 = vadd.f32 %v3454, %v3465
        %v3468 = vadd.f32 %v3455, %v3465
        %v3469 = vadd.f32 %v3456, %v3465
        %v3470 = vadd.f32 %v3457, %v3465
        %v3471 = vadd.f32 %v3458, %v3465
        %v3472 = vadd.f32 %v3459, %v3465
        %v3473 = vadd.f32 %v3460, %v3465
        %v3474 = vadd.f32 %v3461, %v3465
        %v3475 = vmax.f32 %v3467, 0.0
        %v3476 = vmax.f32 %v3468, 0.0
        %v3477 = vmax.f32 %v3469, 0.0
        %v3478 = vmax.f32 %v3470, 0.0
        %v3479 = vmax.f32 %v3471, 0.0
        %v3480 = vmax.f32 %v3472, 0.0
        %v3481 = vmax.f32 %v3473, 0.0
        %v3482 = vmax.f32 %v3474, 0.0
        %3484 = vset.pattern.permute.xlu0 0
        %3485 = vperm.xlu0 %3484, %v3388
        %v3486 = vpop.permute.xlu0 %3485
        %v3488 = vmul.f32 %v3486, %v3475
        %v3489 = vmul.f32 %v3486, %v3476
        %v3490 = vmul.f32 %v3486, %v3477
        %v3491 = vmul.f32 %v3486, %v3478
        %v3492 = vmul.f32 %v3486, %v3479
        %v3493 = vmul.f32 %v3486, %v3480
        %v3494 = vmul.f32 %v3486, %v3481
        %v3495 = vmul.f32 %v3486, %v3482
        %v3496 = vrot.slane %v3488, 4
        %v3497 = vadd.f32 %v3488, %v3496
        %v3498 = vrot.slane %v3497, 2
        %v3499 = vadd.f32 %v3497, %v3498
        %v3500 = vrot.slane %v3499, 1
        %v3501 = vadd.f32 %v3499, %v3500
        %v3502 = vrot.slane %v3489, 4
        %v3503 = vadd.f32 %v3489, %v3502
        %v3504 = vrot.slane %v3503, 2
        %v3505 = vadd.f32 %v3503, %v3504
        %v3506 = vrot.slane %v3505, 1
        %v3507 = vadd.f32 %v3505, %v3506
        %v3508 = vrot.slane %v3490, 4
        %v3509 = vadd.f32 %v3490, %v3508
        %v3510 = vrot.slane %v3509, 2
        %v3511 = vadd.f32 %v3509, %v3510
        %v3512 = vrot.slane %v3511, 1
        %v3513 = vadd.f32 %v3511, %v3512
        %v3514 = vrot.slane %v3491, 4
        %v3515 = vadd.f32 %v3491, %v3514
        %v3516 = vrot.slane %v3515, 2
        %v3517 = vadd.f32 %v3515, %v3516
        %v3518 = vrot.slane %v3517, 1
        %v3519 = vadd.f32 %v3517, %v3518
        %v3520 = vrot.slane %v3492, 4
        %v3521 = vadd.f32 %v3492, %v3520
        %v3522 = vrot.slane %v3521, 2
        %v3523 = vadd.f32 %v3521, %v3522
        %v3524 = vrot.slane %v3523, 1
        %v3525 = vadd.f32 %v3523, %v3524
        %v3526 = vrot.slane %v3493, 4
        %v3527 = vadd.f32 %v3493, %v3526
        %v3528 = vrot.slane %v3527, 2
        %v3529 = vadd.f32 %v3527, %v3528
        %v3530 = vrot.slane %v3529, 1
        %v3531 = vadd.f32 %v3529, %v3530
        %v3532 = vrot.slane %v3494, 4
        %v3533 = vadd.f32 %v3494, %v3532
        %v3534 = vrot.slane %v3533, 2
        %v3535 = vadd.f32 %v3533, %v3534
        %v3536 = vrot.slane %v3535, 1
        %v3537 = vadd.f32 %v3535, %v3536
        %v3538 = vrot.slane %v3495, 4
        %v3539 = vadd.f32 %v3495, %v3538
        %v3540 = vrot.slane %v3539, 2
        %v3541 = vadd.f32 %v3539, %v3540
        %v3542 = vrot.slane %v3541, 1
        %v3543 = vadd.f32 %v3541, %v3542
        %v3544 = vadd.f32 %v3378, %v3501
        %v3545 = vadd.f32 %v3379, %v3507
        %v3546 = vadd.f32 %v3380, %v3513
        %v3547 = vadd.f32 %v3381, %v3519
        %v3548 = vadd.f32 %v3382, %v3525
        %v3549 = vadd.f32 %v3383, %v3531
        %v3550 = vadd.f32 %v3384, %v3537
        %v3551 = vadd.f32 %v3385, %v3543
        %v3552 = vld [vmem:[%s1 + $0x98] sm:$0xff]
        %v3553 = vld [vmem:[%s2 + $0x98] sm:$0xff]
        %v3554 = vld [vmem:[%s3 + $0x98] sm:$0xff]
        %3556 = vset.pattern.permute.xlu0 0
        %3557 = vperm.xlu0 %3556, %v3552
        %v3558 = vpop.permute.xlu0 %3557
        %v3560 = vmul.f32 %v3558, %v246
        %v3561 = vmul.f32 %v3558, %v250
        %v3562 = vmul.f32 %v3558, %v254
        %v3563 = vmul.f32 %v3558, %v258
        %v3564 = vmul.f32 %v3558, %v262
        %v3565 = vmul.f32 %v3558, %v266
        %v3566 = vmul.f32 %v3558, %v270
        %v3567 = vmul.f32 %v3558, %v274
        %3568 = vset.pattern.permute.xlu0 1
        %3569 = vperm.xlu0 %3568, %v3552
        %v3570 = vpop.permute.xlu0 %3569
        %v3572 = vmul.f32 %v3570, %v299
        %v3573 = vmul.f32 %v3570, %v303
        %v3574 = vmul.f32 %v3570, %v307
        %v3575 = vmul.f32 %v3570, %v311
        %v3576 = vmul.f32 %v3570, %v315
        %v3577 = vmul.f32 %v3570, %v319
        %v3578 = vmul.f32 %v3570, %v323
        %v3579 = vmul.f32 %v3570, %v327
        %v3580 = vadd.f32 %v3560, %v3572
        %v3581 = vadd.f32 %v3561, %v3573
        %v3582 = vadd.f32 %v3562, %v3574
        %v3583 = vadd.f32 %v3563, %v3575
        %v3584 = vadd.f32 %v3564, %v3576
        %v3585 = vadd.f32 %v3565, %v3577
        %v3586 = vadd.f32 %v3566, %v3578
        %v3587 = vadd.f32 %v3567, %v3579
        %3588 = vset.pattern.permute.xlu0 2
        %3589 = vperm.xlu0 %3588, %v3552
        %v3590 = vpop.permute.xlu0 %3589
        %v3592 = vmul.f32 %v3590, %v360
        %v3593 = vmul.f32 %v3590, %v364
        %v3594 = vmul.f32 %v3590, %v368
        %v3595 = vmul.f32 %v3590, %v372
        %v3596 = vmul.f32 %v3590, %v376
        %v3597 = vmul.f32 %v3590, %v380
        %v3598 = vmul.f32 %v3590, %v384
        %v3599 = vmul.f32 %v3590, %v388
        %v3600 = vadd.f32 %v3580, %v3592
        %v3601 = vadd.f32 %v3581, %v3593
        %v3602 = vadd.f32 %v3582, %v3594
        %v3603 = vadd.f32 %v3583, %v3595
        %v3604 = vadd.f32 %v3584, %v3596
        %v3605 = vadd.f32 %v3585, %v3597
        %v3606 = vadd.f32 %v3586, %v3598
        %v3607 = vadd.f32 %v3587, %v3599
        %3608 = vset.pattern.permute.xlu0 3
        %3609 = vperm.xlu0 %3608, %v3552
        %v3610 = vpop.permute.xlu0 %3609
        %v3612 = vmul.f32 %v3610, %v421
        %v3613 = vmul.f32 %v3610, %v425
        %v3614 = vmul.f32 %v3610, %v429
        %v3615 = vmul.f32 %v3610, %v433
        %v3616 = vmul.f32 %v3610, %v437
        %v3617 = vmul.f32 %v3610, %v441
        %v3618 = vmul.f32 %v3610, %v445
        %v3619 = vmul.f32 %v3610, %v449
        %v3620 = vadd.f32 %v3600, %v3612
        %v3621 = vadd.f32 %v3601, %v3613
        %v3622 = vadd.f32 %v3602, %v3614
        %v3623 = vadd.f32 %v3603, %v3615
        %v3624 = vadd.f32 %v3604, %v3616
        %v3625 = vadd.f32 %v3605, %v3617
        %v3626 = vadd.f32 %v3606, %v3618
        %v3627 = vadd.f32 %v3607, %v3619
        %3629 = vset.pattern.permute.xlu0 0
        %3630 = vperm.xlu0 %3629, %v3553
        %v3631 = vpop.permute.xlu0 %3630
        %v3633 = vadd.f32 %v3620, %v3631
        %v3634 = vadd.f32 %v3621, %v3631
        %v3635 = vadd.f32 %v3622, %v3631
        %v3636 = vadd.f32 %v3623, %v3631
        %v3637 = vadd.f32 %v3624, %v3631
        %v3638 = vadd.f32 %v3625, %v3631
        %v3639 = vadd.f32 %v3626, %v3631
        %v3640 = vadd.f32 %v3627, %v3631
        %v3641 = vmax.f32 %v3633, 0.0
        %v3642 = vmax.f32 %v3634, 0.0
        %v3643 = vmax.f32 %v3635, 0.0
        %v3644 = vmax.f32 %v3636, 0.0
        %v3645 = vmax.f32 %v3637, 0.0
        %v3646 = vmax.f32 %v3638, 0.0
        %v3647 = vmax.f32 %v3639, 0.0
        %v3648 = vmax.f32 %v3640, 0.0
        %3650 = vset.pattern.permute.xlu0 0
        %3651 = vperm.xlu0 %3650, %v3554
        %v3652 = vpop.permute.xlu0 %3651
        %v3654 = vmul.f32 %v3652, %v3641
        %v3655 = vmul.f32 %v3652, %v3642
        %v3656 = vmul.f32 %v3652, %v3643
        %v3657 = vmul.f32 %v3652, %v3644
        %v3658 = vmul.f32 %v3652, %v3645
        %v3659 = vmul.f32 %v3652, %v3646
        %v3660 = vmul.f32 %v3652, %v3647
        %v3661 = vmul.f32 %v3652, %v3648
        %v3662 = vrot.slane %v3654, 4
        %v3663 = vadd.f32 %v3654, %v3662
        %v3664 = vrot.slane %v3663, 2
        %v3665 = vadd.f32 %v3663, %v3664
        %v3666 = vrot.slane %v3665, 1
        %v3667 = vadd.f32 %v3665, %v3666
        %v3668 = vrot.slane %v3655, 4
        %v3669 = vadd.f32 %v3655, %v3668
        %v3670 = vrot.slane %v3669, 2
        %v3671 = vadd.f32 %v3669, %v3670
        %v3672 = vrot.slane %v3671, 1
        %v3673 = vadd.f32 %v3671, %v3672
        %v3674 = vrot.slane %v3656, 4
        %v3675 = vadd.f32 %v3656, %v3674
        %v3676 = vrot.slane %v3675, 2
        %v3677 = vadd.f32 %v3675, %v3676
        %v3678 = vrot.slane %v3677, 1
        %v3679 = vadd.f32 %v3677, %v3678
        %v3680 = vrot.slane %v3657, 4
        %v3681 = vadd.f32 %v3657, %v3680
        %v3682 = vrot.slane %v3681, 2
        %v3683 = vadd.f32 %v3681, %v3682
        %v3684 = vrot.slane %v3683, 1
        %v3685 = vadd.f32 %v3683, %v3684
        %v3686 = vrot.slane %v3658, 4
        %v3687 = vadd.f32 %v3658, %v3686
        %v3688 = vrot.slane %v3687, 2
        %v3689 = vadd.f32 %v3687, %v3688
        %v3690 = vrot.slane %v3689, 1
        %v3691 = vadd.f32 %v3689, %v3690
        %v3692 = vrot.slane %v3659, 4
        %v3693 = vadd.f32 %v3659, %v3692
        %v3694 = vrot.slane %v3693, 2
        %v3695 = vadd.f32 %v3693, %v3694
        %v3696 = vrot.slane %v3695, 1
        %v3697 = vadd.f32 %v3695, %v3696
        %v3698 = vrot.slane %v3660, 4
        %v3699 = vadd.f32 %v3660, %v3698
        %v3700 = vrot.slane %v3699, 2
        %v3701 = vadd.f32 %v3699, %v3700
        %v3702 = vrot.slane %v3701, 1
        %v3703 = vadd.f32 %v3701, %v3702
        %v3704 = vrot.slane %v3661, 4
        %v3705 = vadd.f32 %v3661, %v3704
        %v3706 = vrot.slane %v3705, 2
        %v3707 = vadd.f32 %v3705, %v3706
        %v3708 = vrot.slane %v3707, 1
        %v3709 = vadd.f32 %v3707, %v3708
        %v3710 = vadd.f32 %v3544, %v3667
        %v3711 = vadd.f32 %v3545, %v3673
        %v3712 = vadd.f32 %v3546, %v3679
        %v3713 = vadd.f32 %v3547, %v3685
        %v3714 = vadd.f32 %v3548, %v3691
        %v3715 = vadd.f32 %v3549, %v3697
        %v3716 = vadd.f32 %v3550, %v3703
        %v3717 = vadd.f32 %v3551, %v3709
        %v3718 = vld [vmem:[%s1 + $0xa0] sm:$0xff]
        %v3719 = vld [vmem:[%s2 + $0xa0] sm:$0xff]
        %v3720 = vld [vmem:[%s3 + $0xa0] sm:$0xff]
        %3722 = vset.pattern.permute.xlu0 0
        %3723 = vperm.xlu0 %3722, %v3718
        %v3724 = vpop.permute.xlu0 %3723
        %v3726 = vmul.f32 %v3724, %v246
        %v3727 = vmul.f32 %v3724, %v250
        %v3728 = vmul.f32 %v3724, %v254
        %v3729 = vmul.f32 %v3724, %v258
        %v3730 = vmul.f32 %v3724, %v262
        %v3731 = vmul.f32 %v3724, %v266
        %v3732 = vmul.f32 %v3724, %v270
        %v3733 = vmul.f32 %v3724, %v274
        %3734 = vset.pattern.permute.xlu0 1
        %3735 = vperm.xlu0 %3734, %v3718
        %v3736 = vpop.permute.xlu0 %3735
        %v3738 = vmul.f32 %v3736, %v299
        %v3739 = vmul.f32 %v3736, %v303
        %v3740 = vmul.f32 %v3736, %v307
        %v3741 = vmul.f32 %v3736, %v311
        %v3742 = vmul.f32 %v3736, %v315
        %v3743 = vmul.f32 %v3736, %v319
        %v3744 = vmul.f32 %v3736, %v323
        %v3745 = vmul.f32 %v3736, %v327
        %v3746 = vadd.f32 %v3726, %v3738
        %v3747 = vadd.f32 %v3727, %v3739
        %v3748 = vadd.f32 %v3728, %v3740
        %v3749 = vadd.f32 %v3729, %v3741
        %v3750 = vadd.f32 %v3730, %v3742
        %v3751 = vadd.f32 %v3731, %v3743
        %v3752 = vadd.f32 %v3732, %v3744
        %v3753 = vadd.f32 %v3733, %v3745
        %3754 = vset.pattern.permute.xlu0 2
        %3755 = vperm.xlu0 %3754, %v3718
        %v3756 = vpop.permute.xlu0 %3755
        %v3758 = vmul.f32 %v3756, %v360
        %v3759 = vmul.f32 %v3756, %v364
        %v3760 = vmul.f32 %v3756, %v368
        %v3761 = vmul.f32 %v3756, %v372
        %v3762 = vmul.f32 %v3756, %v376
        %v3763 = vmul.f32 %v3756, %v380
        %v3764 = vmul.f32 %v3756, %v384
        %v3765 = vmul.f32 %v3756, %v388
        %v3766 = vadd.f32 %v3746, %v3758
        %v3767 = vadd.f32 %v3747, %v3759
        %v3768 = vadd.f32 %v3748, %v3760
        %v3769 = vadd.f32 %v3749, %v3761
        %v3770 = vadd.f32 %v3750, %v3762
        %v3771 = vadd.f32 %v3751, %v3763
        %v3772 = vadd.f32 %v3752, %v3764
        %v3773 = vadd.f32 %v3753, %v3765
        %3774 = vset.pattern.permute.xlu0 3
        %3775 = vperm.xlu0 %3774, %v3718
        %v3776 = vpop.permute.xlu0 %3775
        %v3778 = vmul.f32 %v3776, %v421
        %v3779 = vmul.f32 %v3776, %v425
        %v3780 = vmul.f32 %v3776, %v429
        %v3781 = vmul.f32 %v3776, %v433
        %v3782 = vmul.f32 %v3776, %v437
        %v3783 = vmul.f32 %v3776, %v441
        %v3784 = vmul.f32 %v3776, %v445
        %v3785 = vmul.f32 %v3776, %v449
        %v3786 = vadd.f32 %v3766, %v3778
        %v3787 = vadd.f32 %v3767, %v3779
        %v3788 = vadd.f32 %v3768, %v3780
        %v3789 = vadd.f32 %v3769, %v3781
        %v3790 = vadd.f32 %v3770, %v3782
        %v3791 = vadd.f32 %v3771, %v3783
        %v3792 = vadd.f32 %v3772, %v3784
        %v3793 = vadd.f32 %v3773, %v3785
        %3795 = vset.pattern.permute.xlu0 0
        %3796 = vperm.xlu0 %3795, %v3719
        %v3797 = vpop.permute.xlu0 %3796
        %v3799 = vadd.f32 %v3786, %v3797
        %v3800 = vadd.f32 %v3787, %v3797
        %v3801 = vadd.f32 %v3788, %v3797
        %v3802 = vadd.f32 %v3789, %v3797
        %v3803 = vadd.f32 %v3790, %v3797
        %v3804 = vadd.f32 %v3791, %v3797
        %v3805 = vadd.f32 %v3792, %v3797
        %v3806 = vadd.f32 %v3793, %v3797
        %v3807 = vmax.f32 %v3799, 0.0
        %v3808 = vmax.f32 %v3800, 0.0
        %v3809 = vmax.f32 %v3801, 0.0
        %v3810 = vmax.f32 %v3802, 0.0
        %v3811 = vmax.f32 %v3803, 0.0
        %v3812 = vmax.f32 %v3804, 0.0
        %v3813 = vmax.f32 %v3805, 0.0
        %v3814 = vmax.f32 %v3806, 0.0
        %3816 = vset.pattern.permute.xlu0 0
        %3817 = vperm.xlu0 %3816, %v3720
        %v3818 = vpop.permute.xlu0 %3817
        %v3820 = vmul.f32 %v3818, %v3807
        %v3821 = vmul.f32 %v3818, %v3808
        %v3822 = vmul.f32 %v3818, %v3809
        %v3823 = vmul.f32 %v3818, %v3810
        %v3824 = vmul.f32 %v3818, %v3811
        %v3825 = vmul.f32 %v3818, %v3812
        %v3826 = vmul.f32 %v3818, %v3813
        %v3827 = vmul.f32 %v3818, %v3814
        %v3828 = vrot.slane %v3820, 4
        %v3829 = vadd.f32 %v3820, %v3828
        %v3830 = vrot.slane %v3829, 2
        %v3831 = vadd.f32 %v3829, %v3830
        %v3832 = vrot.slane %v3831, 1
        %v3833 = vadd.f32 %v3831, %v3832
        %v3834 = vrot.slane %v3821, 4
        %v3835 = vadd.f32 %v3821, %v3834
        %v3836 = vrot.slane %v3835, 2
        %v3837 = vadd.f32 %v3835, %v3836
        %v3838 = vrot.slane %v3837, 1
        %v3839 = vadd.f32 %v3837, %v3838
        %v3840 = vrot.slane %v3822, 4
        %v3841 = vadd.f32 %v3822, %v3840
        %v3842 = vrot.slane %v3841, 2
        %v3843 = vadd.f32 %v3841, %v3842
        %v3844 = vrot.slane %v3843, 1
        %v3845 = vadd.f32 %v3843, %v3844
        %v3846 = vrot.slane %v3823, 4
        %v3847 = vadd.f32 %v3823, %v3846
        %v3848 = vrot.slane %v3847, 2
        %v3849 = vadd.f32 %v3847, %v3848
        %v3850 = vrot.slane %v3849, 1
        %v3851 = vadd.f32 %v3849, %v3850
        %v3852 = vrot.slane %v3824, 4
        %v3853 = vadd.f32 %v3824, %v3852
        %v3854 = vrot.slane %v3853, 2
        %v3855 = vadd.f32 %v3853, %v3854
        %v3856 = vrot.slane %v3855, 1
        %v3857 = vadd.f32 %v3855, %v3856
        %v3858 = vrot.slane %v3825, 4
        %v3859 = vadd.f32 %v3825, %v3858
        %v3860 = vrot.slane %v3859, 2
        %v3861 = vadd.f32 %v3859, %v3860
        %v3862 = vrot.slane %v3861, 1
        %v3863 = vadd.f32 %v3861, %v3862
        %v3864 = vrot.slane %v3826, 4
        %v3865 = vadd.f32 %v3826, %v3864
        %v3866 = vrot.slane %v3865, 2
        %v3867 = vadd.f32 %v3865, %v3866
        %v3868 = vrot.slane %v3867, 1
        %v3869 = vadd.f32 %v3867, %v3868
        %v3870 = vrot.slane %v3827, 4
        %v3871 = vadd.f32 %v3827, %v3870
        %v3872 = vrot.slane %v3871, 2
        %v3873 = vadd.f32 %v3871, %v3872
        %v3874 = vrot.slane %v3873, 1
        %v3875 = vadd.f32 %v3873, %v3874
        %v3876 = vadd.f32 %v3710, %v3833
        %v3877 = vadd.f32 %v3711, %v3839
        %v3878 = vadd.f32 %v3712, %v3845
        %v3879 = vadd.f32 %v3713, %v3851
        %v3880 = vadd.f32 %v3714, %v3857
        %v3881 = vadd.f32 %v3715, %v3863
        %v3882 = vadd.f32 %v3716, %v3869
        %v3883 = vadd.f32 %v3717, %v3875
        %v3884 = vld [vmem:[%s1 + $0xa8] sm:$0xff]
        %v3885 = vld [vmem:[%s2 + $0xa8] sm:$0xff]
        %v3886 = vld [vmem:[%s3 + $0xa8] sm:$0xff]
        %3888 = vset.pattern.permute.xlu0 0
        %3889 = vperm.xlu0 %3888, %v3884
        %v3890 = vpop.permute.xlu0 %3889
        %v3892 = vmul.f32 %v3890, %v246
        %v3893 = vmul.f32 %v3890, %v250
        %v3894 = vmul.f32 %v3890, %v254
        %v3895 = vmul.f32 %v3890, %v258
        %v3896 = vmul.f32 %v3890, %v262
        %v3897 = vmul.f32 %v3890, %v266
        %v3898 = vmul.f32 %v3890, %v270
        %v3899 = vmul.f32 %v3890, %v274
        %3900 = vset.pattern.permute.xlu0 1
        %3901 = vperm.xlu0 %3900, %v3884
        %v3902 = vpop.permute.xlu0 %3901
        %v3904 = vmul.f32 %v3902, %v299
        %v3905 = vmul.f32 %v3902, %v303
        %v3906 = vmul.f32 %v3902, %v307
        %v3907 = vmul.f32 %v3902, %v311
        %v3908 = vmul.f32 %v3902, %v315
        %v3909 = vmul.f32 %v3902, %v319
        %v3910 = vmul.f32 %v3902, %v323
        %v3911 = vmul.f32 %v3902, %v327
        %v3912 = vadd.f32 %v3892, %v3904
        %v3913 = vadd.f32 %v3893, %v3905
        %v3914 = vadd.f32 %v3894, %v3906
        %v3915 = vadd.f32 %v3895, %v3907
        %v3916 = vadd.f32 %v3896, %v3908
        %v3917 = vadd.f32 %v3897, %v3909
        %v3918 = vadd.f32 %v3898, %v3910
        %v3919 = vadd.f32 %v3899, %v3911
        %3920 = vset.pattern.permute.xlu0 2
        %3921 = vperm.xlu0 %3920, %v3884
        %v3922 = vpop.permute.xlu0 %3921
        %v3924 = vmul.f32 %v3922, %v360
        %v3925 = vmul.f32 %v3922, %v364
        %v3926 = vmul.f32 %v3922, %v368
        %v3927 = vmul.f32 %v3922, %v372
        %v3928 = vmul.f32 %v3922, %v376
        %v3929 = vmul.f32 %v3922, %v380
        %v3930 = vmul.f32 %v3922, %v384
        %v3931 = vmul.f32 %v3922, %v388
        %v3932 = vadd.f32 %v3912, %v3924
        %v3933 = vadd.f32 %v3913, %v3925
        %v3934 = vadd.f32 %v3914, %v3926
        %v3935 = vadd.f32 %v3915, %v3927
        %v3936 = vadd.f32 %v3916, %v3928
        %v3937 = vadd.f32 %v3917, %v3929
        %v3938 = vadd.f32 %v3918, %v3930
        %v3939 = vadd.f32 %v3919, %v3931
        %3940 = vset.pattern.permute.xlu0 3
        %3941 = vperm.xlu0 %3940, %v3884
        %v3942 = vpop.permute.xlu0 %3941
        %v3944 = vmul.f32 %v3942, %v421
        %v3945 = vmul.f32 %v3942, %v425
        %v3946 = vmul.f32 %v3942, %v429
        %v3947 = vmul.f32 %v3942, %v433
        %v3948 = vmul.f32 %v3942, %v437
        %v3949 = vmul.f32 %v3942, %v441
        %v3950 = vmul.f32 %v3942, %v445
        %v3951 = vmul.f32 %v3942, %v449
        %v3952 = vadd.f32 %v3932, %v3944
        %v3953 = vadd.f32 %v3933, %v3945
        %v3954 = vadd.f32 %v3934, %v3946
        %v3955 = vadd.f32 %v3935, %v3947
        %v3956 = vadd.f32 %v3936, %v3948
        %v3957 = vadd.f32 %v3937, %v3949
        %v3958 = vadd.f32 %v3938, %v3950
        %v3959 = vadd.f32 %v3939, %v3951
        %3961 = vset.pattern.permute.xlu0 0
        %3962 = vperm.xlu0 %3961, %v3885
        %v3963 = vpop.permute.xlu0 %3962
        %v3965 = vadd.f32 %v3952, %v3963
        %v3966 = vadd.f32 %v3953, %v3963
        %v3967 = vadd.f32 %v3954, %v3963
        %v3968 = vadd.f32 %v3955, %v3963
        %v3969 = vadd.f32 %v3956, %v3963
        %v3970 = vadd.f32 %v3957, %v3963
        %v3971 = vadd.f32 %v3958, %v3963
        %v3972 = vadd.f32 %v3959, %v3963
        %v3973 = vmax.f32 %v3965, 0.0
        %v3974 = vmax.f32 %v3966, 0.0
        %v3975 = vmax.f32 %v3967, 0.0
        %v3976 = vmax.f32 %v3968, 0.0
        %v3977 = vmax.f32 %v3969, 0.0
        %v3978 = vmax.f32 %v3970, 0.0
        %v3979 = vmax.f32 %v3971, 0.0
        %v3980 = vmax.f32 %v3972, 0.0
        %3982 = vset.pattern.permute.xlu0 0
        %3983 = vperm.xlu0 %3982, %v3886
        %v3984 = vpop.permute.xlu0 %3983
        %v3986 = vmul.f32 %v3984, %v3973
        %v3987 = vmul.f32 %v3984, %v3974
        %v3988 = vmul.f32 %v3984, %v3975
        %v3989 = vmul.f32 %v3984, %v3976
        %v3990 = vmul.f32 %v3984, %v3977
        %v3991 = vmul.f32 %v3984, %v3978
        %v3992 = vmul.f32 %v3984, %v3979
        %v3993 = vmul.f32 %v3984, %v3980
        %v3994 = vrot.slane %v3986, 4
        %v3995 = vadd.f32 %v3986, %v3994
        %v3996 = vrot.slane %v3995, 2
        %v3997 = vadd.f32 %v3995, %v3996
        %v3998 = vrot.slane %v3997, 1
        %v3999 = vadd.f32 %v3997, %v3998
        %v4000 = vrot.slane %v3987, 4
        %v4001 = vadd.f32 %v3987, %v4000
        %v4002 = vrot.slane %v4001, 2
        %v4003 = vadd.f32 %v4001, %v4002
        %v4004 = vrot.slane %v4003, 1
        %v4005 = vadd.f32 %v4003, %v4004
        %v4006 = vrot.slane %v3988, 4
        %v4007 = vadd.f32 %v3988, %v4006
        %v4008 = vrot.slane %v4007, 2
        %v4009 = vadd.f32 %v4007, %v4008
        %v4010 = vrot.slane %v4009, 1
        %v4011 = vadd.f32 %v4009, %v4010
        %v4012 = vrot.slane %v3989, 4
        %v4013 = vadd.f32 %v3989, %v4012
        %v4014 = vrot.slane %v4013, 2
        %v4015 = vadd.f32 %v4013, %v4014
        %v4016 = vrot.slane %v4015, 1
        %v4017 = vadd.f32 %v4015, %v4016
        %v4018 = vrot.slane %v3990, 4
        %v4019 = vadd.f32 %v3990, %v4018
        %v4020 = vrot.slane %v4019, 2
        %v4021 = vadd.f32 %v4019, %v4020
        %v4022 = vrot.slane %v4021, 1
        %v4023 = vadd.f32 %v4021, %v4022
        %v4024 = vrot.slane %v3991, 4
        %v4025 = vadd.f32 %v3991, %v4024
        %v4026 = vrot.slane %v4025, 2
        %v4027 = vadd.f32 %v4025, %v4026
        %v4028 = vrot.slane %v4027, 1
        %v4029 = vadd.f32 %v4027, %v4028
        %v4030 = vrot.slane %v3992, 4
        %v4031 = vadd.f32 %v3992, %v4030
        %v4032 = vrot.slane %v4031, 2
        %v4033 = vadd.f32 %v4031, %v4032
        %v4034 = vrot.slane %v4033, 1
        %v4035 = vadd.f32 %v4033, %v4034
        %v4036 = vrot.slane %v3993, 4
        %v4037 = vadd.f32 %v3993, %v4036
        %v4038 = vrot.slane %v4037, 2
        %v4039 = vadd.f32 %v4037, %v4038
        %v4040 = vrot.slane %v4039, 1
        %v4041 = vadd.f32 %v4039, %v4040
        %v4042 = vadd.f32 %v3876, %v3999
        %v4043 = vadd.f32 %v3877, %v4005
        %v4044 = vadd.f32 %v3878, %v4011
        %v4045 = vadd.f32 %v3879, %v4017
        %v4046 = vadd.f32 %v3880, %v4023
        %v4047 = vadd.f32 %v3881, %v4029
        %v4048 = vadd.f32 %v3882, %v4035
        %v4049 = vadd.f32 %v3883, %v4041
        %v4050 = vld [vmem:[%s1 + $0xb0] sm:$0xff]
        %v4051 = vld [vmem:[%s2 + $0xb0] sm:$0xff]
        %v4052 = vld [vmem:[%s3 + $0xb0] sm:$0xff]
        %4054 = vset.pattern.permute.xlu0 0
        %4055 = vperm.xlu0 %4054, %v4050
        %v4056 = vpop.permute.xlu0 %4055
        %v4058 = vmul.f32 %v4056, %v246
        %v4059 = vmul.f32 %v4056, %v250
        %v4060 = vmul.f32 %v4056, %v254
        %v4061 = vmul.f32 %v4056, %v258
        %v4062 = vmul.f32 %v4056, %v262
        %v4063 = vmul.f32 %v4056, %v266
        %v4064 = vmul.f32 %v4056, %v270
        %v4065 = vmul.f32 %v4056, %v274
        %4066 = vset.pattern.permute.xlu0 1
        %4067 = vperm.xlu0 %4066, %v4050
        %v4068 = vpop.permute.xlu0 %4067
        %v4070 = vmul.f32 %v4068, %v299
        %v4071 = vmul.f32 %v4068, %v303
        %v4072 = vmul.f32 %v4068, %v307
        %v4073 = vmul.f32 %v4068, %v311
        %v4074 = vmul.f32 %v4068, %v315
        %v4075 = vmul.f32 %v4068, %v319
        %v4076 = vmul.f32 %v4068, %v323
        %v4077 = vmul.f32 %v4068, %v327
        %v4078 = vadd.f32 %v4058, %v4070
        %v4079 = vadd.f32 %v4059, %v4071
        %v4080 = vadd.f32 %v4060, %v4072
        %v4081 = vadd.f32 %v4061, %v4073
        %v4082 = vadd.f32 %v4062, %v4074
        %v4083 = vadd.f32 %v4063, %v4075
        %v4084 = vadd.f32 %v4064, %v4076
        %v4085 = vadd.f32 %v4065, %v4077
        %4086 = vset.pattern.permute.xlu0 2
        %4087 = vperm.xlu0 %4086, %v4050
        %v4088 = vpop.permute.xlu0 %4087
        %v4090 = vmul.f32 %v4088, %v360
        %v4091 = vmul.f32 %v4088, %v364
        %v4092 = vmul.f32 %v4088, %v368
        %v4093 = vmul.f32 %v4088, %v372
        %v4094 = vmul.f32 %v4088, %v376
        %v4095 = vmul.f32 %v4088, %v380
        %v4096 = vmul.f32 %v4088, %v384
        %v4097 = vmul.f32 %v4088, %v388
        %v4098 = vadd.f32 %v4078, %v4090
        %v4099 = vadd.f32 %v4079, %v4091
        %v4100 = vadd.f32 %v4080, %v4092
        %v4101 = vadd.f32 %v4081, %v4093
        %v4102 = vadd.f32 %v4082, %v4094
        %v4103 = vadd.f32 %v4083, %v4095
        %v4104 = vadd.f32 %v4084, %v4096
        %v4105 = vadd.f32 %v4085, %v4097
        %4106 = vset.pattern.permute.xlu0 3
        %4107 = vperm.xlu0 %4106, %v4050
        %v4108 = vpop.permute.xlu0 %4107
        %v4110 = vmul.f32 %v4108, %v421
        %v4111 = vmul.f32 %v4108, %v425
        %v4112 = vmul.f32 %v4108, %v429
        %v4113 = vmul.f32 %v4108, %v433
        %v4114 = vmul.f32 %v4108, %v437
        %v4115 = vmul.f32 %v4108, %v441
        %v4116 = vmul.f32 %v4108, %v445
        %v4117 = vmul.f32 %v4108, %v449
        %v4118 = vadd.f32 %v4098, %v4110
        %v4119 = vadd.f32 %v4099, %v4111
        %v4120 = vadd.f32 %v4100, %v4112
        %v4121 = vadd.f32 %v4101, %v4113
        %v4122 = vadd.f32 %v4102, %v4114
        %v4123 = vadd.f32 %v4103, %v4115
        %v4124 = vadd.f32 %v4104, %v4116
        %v4125 = vadd.f32 %v4105, %v4117
        %4127 = vset.pattern.permute.xlu0 0
        %4128 = vperm.xlu0 %4127, %v4051
        %v4129 = vpop.permute.xlu0 %4128
        %v4131 = vadd.f32 %v4118, %v4129
        %v4132 = vadd.f32 %v4119, %v4129
        %v4133 = vadd.f32 %v4120, %v4129
        %v4134 = vadd.f32 %v4121, %v4129
        %v4135 = vadd.f32 %v4122, %v4129
        %v4136 = vadd.f32 %v4123, %v4129
        %v4137 = vadd.f32 %v4124, %v4129
        %v4138 = vadd.f32 %v4125, %v4129
        %v4139 = vmax.f32 %v4131, 0.0
        %v4140 = vmax.f32 %v4132, 0.0
        %v4141 = vmax.f32 %v4133, 0.0
        %v4142 = vmax.f32 %v4134, 0.0
        %v4143 = vmax.f32 %v4135, 0.0
        %v4144 = vmax.f32 %v4136, 0.0
        %v4145 = vmax.f32 %v4137, 0.0
        %v4146 = vmax.f32 %v4138, 0.0
        %4148 = vset.pattern.permute.xlu0 0
        %4149 = vperm.xlu0 %4148, %v4052
        %v4150 = vpop.permute.xlu0 %4149
        %v4152 = vmul.f32 %v4150, %v4139
        %v4153 = vmul.f32 %v4150, %v4140
        %v4154 = vmul.f32 %v4150, %v4141
        %v4155 = vmul.f32 %v4150, %v4142
        %v4156 = vmul.f32 %v4150, %v4143
        %v4157 = vmul.f32 %v4150, %v4144
        %v4158 = vmul.f32 %v4150, %v4145
        %v4159 = vmul.f32 %v4150, %v4146
        %v4160 = vrot.slane %v4152, 4
        %v4161 = vadd.f32 %v4152, %v4160
        %v4162 = vrot.slane %v4161, 2
        %v4163 = vadd.f32 %v4161, %v4162
        %v4164 = vrot.slane %v4163, 1
        %v4165 = vadd.f32 %v4163, %v4164
        %v4166 = vrot.slane %v4153, 4
        %v4167 = vadd.f32 %v4153, %v4166
        %v4168 = vrot.slane %v4167, 2
        %v4169 = vadd.f32 %v4167, %v4168
        %v4170 = vrot.slane %v4169, 1
        %v4171 = vadd.f32 %v4169, %v4170
        %v4172 = vrot.slane %v4154, 4
        %v4173 = vadd.f32 %v4154, %v4172
        %v4174 = vrot.slane %v4173, 2
        %v4175 = vadd.f32 %v4173, %v4174
        %v4176 = vrot.slane %v4175, 1
        %v4177 = vadd.f32 %v4175, %v4176
        %v4178 = vrot.slane %v4155, 4
        %v4179 = vadd.f32 %v4155, %v4178
        %v4180 = vrot.slane %v4179, 2
        %v4181 = vadd.f32 %v4179, %v4180
        %v4182 = vrot.slane %v4181, 1
        %v4183 = vadd.f32 %v4181, %v4182
        %v4184 = vrot.slane %v4156, 4
        %v4185 = vadd.f32 %v4156, %v4184
        %v4186 = vrot.slane %v4185, 2
        %v4187 = vadd.f32 %v4185, %v4186
        %v4188 = vrot.slane %v4187, 1
        %v4189 = vadd.f32 %v4187, %v4188
        %v4190 = vrot.slane %v4157, 4
        %v4191 = vadd.f32 %v4157, %v4190
        %v4192 = vrot.slane %v4191, 2
        %v4193 = vadd.f32 %v4191, %v4192
        %v4194 = vrot.slane %v4193, 1
        %v4195 = vadd.f32 %v4193, %v4194
        %v4196 = vrot.slane %v4158, 4
        %v4197 = vadd.f32 %v4158, %v4196
        %v4198 = vrot.slane %v4197, 2
        %v4199 = vadd.f32 %v4197, %v4198
        %v4200 = vrot.slane %v4199, 1
        %v4201 = vadd.f32 %v4199, %v4200
        %v4202 = vrot.slane %v4159, 4
        %v4203 = vadd.f32 %v4159, %v4202
        %v4204 = vrot.slane %v4203, 2
        %v4205 = vadd.f32 %v4203, %v4204
        %v4206 = vrot.slane %v4205, 1
        %v4207 = vadd.f32 %v4205, %v4206
        %v4208 = vadd.f32 %v4042, %v4165
        %v4209 = vadd.f32 %v4043, %v4171
        %v4210 = vadd.f32 %v4044, %v4177
        %v4211 = vadd.f32 %v4045, %v4183
        %v4212 = vadd.f32 %v4046, %v4189
        %v4213 = vadd.f32 %v4047, %v4195
        %v4214 = vadd.f32 %v4048, %v4201
        %v4215 = vadd.f32 %v4049, %v4207
        %v4216 = vld [vmem:[%s1 + $0xb8] sm:$0xff]
        %v4217 = vld [vmem:[%s2 + $0xb8] sm:$0xff]
        %v4218 = vld [vmem:[%s3 + $0xb8] sm:$0xff]
        %4220 = vset.pattern.permute.xlu0 0
        %4221 = vperm.xlu0 %4220, %v4216
        %v4222 = vpop.permute.xlu0 %4221
        %v4224 = vmul.f32 %v4222, %v246
        %v4225 = vmul.f32 %v4222, %v250
        %v4226 = vmul.f32 %v4222, %v254
        %v4227 = vmul.f32 %v4222, %v258
        %v4228 = vmul.f32 %v4222, %v262
        %v4229 = vmul.f32 %v4222, %v266
        %v4230 = vmul.f32 %v4222, %v270
        %v4231 = vmul.f32 %v4222, %v274
        %4232 = vset.pattern.permute.xlu0 1
        %4233 = vperm.xlu0 %4232, %v4216
        %v4234 = vpop.permute.xlu0 %4233
        %v4236 = vmul.f32 %v4234, %v299
        %v4237 = vmul.f32 %v4234, %v303
        %v4238 = vmul.f32 %v4234, %v307
        %v4239 = vmul.f32 %v4234, %v311
        %v4240 = vmul.f32 %v4234, %v315
        %v4241 = vmul.f32 %v4234, %v319
        %v4242 = vmul.f32 %v4234, %v323
        %v4243 = vmul.f32 %v4234, %v327
        %v4244 = vadd.f32 %v4224, %v4236
        %v4245 = vadd.f32 %v4225, %v4237
        %v4246 = vadd.f32 %v4226, %v4238
        %v4247 = vadd.f32 %v4227, %v4239
        %v4248 = vadd.f32 %v4228, %v4240
        %v4249 = vadd.f32 %v4229, %v4241
        %v4250 = vadd.f32 %v4230, %v4242
        %v4251 = vadd.f32 %v4231, %v4243
        %4252 = vset.pattern.permute.xlu0 2
        %4253 = vperm.xlu0 %4252, %v4216
        %v4254 = vpop.permute.xlu0 %4253
        %v4256 = vmul.f32 %v4254, %v360
        %v4257 = vmul.f32 %v4254, %v364
        %v4258 = vmul.f32 %v4254, %v368
        %v4259 = vmul.f32 %v4254, %v372
        %v4260 = vmul.f32 %v4254, %v376
        %v4261 = vmul.f32 %v4254, %v380
        %v4262 = vmul.f32 %v4254, %v384
        %v4263 = vmul.f32 %v4254, %v388
        %v4264 = vadd.f32 %v4244, %v4256
        %v4265 = vadd.f32 %v4245, %v4257
        %v4266 = vadd.f32 %v4246, %v4258
        %v4267 = vadd.f32 %v4247, %v4259
        %v4268 = vadd.f32 %v4248, %v4260
        %v4269 = vadd.f32 %v4249, %v4261
        %v4270 = vadd.f32 %v4250, %v4262
        %v4271 = vadd.f32 %v4251, %v4263
        %4272 = vset.pattern.permute.xlu0 3
        %4273 = vperm.xlu0 %4272, %v4216
        %v4274 = vpop.permute.xlu0 %4273
        %v4276 = vmul.f32 %v4274, %v421
        %v4277 = vmul.f32 %v4274, %v425
        %v4278 = vmul.f32 %v4274, %v429
        %v4279 = vmul.f32 %v4274, %v433
        %v4280 = vmul.f32 %v4274, %v437
        %v4281 = vmul.f32 %v4274, %v441
        %v4282 = vmul.f32 %v4274, %v445
        %v4283 = vmul.f32 %v4274, %v449
        %v4284 = vadd.f32 %v4264, %v4276
        %v4285 = vadd.f32 %v4265, %v4277
        %v4286 = vadd.f32 %v4266, %v4278
        %v4287 = vadd.f32 %v4267, %v4279
        %v4288 = vadd.f32 %v4268, %v4280
        %v4289 = vadd.f32 %v4269, %v4281
        %v4290 = vadd.f32 %v4270, %v4282
        %v4291 = vadd.f32 %v4271, %v4283
        %4293 = vset.pattern.permute.xlu0 0
        %4294 = vperm.xlu0 %4293, %v4217
        %v4295 = vpop.permute.xlu0 %4294
        %v4297 = vadd.f32 %v4284, %v4295
        %v4298 = vadd.f32 %v4285, %v4295
        %v4299 = vadd.f32 %v4286, %v4295
        %v4300 = vadd.f32 %v4287, %v4295
        %v4301 = vadd.f32 %v4288, %v4295
        %v4302 = vadd.f32 %v4289, %v4295
        %v4303 = vadd.f32 %v4290, %v4295
        %v4304 = vadd.f32 %v4291, %v4295
        %v4305 = vmax.f32 %v4297, 0.0
        %v4306 = vmax.f32 %v4298, 0.0
        %v4307 = vmax.f32 %v4299, 0.0
        %v4308 = vmax.f32 %v4300, 0.0
        %v4309 = vmax.f32 %v4301, 0.0
        %v4310 = vmax.f32 %v4302, 0.0
        %v4311 = vmax.f32 %v4303, 0.0
        %v4312 = vmax.f32 %v4304, 0.0
        %4314 = vset.pattern.permute.xlu0 0
        %4315 = vperm.xlu0 %4314, %v4218
        %v4316 = vpop.permute.xlu0 %4315
        %v4318 = vmul.f32 %v4316, %v4305
        %v4319 = vmul.f32 %v4316, %v4306
        %v4320 = vmul.f32 %v4316, %v4307
        %v4321 = vmul.f32 %v4316, %v4308
        %v4322 = vmul.f32 %v4316, %v4309
        %v4323 = vmul.f32 %v4316, %v4310
        %v4324 = vmul.f32 %v4316, %v4311
        %v4325 = vmul.f32 %v4316, %v4312
        %v4326 = vrot.slane %v4318, 4
        %v4327 = vadd.f32 %v4318, %v4326
        %v4328 = vrot.slane %v4327, 2
        %v4329 = vadd.f32 %v4327, %v4328
        %v4330 = vrot.slane %v4329, 1
        %v4331 = vadd.f32 %v4329, %v4330
        %v4332 = vrot.slane %v4319, 4
        %v4333 = vadd.f32 %v4319, %v4332
        %v4334 = vrot.slane %v4333, 2
        %v4335 = vadd.f32 %v4333, %v4334
        %v4336 = vrot.slane %v4335, 1
        %v4337 = vadd.f32 %v4335, %v4336
        %v4338 = vrot.slane %v4320, 4
        %v4339 = vadd.f32 %v4320, %v4338
        %v4340 = vrot.slane %v4339, 2
        %v4341 = vadd.f32 %v4339, %v4340
        %v4342 = vrot.slane %v4341, 1
        %v4343 = vadd.f32 %v4341, %v4342
        %v4344 = vrot.slane %v4321, 4
        %v4345 = vadd.f32 %v4321, %v4344
        %v4346 = vrot.slane %v4345, 2
        %v4347 = vadd.f32 %v4345, %v4346
        %v4348 = vrot.slane %v4347, 1
        %v4349 = vadd.f32 %v4347, %v4348
        %v4350 = vrot.slane %v4322, 4
        %v4351 = vadd.f32 %v4322, %v4350
        %v4352 = vrot.slane %v4351, 2
        %v4353 = vadd.f32 %v4351, %v4352
        %v4354 = vrot.slane %v4353, 1
        %v4355 = vadd.f32 %v4353, %v4354
        %v4356 = vrot.slane %v4323, 4
        %v4357 = vadd.f32 %v4323, %v4356
        %v4358 = vrot.slane %v4357, 2
        %v4359 = vadd.f32 %v4357, %v4358
        %v4360 = vrot.slane %v4359, 1
        %v4361 = vadd.f32 %v4359, %v4360
        %v4362 = vrot.slane %v4324, 4
        %v4363 = vadd.f32 %v4324, %v4362
        %v4364 = vrot.slane %v4363, 2
        %v4365 = vadd.f32 %v4363, %v4364
        %v4366 = vrot.slane %v4365, 1
        %v4367 = vadd.f32 %v4365, %v4366
        %v4368 = vrot.slane %v4325, 4
        %v4369 = vadd.f32 %v4325, %v4368
        %v4370 = vrot.slane %v4369, 2
        %v4371 = vadd.f32 %v4369, %v4370
        %v4372 = vrot.slane %v4371, 1
        %v4373 = vadd.f32 %v4371, %v4372
        %v4374 = vadd.f32 %v4208, %v4331
        %v4375 = vadd.f32 %v4209, %v4337
        %v4376 = vadd.f32 %v4210, %v4343
        %v4377 = vadd.f32 %v4211, %v4349
        %v4378 = vadd.f32 %v4212, %v4355
        %v4379 = vadd.f32 %v4213, %v4361
        %v4380 = vadd.f32 %v4214, %v4367
        %v4381 = vadd.f32 %v4215, %v4373
        %v4382 = vld [vmem:[%s1 + $0xc0] sm:$0xff]
        %v4383 = vld [vmem:[%s2 + $0xc0] sm:$0xff]
        %v4384 = vld [vmem:[%s3 + $0xc0] sm:$0xff]
        %4386 = vset.pattern.permute.xlu0 0
        %4387 = vperm.xlu0 %4386, %v4382
        %v4388 = vpop.permute.xlu0 %4387
        %v4390 = vmul.f32 %v4388, %v246
        %v4391 = vmul.f32 %v4388, %v250
        %v4392 = vmul.f32 %v4388, %v254
        %v4393 = vmul.f32 %v4388, %v258
        %v4394 = vmul.f32 %v4388, %v262
        %v4395 = vmul.f32 %v4388, %v266
        %v4396 = vmul.f32 %v4388, %v270
        %v4397 = vmul.f32 %v4388, %v274
        %4398 = vset.pattern.permute.xlu0 1
        %4399 = vperm.xlu0 %4398, %v4382
        %v4400 = vpop.permute.xlu0 %4399
        %v4402 = vmul.f32 %v4400, %v299
        %v4403 = vmul.f32 %v4400, %v303
        %v4404 = vmul.f32 %v4400, %v307
        %v4405 = vmul.f32 %v4400, %v311
        %v4406 = vmul.f32 %v4400, %v315
        %v4407 = vmul.f32 %v4400, %v319
        %v4408 = vmul.f32 %v4400, %v323
        %v4409 = vmul.f32 %v4400, %v327
        %v4410 = vadd.f32 %v4390, %v4402
        %v4411 = vadd.f32 %v4391, %v4403
        %v4412 = vadd.f32 %v4392, %v4404
        %v4413 = vadd.f32 %v4393, %v4405
        %v4414 = vadd.f32 %v4394, %v4406
        %v4415 = vadd.f32 %v4395, %v4407
        %v4416 = vadd.f32 %v4396, %v4408
        %v4417 = vadd.f32 %v4397, %v4409
        %4418 = vset.pattern.permute.xlu0 2
        %4419 = vperm.xlu0 %4418, %v4382
        %v4420 = vpop.permute.xlu0 %4419
        %v4422 = vmul.f32 %v4420, %v360
        %v4423 = vmul.f32 %v4420, %v364
        %v4424 = vmul.f32 %v4420, %v368
        %v4425 = vmul.f32 %v4420, %v372
        %v4426 = vmul.f32 %v4420, %v376
        %v4427 = vmul.f32 %v4420, %v380
        %v4428 = vmul.f32 %v4420, %v384
        %v4429 = vmul.f32 %v4420, %v388
        %v4430 = vadd.f32 %v4410, %v4422
        %v4431 = vadd.f32 %v4411, %v4423
        %v4432 = vadd.f32 %v4412, %v4424
        %v4433 = vadd.f32 %v4413, %v4425
        %v4434 = vadd.f32 %v4414, %v4426
        %v4435 = vadd.f32 %v4415, %v4427
        %v4436 = vadd.f32 %v4416, %v4428
        %v4437 = vadd.f32 %v4417, %v4429
        %4438 = vset.pattern.permute.xlu0 3
        %4439 = vperm.xlu0 %4438, %v4382
        %v4440 = vpop.permute.xlu0 %4439
        %v4442 = vmul.f32 %v4440, %v421
        %v4443 = vmul.f32 %v4440, %v425
        %v4444 = vmul.f32 %v4440, %v429
        %v4445 = vmul.f32 %v4440, %v433
        %v4446 = vmul.f32 %v4440, %v437
        %v4447 = vmul.f32 %v4440, %v441
        %v4448 = vmul.f32 %v4440, %v445
        %v4449 = vmul.f32 %v4440, %v449
        %v4450 = vadd.f32 %v4430, %v4442
        %v4451 = vadd.f32 %v4431, %v4443
        %v4452 = vadd.f32 %v4432, %v4444
        %v4453 = vadd.f32 %v4433, %v4445
        %v4454 = vadd.f32 %v4434, %v4446
        %v4455 = vadd.f32 %v4435, %v4447
        %v4456 = vadd.f32 %v4436, %v4448
        %v4457 = vadd.f32 %v4437, %v4449
        %4459 = vset.pattern.permute.xlu0 0
        %4460 = vperm.xlu0 %4459, %v4383
        %v4461 = vpop.permute.xlu0 %4460
        %v4463 = vadd.f32 %v4450, %v4461
        %v4464 = vadd.f32 %v4451, %v4461
        %v4465 = vadd.f32 %v4452, %v4461
        %v4466 = vadd.f32 %v4453, %v4461
        %v4467 = vadd.f32 %v4454, %v4461
        %v4468 = vadd.f32 %v4455, %v4461
        %v4469 = vadd.f32 %v4456, %v4461
        %v4470 = vadd.f32 %v4457, %v4461
        %v4471 = vmax.f32 %v4463, 0.0
        %v4472 = vmax.f32 %v4464, 0.0
        %v4473 = vmax.f32 %v4465, 0.0
        %v4474 = vmax.f32 %v4466, 0.0
        %v4475 = vmax.f32 %v4467, 0.0
        %v4476 = vmax.f32 %v4468, 0.0
        %v4477 = vmax.f32 %v4469, 0.0
        %v4478 = vmax.f32 %v4470, 0.0
        %4480 = vset.pattern.permute.xlu0 0
        %4481 = vperm.xlu0 %4480, %v4384
        %v4482 = vpop.permute.xlu0 %4481
        %v4484 = vmul.f32 %v4482, %v4471
        %v4485 = vmul.f32 %v4482, %v4472
        %v4486 = vmul.f32 %v4482, %v4473
        %v4487 = vmul.f32 %v4482, %v4474
        %v4488 = vmul.f32 %v4482, %v4475
        %v4489 = vmul.f32 %v4482, %v4476
        %v4490 = vmul.f32 %v4482, %v4477
        %v4491 = vmul.f32 %v4482, %v4478
        %v4492 = vrot.slane %v4484, 4
        %v4493 = vadd.f32 %v4484, %v4492
        %v4494 = vrot.slane %v4493, 2
        %v4495 = vadd.f32 %v4493, %v4494
        %v4496 = vrot.slane %v4495, 1
        %v4497 = vadd.f32 %v4495, %v4496
        %v4498 = vrot.slane %v4485, 4
        %v4499 = vadd.f32 %v4485, %v4498
        %v4500 = vrot.slane %v4499, 2
        %v4501 = vadd.f32 %v4499, %v4500
        %v4502 = vrot.slane %v4501, 1
        %v4503 = vadd.f32 %v4501, %v4502
        %v4504 = vrot.slane %v4486, 4
        %v4505 = vadd.f32 %v4486, %v4504
        %v4506 = vrot.slane %v4505, 2
        %v4507 = vadd.f32 %v4505, %v4506
        %v4508 = vrot.slane %v4507, 1
        %v4509 = vadd.f32 %v4507, %v4508
        %v4510 = vrot.slane %v4487, 4
        %v4511 = vadd.f32 %v4487, %v4510
        %v4512 = vrot.slane %v4511, 2
        %v4513 = vadd.f32 %v4511, %v4512
        %v4514 = vrot.slane %v4513, 1
        %v4515 = vadd.f32 %v4513, %v4514
        %v4516 = vrot.slane %v4488, 4
        %v4517 = vadd.f32 %v4488, %v4516
        %v4518 = vrot.slane %v4517, 2
        %v4519 = vadd.f32 %v4517, %v4518
        %v4520 = vrot.slane %v4519, 1
        %v4521 = vadd.f32 %v4519, %v4520
        %v4522 = vrot.slane %v4489, 4
        %v4523 = vadd.f32 %v4489, %v4522
        %v4524 = vrot.slane %v4523, 2
        %v4525 = vadd.f32 %v4523, %v4524
        %v4526 = vrot.slane %v4525, 1
        %v4527 = vadd.f32 %v4525, %v4526
        %v4528 = vrot.slane %v4490, 4
        %v4529 = vadd.f32 %v4490, %v4528
        %v4530 = vrot.slane %v4529, 2
        %v4531 = vadd.f32 %v4529, %v4530
        %v4532 = vrot.slane %v4531, 1
        %v4533 = vadd.f32 %v4531, %v4532
        %v4534 = vrot.slane %v4491, 4
        %v4535 = vadd.f32 %v4491, %v4534
        %v4536 = vrot.slane %v4535, 2
        %v4537 = vadd.f32 %v4535, %v4536
        %v4538 = vrot.slane %v4537, 1
        %v4539 = vadd.f32 %v4537, %v4538
        %v4540 = vadd.f32 %v4374, %v4497
        %v4541 = vadd.f32 %v4375, %v4503
        %v4542 = vadd.f32 %v4376, %v4509
        %v4543 = vadd.f32 %v4377, %v4515
        %v4544 = vadd.f32 %v4378, %v4521
        %v4545 = vadd.f32 %v4379, %v4527
        %v4546 = vadd.f32 %v4380, %v4533
        %v4547 = vadd.f32 %v4381, %v4539
        %v4548 = vld [vmem:[%s1 + $0xc8] sm:$0xff]
        %v4549 = vld [vmem:[%s2 + $0xc8] sm:$0xff]
        %v4550 = vld [vmem:[%s3 + $0xc8] sm:$0xff]
        %4552 = vset.pattern.permute.xlu0 0
        %4553 = vperm.xlu0 %4552, %v4548
        %v4554 = vpop.permute.xlu0 %4553
        %v4556 = vmul.f32 %v4554, %v246
        %v4557 = vmul.f32 %v4554, %v250
        %v4558 = vmul.f32 %v4554, %v254
        %v4559 = vmul.f32 %v4554, %v258
        %v4560 = vmul.f32 %v4554, %v262
        %v4561 = vmul.f32 %v4554, %v266
        %v4562 = vmul.f32 %v4554, %v270
        %v4563 = vmul.f32 %v4554, %v274
        %4564 = vset.pattern.permute.xlu0 1
        %4565 = vperm.xlu0 %4564, %v4548
        %v4566 = vpop.permute.xlu0 %4565
        %v4568 = vmul.f32 %v4566, %v299
        %v4569 = vmul.f32 %v4566, %v303
        %v4570 = vmul.f32 %v4566, %v307
        %v4571 = vmul.f32 %v4566, %v311
        %v4572 = vmul.f32 %v4566, %v315
        %v4573 = vmul.f32 %v4566, %v319
        %v4574 = vmul.f32 %v4566, %v323
        %v4575 = vmul.f32 %v4566, %v327
        %v4576 = vadd.f32 %v4556, %v4568
        %v4577 = vadd.f32 %v4557, %v4569
        %v4578 = vadd.f32 %v4558, %v4570
        %v4579 = vadd.f32 %v4559, %v4571
        %v4580 = vadd.f32 %v4560, %v4572
        %v4581 = vadd.f32 %v4561, %v4573
        %v4582 = vadd.f32 %v4562, %v4574
        %v4583 = vadd.f32 %v4563, %v4575
        %4584 = vset.pattern.permute.xlu0 2
        %4585 = vperm.xlu0 %4584, %v4548
        %v4586 = vpop.permute.xlu0 %4585
        %v4588 = vmul.f32 %v4586, %v360
        %v4589 = vmul.f32 %v4586, %v364
        %v4590 = vmul.f32 %v4586, %v368
        %v4591 = vmul.f32 %v4586, %v372
        %v4592 = vmul.f32 %v4586, %v376
        %v4593 = vmul.f32 %v4586, %v380
        %v4594 = vmul.f32 %v4586, %v384
        %v4595 = vmul.f32 %v4586, %v388
        %v4596 = vadd.f32 %v4576, %v4588
        %v4597 = vadd.f32 %v4577, %v4589
        %v4598 = vadd.f32 %v4578, %v4590
        %v4599 = vadd.f32 %v4579, %v4591
        %v4600 = vadd.f32 %v4580, %v4592
        %v4601 = vadd.f32 %v4581, %v4593
        %v4602 = vadd.f32 %v4582, %v4594
        %v4603 = vadd.f32 %v4583, %v4595
        %4604 = vset.pattern.permute.xlu0 3
        %4605 = vperm.xlu0 %4604, %v4548
        %v4606 = vpop.permute.xlu0 %4605
        %v4608 = vmul.f32 %v4606, %v421
        %v4609 = vmul.f32 %v4606, %v425
        %v4610 = vmul.f32 %v4606, %v429
        %v4611 = vmul.f32 %v4606, %v433
        %v4612 = vmul.f32 %v4606, %v437
        %v4613 = vmul.f32 %v4606, %v441
        %v4614 = vmul.f32 %v4606, %v445
        %v4615 = vmul.f32 %v4606, %v449
        %v4616 = vadd.f32 %v4596, %v4608
        %v4617 = vadd.f32 %v4597, %v4609
        %v4618 = vadd.f32 %v4598, %v4610
        %v4619 = vadd.f32 %v4599, %v4611
        %v4620 = vadd.f32 %v4600, %v4612
        %v4621 = vadd.f32 %v4601, %v4613
        %v4622 = vadd.f32 %v4602, %v4614
        %v4623 = vadd.f32 %v4603, %v4615
        %4625 = vset.pattern.permute.xlu0 0
        %4626 = vperm.xlu0 %4625, %v4549
        %v4627 = vpop.permute.xlu0 %4626
        %v4629 = vadd.f32 %v4616, %v4627
        %v4630 = vadd.f32 %v4617, %v4627
        %v4631 = vadd.f32 %v4618, %v4627
        %v4632 = vadd.f32 %v4619, %v4627
        %v4633 = vadd.f32 %v4620, %v4627
        %v4634 = vadd.f32 %v4621, %v4627
        %v4635 = vadd.f32 %v4622, %v4627
        %v4636 = vadd.f32 %v4623, %v4627
        %v4637 = vmax.f32 %v4629, 0.0
        %v4638 = vmax.f32 %v4630, 0.0
        %v4639 = vmax.f32 %v4631, 0.0
        %v4640 = vmax.f32 %v4632, 0.0
        %v4641 = vmax.f32 %v4633, 0.0
        %v4642 = vmax.f32 %v4634, 0.0
        %v4643 = vmax.f32 %v4635, 0.0
        %v4644 = vmax.f32 %v4636, 0.0
        %4646 = vset.pattern.permute.xlu0 0
        %4647 = vperm.xlu0 %4646, %v4550
        %v4648 = vpop.permute.xlu0 %4647
        %v4650 = vmul.f32 %v4648, %v4637
        %v4651 = vmul.f32 %v4648, %v4638
        %v4652 = vmul.f32 %v4648, %v4639
        %v4653 = vmul.f32 %v4648, %v4640
        %v4654 = vmul.f32 %v4648, %v4641
        %v4655 = vmul.f32 %v4648, %v4642
        %v4656 = vmul.f32 %v4648, %v4643
        %v4657 = vmul.f32 %v4648, %v4644
        %v4658 = vrot.slane %v4650, 4
        %v4659 = vadd.f32 %v4650, %v4658
        %v4660 = vrot.slane %v4659, 2
        %v4661 = vadd.f32 %v4659, %v4660
        %v4662 = vrot.slane %v4661, 1
        %v4663 = vadd.f32 %v4661, %v4662
        %v4664 = vrot.slane %v4651, 4
        %v4665 = vadd.f32 %v4651, %v4664
        %v4666 = vrot.slane %v4665, 2
        %v4667 = vadd.f32 %v4665, %v4666
        %v4668 = vrot.slane %v4667, 1
        %v4669 = vadd.f32 %v4667, %v4668
        %v4670 = vrot.slane %v4652, 4
        %v4671 = vadd.f32 %v4652, %v4670
        %v4672 = vrot.slane %v4671, 2
        %v4673 = vadd.f32 %v4671, %v4672
        %v4674 = vrot.slane %v4673, 1
        %v4675 = vadd.f32 %v4673, %v4674
        %v4676 = vrot.slane %v4653, 4
        %v4677 = vadd.f32 %v4653, %v4676
        %v4678 = vrot.slane %v4677, 2
        %v4679 = vadd.f32 %v4677, %v4678
        %v4680 = vrot.slane %v4679, 1
        %v4681 = vadd.f32 %v4679, %v4680
        %v4682 = vrot.slane %v4654, 4
        %v4683 = vadd.f32 %v4654, %v4682
        %v4684 = vrot.slane %v4683, 2
        %v4685 = vadd.f32 %v4683, %v4684
        %v4686 = vrot.slane %v4685, 1
        %v4687 = vadd.f32 %v4685, %v4686
        %v4688 = vrot.slane %v4655, 4
        %v4689 = vadd.f32 %v4655, %v4688
        %v4690 = vrot.slane %v4689, 2
        %v4691 = vadd.f32 %v4689, %v4690
        %v4692 = vrot.slane %v4691, 1
        %v4693 = vadd.f32 %v4691, %v4692
        %v4694 = vrot.slane %v4656, 4
        %v4695 = vadd.f32 %v4656, %v4694
        %v4696 = vrot.slane %v4695, 2
        %v4697 = vadd.f32 %v4695, %v4696
        %v4698 = vrot.slane %v4697, 1
        %v4699 = vadd.f32 %v4697, %v4698
        %v4700 = vrot.slane %v4657, 4
        %v4701 = vadd.f32 %v4657, %v4700
        %v4702 = vrot.slane %v4701, 2
        %v4703 = vadd.f32 %v4701, %v4702
        %v4704 = vrot.slane %v4703, 1
        %v4705 = vadd.f32 %v4703, %v4704
        %v4706 = vadd.f32 %v4540, %v4663
        %v4707 = vadd.f32 %v4541, %v4669
        %v4708 = vadd.f32 %v4542, %v4675
        %v4709 = vadd.f32 %v4543, %v4681
        %v4710 = vadd.f32 %v4544, %v4687
        %v4711 = vadd.f32 %v4545, %v4693
        %v4712 = vadd.f32 %v4546, %v4699
        %v4713 = vadd.f32 %v4547, %v4705
        %v4714 = vld [vmem:[%s1 + $0xd0] sm:$0xff]
        %v4715 = vld [vmem:[%s2 + $0xd0] sm:$0xff]
        %v4716 = vld [vmem:[%s3 + $0xd0] sm:$0xff]
        %4718 = vset.pattern.permute.xlu0 0
        %4719 = vperm.xlu0 %4718, %v4714
        %v4720 = vpop.permute.xlu0 %4719
        %v4722 = vmul.f32 %v4720, %v246
        %v4723 = vmul.f32 %v4720, %v250
        %v4724 = vmul.f32 %v4720, %v254
        %v4725 = vmul.f32 %v4720, %v258
        %v4726 = vmul.f32 %v4720, %v262
        %v4727 = vmul.f32 %v4720, %v266
        %v4728 = vmul.f32 %v4720, %v270
        %v4729 = vmul.f32 %v4720, %v274
        %4730 = vset.pattern.permute.xlu0 1
        %4731 = vperm.xlu0 %4730, %v4714
        %v4732 = vpop.permute.xlu0 %4731
        %v4734 = vmul.f32 %v4732, %v299
        %v4735 = vmul.f32 %v4732, %v303
        %v4736 = vmul.f32 %v4732, %v307
        %v4737 = vmul.f32 %v4732, %v311
        %v4738 = vmul.f32 %v4732, %v315
        %v4739 = vmul.f32 %v4732, %v319
        %v4740 = vmul.f32 %v4732, %v323
        %v4741 = vmul.f32 %v4732, %v327
        %v4742 = vadd.f32 %v4722, %v4734
        %v4743 = vadd.f32 %v4723, %v4735
        %v4744 = vadd.f32 %v4724, %v4736
        %v4745 = vadd.f32 %v4725, %v4737
        %v4746 = vadd.f32 %v4726, %v4738
        %v4747 = vadd.f32 %v4727, %v4739
        %v4748 = vadd.f32 %v4728, %v4740
        %v4749 = vadd.f32 %v4729, %v4741
        %4750 = vset.pattern.permute.xlu0 2
        %4751 = vperm.xlu0 %4750, %v4714
        %v4752 = vpop.permute.xlu0 %4751
        %v4754 = vmul.f32 %v4752, %v360
        %v4755 = vmul.f32 %v4752, %v364
        %v4756 = vmul.f32 %v4752, %v368
        %v4757 = vmul.f32 %v4752, %v372
        %v4758 = vmul.f32 %v4752, %v376
        %v4759 = vmul.f32 %v4752, %v380
        %v4760 = vmul.f32 %v4752, %v384
        %v4761 = vmul.f32 %v4752, %v388
        %v4762 = vadd.f32 %v4742, %v4754
        %v4763 = vadd.f32 %v4743, %v4755
        %v4764 = vadd.f32 %v4744, %v4756
        %v4765 = vadd.f32 %v4745, %v4757
        %v4766 = vadd.f32 %v4746, %v4758
        %v4767 = vadd.f32 %v4747, %v4759
        %v4768 = vadd.f32 %v4748, %v4760
        %v4769 = vadd.f32 %v4749, %v4761
        %4770 = vset.pattern.permute.xlu0 3
        %4771 = vperm.xlu0 %4770, %v4714
        %v4772 = vpop.permute.xlu0 %4771
        %v4774 = vmul.f32 %v4772, %v421
        %v4775 = vmul.f32 %v4772, %v425
        %v4776 = vmul.f32 %v4772, %v429
        %v4777 = vmul.f32 %v4772, %v433
        %v4778 = vmul.f32 %v4772, %v437
        %v4779 = vmul.f32 %v4772, %v441
        %v4780 = vmul.f32 %v4772, %v445
        %v4781 = vmul.f32 %v4772, %v449
        %v4782 = vadd.f32 %v4762, %v4774
        %v4783 = vadd.f32 %v4763, %v4775
        %v4784 = vadd.f32 %v4764, %v4776
        %v4785 = vadd.f32 %v4765, %v4777
        %v4786 = vadd.f32 %v4766, %v4778
        %v4787 = vadd.f32 %v4767, %v4779
        %v4788 = vadd.f32 %v4768, %v4780
        %v4789 = vadd.f32 %v4769, %v4781
        %4791 = vset.pattern.permute.xlu0 0
        %4792 = vperm.xlu0 %4791, %v4715
        %v4793 = vpop.permute.xlu0 %4792
        %v4795 = vadd.f32 %v4782, %v4793
        %v4796 = vadd.f32 %v4783, %v4793
        %v4797 = vadd.f32 %v4784, %v4793
        %v4798 = vadd.f32 %v4785, %v4793
        %v4799 = vadd.f32 %v4786, %v4793
        %v4800 = vadd.f32 %v4787, %v4793
        %v4801 = vadd.f32 %v4788, %v4793
        %v4802 = vadd.f32 %v4789, %v4793
        %v4803 = vmax.f32 %v4795, 0.0
        %v4804 = vmax.f32 %v4796, 0.0
        %v4805 = vmax.f32 %v4797, 0.0
        %v4806 = vmax.f32 %v4798, 0.0
        %v4807 = vmax.f32 %v4799, 0.0
        %v4808 = vmax.f32 %v4800, 0.0
        %v4809 = vmax.f32 %v4801, 0.0
        %v4810 = vmax.f32 %v4802, 0.0
        %4812 = vset.pattern.permute.xlu0 0
        %4813 = vperm.xlu0 %4812, %v4716
        %v4814 = vpop.permute.xlu0 %4813
        %v4816 = vmul.f32 %v4814, %v4803
        %v4817 = vmul.f32 %v4814, %v4804
        %v4818 = vmul.f32 %v4814, %v4805
        %v4819 = vmul.f32 %v4814, %v4806
        %v4820 = vmul.f32 %v4814, %v4807
        %v4821 = vmul.f32 %v4814, %v4808
        %v4822 = vmul.f32 %v4814, %v4809
        %v4823 = vmul.f32 %v4814, %v4810
        %v4824 = vrot.slane %v4816, 4
        %v4825 = vadd.f32 %v4816, %v4824
        %v4826 = vrot.slane %v4825, 2
        %v4827 = vadd.f32 %v4825, %v4826
        %v4828 = vrot.slane %v4827, 1
        %v4829 = vadd.f32 %v4827, %v4828
        %v4830 = vrot.slane %v4817, 4
        %v4831 = vadd.f32 %v4817, %v4830
        %v4832 = vrot.slane %v4831, 2
        %v4833 = vadd.f32 %v4831, %v4832
        %v4834 = vrot.slane %v4833, 1
        %v4835 = vadd.f32 %v4833, %v4834
        %v4836 = vrot.slane %v4818, 4
        %v4837 = vadd.f32 %v4818, %v4836
        %v4838 = vrot.slane %v4837, 2
        %v4839 = vadd.f32 %v4837, %v4838
        %v4840 = vrot.slane %v4839, 1
        %v4841 = vadd.f32 %v4839, %v4840
        %v4842 = vrot.slane %v4819, 4
        %v4843 = vadd.f32 %v4819, %v4842
        %v4844 = vrot.slane %v4843, 2
        %v4845 = vadd.f32 %v4843, %v4844
        %v4846 = vrot.slane %v4845, 1
        %v4847 = vadd.f32 %v4845, %v4846
        %v4848 = vrot.slane %v4820, 4
        %v4849 = vadd.f32 %v4820, %v4848
        %v4850 = vrot.slane %v4849, 2
        %v4851 = vadd.f32 %v4849, %v4850
        %v4852 = vrot.slane %v4851, 1
        %v4853 = vadd.f32 %v4851, %v4852
        %v4854 = vrot.slane %v4821, 4
        %v4855 = vadd.f32 %v4821, %v4854
        %v4856 = vrot.slane %v4855, 2
        %v4857 = vadd.f32 %v4855, %v4856
        %v4858 = vrot.slane %v4857, 1
        %v4859 = vadd.f32 %v4857, %v4858
        %v4860 = vrot.slane %v4822, 4
        %v4861 = vadd.f32 %v4822, %v4860
        %v4862 = vrot.slane %v4861, 2
        %v4863 = vadd.f32 %v4861, %v4862
        %v4864 = vrot.slane %v4863, 1
        %v4865 = vadd.f32 %v4863, %v4864
        %v4866 = vrot.slane %v4823, 4
        %v4867 = vadd.f32 %v4823, %v4866
        %v4868 = vrot.slane %v4867, 2
        %v4869 = vadd.f32 %v4867, %v4868
        %v4870 = vrot.slane %v4869, 1
        %v4871 = vadd.f32 %v4869, %v4870
        %v4872 = vadd.f32 %v4706, %v4829
        %v4873 = vadd.f32 %v4707, %v4835
        %v4874 = vadd.f32 %v4708, %v4841
        %v4875 = vadd.f32 %v4709, %v4847
        %v4876 = vadd.f32 %v4710, %v4853
        %v4877 = vadd.f32 %v4711, %v4859
        %v4878 = vadd.f32 %v4712, %v4865
        %v4879 = vadd.f32 %v4713, %v4871
        %v4880 = vld [vmem:[%s1 + $0xd8] sm:$0xff]
        %v4881 = vld [vmem:[%s2 + $0xd8] sm:$0xff]
        %v4882 = vld [vmem:[%s3 + $0xd8] sm:$0xff]
        %4884 = vset.pattern.permute.xlu0 0
        %4885 = vperm.xlu0 %4884, %v4880
        %v4886 = vpop.permute.xlu0 %4885
        %v4888 = vmul.f32 %v4886, %v246
        %v4889 = vmul.f32 %v4886, %v250
        %v4890 = vmul.f32 %v4886, %v254
        %v4891 = vmul.f32 %v4886, %v258
        %v4892 = vmul.f32 %v4886, %v262
        %v4893 = vmul.f32 %v4886, %v266
        %v4894 = vmul.f32 %v4886, %v270
        %v4895 = vmul.f32 %v4886, %v274
        %4896 = vset.pattern.permute.xlu0 1
        %4897 = vperm.xlu0 %4896, %v4880
        %v4898 = vpop.permute.xlu0 %4897
        %v4900 = vmul.f32 %v4898, %v299
        %v4901 = vmul.f32 %v4898, %v303
        %v4902 = vmul.f32 %v4898, %v307
        %v4903 = vmul.f32 %v4898, %v311
        %v4904 = vmul.f32 %v4898, %v315
        %v4905 = vmul.f32 %v4898, %v319
        %v4906 = vmul.f32 %v4898, %v323
        %v4907 = vmul.f32 %v4898, %v327
        %v4908 = vadd.f32 %v4888, %v4900
        %v4909 = vadd.f32 %v4889, %v4901
        %v4910 = vadd.f32 %v4890, %v4902
        %v4911 = vadd.f32 %v4891, %v4903
        %v4912 = vadd.f32 %v4892, %v4904
        %v4913 = vadd.f32 %v4893, %v4905
        %v4914 = vadd.f32 %v4894, %v4906
        %v4915 = vadd.f32 %v4895, %v4907
        %4916 = vset.pattern.permute.xlu0 2
        %4917 = vperm.xlu0 %4916, %v4880
        %v4918 = vpop.permute.xlu0 %4917
        %v4920 = vmul.f32 %v4918, %v360
        %v4921 = vmul.f32 %v4918, %v364
        %v4922 = vmul.f32 %v4918, %v368
        %v4923 = vmul.f32 %v4918, %v372
        %v4924 = vmul.f32 %v4918, %v376
        %v4925 = vmul.f32 %v4918, %v380
        %v4926 = vmul.f32 %v4918, %v384
        %v4927 = vmul.f32 %v4918, %v388
        %v4928 = vadd.f32 %v4908, %v4920
        %v4929 = vadd.f32 %v4909, %v4921
        %v4930 = vadd.f32 %v4910, %v4922
        %v4931 = vadd.f32 %v4911, %v4923
        %v4932 = vadd.f32 %v4912, %v4924
        %v4933 = vadd.f32 %v4913, %v4925
        %v4934 = vadd.f32 %v4914, %v4926
        %v4935 = vadd.f32 %v4915, %v4927
        %4936 = vset.pattern.permute.xlu0 3
        %4937 = vperm.xlu0 %4936, %v4880
        %v4938 = vpop.permute.xlu0 %4937
        %v4940 = vmul.f32 %v4938, %v421
        %v4941 = vmul.f32 %v4938, %v425
        %v4942 = vmul.f32 %v4938, %v429
        %v4943 = vmul.f32 %v4938, %v433
        %v4944 = vmul.f32 %v4938, %v437
        %v4945 = vmul.f32 %v4938, %v441
        %v4946 = vmul.f32 %v4938, %v445
        %v4947 = vmul.f32 %v4938, %v449
        %v4948 = vadd.f32 %v4928, %v4940
        %v4949 = vadd.f32 %v4929, %v4941
        %v4950 = vadd.f32 %v4930, %v4942
        %v4951 = vadd.f32 %v4931, %v4943
        %v4952 = vadd.f32 %v4932, %v4944
        %v4953 = vadd.f32 %v4933, %v4945
        %v4954 = vadd.f32 %v4934, %v4946
        %v4955 = vadd.f32 %v4935, %v4947
        %4957 = vset.pattern.permute.xlu0 0
        %4958 = vperm.xlu0 %4957, %v4881
        %v4959 = vpop.permute.xlu0 %4958
        %v4961 = vadd.f32 %v4948, %v4959
        %v4962 = vadd.f32 %v4949, %v4959
        %v4963 = vadd.f32 %v4950, %v4959
        %v4964 = vadd.f32 %v4951, %v4959
        %v4965 = vadd.f32 %v4952, %v4959
        %v4966 = vadd.f32 %v4953, %v4959
        %v4967 = vadd.f32 %v4954, %v4959
        %v4968 = vadd.f32 %v4955, %v4959
        %v4969 = vmax.f32 %v4961, 0.0
        %v4970 = vmax.f32 %v4962, 0.0
        %v4971 = vmax.f32 %v4963, 0.0
        %v4972 = vmax.f32 %v4964, 0.0
        %v4973 = vmax.f32 %v4965, 0.0
        %v4974 = vmax.f32 %v4966, 0.0
        %v4975 = vmax.f32 %v4967, 0.0
        %v4976 = vmax.f32 %v4968, 0.0
        %4978 = vset.pattern.permute.xlu0 0
        %4979 = vperm.xlu0 %4978, %v4882
        %v4980 = vpop.permute.xlu0 %4979
        %v4982 = vmul.f32 %v4980, %v4969
        %v4983 = vmul.f32 %v4980, %v4970
        %v4984 = vmul.f32 %v4980, %v4971
        %v4985 = vmul.f32 %v4980, %v4972
        %v4986 = vmul.f32 %v4980, %v4973
        %v4987 = vmul.f32 %v4980, %v4974
        %v4988 = vmul.f32 %v4980, %v4975
        %v4989 = vmul.f32 %v4980, %v4976
        %v4990 = vrot.slane %v4982, 4
        %v4991 = vadd.f32 %v4982, %v4990
        %v4992 = vrot.slane %v4991, 2
        %v4993 = vadd.f32 %v4991, %v4992
        %v4994 = vrot.slane %v4993, 1
        %v4995 = vadd.f32 %v4993, %v4994
        %v4996 = vrot.slane %v4983, 4
        %v4997 = vadd.f32 %v4983, %v4996
        %v4998 = vrot.slane %v4997, 2
        %v4999 = vadd.f32 %v4997, %v4998
        %v5000 = vrot.slane %v4999, 1
        %v5001 = vadd.f32 %v4999, %v5000
        %v5002 = vrot.slane %v4984, 4
        %v5003 = vadd.f32 %v4984, %v5002
        %v5004 = vrot.slane %v5003, 2
        %v5005 = vadd.f32 %v5003, %v5004
        %v5006 = vrot.slane %v5005, 1
        %v5007 = vadd.f32 %v5005, %v5006
        %v5008 = vrot.slane %v4985, 4
        %v5009 = vadd.f32 %v4985, %v5008
        %v5010 = vrot.slane %v5009, 2
        %v5011 = vadd.f32 %v5009, %v5010
        %v5012 = vrot.slane %v5011, 1
        %v5013 = vadd.f32 %v5011, %v5012
        %v5014 = vrot.slane %v4986, 4
        %v5015 = vadd.f32 %v4986, %v5014
        %v5016 = vrot.slane %v5015, 2
        %v5017 = vadd.f32 %v5015, %v5016
        %v5018 = vrot.slane %v5017, 1
        %v5019 = vadd.f32 %v5017, %v5018
        %v5020 = vrot.slane %v4987, 4
        %v5021 = vadd.f32 %v4987, %v5020
        %v5022 = vrot.slane %v5021, 2
        %v5023 = vadd.f32 %v5021, %v5022
        %v5024 = vrot.slane %v5023, 1
        %v5025 = vadd.f32 %v5023, %v5024
        %v5026 = vrot.slane %v4988, 4
        %v5027 = vadd.f32 %v4988, %v5026
        %v5028 = vrot.slane %v5027, 2
        %v5029 = vadd.f32 %v5027, %v5028
        %v5030 = vrot.slane %v5029, 1
        %v5031 = vadd.f32 %v5029, %v5030
        %v5032 = vrot.slane %v4989, 4
        %v5033 = vadd.f32 %v4989, %v5032
        %v5034 = vrot.slane %v5033, 2
        %v5035 = vadd.f32 %v5033, %v5034
        %v5036 = vrot.slane %v5035, 1
        %v5037 = vadd.f32 %v5035, %v5036
        %v5038 = vadd.f32 %v4872, %v4995
        %v5039 = vadd.f32 %v4873, %v5001
        %v5040 = vadd.f32 %v4874, %v5007
        %v5041 = vadd.f32 %v4875, %v5013
        %v5042 = vadd.f32 %v4876, %v5019
        %v5043 = vadd.f32 %v4877, %v5025
        %v5044 = vadd.f32 %v4878, %v5031
        %v5045 = vadd.f32 %v4879, %v5037
        %v5046 = vld [vmem:[%s1 + $0xe0] sm:$0xff]
        %v5047 = vld [vmem:[%s2 + $0xe0] sm:$0xff]
        %v5048 = vld [vmem:[%s3 + $0xe0] sm:$0xff]
        %5050 = vset.pattern.permute.xlu0 0
        %5051 = vperm.xlu0 %5050, %v5046
        %v5052 = vpop.permute.xlu0 %5051
        %v5054 = vmul.f32 %v5052, %v246
        %v5055 = vmul.f32 %v5052, %v250
        %v5056 = vmul.f32 %v5052, %v254
        %v5057 = vmul.f32 %v5052, %v258
        %v5058 = vmul.f32 %v5052, %v262
        %v5059 = vmul.f32 %v5052, %v266
        %v5060 = vmul.f32 %v5052, %v270
        %v5061 = vmul.f32 %v5052, %v274
        %5062 = vset.pattern.permute.xlu0 1
        %5063 = vperm.xlu0 %5062, %v5046
        %v5064 = vpop.permute.xlu0 %5063
        %v5066 = vmul.f32 %v5064, %v299
        %v5067 = vmul.f32 %v5064, %v303
        %v5068 = vmul.f32 %v5064, %v307
        %v5069 = vmul.f32 %v5064, %v311
        %v5070 = vmul.f32 %v5064, %v315
        %v5071 = vmul.f32 %v5064, %v319
        %v5072 = vmul.f32 %v5064, %v323
        %v5073 = vmul.f32 %v5064, %v327
        %v5074 = vadd.f32 %v5054, %v5066
        %v5075 = vadd.f32 %v5055, %v5067
        %v5076 = vadd.f32 %v5056, %v5068
        %v5077 = vadd.f32 %v5057, %v5069
        %v5078 = vadd.f32 %v5058, %v5070
        %v5079 = vadd.f32 %v5059, %v5071
        %v5080 = vadd.f32 %v5060, %v5072
        %v5081 = vadd.f32 %v5061, %v5073
        %5082 = vset.pattern.permute.xlu0 2
        %5083 = vperm.xlu0 %5082, %v5046
        %v5084 = vpop.permute.xlu0 %5083
        %v5086 = vmul.f32 %v5084, %v360
        %v5087 = vmul.f32 %v5084, %v364
        %v5088 = vmul.f32 %v5084, %v368
        %v5089 = vmul.f32 %v5084, %v372
        %v5090 = vmul.f32 %v5084, %v376
        %v5091 = vmul.f32 %v5084, %v380
        %v5092 = vmul.f32 %v5084, %v384
        %v5093 = vmul.f32 %v5084, %v388
        %v5094 = vadd.f32 %v5074, %v5086
        %v5095 = vadd.f32 %v5075, %v5087
        %v5096 = vadd.f32 %v5076, %v5088
        %v5097 = vadd.f32 %v5077, %v5089
        %v5098 = vadd.f32 %v5078, %v5090
        %v5099 = vadd.f32 %v5079, %v5091
        %v5100 = vadd.f32 %v5080, %v5092
        %v5101 = vadd.f32 %v5081, %v5093
        %5102 = vset.pattern.permute.xlu0 3
        %5103 = vperm.xlu0 %5102, %v5046
        %v5104 = vpop.permute.xlu0 %5103
        %v5106 = vmul.f32 %v5104, %v421
        %v5107 = vmul.f32 %v5104, %v425
        %v5108 = vmul.f32 %v5104, %v429
        %v5109 = vmul.f32 %v5104, %v433
        %v5110 = vmul.f32 %v5104, %v437
        %v5111 = vmul.f32 %v5104, %v441
        %v5112 = vmul.f32 %v5104, %v445
        %v5113 = vmul.f32 %v5104, %v449
        %v5114 = vadd.f32 %v5094, %v5106
        %v5115 = vadd.f32 %v5095, %v5107
        %v5116 = vadd.f32 %v5096, %v5108
        %v5117 = vadd.f32 %v5097, %v5109
        %v5118 = vadd.f32 %v5098, %v5110
        %v5119 = vadd.f32 %v5099, %v5111
        %v5120 = vadd.f32 %v5100, %v5112
        %v5121 = vadd.f32 %v5101, %v5113
        %5123 = vset.pattern.permute.xlu0 0
        %5124 = vperm.xlu0 %5123, %v5047
        %v5125 = vpop.permute.xlu0 %5124
        %v5127 = vadd.f32 %v5114, %v5125
        %v5128 = vadd.f32 %v5115, %v5125
        %v5129 = vadd.f32 %v5116, %v5125
        %v5130 = vadd.f32 %v5117, %v5125
        %v5131 = vadd.f32 %v5118, %v5125
        %v5132 = vadd.f32 %v5119, %v5125
        %v5133 = vadd.f32 %v5120, %v5125
        %v5134 = vadd.f32 %v5121, %v5125
        %v5135 = vmax.f32 %v5127, 0.0
        %v5136 = vmax.f32 %v5128, 0.0
        %v5137 = vmax.f32 %v5129, 0.0
        %v5138 = vmax.f32 %v5130, 0.0
        %v5139 = vmax.f32 %v5131, 0.0
        %v5140 = vmax.f32 %v5132, 0.0
        %v5141 = vmax.f32 %v5133, 0.0
        %v5142 = vmax.f32 %v5134, 0.0
        %5144 = vset.pattern.permute.xlu0 0
        %5145 = vperm.xlu0 %5144, %v5048
        %v5146 = vpop.permute.xlu0 %5145
        %v5148 = vmul.f32 %v5146, %v5135
        %v5149 = vmul.f32 %v5146, %v5136
        %v5150 = vmul.f32 %v5146, %v5137
        %v5151 = vmul.f32 %v5146, %v5138
        %v5152 = vmul.f32 %v5146, %v5139
        %v5153 = vmul.f32 %v5146, %v5140
        %v5154 = vmul.f32 %v5146, %v5141
        %v5155 = vmul.f32 %v5146, %v5142
        %v5156 = vrot.slane %v5148, 4
        %v5157 = vadd.f32 %v5148, %v5156
        %v5158 = vrot.slane %v5157, 2
        %v5159 = vadd.f32 %v5157, %v5158
        %v5160 = vrot.slane %v5159, 1
        %v5161 = vadd.f32 %v5159, %v5160
        %v5162 = vrot.slane %v5149, 4
        %v5163 = vadd.f32 %v5149, %v5162
        %v5164 = vrot.slane %v5163, 2
        %v5165 = vadd.f32 %v5163, %v5164
        %v5166 = vrot.slane %v5165, 1
        %v5167 = vadd.f32 %v5165, %v5166
        %v5168 = vrot.slane %v5150, 4
        %v5169 = vadd.f32 %v5150, %v5168
        %v5170 = vrot.slane %v5169, 2
        %v5171 = vadd.f32 %v5169, %v5170
        %v5172 = vrot.slane %v5171, 1
        %v5173 = vadd.f32 %v5171, %v5172
        %v5174 = vrot.slane %v5151, 4
        %v5175 = vadd.f32 %v5151, %v5174
        %v5176 = vrot.slane %v5175, 2
        %v5177 = vadd.f32 %v5175, %v5176
        %v5178 = vrot.slane %v5177, 1
        %v5179 = vadd.f32 %v5177, %v5178
        %v5180 = vrot.slane %v5152, 4
        %v5181 = vadd.f32 %v5152, %v5180
        %v5182 = vrot.slane %v5181, 2
        %v5183 = vadd.f32 %v5181, %v5182
        %v5184 = vrot.slane %v5183, 1
        %v5185 = vadd.f32 %v5183, %v5184
        %v5186 = vrot.slane %v5153, 4
        %v5187 = vadd.f32 %v5153, %v5186
        %v5188 = vrot.slane %v5187, 2
        %v5189 = vadd.f32 %v5187, %v5188
        %v5190 = vrot.slane %v5189, 1
        %v5191 = vadd.f32 %v5189, %v5190
        %v5192 = vrot.slane %v5154, 4
        %v5193 = vadd.f32 %v5154, %v5192
        %v5194 = vrot.slane %v5193, 2
        %v5195 = vadd.f32 %v5193, %v5194
        %v5196 = vrot.slane %v5195, 1
        %v5197 = vadd.f32 %v5195, %v5196
        %v5198 = vrot.slane %v5155, 4
        %v5199 = vadd.f32 %v5155, %v5198
        %v5200 = vrot.slane %v5199, 2
        %v5201 = vadd.f32 %v5199, %v5200
        %v5202 = vrot.slane %v5201, 1
        %v5203 = vadd.f32 %v5201, %v5202
        %v5204 = vadd.f32 %v5038, %v5161
        %v5205 = vadd.f32 %v5039, %v5167
        %v5206 = vadd.f32 %v5040, %v5173
        %v5207 = vadd.f32 %v5041, %v5179
        %v5208 = vadd.f32 %v5042, %v5185
        %v5209 = vadd.f32 %v5043, %v5191
        %v5210 = vadd.f32 %v5044, %v5197
        %v5211 = vadd.f32 %v5045, %v5203
        %v5212 = vld [vmem:[%s1 + $0xe8] sm:$0xff]
        %v5213 = vld [vmem:[%s2 + $0xe8] sm:$0xff]
        %v5214 = vld [vmem:[%s3 + $0xe8] sm:$0xff]
        %5216 = vset.pattern.permute.xlu0 0
        %5217 = vperm.xlu0 %5216, %v5212
        %v5218 = vpop.permute.xlu0 %5217
        %v5220 = vmul.f32 %v5218, %v246
        %v5221 = vmul.f32 %v5218, %v250
        %v5222 = vmul.f32 %v5218, %v254
        %v5223 = vmul.f32 %v5218, %v258
        %v5224 = vmul.f32 %v5218, %v262
        %v5225 = vmul.f32 %v5218, %v266
        %v5226 = vmul.f32 %v5218, %v270
        %v5227 = vmul.f32 %v5218, %v274
        %5228 = vset.pattern.permute.xlu0 1
        %5229 = vperm.xlu0 %5228, %v5212
        %v5230 = vpop.permute.xlu0 %5229
        %v5232 = vmul.f32 %v5230, %v299
        %v5233 = vmul.f32 %v5230, %v303
        %v5234 = vmul.f32 %v5230, %v307
        %v5235 = vmul.f32 %v5230, %v311
        %v5236 = vmul.f32 %v5230, %v315
        %v5237 = vmul.f32 %v5230, %v319
        %v5238 = vmul.f32 %v5230, %v323
        %v5239 = vmul.f32 %v5230, %v327
        %v5240 = vadd.f32 %v5220, %v5232
        %v5241 = vadd.f32 %v5221, %v5233
        %v5242 = vadd.f32 %v5222, %v5234
        %v5243 = vadd.f32 %v5223, %v5235
        %v5244 = vadd.f32 %v5224, %v5236
        %v5245 = vadd.f32 %v5225, %v5237
        %v5246 = vadd.f32 %v5226, %v5238
        %v5247 = vadd.f32 %v5227, %v5239
        %5248 = vset.pattern.permute.xlu0 2
        %5249 = vperm.xlu0 %5248, %v5212
        %v5250 = vpop.permute.xlu0 %5249
        %v5252 = vmul.f32 %v5250, %v360
        %v5253 = vmul.f32 %v5250, %v364
        %v5254 = vmul.f32 %v5250, %v368
        %v5255 = vmul.f32 %v5250, %v372
        %v5256 = vmul.f32 %v5250, %v376
        %v5257 = vmul.f32 %v5250, %v380
        %v5258 = vmul.f32 %v5250, %v384
        %v5259 = vmul.f32 %v5250, %v388
        %v5260 = vadd.f32 %v5240, %v5252
        %v5261 = vadd.f32 %v5241, %v5253
        %v5262 = vadd.f32 %v5242, %v5254
        %v5263 = vadd.f32 %v5243, %v5255
        %v5264 = vadd.f32 %v5244, %v5256
        %v5265 = vadd.f32 %v5245, %v5257
        %v5266 = vadd.f32 %v5246, %v5258
        %v5267 = vadd.f32 %v5247, %v5259
        %5268 = vset.pattern.permute.xlu0 3
        %5269 = vperm.xlu0 %5268, %v5212
        %v5270 = vpop.permute.xlu0 %5269
        %v5272 = vmul.f32 %v5270, %v421
        %v5273 = vmul.f32 %v5270, %v425
        %v5274 = vmul.f32 %v5270, %v429
        %v5275 = vmul.f32 %v5270, %v433
        %v5276 = vmul.f32 %v5270, %v437
        %v5277 = vmul.f32 %v5270, %v441
        %v5278 = vmul.f32 %v5270, %v445
        %v5279 = vmul.f32 %v5270, %v449
        %v5280 = vadd.f32 %v5260, %v5272
        %v5281 = vadd.f32 %v5261, %v5273
        %v5282 = vadd.f32 %v5262, %v5274
        %v5283 = vadd.f32 %v5263, %v5275
        %v5284 = vadd.f32 %v5264, %v5276
        %v5285 = vadd.f32 %v5265, %v5277
        %v5286 = vadd.f32 %v5266, %v5278
        %v5287 = vadd.f32 %v5267, %v5279
        %5289 = vset.pattern.permute.xlu0 0
        %5290 = vperm.xlu0 %5289, %v5213
        %v5291 = vpop.permute.xlu0 %5290
        %v5293 = vadd.f32 %v5280, %v5291
        %v5294 = vadd.f32 %v5281, %v5291
        %v5295 = vadd.f32 %v5282, %v5291
        %v5296 = vadd.f32 %v5283, %v5291
        %v5297 = vadd.f32 %v5284, %v5291
        %v5298 = vadd.f32 %v5285, %v5291
        %v5299 = vadd.f32 %v5286, %v5291
        %v5300 = vadd.f32 %v5287, %v5291
        %v5301 = vmax.f32 %v5293, 0.0
        %v5302 = vmax.f32 %v5294, 0.0
        %v5303 = vmax.f32 %v5295, 0.0
        %v5304 = vmax.f32 %v5296, 0.0
        %v5305 = vmax.f32 %v5297, 0.0
        %v5306 = vmax.f32 %v5298, 0.0
        %v5307 = vmax.f32 %v5299, 0.0
        %v5308 = vmax.f32 %v5300, 0.0
        %5310 = vset.pattern.permute.xlu0 0
        %5311 = vperm.xlu0 %5310, %v5214
        %v5312 = vpop.permute.xlu0 %5311
        %v5314 = vmul.f32 %v5312, %v5301
        %v5315 = vmul.f32 %v5312, %v5302
        %v5316 = vmul.f32 %v5312, %v5303
        %v5317 = vmul.f32 %v5312, %v5304
        %v5318 = vmul.f32 %v5312, %v5305
        %v5319 = vmul.f32 %v5312, %v5306
        %v5320 = vmul.f32 %v5312, %v5307
        %v5321 = vmul.f32 %v5312, %v5308
        %v5322 = vrot.slane %v5314, 4
        %v5323 = vadd.f32 %v5314, %v5322
        %v5324 = vrot.slane %v5323, 2
        %v5325 = vadd.f32 %v5323, %v5324
        %v5326 = vrot.slane %v5325, 1
        %v5327 = vadd.f32 %v5325, %v5326
        %v5328 = vrot.slane %v5315, 4
        %v5329 = vadd.f32 %v5315, %v5328
        %v5330 = vrot.slane %v5329, 2
        %v5331 = vadd.f32 %v5329, %v5330
        %v5332 = vrot.slane %v5331, 1
        %v5333 = vadd.f32 %v5331, %v5332
        %v5334 = vrot.slane %v5316, 4
        %v5335 = vadd.f32 %v5316, %v5334
        %v5336 = vrot.slane %v5335, 2
        %v5337 = vadd.f32 %v5335, %v5336
        %v5338 = vrot.slane %v5337, 1
        %v5339 = vadd.f32 %v5337, %v5338
        %v5340 = vrot.slane %v5317, 4
        %v5341 = vadd.f32 %v5317, %v5340
        %v5342 = vrot.slane %v5341, 2
        %v5343 = vadd.f32 %v5341, %v5342
        %v5344 = vrot.slane %v5343, 1
        %v5345 = vadd.f32 %v5343, %v5344
        %v5346 = vrot.slane %v5318, 4
        %v5347 = vadd.f32 %v5318, %v5346
        %v5348 = vrot.slane %v5347, 2
        %v5349 = vadd.f32 %v5347, %v5348
        %v5350 = vrot.slane %v5349, 1
        %v5351 = vadd.f32 %v5349, %v5350
        %v5352 = vrot.slane %v5319, 4
        %v5353 = vadd.f32 %v5319, %v5352
        %v5354 = vrot.slane %v5353, 2
        %v5355 = vadd.f32 %v5353, %v5354
        %v5356 = vrot.slane %v5355, 1
        %v5357 = vadd.f32 %v5355, %v5356
        %v5358 = vrot.slane %v5320, 4
        %v5359 = vadd.f32 %v5320, %v5358
        %v5360 = vrot.slane %v5359, 2
        %v5361 = vadd.f32 %v5359, %v5360
        %v5362 = vrot.slane %v5361, 1
        %v5363 = vadd.f32 %v5361, %v5362
        %v5364 = vrot.slane %v5321, 4
        %v5365 = vadd.f32 %v5321, %v5364
        %v5366 = vrot.slane %v5365, 2
        %v5367 = vadd.f32 %v5365, %v5366
        %v5368 = vrot.slane %v5367, 1
        %v5369 = vadd.f32 %v5367, %v5368
        %v5370 = vadd.f32 %v5204, %v5327
        %v5371 = vadd.f32 %v5205, %v5333
        %v5372 = vadd.f32 %v5206, %v5339
        %v5373 = vadd.f32 %v5207, %v5345
        %v5374 = vadd.f32 %v5208, %v5351
        %v5375 = vadd.f32 %v5209, %v5357
        %v5376 = vadd.f32 %v5210, %v5363
        %v5377 = vadd.f32 %v5211, %v5369
        %v5378 = vld [vmem:[%s1 + $0xf0] sm:$0xff]
        %v5379 = vld [vmem:[%s2 + $0xf0] sm:$0xff]
        %v5380 = vld [vmem:[%s3 + $0xf0] sm:$0xff]
        %5382 = vset.pattern.permute.xlu0 0
        %5383 = vperm.xlu0 %5382, %v5378
        %v5384 = vpop.permute.xlu0 %5383
        %v5386 = vmul.f32 %v5384, %v246
        %v5387 = vmul.f32 %v5384, %v250
        %v5388 = vmul.f32 %v5384, %v254
        %v5389 = vmul.f32 %v5384, %v258
        %v5390 = vmul.f32 %v5384, %v262
        %v5391 = vmul.f32 %v5384, %v266
        %v5392 = vmul.f32 %v5384, %v270
        %v5393 = vmul.f32 %v5384, %v274
        %5394 = vset.pattern.permute.xlu0 1
        %5395 = vperm.xlu0 %5394, %v5378
        %v5396 = vpop.permute.xlu0 %5395
        %v5398 = vmul.f32 %v5396, %v299
        %v5399 = vmul.f32 %v5396, %v303
        %v5400 = vmul.f32 %v5396, %v307
        %v5401 = vmul.f32 %v5396, %v311
        %v5402 = vmul.f32 %v5396, %v315
        %v5403 = vmul.f32 %v5396, %v319
        %v5404 = vmul.f32 %v5396, %v323
        %v5405 = vmul.f32 %v5396, %v327
        %v5406 = vadd.f32 %v5386, %v5398
        %v5407 = vadd.f32 %v5387, %v5399
        %v5408 = vadd.f32 %v5388, %v5400
        %v5409 = vadd.f32 %v5389, %v5401
        %v5410 = vadd.f32 %v5390, %v5402
        %v5411 = vadd.f32 %v5391, %v5403
        %v5412 = vadd.f32 %v5392, %v5404
        %v5413 = vadd.f32 %v5393, %v5405
        %5414 = vset.pattern.permute.xlu0 2
        %5415 = vperm.xlu0 %5414, %v5378
        %v5416 = vpop.permute.xlu0 %5415
        %v5418 = vmul.f32 %v5416, %v360
        %v5419 = vmul.f32 %v5416, %v364
        %v5420 = vmul.f32 %v5416, %v368
        %v5421 = vmul.f32 %v5416, %v372
        %v5422 = vmul.f32 %v5416, %v376
        %v5423 = vmul.f32 %v5416, %v380
        %v5424 = vmul.f32 %v5416, %v384
        %v5425 = vmul.f32 %v5416, %v388
        %v5426 = vadd.f32 %v5406, %v5418
        %v5427 = vadd.f32 %v5407, %v5419
        %v5428 = vadd.f32 %v5408, %v5420
        %v5429 = vadd.f32 %v5409, %v5421
        %v5430 = vadd.f32 %v5410, %v5422
        %v5431 = vadd.f32 %v5411, %v5423
        %v5432 = vadd.f32 %v5412, %v5424
        %v5433 = vadd.f32 %v5413, %v5425
        %5434 = vset.pattern.permute.xlu0 3
        %5435 = vperm.xlu0 %5434, %v5378
        %v5436 = vpop.permute.xlu0 %5435
        %v5438 = vmul.f32 %v5436, %v421
        %v5439 = vmul.f32 %v5436, %v425
        %v5440 = vmul.f32 %v5436, %v429
        %v5441 = vmul.f32 %v5436, %v433
        %v5442 = vmul.f32 %v5436, %v437
        %v5443 = vmul.f32 %v5436, %v441
        %v5444 = vmul.f32 %v5436, %v445
        %v5445 = vmul.f32 %v5436, %v449
        %v5446 = vadd.f32 %v5426, %v5438
        %v5447 = vadd.f32 %v5427, %v5439
        %v5448 = vadd.f32 %v5428, %v5440
        %v5449 = vadd.f32 %v5429, %v5441
        %v5450 = vadd.f32 %v5430, %v5442
        %v5451 = vadd.f32 %v5431, %v5443
        %v5452 = vadd.f32 %v5432, %v5444
        %v5453 = vadd.f32 %v5433, %v5445
        %5455 = vset.pattern.permute.xlu0 0
        %5456 = vperm.xlu0 %5455, %v5379
        %v5457 = vpop.permute.xlu0 %5456
        %v5459 = vadd.f32 %v5446, %v5457
        %v5460 = vadd.f32 %v5447, %v5457
        %v5461 = vadd.f32 %v5448, %v5457
        %v5462 = vadd.f32 %v5449, %v5457
        %v5463 = vadd.f32 %v5450, %v5457
        %v5464 = vadd.f32 %v5451, %v5457
        %v5465 = vadd.f32 %v5452, %v5457
        %v5466 = vadd.f32 %v5453, %v5457
        %v5467 = vmax.f32 %v5459, 0.0
        %v5468 = vmax.f32 %v5460, 0.0
        %v5469 = vmax.f32 %v5461, 0.0
        %v5470 = vmax.f32 %v5462, 0.0
        %v5471 = vmax.f32 %v5463, 0.0
        %v5472 = vmax.f32 %v5464, 0.0
        %v5473 = vmax.f32 %v5465, 0.0
        %v5474 = vmax.f32 %v5466, 0.0
        %5476 = vset.pattern.permute.xlu0 0
        %5477 = vperm.xlu0 %5476, %v5380
        %v5478 = vpop.permute.xlu0 %5477
        %v5480 = vmul.f32 %v5478, %v5467
        %v5481 = vmul.f32 %v5478, %v5468
        %v5482 = vmul.f32 %v5478, %v5469
        %v5483 = vmul.f32 %v5478, %v5470
        %v5484 = vmul.f32 %v5478, %v5471
        %v5485 = vmul.f32 %v5478, %v5472
        %v5486 = vmul.f32 %v5478, %v5473
        %v5487 = vmul.f32 %v5478, %v5474
        %v5488 = vrot.slane %v5480, 4
        %v5489 = vadd.f32 %v5480, %v5488
        %v5490 = vrot.slane %v5489, 2
        %v5491 = vadd.f32 %v5489, %v5490
        %v5492 = vrot.slane %v5491, 1
        %v5493 = vadd.f32 %v5491, %v5492
        %v5494 = vrot.slane %v5481, 4
        %v5495 = vadd.f32 %v5481, %v5494
        %v5496 = vrot.slane %v5495, 2
        %v5497 = vadd.f32 %v5495, %v5496
        %v5498 = vrot.slane %v5497, 1
        %v5499 = vadd.f32 %v5497, %v5498
        %v5500 = vrot.slane %v5482, 4
        %v5501 = vadd.f32 %v5482, %v5500
        %v5502 = vrot.slane %v5501, 2
        %v5503 = vadd.f32 %v5501, %v5502
        %v5504 = vrot.slane %v5503, 1
        %v5505 = vadd.f32 %v5503, %v5504
        %v5506 = vrot.slane %v5483, 4
        %v5507 = vadd.f32 %v5483, %v5506
        %v5508 = vrot.slane %v5507, 2
        %v5509 = vadd.f32 %v5507, %v5508
        %v5510 = vrot.slane %v5509, 1
        %v5511 = vadd.f32 %v5509, %v5510
        %v5512 = vrot.slane %v5484, 4
        %v5513 = vadd.f32 %v5484, %v5512
        %v5514 = vrot.slane %v5513, 2
        %v5515 = vadd.f32 %v5513, %v5514
        %v5516 = vrot.slane %v5515, 1
        %v5517 = vadd.f32 %v5515, %v5516
        %v5518 = vrot.slane %v5485, 4
        %v5519 = vadd.f32 %v5485, %v5518
        %v5520 = vrot.slane %v5519, 2
        %v5521 = vadd.f32 %v5519, %v5520
        %v5522 = vrot.slane %v5521, 1
        %v5523 = vadd.f32 %v5521, %v5522
        %v5524 = vrot.slane %v5486, 4
        %v5525 = vadd.f32 %v5486, %v5524
        %v5526 = vrot.slane %v5525, 2
        %v5527 = vadd.f32 %v5525, %v5526
        %v5528 = vrot.slane %v5527, 1
        %v5529 = vadd.f32 %v5527, %v5528
        %v5530 = vrot.slane %v5487, 4
        %v5531 = vadd.f32 %v5487, %v5530
        %v5532 = vrot.slane %v5531, 2
        %v5533 = vadd.f32 %v5531, %v5532
        %v5534 = vrot.slane %v5533, 1
        %v5535 = vadd.f32 %v5533, %v5534
        %v5536 = vadd.f32 %v5370, %v5493
        %v5537 = vadd.f32 %v5371, %v5499
        %v5538 = vadd.f32 %v5372, %v5505
        %v5539 = vadd.f32 %v5373, %v5511
        %v5540 = vadd.f32 %v5374, %v5517
        %v5541 = vadd.f32 %v5375, %v5523
        %v5542 = vadd.f32 %v5376, %v5529
        %v5543 = vadd.f32 %v5377, %v5535
        %v5544 = vld [vmem:[%s1 + $0xf8] sm:$0xff]
        %v5545 = vld [vmem:[%s2 + $0xf8] sm:$0xff]
        %v5546 = vld [vmem:[%s3 + $0xf8] sm:$0xff]
        %5548 = vset.pattern.permute.xlu0 0
        %5549 = vperm.xlu0 %5548, %v5544
        %v5550 = vpop.permute.xlu0 %5549
        %v5552 = vmul.f32 %v5550, %v246
        %v5553 = vmul.f32 %v5550, %v250
        %v5554 = vmul.f32 %v5550, %v254
        %v5555 = vmul.f32 %v5550, %v258
        %v5556 = vmul.f32 %v5550, %v262
        %v5557 = vmul.f32 %v5550, %v266
        %v5558 = vmul.f32 %v5550, %v270
        %v5559 = vmul.f32 %v5550, %v274
        %5560 = vset.pattern.permute.xlu0 1
        %5561 = vperm.xlu0 %5560, %v5544
        %v5562 = vpop.permute.xlu0 %5561
        %v5564 = vmul.f32 %v5562, %v299
        %v5565 = vmul.f32 %v5562, %v303
        %v5566 = vmul.f32 %v5562, %v307
        %v5567 = vmul.f32 %v5562, %v311
        %v5568 = vmul.f32 %v5562, %v315
        %v5569 = vmul.f32 %v5562, %v319
        %v5570 = vmul.f32 %v5562, %v323
        %v5571 = vmul.f32 %v5562, %v327
        %v5572 = vadd.f32 %v5552, %v5564
        %v5573 = vadd.f32 %v5553, %v5565
        %v5574 = vadd.f32 %v5554, %v5566
        %v5575 = vadd.f32 %v5555, %v5567
        %v5576 = vadd.f32 %v5556, %v5568
        %v5577 = vadd.f32 %v5557, %v5569
        %v5578 = vadd.f32 %v5558, %v5570
        %v5579 = vadd.f32 %v5559, %v5571
        %5580 = vset.pattern.permute.xlu0 2
        %5581 = vperm.xlu0 %5580, %v5544
        %v5582 = vpop.permute.xlu0 %5581
        %v5584 = vmul.f32 %v5582, %v360
        %v5585 = vmul.f32 %v5582, %v364
        %v5586 = vmul.f32 %v5582, %v368
        %v5587 = vmul.f32 %v5582, %v372
        %v5588 = vmul.f32 %v5582, %v376
        %v5589 = vmul.f32 %v5582, %v380
        %v5590 = vmul.f32 %v5582, %v384
        %v5591 = vmul.f32 %v5582, %v388
        %v5592 = vadd.f32 %v5572, %v5584
        %v5593 = vadd.f32 %v5573, %v5585
        %v5594 = vadd.f32 %v5574, %v5586
        %v5595 = vadd.f32 %v5575, %v5587
        %v5596 = vadd.f32 %v5576, %v5588
        %v5597 = vadd.f32 %v5577, %v5589
        %v5598 = vadd.f32 %v5578, %v5590
        %v5599 = vadd.f32 %v5579, %v5591
        %5600 = vset.pattern.permute.xlu0 3
        %5601 = vperm.xlu0 %5600, %v5544
        %v5602 = vpop.permute.xlu0 %5601
        %v5604 = vmul.f32 %v5602, %v421
        %v5605 = vmul.f32 %v5602, %v425
        %v5606 = vmul.f32 %v5602, %v429
        %v5607 = vmul.f32 %v5602, %v433
        %v5608 = vmul.f32 %v5602, %v437
        %v5609 = vmul.f32 %v5602, %v441
        %v5610 = vmul.f32 %v5602, %v445
        %v5611 = vmul.f32 %v5602, %v449
        %v5612 = vadd.f32 %v5592, %v5604
        %v5613 = vadd.f32 %v5593, %v5605
        %v5614 = vadd.f32 %v5594, %v5606
        %v5615 = vadd.f32 %v5595, %v5607
        %v5616 = vadd.f32 %v5596, %v5608
        %v5617 = vadd.f32 %v5597, %v5609
        %v5618 = vadd.f32 %v5598, %v5610
        %v5619 = vadd.f32 %v5599, %v5611
        %5621 = vset.pattern.permute.xlu0 0
        %5622 = vperm.xlu0 %5621, %v5545
        %v5623 = vpop.permute.xlu0 %5622
        %v5625 = vadd.f32 %v5612, %v5623
        %v5626 = vadd.f32 %v5613, %v5623
        %v5627 = vadd.f32 %v5614, %v5623
        %v5628 = vadd.f32 %v5615, %v5623
        %v5629 = vadd.f32 %v5616, %v5623
        %v5630 = vadd.f32 %v5617, %v5623
        %v5631 = vadd.f32 %v5618, %v5623
        %v5632 = vadd.f32 %v5619, %v5623
        %v5633 = vmax.f32 %v5625, 0.0
        %v5634 = vmax.f32 %v5626, 0.0
        %v5635 = vmax.f32 %v5627, 0.0
        %v5636 = vmax.f32 %v5628, 0.0
        %v5637 = vmax.f32 %v5629, 0.0
        %v5638 = vmax.f32 %v5630, 0.0
        %v5639 = vmax.f32 %v5631, 0.0
        %v5640 = vmax.f32 %v5632, 0.0
        %5642 = vset.pattern.permute.xlu0 0
        %5643 = vperm.xlu0 %5642, %v5546
        %v5644 = vpop.permute.xlu0 %5643
        %v5646 = vmul.f32 %v5644, %v5633
        %v5647 = vmul.f32 %v5644, %v5634
        %v5648 = vmul.f32 %v5644, %v5635
        %v5649 = vmul.f32 %v5644, %v5636
        %v5650 = vmul.f32 %v5644, %v5637
        %v5651 = vmul.f32 %v5644, %v5638
        %v5652 = vmul.f32 %v5644, %v5639
        %v5653 = vmul.f32 %v5644, %v5640
        %v5654 = vrot.slane %v5646, 4
        %v5655 = vadd.f32 %v5646, %v5654
        %v5656 = vrot.slane %v5655, 2
        %v5657 = vadd.f32 %v5655, %v5656
        %v5658 = vrot.slane %v5657, 1
        %v5659 = vadd.f32 %v5657, %v5658
        %v5660 = vrot.slane %v5647, 4
        %v5661 = vadd.f32 %v5647, %v5660
        %v5662 = vrot.slane %v5661, 2
        %v5663 = vadd.f32 %v5661, %v5662
        %v5664 = vrot.slane %v5663, 1
        %v5665 = vadd.f32 %v5663, %v5664
        %v5666 = vrot.slane %v5648, 4
        %v5667 = vadd.f32 %v5648, %v5666
        %v5668 = vrot.slane %v5667, 2
        %v5669 = vadd.f32 %v5667, %v5668
        %v5670 = vrot.slane %v5669, 1
        %v5671 = vadd.f32 %v5669, %v5670
        %v5672 = vrot.slane %v5649, 4
        %v5673 = vadd.f32 %v5649, %v5672
        %v5674 = vrot.slane %v5673, 2
        %v5675 = vadd.f32 %v5673, %v5674
        %v5676 = vrot.slane %v5675, 1
        %v5677 = vadd.f32 %v5675, %v5676
        %v5678 = vrot.slane %v5650, 4
        %v5679 = vadd.f32 %v5650, %v5678
        %v5680 = vrot.slane %v5679, 2
        %v5681 = vadd.f32 %v5679, %v5680
        %v5682 = vrot.slane %v5681, 1
        %v5683 = vadd.f32 %v5681, %v5682
        %v5684 = vrot.slane %v5651, 4
        %v5685 = vadd.f32 %v5651, %v5684
        %v5686 = vrot.slane %v5685, 2
        %v5687 = vadd.f32 %v5685, %v5686
        %v5688 = vrot.slane %v5687, 1
        %v5689 = vadd.f32 %v5687, %v5688
        %v5690 = vrot.slane %v5652, 4
        %v5691 = vadd.f32 %v5652, %v5690
        %v5692 = vrot.slane %v5691, 2
        %v5693 = vadd.f32 %v5691, %v5692
        %v5694 = vrot.slane %v5693, 1
        %v5695 = vadd.f32 %v5693, %v5694
        %v5696 = vrot.slane %v5653, 4
        %v5697 = vadd.f32 %v5653, %v5696
        %v5698 = vrot.slane %v5697, 2
        %v5699 = vadd.f32 %v5697, %v5698
        %v5700 = vrot.slane %v5699, 1
        %v5701 = vadd.f32 %v5699, %v5700
        %v5702 = vadd.f32 %v5536, %v5659
        %v5703 = vadd.f32 %v5537, %v5665
        %v5704 = vadd.f32 %v5538, %v5671
        %v5705 = vadd.f32 %v5539, %v5677
        %v5706 = vadd.f32 %v5540, %v5683
        %v5707 = vadd.f32 %v5541, %v5689
        %v5708 = vadd.f32 %v5542, %v5695
        %v5709 = vadd.f32 %v5543, %v5701
        %s5710 = sld [smem:[#allocation2]]
        %v5711 = vstv %s5710
        %v5712 = vadd.f32 %v5702, %v5711
        %v5713 = vadd.f32 %v5703, %v5711
        %v5714 = vadd.f32 %v5704, %v5711
        %v5715 = vadd.f32 %v5705, %v5711
        %v5716 = vadd.f32 %v5706, %v5711
        %v5717 = vadd.f32 %v5707, %v5711
        %v5718 = vadd.f32 %v5708, %v5711
        %v5719 = vadd.f32 %v5709, %v5711
        %v5728 = vcombine.low %v5712, %v5713
        %v5729 = vcombine.low %v5714, %v5715
        %v5730 = vcombine.low %v5716, %v5717
        %v5731 = vcombine.low %v5718, %v5719
        %v5733 = vunpack.c.l.s4 1966171168
        %v5734 = vunpack.c.0.s8 %v5733
        %v5735 = vlaneseq
        %v5736 = vshrl.u32 %v5735, 7
        %v5737 = vsub.s32 %v5734, %v5736
        %v5738 = vrot.slane %v5728, %v5737
        %v5740 = vunpack.c.l.s4 1966171168
        %v5741 = vunpack.c.0.s8 %v5740
        %v5742 = vlaneseq
        %v5743 = vshrl.u32 %v5742, 7
        %v5744 = vsub.s32 %v5741, %v5743
        %v5745 = vrot.slane %v5729, %v5744
        %v5747 = vunpack.c.l.s4 1966171168
        %v5748 = vunpack.c.0.s8 %v5747
        %v5749 = vlaneseq
        %v5750 = vshrl.u32 %v5749, 7
        %v5751 = vsub.s32 %v5748, %v5750
        %v5752 = vrot.slane %v5730, %v5751
        %v5754 = vunpack.c.l.s4 1966171168
        %v5755 = vunpack.c.0.s8 %v5754
        %v5756 = vlaneseq
        %v5757 = vshrl.u32 %v5756, 7
        %v5758 = vsub.s32 %v5755, %v5757
        %v5759 = vrot.slane %v5731, %v5758
        %v5760 = vcombine.low %v5738, %v5745
        %v5761 = vcombine.low %v5752, %v5759
        %v5763 = vunpack.c.l.s4 1966171168
        %v5764 = vunpack.c.0.s8 %v5763
        %v5765 = vlaneseq
        %v5766 = vshrl.u32 %v5765, 7
        %v5767 = vsub.s32 %v5764, %v5766
        %v5768 = vrot.slane %v5760, %v5767
        %v5770 = vunpack.c.l.s4 1966171168
        %v5771 = vunpack.c.0.s8 %v5770
        %v5772 = vlaneseq
        %v5773 = vshrl.u32 %v5772, 7
        %v5774 = vsub.s32 %v5771, %v5773
        %v5775 = vrot.slane %v5761, %v5774
        %v5776 = vcombine.low %v5768, %v5775
        %5778 = vst [vmem:[%s219] sm:$0xff] %v5776
        %s5779 = sand.u32 %s138, 1
        %s5780 = scalar_lea.sflag [#allocation4], %s5779
        %s5781 = sand.u32 %s138, 1
        %s5782 = smul.addr %s5781, 8
        %s5783 = scalar_lea.vmem [#allocation3], %s5782
        // Predicated region
        $region41: #{tpu_custom_call.1} parent=39 // pred_check
          %p5784 = pneg %p148
        $region42: #{tpu_custom_call.1} parent=39 // pred_check_branch
          %5786 = sbr.rel (%p5784) target = $region44
        $region43: #{tpu_custom_call.1} parent=39 // pred_region
          %s5787 = smul.u32 8, %s20
          %s5789 = ssub.s32 128, 128
          %5790 = vsyncadd %s5780, %s5789
          %s5791 = smul.addr %s5787, 16
          %s5792 = scalar_lea.hbm %s5, %s5791
          %s5794 = sshll.u32 %s5783, 4
          %s5795 = int_to_ptr.vmem [resolvable:$true] %s5794
          %5797 = dma.vmem_to_hbm [thread:$0]  %s5795, 128, %s5792, %s5780
        $region44: #{tpu_custom_call.1} parent=39 // pred_fallthru
          _
      $region40: #{tpu_custom_call.1} parent=5 // pred_fallthru
        _
      %p5798 = scmp.le.s32.totalorder 2, %s15
      // Predicated region
      $region45: #{tpu_custom_call.1} parent=5 // pred_check
        %p5799 = pneg %p5798
      $region46: #{tpu_custom_call.1} parent=5 // pred_check_branch
        %5801 = sbr.rel (%p5799) target = $region48
      $region47: #{tpu_custom_call.1} parent=5 // pred_region
        %s5802 = ssub.s32 %s15, 2
        // Predicated region
        $region49: #{tpu_custom_call.1} parent=47 // pred_check
          %p5803 = pneg %p154
        $region50: #{tpu_custom_call.1} parent=47 // pred_check_branch
          %5805 = sbr.rel (%p5803) target = $region52
        $region51: #{tpu_custom_call.1} parent=47 // pred_region
          %s5806 = sand.u32 %s139, 1
          %s5807 = scalar_lea.sflag [#allocation4], %s5806
          %s5808 = sand.u32 %s139, 1
          %s5809 = smul.addr %s5808, 8
          %s5810 = scalar_lea.vmem [#allocation3], %s5809
          %5811 = dma.done %s5807, 128
        $region52: #{tpu_custom_call.1} parent=47 // pred_fallthru
          _
      $region48: #{tpu_custom_call.1} parent=5 // pred_fallthru
        _
    $region6: #{tpu_custom_call.1} parent=1 // loop_footer
      %s19 = sadd.s32 1, %s15
    $region7: #{tpu_custom_call.1} parent=1 // loop_footer_branch
      %14 = sbr.rel target = $region3
    $region8: #{tpu_custom_call.1} parent=1 // loop_exit
      _
    %5812 = vsyncpa [#allocation4], 1
    %s5813 = scalar_lea.sflag [#allocation4], 1
    %5814 = vsyncpa %s5813, 1

</llo_original>
